<compile_context>
chip_gen: v7x
topology: tpu7x:2x2x1
jax: 0.10.0
libtpu: 0.0.40
codegen_flags: <defaults>
</compile_context>

<pallas_src>
import functools

import jax
import jax.numpy as jnp
from jax.experimental import pallas as pl
from jax.experimental.pallas import tpu as pltpu


def _silu(y):
    # y * sigmoid(y) == y / (1 + exp(-y)); exp and approx reciprocal both run on the EUP
    # slot, keeping the epilogue off the VALU critical path.
    return y * pl.reciprocal(1.0 + jnp.exp(-y), approx=True)


# ------------------------------- fused CSP kernel -------------------------------
def _csp_kernel(x_ref, w1_ref, b1_ref, wr_ref, br_ref, w2_ref, b2_ref,
                o_ref, xp_ref, col_ref, *, h, w, half, n_res, add):
    hw = h * w
    bf16 = jnp.bfloat16

    # Zero the padded-activation scratch; the 1-pixel border stays zero for every
    # 3x3 conv of this grid step (in-kernel zero padding).  Kept unconditional:
    # with megacore grid splitting each core owns its own scratch, so gating on
    # program_id(0) == 0 would leave one core's border uninitialized.
    xp_ref[...] = jnp.zeros_like(xp_ref)

    x = x_ref[...].astype(bf16)                                   # (hw, cin) bf16

    # conv1 (1x1) + folded BN + SiLU, produced directly as the two channel chunks
    # (weights were pre-split in prepare_params, so no in-kernel lane slicing).
    a = _silu(jnp.dot(x, w1_ref[0], preferred_element_type=jnp.float32)
              + b1_ref[0])                                        # (hw, half) f32
    cur = _silu(jnp.dot(x, w1_ref[1], preferred_element_type=jnp.float32)
                + b1_ref[1])                                      # (hw, half) f32

    # conv2 accumulator: consume the would-be channel concat chunk by chunk.
    acc = jnp.dot(a.astype(bf16), w2_ref[0], preferred_element_type=jnp.float32)
    acc = acc + jnp.dot(cur.astype(bf16), w2_ref[1],
                        preferred_element_type=jnp.float32)       # (hw, out_ch) f32

    def conv3x3(v, layer):
        # v: (hw, half) f32.  3x3 conv (stride 1, pad 1) + folded BN + SiLU as a
        # single K = 9*half MXU matmul over a bf16 im2col slab kept in VMEM.
        xp_ref[1:h + 1, 1:w + 1, :] = v.reshape(h, w, half)
        for dh in range(3):
            for dw in range(3):
                tap = dh * 3 + dw
                col_ref[:, tap * half:(tap + 1) * half] = (
                    xp_ref[dh:dh + h, dw:dw + w, :]
                    .reshape(hw, half).astype(bf16))
        y = jnp.dot(col_ref[...], wr_ref[layer],
                    preferred_element_type=jnp.float32)
        return _silu(y + br_ref[layer])

    for i in range(n_res):
        y1 = conv3x3(cur, 2 * i)
        y2 = conv3x3(y1, 2 * i + 1)
        cur = cur + y2 if add else y2
        acc = acc + jnp.dot(cur.astype(bf16), w2_ref[2 + i],
                            preferred_element_type=jnp.float32)

    # conv2 epilogue: folded-BN bias + SiLU, f32, single store of the output tile.
    o_ref[...] = _silu(acc + b2_ref[...]).astype(o_ref.dtype)


def csp_forward(x_nchw, prep, *, add=True):
    """Fused CSP forward. x_nchw: (N, C, H, W) f32. Returns (N, out_ch, H, W) f32."""
    n, cin, h, w = x_nchw.shape
    half = prep["w1"].shape[-1]
    out_ch = prep["w2"].shape[-1]
    n_res = prep["wr"].shape[0] // 2
    hw = h * w

    # NCHW -> (N, H*W, C): channels-last so channels feed the MXU contraction.
    x = jnp.transpose(x_nchw, (0, 2, 3, 1)).reshape(n, hw, cin)

    kernel = functools.partial(_csp_kernel, h=h, w=w, half=half,
                               n_res=n_res, add=add)

    out = pl.pallas_call(
        kernel,
        out_shape=jax.ShapeDtypeStruct((n, hw, out_ch), jnp.float32),
        grid_spec=pltpu.PrefetchScalarGridSpec(
            num_scalar_prefetch=0,
            grid=(n,),
            in_specs=[
                pl.BlockSpec((pl.Squeezed(), hw, cin), lambda b: (b, 0, 0)),
                # Weight/bias blocks: constant index maps -> DMA'd once, reused.
                pl.BlockSpec(prep["w1"].shape, lambda b: (0, 0, 0)),
                pl.BlockSpec(prep["b1"].shape, lambda b: (0, 0, 0)),
                pl.BlockSpec(prep["wr"].shape, lambda b: (0, 0, 0)),
                pl.BlockSpec(prep["br"].shape, lambda b: (0, 0, 0)),
                pl.BlockSpec(prep["w2"].shape, lambda b: (0, 0, 0)),
                pl.BlockSpec(prep["b2"].shape, lambda b: (0, 0)),
            ],
            out_specs=pl.BlockSpec((pl.Squeezed(), hw, out_ch),
                                   lambda b: (b, 0, 0)),
            scratch_shapes=[
                pltpu.VMEM((h + 2, w + 2, half), jnp.float32),    # padded activation
                pltpu.VMEM((hw, 9 * half), jnp.bfloat16),         # im2col slab (bf16)
            ],
        ),
        compiler_params=pltpu.CompilerParams(
            dimension_semantics=("parallel",),                    # megacore-friendly
        ),
    )(x, prep["w1"], prep["b1"], prep["wr"], prep["br"], prep["w2"], prep["b2"])

    return jnp.transpose(out.reshape(n, h, w, out_ch), (0, 3, 1, 2))


# --------------------------- parameters (deterministic) ---------------------------
def _init_bn(key, c):
    k1, k2, k3, k4 = jax.random.split(key, 4)
    gamma = 1.0 + 0.1 * jax.random.normal(k1, (c,), jnp.float32)
    beta = 0.1 * jax.random.normal(k2, (c,), jnp.float32)
    mean = 0.1 * jax.random.normal(k3, (c,), jnp.float32)
    var = jnp.abs(1.0 + 0.1 * jax.random.normal(k4, (c,), jnp.float32))
    scale = gamma / jnp.sqrt(var + 1e-3)                 # BatchNorm2d(eps=0.001)
    bias = beta - mean * scale
    return scale, bias


def _init_conv1x1(key, cin, cout):
    kw, kb = jax.random.split(key)
    wgt = jax.random.normal(kw, (cin, cout), jnp.float32) / jnp.sqrt(float(cin))
    s, b = _init_bn(kb, cout)
    return (wgt, s, b)


def _init_conv3x3(key, cin, cout):
    kw, kb = jax.random.split(key)
    wgt = jax.random.normal(kw, (3, 3, cin, cout), jnp.float32) / jnp.sqrt(9.0 * cin)
    s, b = _init_bn(kb, cout)
    return (wgt, s, b)


def init_csp_params(key, in_ch, out_ch, n):
    half = out_ch // 2
    keys = jax.random.split(key, 2 + 2 * n)
    params = {
        "conv1": _init_conv1x1(keys[0], in_ch, out_ch),
        "conv2": _init_conv1x1(keys[1], (2 + n) * half, out_ch),
        "res": [],
    }
    for i in range(n):
        params["res"].append({
            "c1": _init_conv3x3(keys[2 + 2 * i], half, half),
            "c2": _init_conv3x3(keys[3 + 2 * i], half, half),
        })
    return params


def prepare_params(params, compute_dtype=jnp.bfloat16):
    """Fold BN scale into bf16 weights, reshape 3x3 weights to im2col (9*cin, cout),
    split conv1 into its two chunks and conv2 into per-chunk weights (concat-free)."""
    w1, s1, b1 = params["conv1"]
    out_ch = w1.shape[1]
    half = out_ch // 2
    w1f = (w1 * s1[None, :]).astype(compute_dtype)
    prep = {
        "w1": jnp.stack([w1f[:, :half], w1f[:, half:]]),             # (2, cin, half)
        "b1": jnp.stack([b1[:half][None, :], b1[half:][None, :]]),   # (2, 1, half) f32
    }
    wr, br = [], []
    for rp in params["res"]:
        for name in ("c1", "c2"):
            wgt, s, b = rp[name]
            wr.append((wgt * s[None, None, None, :]).reshape(9 * half, half)
                      .astype(compute_dtype))
            br.append(b[None, :])
    prep["wr"] = jnp.stack(wr)                                       # (2n, 9*half, half)
    prep["br"] = jnp.stack(br)                                       # (2n, 1, half) f32
    w2, s2, b2 = params["conv2"]
    n_chunks = w2.shape[0] // half
    prep["w2"] = (w2 * s2[None, :]).astype(compute_dtype).reshape(n_chunks, half, out_ch)
    prep["b2"] = b2[None, :]                                         # (1, out_ch) f32
    return prep


# --------------------------- plain-JAX references (checks) ---------------------------
def csp_reference_f32(x_nchw, params, add=True):
    """Pure-f32 reference of the module (no bf16)."""
    x = jnp.transpose(x_nchw, (0, 2, 3, 1))

    def cbs1(v, p):
        wgt, s, b = p
        y = jnp.einsum("nhwc,co->nhwo", v, wgt)
        y = y * s.reshape(1, 1, 1, -1) + b.reshape(1, 1, 1, -1)
        return y * jax.nn.sigmoid(y)

    def cbs3(v, p):
        wgt, s, b = p
        y = jax.lax.conv_general_dilated(
            v, wgt, (1, 1), "SAME", dimension_numbers=("NHWC", "HWIO", "NHWC"))
        y = y * s.reshape(1, 1, 1, -1) + b.reshape(1, 1, 1, -1)
        return y * jax.nn.sigmoid(y)

    t = cbs1(x, params["conv1"])
    half = t.shape[-1] // 2
    ys = [t[..., :half], t[..., half:]]
    for rp in params["res"]:
        cur = ys[-1]
        y2 = cbs3(cbs3(cur, rp["c1"]), rp["c2"])
        ys.append(cur + y2 if add else y2)
    out = cbs1(jnp.concatenate(ys, axis=-1), params["conv2"])
    return jnp.transpose(out, (0, 3, 1, 2))


def csp_reference_bf16(x_nchw, prep, add=True):
    """Reference that emulates the kernel's numerics (folded bf16 weights, bf16
    matmul inputs, f32 accumulation / epilogue)."""
    bf = jnp.bfloat16
    x = jnp.transpose(x_nchw, (0, 2, 3, 1))
    n_res = prep["wr"].shape[0] // 2
    half = prep["w1"].shape[-1]

    def silu(y):
        return y * jax.nn.sigmoid(y)

    def pw(v, wgt, b):
        y = jnp.einsum("nhwc,co->nhwo", v.astype(bf), wgt,
                       preferred_element_type=jnp.float32)
        return silu(y + b.reshape(1, 1, 1, -1))

    def c3(v, wflat, b):
        ci, co = v.shape[-1], wflat.shape[-1]
        y = jax.lax.conv_general_dilated(
            v.astype(bf), wflat.reshape(3, 3, ci, co), (1, 1), "SAME",
            dimension_numbers=("NHWC", "HWIO", "NHWC"),
            preferred_element_type=jnp.float32)
        return silu(y + b.reshape(1, 1, 1, -1))

    w1 = jnp.concatenate([prep["w1"][0], prep["w1"][1]], axis=-1)
    b1 = jnp.concatenate([prep["b1"][0, 0], prep["b1"][1, 0]], axis=-1)
    t = pw(x, w1, b1)
    ys = [t[..., :half], t[..., half:]]
    for i in range(n_res):
        cur = ys[-1]
        y2 = c3(c3(cur, prep["wr"][2 * i], prep["br"][2 * i, 0]),
                prep["wr"][2 * i + 1], prep["br"][2 * i + 1, 0])
        ys.append(cur + y2 if add else y2)
    cat = jnp.concatenate(ys, axis=-1)
    out = pw(cat, prep["w2"].reshape(-1, prep["w2"].shape[-1]), prep["b2"][0])
    return jnp.transpose(out, (0, 3, 1, 2))


if __name__ == "__main__":
    N, IN_CH, OUT_CH, H, W, N_RES = 2, 16, 16, 16, 16, 2

    key = jax.random.PRNGKey(0)
    kx, kp = jax.random.split(key)
    x = jax.random.normal(kx, (N, IN_CH, H, W), jnp.float32)   # NCHW like PyTorch
    params = init_csp_params(kp, IN_CH, OUT_CH, N_RES)
    prep = prepare_params(params)

    fwd = jax.jit(functools.partial(csp_forward, add=True))
    out = jax.block_until_ready(fwd(x, prep))
    assert out.shape == (N, OUT_CH, H, W), out.shape

    ref_bf = jax.block_until_ready(csp_reference_bf16(x, prep, add=True))
    ref_f32 = jax.block_until_ready(csp_reference_f32(x, params, add=True))
    err_bf = float(jnp.max(jnp.abs(out - ref_bf)))
    err_f32 = float(jnp.max(jnp.abs(out - ref_f32)))
    assert err_bf < 5e-2, f"mismatch vs bf16-emulated reference: {err_bf}"
    assert err_f32 < 2.5e-1, f"mismatch vs f32 reference: {err_f32}"

    print("KERNEL_OK")
</pallas_src>

<mosaic_0001>
module attributes {stable_mosaic.version = 11 : i64} {
  func.func @_csp_kernel(%arg0: i32, %arg1: memref<1x256x16xf32, #tpu.memory_space<vmem>>, %arg2: memref<2x16x8xbf16, #tpu.memory_space<vmem>>, %arg3: memref<2x1x8xf32, #tpu.memory_space<vmem>>, %arg4: memref<4x72x8xbf16, #tpu.memory_space<vmem>>, %arg5: memref<4x1x8xf32, #tpu.memory_space<vmem>>, %arg6: memref<4x8x16xbf16, #tpu.memory_space<vmem>>, %arg7: memref<1x16xf32, #tpu.memory_space<vmem>>, %arg8: memref<1x256x16xf32, #tpu.memory_space<vmem>>, %arg9: memref<18x18x8xf32, #tpu.memory_space<vmem>>, %arg10: memref<256x72xbf16, #tpu.memory_space<vmem>>) attributes {dimension_semantics = [#tpu.dimension_semantics<parallel>], iteration_bounds = array<i64: 2>, scalar_prefetch = 0 : i64, scratch_operands = 2 : i64, tpu.core_type = #tpu.core_type<tc>, window_params = [{transform_indices = @transform_0, window_bounds = array<i64: 1, 256, 16>}, {pipeline_mode = #tpu.pipeline_mode<synchronous>, transform_indices = @transform_1, window_bounds = array<i64: 2, 16, 8>}, {pipeline_mode = #tpu.pipeline_mode<synchronous>, transform_indices = @transform_2, window_bounds = array<i64: 2, 1, 8>}, {pipeline_mode = #tpu.pipeline_mode<synchronous>, transform_indices = @transform_3, window_bounds = array<i64: 4, 72, 8>}, {pipeline_mode = #tpu.pipeline_mode<synchronous>, transform_indices = @transform_4, window_bounds = array<i64: 4, 1, 8>}, {pipeline_mode = #tpu.pipeline_mode<synchronous>, transform_indices = @transform_5, window_bounds = array<i64: 4, 8, 16>}, {pipeline_mode = #tpu.pipeline_mode<synchronous>, transform_indices = @transform_6, window_bounds = array<i64: 1, 16>}, {transform_indices = @transform_7, window_bounds = array<i64: 1, 256, 16>}]} {
    %cst = arith.constant 0.000000e+00 : f32
    %0 = vector.broadcast %cst : f32 to vector<18x18x8xf32>
    %c0 = arith.constant 0 : index
    %c0_0 = arith.constant 0 : index
    %c0_1 = arith.constant 0 : index
    %1 = vector.load %arg9[%c0, %c0_0, %c0_1] : memref<18x18x8xf32, #tpu.memory_space<vmem>>, vector<18x18x8xf32>
    tpu.vector_store %arg9[%c0, %c0_0, %c0_1], %0 {strides = array<i32>} : memref<18x18x8xf32, #tpu.memory_space<vmem>>, vector<18x18x8xf32>,
    %c0_2 = arith.constant 0 : index
    %c0_3 = arith.constant 0 : index
    %c0_4 = arith.constant 0 : index
    %2 = vector.load %arg1[%c0_2, %c0_3, %c0_4] : memref<1x256x16xf32, #tpu.memory_space<vmem>>, vector<1x256x16xf32>
    %3 = vector.shape_cast %2 : vector<1x256x16xf32> to vector<256x16xf32>
    %4 = arith.truncf %3 : vector<256x16xf32> to vector<256x16xbf16>
    %c0_5 = arith.constant 0 : index
    %c0_6 = arith.constant 0 : index
    %c0_7 = arith.constant 0 : index
    %5 = vector.load %arg2[%c0_5, %c0_6, %c0_7] : memref<2x16x8xbf16, #tpu.memory_space<vmem>>, vector<1x16x8xbf16>
    %6 = vector.shape_cast %5 : vector<1x16x8xbf16> to vector<16x8xbf16>
    %cst_8 = arith.constant dense<0.000000e+00> : vector<256x8xf32>
    %7 = tpu.matmul %4, %6, %cst_8 {dimension_numbers = #tpu.dot_dimension_numbers<[1], [0], [0], [1], [0, 0, 1, 1], [], []>} : vector<256x16xbf16>, vector<16x8xbf16>, vector<256x8xf32> -> vector<256x8xf32>
    %c0_9 = arith.constant 0 : index
    %c0_10 = arith.constant 0 : index
    %c0_11 = arith.constant 0 : index
    %8 = vector.load %arg3[%c0_9, %c0_10, %c0_11] : memref<2x1x8xf32, #tpu.memory_space<vmem>>, vector<1x1x8xf32>
    %9 = vector.shape_cast %8 : vector<1x1x8xf32> to vector<1x8xf32>
    %10 = vector.broadcast %9 : vector<1x8xf32> to vector<256x8xf32>
    %11 = arith.addf %7, %10 : vector<256x8xf32>
    %cst_12 = arith.constant 0.000000e+00 : f32
    %12 = vector.broadcast %cst_12 : f32 to vector<256x8xf32>
    %13 = arith.subf %12, %11 : vector<256x8xf32>
    %14 = math.exp %13 : vector<256x8xf32>
    %cst_13 = arith.constant 1.000000e+00 : f32
    %15 = vector.broadcast %cst_13 : f32 to vector<256x8xf32>
    %16 = arith.addf %15, %14 : vector<256x8xf32>
    %17 = tpu.reciprocal %16 {approx = true} : vector<256x8xf32> -> vector<256x8xf32>
    %18 = arith.mulf %11, %17 : vector<256x8xf32>
    %c1 = arith.constant 1 : index
    %c0_14 = arith.constant 0 : index
    %c0_15 = arith.constant 0 : index
    %19 = vector.load %arg2[%c1, %c0_14, %c0_15] : memref<2x16x8xbf16, #tpu.memory_space<vmem>>, vector<1x16x8xbf16>
    %20 = vector.shape_cast %19 : vector<1x16x8xbf16> to vector<16x8xbf16>
    %cst_16 = arith.constant dense<0.000000e+00> : vector<256x8xf32>
    %21 = tpu.matmul %4, %20, %cst_16 {dimension_numbers = #tpu.dot_dimension_numbers<[1], [0], [0], [1], [0, 0, 1, 1], [], []>} : vector<256x16xbf16>, vector<16x8xbf16>, vector<256x8xf32> -> vector<256x8xf32>
    %c1_17 = arith.constant 1 : index
    %c0_18 = arith.constant 0 : index
    %c0_19 = arith.constant 0 : index
    %22 = vector.load %arg3[%c1_17, %c0_18, %c0_19] : memref<2x1x8xf32, #tpu.memory_space<vmem>>, vector<1x1x8xf32>
    %23 = vector.shape_cast %22 : vector<1x1x8xf32> to vector<1x8xf32>
    %24 = vector.broadcast %23 : vector<1x8xf32> to vector<256x8xf32>
    %25 = arith.addf %21, %24 : vector<256x8xf32>
    %cst_20 = arith.constant 0.000000e+00 : f32
    %26 = vector.broadcast %cst_20 : f32 to vector<256x8xf32>
    %27 = arith.subf %26, %25 : vector<256x8xf32>
    %28 = math.exp %27 : vector<256x8xf32>
    %cst_21 = arith.constant 1.000000e+00 : f32
    %29 = vector.broadcast %cst_21 : f32 to vector<256x8xf32>
    %30 = arith.addf %29, %28 : vector<256x8xf32>
    %31 = tpu.reciprocal %30 {approx = true} : vector<256x8xf32> -> vector<256x8xf32>
    %32 = arith.mulf %25, %31 : vector<256x8xf32>
    %33 = arith.truncf %18 : vector<256x8xf32> to vector<256x8xbf16>
    %c0_22 = arith.constant 0 : index
    %c0_23 = arith.constant 0 : index
    %c0_24 = arith.constant 0 : index
    %34 = vector.load %arg6[%c0_22, %c0_23, %c0_24] : memref<4x8x16xbf16, #tpu.memory_space<vmem>>, vector<1x8x16xbf16>
    %35 = vector.shape_cast %34 : vector<1x8x16xbf16> to vector<8x16xbf16>
    %cst_25 = arith.constant dense<0.000000e+00> : vector<256x16xf32>
    %36 = tpu.matmul %33, %35, %cst_25 {dimension_numbers = #tpu.dot_dimension_numbers<[1], [0], [0], [1], [0, 0, 1, 1], [], []>} : vector<256x8xbf16>, vector<8x16xbf16>, vector<256x16xf32> -> vector<256x16xf32>
    %37 = arith.truncf %32 : vector<256x8xf32> to vector<256x8xbf16>
    %c1_26 = arith.constant 1 : index
    %c0_27 = arith.constant 0 : index
    %c0_28 = arith.constant 0 : index
    %38 = vector.load %arg6[%c1_26, %c0_27, %c0_28] : memref<4x8x16xbf16, #tpu.memory_space<vmem>>, vector<1x8x16xbf16>
    %39 = vector.shape_cast %38 : vector<1x8x16xbf16> to vector<8x16xbf16>
    %cst_29 = arith.constant dense<0.000000e+00> : vector<256x16xf32>
    %40 = tpu.matmul %37, %39, %cst_29 {dimension_numbers = #tpu.dot_dimension_numbers<[1], [0], [0], [1], [0, 0, 1, 1], [], []>} : vector<256x8xbf16>, vector<8x16xbf16>, vector<256x16xf32> -> vector<256x16xf32>
    %41 = arith.addf %36, %40 : vector<256x16xf32>
    %42 = vector.shape_cast %32 : vector<256x8xf32> to vector<16x16x8xf32>
    %c1_30 = arith.constant 1 : index
    %c1_31 = arith.constant 1 : index
    %c0_32 = arith.constant 0 : index
    %43 = vector.load %arg9[%c1_30, %c1_31, %c0_32] : memref<18x18x8xf32, #tpu.memory_space<vmem>>, vector<16x16x8xf32>
    tpu.vector_store %arg9[%c1_30, %c1_31, %c0_32], %42 {strides = array<i32>} : memref<18x18x8xf32, #tpu.memory_space<vmem>>, vector<16x16x8xf32>,
    %c0_33 = arith.constant 0 : index
    %c0_34 = arith.constant 0 : index
    %c0_35 = arith.constant 0 : index
    %44 = vector.load %arg9[%c0_33, %c0_34, %c0_35] : memref<18x18x8xf32, #tpu.memory_space<vmem>>, vector<16x16x8xf32>
    %45 = vector.shape_cast %44 : vector<16x16x8xf32> to vector<256x8xf32>
    %46 = arith.truncf %45 : vector<256x8xf32> to vector<256x8xbf16>
    %c0_36 = arith.constant 0 : index
    %c0_37 = arith.constant 0 : index
    %47 = vector.load %arg10[%c0_36, %c0_37] : memref<256x72xbf16, #tpu.memory_space<vmem>>, vector<256x8xbf16>
    tpu.vector_store %arg10[%c0_36, %c0_37], %46 {strides = array<i32>} : memref<256x72xbf16, #tpu.memory_space<vmem>>, vector<256x8xbf16>,
    %c0_38 = arith.constant 0 : index
    %c1_39 = arith.constant 1 : index
    %c0_40 = arith.constant 0 : index
    %48 = vector.load %arg9[%c0_38, %c1_39, %c0_40] : memref<18x18x8xf32, #tpu.memory_space<vmem>>, vector<16x16x8xf32>
    %49 = vector.shape_cast %48 : vector<16x16x8xf32> to vector<256x8xf32>
    %50 = arith.truncf %49 : vector<256x8xf32> to vector<256x8xbf16>
    %c0_41 = arith.constant 0 : index
    %c8 = arith.constant 8 : index
    %51 = vector.load %arg10[%c0_41, %c8] : memref<256x72xbf16, #tpu.memory_space<vmem>>, vector<256x8xbf16>
    tpu.vector_store %arg10[%c0_41, %c8], %50 {strides = array<i32>} : memref<256x72xbf16, #tpu.memory_space<vmem>>, vector<256x8xbf16>,
    %c0_42 = arith.constant 0 : index
    %c2 = arith.constant 2 : index
    %c0_43 = arith.constant 0 : index
    %52 = vector.load %arg9[%c0_42, %c2, %c0_43] : memref<18x18x8xf32, #tpu.memory_space<vmem>>, vector<16x16x8xf32>
    %53 = vector.shape_cast %52 : vector<16x16x8xf32> to vector<256x8xf32>
    %54 = arith.truncf %53 : vector<256x8xf32> to vector<256x8xbf16>
    %c0_44 = arith.constant 0 : index
    %c16 = arith.constant 16 : index
    %55 = vector.load %arg10[%c0_44, %c16] : memref<256x72xbf16, #tpu.memory_space<vmem>>, vector<256x8xbf16>
    tpu.vector_store %arg10[%c0_44, %c16], %54 {strides = array<i32>} : memref<256x72xbf16, #tpu.memory_space<vmem>>, vector<256x8xbf16>,
    %c1_45 = arith.constant 1 : index
    %c0_46 = arith.constant 0 : index
    %c0_47 = arith.constant 0 : index
    %56 = vector.load %arg9[%c1_45, %c0_46, %c0_47] : memref<18x18x8xf32, #tpu.memory_space<vmem>>, vector<16x16x8xf32>
    %57 = vector.shape_cast %56 : vector<16x16x8xf32> to vector<256x8xf32>
    %58 = arith.truncf %57 : vector<256x8xf32> to vector<256x8xbf16>
    %c0_48 = arith.constant 0 : index
    %c24 = arith.constant 24 : index
    %59 = vector.load %arg10[%c0_48, %c24] : memref<256x72xbf16, #tpu.memory_space<vmem>>, vector<256x8xbf16>
    tpu.vector_store %arg10[%c0_48, %c24], %58 {strides = array<i32>} : memref<256x72xbf16, #tpu.memory_space<vmem>>, vector<256x8xbf16>,
    %c1_49 = arith.constant 1 : index
    %c1_50 = arith.constant 1 : index
    %c0_51 = arith.constant 0 : index
    %60 = vector.load %arg9[%c1_49, %c1_50, %c0_51] : memref<18x18x8xf32, #tpu.memory_space<vmem>>, vector<16x16x8xf32>
    %61 = vector.shape_cast %60 : vector<16x16x8xf32> to vector<256x8xf32>
    %62 = arith.truncf %61 : vector<256x8xf32> to vector<256x8xbf16>
    %c0_52 = arith.constant 0 : index
    %c32 = arith.constant 32 : index
    %63 = vector.load %arg10[%c0_52, %c32] : memref<256x72xbf16, #tpu.memory_space<vmem>>, vector<256x8xbf16>
    tpu.vector_store %arg10[%c0_52, %c32], %62 {strides = array<i32>} : memref<256x72xbf16, #tpu.memory_space<vmem>>, vector<256x8xbf16>,
    %c1_53 = arith.constant 1 : index
    %c2_54 = arith.constant 2 : index
    %c0_55 = arith.constant 0 : index
    %64 = vector.load %arg9[%c1_53, %c2_54, %c0_55] : memref<18x18x8xf32, #tpu.memory_space<vmem>>, vector<16x16x8xf32>
    %65 = vector.shape_cast %64 : vector<16x16x8xf32> to vector<256x8xf32>
    %66 = arith.truncf %65 : vector<256x8xf32> to vector<256x8xbf16>
    %c0_56 = arith.constant 0 : index
    %c40 = arith.constant 40 : index
    %67 = vector.load %arg10[%c0_56, %c40] : memref<256x72xbf16, #tpu.memory_space<vmem>>, vector<256x8xbf16>
    tpu.vector_store %arg10[%c0_56, %c40], %66 {strides = array<i32>} : memref<256x72xbf16, #tpu.memory_space<vmem>>, vector<256x8xbf16>,
    %c2_57 = arith.constant 2 : index
    %c0_58 = arith.constant 0 : index
    %c0_59 = arith.constant 0 : index
    %68 = vector.load %arg9[%c2_57, %c0_58, %c0_59] : memref<18x18x8xf32, #tpu.memory_space<vmem>>, vector<16x16x8xf32>
    %69 = vector.shape_cast %68 : vector<16x16x8xf32> to vector<256x8xf32>
    %70 = arith.truncf %69 : vector<256x8xf32> to vector<256x8xbf16>
    %c0_60 = arith.constant 0 : index
    %c48 = arith.constant 48 : index
    %71 = vector.load %arg10[%c0_60, %c48] : memref<256x72xbf16, #tpu.memory_space<vmem>>, vector<256x8xbf16>
    tpu.vector_store %arg10[%c0_60, %c48], %70 {strides = array<i32>} : memref<256x72xbf16, #tpu.memory_space<vmem>>, vector<256x8xbf16>,
    %c2_61 = arith.constant 2 : index
    %c1_62 = arith.constant 1 : index
    %c0_63 = arith.constant 0 : index
    %72 = vector.load %arg9[%c2_61, %c1_62, %c0_63] : memref<18x18x8xf32, #tpu.memory_space<vmem>>, vector<16x16x8xf32>
    %73 = vector.shape_cast %72 : vector<16x16x8xf32> to vector<256x8xf32>
    %74 = arith.truncf %73 : vector<256x8xf32> to vector<256x8xbf16>
    %c0_64 = arith.constant 0 : index
    %c56 = arith.constant 56 : index
    %75 = vector.load %arg10[%c0_64, %c56] : memref<256x72xbf16, #tpu.memory_space<vmem>>, vector<256x8xbf16>
    tpu.vector_store %arg10[%c0_64, %c56], %74 {strides = array<i32>} : memref<256x72xbf16, #tpu.memory_space<vmem>>, vector<256x8xbf16>,
    %c2_65 = arith.constant 2 : index
    %c2_66 = arith.constant 2 : index
    %c0_67 = arith.constant 0 : index
    %76 = vector.load %arg9[%c2_65, %c2_66, %c0_67] : memref<18x18x8xf32, #tpu.memory_space<vmem>>, vector<16x16x8xf32>
    %77 = vector.shape_cast %76 : vector<16x16x8xf32> to vector<256x8xf32>
    %78 = arith.truncf %77 : vector<256x8xf32> to vector<256x8xbf16>
    %c0_68 = arith.constant 0 : index
    %c64 = arith.constant 64 : index
    %79 = vector.load %arg10[%c0_68, %c64] : memref<256x72xbf16, #tpu.memory_space<vmem>>, vector<256x8xbf16>
    tpu.vector_store %arg10[%c0_68, %c64], %78 {strides = array<i32>} : memref<256x72xbf16, #tpu.memory_space<vmem>>, vector<256x8xbf16>,
    %c0_69 = arith.constant 0 : index
    %c0_70 = arith.constant 0 : index
    %80 = vector.load %arg10[%c0_69, %c0_70] : memref<256x72xbf16, #tpu.memory_space<vmem>>, vector<256x72xbf16>
    %c0_71 = arith.constant 0 : index
    %c0_72 = arith.constant 0 : index
    %c0_73 = arith.constant 0 : index
    %81 = vector.load %arg4[%c0_71, %c0_72, %c0_73] : memref<4x72x8xbf16, #tpu.memory_space<vmem>>, vector<1x72x8xbf16>
    %82 = vector.shape_cast %81 : vector<1x72x8xbf16> to vector<72x8xbf16>
    %cst_74 = arith.constant dense<0.000000e+00> : vector<256x8xf32>
    %83 = tpu.matmul %80, %82, %cst_74 {dimension_numbers = #tpu.dot_dimension_numbers<[1], [0], [0], [1], [0, 0, 1, 1], [], []>} : vector<256x72xbf16>, vector<72x8xbf16>, vector<256x8xf32> -> vector<256x8xf32>
    %c0_75 = arith.constant 0 : index
    %c0_76 = arith.constant 0 : index
    %c0_77 = arith.constant 0 : index
    %84 = vector.load %arg5[%c0_75, %c0_76, %c0_77] : memref<4x1x8xf32, #tpu.memory_space<vmem>>, vector<1x1x8xf32>
    %85 = vector.shape_cast %84 : vector<1x1x8xf32> to vector<1x8xf32>
    %86 = vector.broadcast %85 : vector<1x8xf32> to vector<256x8xf32>
    %87 = arith.addf %83, %86 : vector<256x8xf32>
    %cst_78 = arith.constant 0.000000e+00 : f32
    %88 = vector.broadcast %cst_78 : f32 to vector<256x8xf32>
    %89 = arith.subf %88, %87 : vector<256x8xf32>
    %90 = math.exp %89 : vector<256x8xf32>
    %cst_79 = arith.constant 1.000000e+00 : f32
    %91 = vector.broadcast %cst_79 : f32 to vector<256x8xf32>
    %92 = arith.addf %91, %90 : vector<256x8xf32>
    %93 = tpu.reciprocal %92 {approx = true} : vector<256x8xf32> -> vector<256x8xf32>
    %94 = arith.mulf %87, %93 : vector<256x8xf32>
    %95 = vector.shape_cast %94 : vector<256x8xf32> to vector<16x16x8xf32>
    %c1_80 = arith.constant 1 : index
    %c1_81 = arith.constant 1 : index
    %c0_82 = arith.constant 0 : index
    %96 = vector.load %arg9[%c1_80, %c1_81, %c0_82] : memref<18x18x8xf32, #tpu.memory_space<vmem>>, vector<16x16x8xf32>
    tpu.vector_store %arg9[%c1_80, %c1_81, %c0_82], %95 {strides = array<i32>} : memref<18x18x8xf32, #tpu.memory_space<vmem>>, vector<16x16x8xf32>,
    %c0_83 = arith.constant 0 : index
    %c0_84 = arith.constant 0 : index
    %c0_85 = arith.constant 0 : index
    %97 = vector.load %arg9[%c0_83, %c0_84, %c0_85] : memref<18x18x8xf32, #tpu.memory_space<vmem>>, vector<16x16x8xf32>
    %98 = vector.shape_cast %97 : vector<16x16x8xf32> to vector<256x8xf32>
    %99 = arith.truncf %98 : vector<256x8xf32> to vector<256x8xbf16>
    %c0_86 = arith.constant 0 : index
    %c0_87 = arith.constant 0 : index
    %100 = vector.load %arg10[%c0_86, %c0_87] : memref<256x72xbf16, #tpu.memory_space<vmem>>, vector<256x8xbf16>
    tpu.vector_store %arg10[%c0_86, %c0_87], %99 {strides = array<i32>} : memref<256x72xbf16, #tpu.memory_space<vmem>>, vector<256x8xbf16>,
    %c0_88 = arith.constant 0 : index
    %c1_89 = arith.constant 1 : index
    %c0_90 = arith.constant 0 : index
    %101 = vector.load %arg9[%c0_88, %c1_89, %c0_90] : memref<18x18x8xf32, #tpu.memory_space<vmem>>, vector<16x16x8xf32>
    %102 = vector.shape_cast %101 : vector<16x16x8xf32> to vector<256x8xf32>
    %103 = arith.truncf %102 : vector<256x8xf32> to vector<256x8xbf16>
    %c0_91 = arith.constant 0 : index
    %c8_92 = arith.constant 8 : index
    %104 = vector.load %arg10[%c0_91, %c8_92] : memref<256x72xbf16, #tpu.memory_space<vmem>>, vector<256x8xbf16>
    tpu.vector_store %arg10[%c0_91, %c8_92], %103 {strides = array<i32>} : memref<256x72xbf16, #tpu.memory_space<vmem>>, vector<256x8xbf16>,
    %c0_93 = arith.constant 0 : index
    %c2_94 = arith.constant 2 : index
    %c0_95 = arith.constant 0 : index
    %105 = vector.load %arg9[%c0_93, %c2_94, %c0_95] : memref<18x18x8xf32, #tpu.memory_space<vmem>>, vector<16x16x8xf32>
    %106 = vector.shape_cast %105 : vector<16x16x8xf32> to vector<256x8xf32>
    %107 = arith.truncf %106 : vector<256x8xf32> to vector<256x8xbf16>
    %c0_96 = arith.constant 0 : index
    %c16_97 = arith.constant 16 : index
    %108 = vector.load %arg10[%c0_96, %c16_97] : memref<256x72xbf16, #tpu.memory_space<vmem>>, vector<256x8xbf16>
    tpu.vector_store %arg10[%c0_96, %c16_97], %107 {strides = array<i32>} : memref<256x72xbf16, #tpu.memory_space<vmem>>, vector<256x8xbf16>,
    %c1_98 = arith.constant 1 : index
    %c0_99 = arith.constant 0 : index
    %c0_100 = arith.constant 0 : index
    %109 = vector.load %arg9[%c1_98, %c0_99, %c0_100] : memref<18x18x8xf32, #tpu.memory_space<vmem>>, vector<16x16x8xf32>
    %110 = vector.shape_cast %109 : vector<16x16x8xf32> to vector<256x8xf32>
    %111 = arith.truncf %110 : vector<256x8xf32> to vector<256x8xbf16>
    %c0_101 = arith.constant 0 : index
    %c24_102 = arith.constant 24 : index
    %112 = vector.load %arg10[%c0_101, %c24_102] : memref<256x72xbf16, #tpu.memory_space<vmem>>, vector<256x8xbf16>
    tpu.vector_store %arg10[%c0_101, %c24_102], %111 {strides = array<i32>} : memref<256x72xbf16, #tpu.memory_space<vmem>>, vector<256x8xbf16>,
    %c1_103 = arith.constant 1 : index
    %c1_104 = arith.constant 1 : index
    %c0_105 = arith.constant 0 : index
    %113 = vector.load %arg9[%c1_103, %c1_104, %c0_105] : memref<18x18x8xf32, #tpu.memory_space<vmem>>, vector<16x16x8xf32>
    %114 = vector.shape_cast %113 : vector<16x16x8xf32> to vector<256x8xf32>
    %115 = arith.truncf %114 : vector<256x8xf32> to vector<256x8xbf16>
    %c0_106 = arith.constant 0 : index
    %c32_107 = arith.constant 32 : index
    %116 = vector.load %arg10[%c0_106, %c32_107] : memref<256x72xbf16, #tpu.memory_space<vmem>>, vector<256x8xbf16>
    tpu.vector_store %arg10[%c0_106, %c32_107], %115 {strides = array<i32>} : memref<256x72xbf16, #tpu.memory_space<vmem>>, vector<256x8xbf16>,
    %c1_108 = arith.constant 1 : index
    %c2_109 = arith.constant 2 : index
    %c0_110 = arith.constant 0 : index
    %117 = vector.load %arg9[%c1_108, %c2_109, %c0_110] : memref<18x18x8xf32, #tpu.memory_space<vmem>>, vector<16x16x8xf32>
    %118 = vector.shape_cast %117 : vector<16x16x8xf32> to vector<256x8xf32>
    %119 = arith.truncf %118 : vector<256x8xf32> to vector<256x8xbf16>
    %c0_111 = arith.constant 0 : index
    %c40_112 = arith.constant 40 : index
    %120 = vector.load %arg10[%c0_111, %c40_112] : memref<256x72xbf16, #tpu.memory_space<vmem>>, vector<256x8xbf16>
    tpu.vector_store %arg10[%c0_111, %c40_112], %119 {strides = array<i32>} : memref<256x72xbf16, #tpu.memory_space<vmem>>, vector<256x8xbf16>,
    %c2_113 = arith.constant 2 : index
    %c0_114 = arith.constant 0 : index
    %c0_115 = arith.constant 0 : index
    %121 = vector.load %arg9[%c2_113, %c0_114, %c0_115] : memref<18x18x8xf32, #tpu.memory_space<vmem>>, vector<16x16x8xf32>
    %122 = vector.shape_cast %121 : vector<16x16x8xf32> to vector<256x8xf32>
    %123 = arith.truncf %122 : vector<256x8xf32> to vector<256x8xbf16>
    %c0_116 = arith.constant 0 : index
    %c48_117 = arith.constant 48 : index
    %124 = vector.load %arg10[%c0_116, %c48_117] : memref<256x72xbf16, #tpu.memory_space<vmem>>, vector<256x8xbf16>
    tpu.vector_store %arg10[%c0_116, %c48_117], %123 {strides = array<i32>} : memref<256x72xbf16, #tpu.memory_space<vmem>>, vector<256x8xbf16>,
    %c2_118 = arith.constant 2 : index
    %c1_119 = arith.constant 1 : index
    %c0_120 = arith.constant 0 : index
    %125 = vector.load %arg9[%c2_118, %c1_119, %c0_120] : memref<18x18x8xf32, #tpu.memory_space<vmem>>, vector<16x16x8xf32>
    %126 = vector.shape_cast %125 : vector<16x16x8xf32> to vector<256x8xf32>
    %127 = arith.truncf %126 : vector<256x8xf32> to vector<256x8xbf16>
    %c0_121 = arith.constant 0 : index
    %c56_122 = arith.constant 56 : index
    %128 = vector.load %arg10[%c0_121, %c56_122] : memref<256x72xbf16, #tpu.memory_space<vmem>>, vector<256x8xbf16>
    tpu.vector_store %arg10[%c0_121, %c56_122], %127 {strides = array<i32>} : memref<256x72xbf16, #tpu.memory_space<vmem>>, vector<256x8xbf16>,
    %c2_123 = arith.constant 2 : index
    %c2_124 = arith.constant 2 : index
    %c0_125 = arith.constant 0 : index
    %129 = vector.load %arg9[%c2_123, %c2_124, %c0_125] : memref<18x18x8xf32, #tpu.memory_space<vmem>>, vector<16x16x8xf32>
    %130 = vector.shape_cast %129 : vector<16x16x8xf32> to vector<256x8xf32>
    %131 = arith.truncf %130 : vector<256x8xf32> to vector<256x8xbf16>
    %c0_126 = arith.constant 0 : index
    %c64_127 = arith.constant 64 : index
    %132 = vector.load %arg10[%c0_126, %c64_127] : memref<256x72xbf16, #tpu.memory_space<vmem>>, vector<256x8xbf16>
    tpu.vector_store %arg10[%c0_126, %c64_127], %131 {strides = array<i32>} : memref<256x72xbf16, #tpu.memory_space<vmem>>, vector<256x8xbf16>,
    %c0_128 = arith.constant 0 : index
    %c0_129 = arith.constant 0 : index
    %133 = vector.load %arg10[%c0_128, %c0_129] : memref<256x72xbf16, #tpu.memory_space<vmem>>, vector<256x72xbf16>
    %c1_130 = arith.constant 1 : index
    %c0_131 = arith.constant 0 : index
    %c0_132 = arith.constant 0 : index
    %134 = vector.load %arg4[%c1_130, %c0_131, %c0_132] : memref<4x72x8xbf16, #tpu.memory_space<vmem>>, vector<1x72x8xbf16>
    %135 = vector.shape_cast %134 : vector<1x72x8xbf16> to vector<72x8xbf16>
    %cst_133 = arith.constant dense<0.000000e+00> : vector<256x8xf32>
    %136 = tpu.matmul %133, %135, %cst_133 {dimension_numbers = #tpu.dot_dimension_numbers<[1], [0], [0], [1], [0, 0, 1, 1], [], []>} : vector<256x72xbf16>, vector<72x8xbf16>, vector<256x8xf32> -> vector<256x8xf32>
    %c1_134 = arith.constant 1 : index
    %c0_135 = arith.constant 0 : index
    %c0_136 = arith.constant 0 : index
    %137 = vector.load %arg5[%c1_134, %c0_135, %c0_136] : memref<4x1x8xf32, #tpu.memory_space<vmem>>, vector<1x1x8xf32>
    %138 = vector.shape_cast %137 : vector<1x1x8xf32> to vector<1x8xf32>
    %139 = vector.broadcast %138 : vector<1x8xf32> to vector<256x8xf32>
    %140 = arith.addf %136, %139 : vector<256x8xf32>
    %cst_137 = arith.constant 0.000000e+00 : f32
    %141 = vector.broadcast %cst_137 : f32 to vector<256x8xf32>
    %142 = arith.subf %141, %140 : vector<256x8xf32>
    %143 = math.exp %142 : vector<256x8xf32>
    %cst_138 = arith.constant 1.000000e+00 : f32
    %144 = vector.broadcast %cst_138 : f32 to vector<256x8xf32>
    %145 = arith.addf %144, %143 : vector<256x8xf32>
    %146 = tpu.reciprocal %145 {approx = true} : vector<256x8xf32> -> vector<256x8xf32>
    %147 = arith.mulf %140, %146 : vector<256x8xf32>
    %148 = arith.addf %32, %147 : vector<256x8xf32>
    %149 = arith.truncf %148 : vector<256x8xf32> to vector<256x8xbf16>
    %c2_139 = arith.constant 2 : index
    %c0_140 = arith.constant 0 : index
    %c0_141 = arith.constant 0 : index
    %150 = vector.load %arg6[%c2_139, %c0_140, %c0_141] : memref<4x8x16xbf16, #tpu.memory_space<vmem>>, vector<1x8x16xbf16>
    %151 = vector.shape_cast %150 : vector<1x8x16xbf16> to vector<8x16xbf16>
    %cst_142 = arith.constant dense<0.000000e+00> : vector<256x16xf32>
    %152 = tpu.matmul %149, %151, %cst_142 {dimension_numbers = #tpu.dot_dimension_numbers<[1], [0], [0], [1], [0, 0, 1, 1], [], []>} : vector<256x8xbf16>, vector<8x16xbf16>, vector<256x16xf32> -> vector<256x16xf32>
    %153 = arith.addf %41, %152 : vector<256x16xf32>
    %154 = vector.shape_cast %148 : vector<256x8xf32> to vector<16x16x8xf32>
    %c1_143 = arith.constant 1 : index
    %c1_144 = arith.constant 1 : index
    %c0_145 = arith.constant 0 : index
    %155 = vector.load %arg9[%c1_143, %c1_144, %c0_145] : memref<18x18x8xf32, #tpu.memory_space<vmem>>, vector<16x16x8xf32>
    tpu.vector_store %arg9[%c1_143, %c1_144, %c0_145], %154 {strides = array<i32>} : memref<18x18x8xf32, #tpu.memory_space<vmem>>, vector<16x16x8xf32>,
    %c0_146 = arith.constant 0 : index
    %c0_147 = arith.constant 0 : index
    %c0_148 = arith.constant 0 : index
    %156 = vector.load %arg9[%c0_146, %c0_147, %c0_148] : memref<18x18x8xf32, #tpu.memory_space<vmem>>, vector<16x16x8xf32>
    %157 = vector.shape_cast %156 : vector<16x16x8xf32> to vector<256x8xf32>
    %158 = arith.truncf %157 : vector<256x8xf32> to vector<256x8xbf16>
    %c0_149 = arith.constant 0 : index
    %c0_150 = arith.constant 0 : index
    %159 = vector.load %arg10[%c0_149, %c0_150] : memref<256x72xbf16, #tpu.memory_space<vmem>>, vector<256x8xbf16>
    tpu.vector_store %arg10[%c0_149, %c0_150], %158 {strides = array<i32>} : memref<256x72xbf16, #tpu.memory_space<vmem>>, vector<256x8xbf16>,
    %c0_151 = arith.constant 0 : index
    %c1_152 = arith.constant 1 : index
    %c0_153 = arith.constant 0 : index
    %160 = vector.load %arg9[%c0_151, %c1_152, %c0_153] : memref<18x18x8xf32, #tpu.memory_space<vmem>>, vector<16x16x8xf32>
    %161 = vector.shape_cast %160 : vector<16x16x8xf32> to vector<256x8xf32>
    %162 = arith.truncf %161 : vector<256x8xf32> to vector<256x8xbf16>
    %c0_154 = arith.constant 0 : index
    %c8_155 = arith.constant 8 : index
    %163 = vector.load %arg10[%c0_154, %c8_155] : memref<256x72xbf16, #tpu.memory_space<vmem>>, vector<256x8xbf16>
    tpu.vector_store %arg10[%c0_154, %c8_155], %162 {strides = array<i32>} : memref<256x72xbf16, #tpu.memory_space<vmem>>, vector<256x8xbf16>,
    %c0_156 = arith.constant 0 : index
    %c2_157 = arith.constant 2 : index
    %c0_158 = arith.constant 0 : index
    %164 = vector.load %arg9[%c0_156, %c2_157, %c0_158] : memref<18x18x8xf32, #tpu.memory_space<vmem>>, vector<16x16x8xf32>
    %165 = vector.shape_cast %164 : vector<16x16x8xf32> to vector<256x8xf32>
    %166 = arith.truncf %165 : vector<256x8xf32> to vector<256x8xbf16>
    %c0_159 = arith.constant 0 : index
    %c16_160 = arith.constant 16 : index
    %167 = vector.load %arg10[%c0_159, %c16_160] : memref<256x72xbf16, #tpu.memory_space<vmem>>, vector<256x8xbf16>
    tpu.vector_store %arg10[%c0_159, %c16_160], %166 {strides = array<i32>} : memref<256x72xbf16, #tpu.memory_space<vmem>>, vector<256x8xbf16>,
    %c1_161 = arith.constant 1 : index
    %c0_162 = arith.constant 0 : index
    %c0_163 = arith.constant 0 : index
    %168 = vector.load %arg9[%c1_161, %c0_162, %c0_163] : memref<18x18x8xf32, #tpu.memory_space<vmem>>, vector<16x16x8xf32>
    %169 = vector.shape_cast %168 : vector<16x16x8xf32> to vector<256x8xf32>
    %170 = arith.truncf %169 : vector<256x8xf32> to vector<256x8xbf16>
    %c0_164 = arith.constant 0 : index
    %c24_165 = arith.constant 24 : index
    %171 = vector.load %arg10[%c0_164, %c24_165] : memref<256x72xbf16, #tpu.memory_space<vmem>>, vector<256x8xbf16>
    tpu.vector_store %arg10[%c0_164, %c24_165], %170 {strides = array<i32>} : memref<256x72xbf16, #tpu.memory_space<vmem>>, vector<256x8xbf16>,
    %c1_166 = arith.constant 1 : index
    %c1_167 = arith.constant 1 : index
    %c0_168 = arith.constant 0 : index
    %172 = vector.load %arg9[%c1_166, %c1_167, %c0_168] : memref<18x18x8xf32, #tpu.memory_space<vmem>>, vector<16x16x8xf32>
    %173 = vector.shape_cast %172 : vector<16x16x8xf32> to vector<256x8xf32>
    %174 = arith.truncf %173 : vector<256x8xf32> to vector<256x8xbf16>
    %c0_169 = arith.constant 0 : index
    %c32_170 = arith.constant 32 : index
    %175 = vector.load %arg10[%c0_169, %c32_170] : memref<256x72xbf16, #tpu.memory_space<vmem>>, vector<256x8xbf16>
    tpu.vector_store %arg10[%c0_169, %c32_170], %174 {strides = array<i32>} : memref<256x72xbf16, #tpu.memory_space<vmem>>, vector<256x8xbf16>,
    %c1_171 = arith.constant 1 : index
    %c2_172 = arith.constant 2 : index
    %c0_173 = arith.constant 0 : index
    %176 = vector.load %arg9[%c1_171, %c2_172, %c0_173] : memref<18x18x8xf32, #tpu.memory_space<vmem>>, vector<16x16x8xf32>
    %177 = vector.shape_cast %176 : vector<16x16x8xf32> to vector<256x8xf32>
    %178 = arith.truncf %177 : vector<256x8xf32> to vector<256x8xbf16>
    %c0_174 = arith.constant 0 : index
    %c40_175 = arith.constant 40 : index
    %179 = vector.load %arg10[%c0_174, %c40_175] : memref<256x72xbf16, #tpu.memory_space<vmem>>, vector<256x8xbf16>
    tpu.vector_store %arg10[%c0_174, %c40_175], %178 {strides = array<i32>} : memref<256x72xbf16, #tpu.memory_space<vmem>>, vector<256x8xbf16>,
    %c2_176 = arith.constant 2 : index
    %c0_177 = arith.constant 0 : index
    %c0_178 = arith.constant 0 : index
    %180 = vector.load %arg9[%c2_176, %c0_177, %c0_178] : memref<18x18x8xf32, #tpu.memory_space<vmem>>, vector<16x16x8xf32>
    %181 = vector.shape_cast %180 : vector<16x16x8xf32> to vector<256x8xf32>
    %182 = arith.truncf %181 : vector<256x8xf32> to vector<256x8xbf16>
    %c0_179 = arith.constant 0 : index
    %c48_180 = arith.constant 48 : index
    %183 = vector.load %arg10[%c0_179, %c48_180] : memref<256x72xbf16, #tpu.memory_space<vmem>>, vector<256x8xbf16>
    tpu.vector_store %arg10[%c0_179, %c48_180], %182 {strides = array<i32>} : memref<256x72xbf16, #tpu.memory_space<vmem>>, vector<256x8xbf16>,
    %c2_181 = arith.constant 2 : index
    %c1_182 = arith.constant 1 : index
    %c0_183 = arith.constant 0 : index
    %184 = vector.load %arg9[%c2_181, %c1_182, %c0_183] : memref<18x18x8xf32, #tpu.memory_space<vmem>>, vector<16x16x8xf32>
    %185 = vector.shape_cast %184 : vector<16x16x8xf32> to vector<256x8xf32>
    %186 = arith.truncf %185 : vector<256x8xf32> to vector<256x8xbf16>
    %c0_184 = arith.constant 0 : index
    %c56_185 = arith.constant 56 : index
    %187 = vector.load %arg10[%c0_184, %c56_185] : memref<256x72xbf16, #tpu.memory_space<vmem>>, vector<256x8xbf16>
    tpu.vector_store %arg10[%c0_184, %c56_185], %186 {strides = array<i32>} : memref<256x72xbf16, #tpu.memory_space<vmem>>, vector<256x8xbf16>,
    %c2_186 = arith.constant 2 : index
    %c2_187 = arith.constant 2 : index
    %c0_188 = arith.constant 0 : index
    %188 = vector.load %arg9[%c2_186, %c2_187, %c0_188] : memref<18x18x8xf32, #tpu.memory_space<vmem>>, vector<16x16x8xf32>
    %189 = vector.shape_cast %188 : vector<16x16x8xf32> to vector<256x8xf32>
    %190 = arith.truncf %189 : vector<256x8xf32> to vector<256x8xbf16>
    %c0_189 = arith.constant 0 : index
    %c64_190 = arith.constant 64 : index
    %191 = vector.load %arg10[%c0_189, %c64_190] : memref<256x72xbf16, #tpu.memory_space<vmem>>, vector<256x8xbf16>
    tpu.vector_store %arg10[%c0_189, %c64_190], %190 {strides = array<i32>} : memref<256x72xbf16, #tpu.memory_space<vmem>>, vector<256x8xbf16>,
    %c0_191 = arith.constant 0 : index
    %c0_192 = arith.constant 0 : index
    %192 = vector.load %arg10[%c0_191, %c0_192] : memref<256x72xbf16, #tpu.memory_space<vmem>>, vector<256x72xbf16>
    %c2_193 = arith.constant 2 : index
    %c0_194 = arith.constant 0 : index
    %c0_195 = arith.constant 0 : index
    %193 = vector.load %arg4[%c2_193, %c0_194, %c0_195] : memref<4x72x8xbf16, #tpu.memory_space<vmem>>, vector<1x72x8xbf16>
    %194 = vector.shape_cast %193 : vector<1x72x8xbf16> to vector<72x8xbf16>
    %cst_196 = arith.constant dense<0.000000e+00> : vector<256x8xf32>
    %195 = tpu.matmul %192, %194, %cst_196 {dimension_numbers = #tpu.dot_dimension_numbers<[1], [0], [0], [1], [0, 0, 1, 1], [], []>} : vector<256x72xbf16>, vector<72x8xbf16>, vector<256x8xf32> -> vector<256x8xf32>
    %c2_197 = arith.constant 2 : index
    %c0_198 = arith.constant 0 : index
    %c0_199 = arith.constant 0 : index
    %196 = vector.load %arg5[%c2_197, %c0_198, %c0_199] : memref<4x1x8xf32, #tpu.memory_space<vmem>>, vector<1x1x8xf32>
    %197 = vector.shape_cast %196 : vector<1x1x8xf32> to vector<1x8xf32>
    %198 = vector.broadcast %197 : vector<1x8xf32> to vector<256x8xf32>
    %199 = arith.addf %195, %198 : vector<256x8xf32>
    %cst_200 = arith.constant 0.000000e+00 : f32
    %200 = vector.broadcast %cst_200 : f32 to vector<256x8xf32>
    %201 = arith.subf %200, %199 : vector<256x8xf32>
    %202 = math.exp %201 : vector<256x8xf32>
    %cst_201 = arith.constant 1.000000e+00 : f32
    %203 = vector.broadcast %cst_201 : f32 to vector<256x8xf32>
    %204 = arith.addf %203, %202 : vector<256x8xf32>
    %205 = tpu.reciprocal %204 {approx = true} : vector<256x8xf32> -> vector<256x8xf32>
    %206 = arith.mulf %199, %205 : vector<256x8xf32>
    %207 = vector.shape_cast %206 : vector<256x8xf32> to vector<16x16x8xf32>
    %c1_202 = arith.constant 1 : index
    %c1_203 = arith.constant 1 : index
    %c0_204 = arith.constant 0 : index
    %208 = vector.load %arg9[%c1_202, %c1_203, %c0_204] : memref<18x18x8xf32, #tpu.memory_space<vmem>>, vector<16x16x8xf32>
    tpu.vector_store %arg9[%c1_202, %c1_203, %c0_204], %207 {strides = array<i32>} : memref<18x18x8xf32, #tpu.memory_space<vmem>>, vector<16x16x8xf32>,
    %c0_205 = arith.constant 0 : index
    %c0_206 = arith.constant 0 : index
    %c0_207 = arith.constant 0 : index
    %209 = vector.load %arg9[%c0_205, %c0_206, %c0_207] : memref<18x18x8xf32, #tpu.memory_space<vmem>>, vector<16x16x8xf32>
    %210 = vector.shape_cast %209 : vector<16x16x8xf32> to vector<256x8xf32>
    %211 = arith.truncf %210 : vector<256x8xf32> to vector<256x8xbf16>
    %c0_208 = arith.constant 0 : index
    %c0_209 = arith.constant 0 : index
    %212 = vector.load %arg10[%c0_208, %c0_209] : memref<256x72xbf16, #tpu.memory_space<vmem>>, vector<256x8xbf16>
    tpu.vector_store %arg10[%c0_208, %c0_209], %211 {strides = array<i32>} : memref<256x72xbf16, #tpu.memory_space<vmem>>, vector<256x8xbf16>,
    %c0_210 = arith.constant 0 : index
    %c1_211 = arith.constant 1 : index
    %c0_212 = arith.constant 0 : index
    %213 = vector.load %arg9[%c0_210, %c1_211, %c0_212] : memref<18x18x8xf32, #tpu.memory_space<vmem>>, vector<16x16x8xf32>
    %214 = vector.shape_cast %213 : vector<16x16x8xf32> to vector<256x8xf32>
    %215 = arith.truncf %214 : vector<256x8xf32> to vector<256x8xbf16>
    %c0_213 = arith.constant 0 : index
    %c8_214 = arith.constant 8 : index
    %216 = vector.load %arg10[%c0_213, %c8_214] : memref<256x72xbf16, #tpu.memory_space<vmem>>, vector<256x8xbf16>
    tpu.vector_store %arg10[%c0_213, %c8_214], %215 {strides = array<i32>} : memref<256x72xbf16, #tpu.memory_space<vmem>>, vector<256x8xbf16>,
    %c0_215 = arith.constant 0 : index
    %c2_216 = arith.constant 2 : index
    %c0_217 = arith.constant 0 : index
    %217 = vector.load %arg9[%c0_215, %c2_216, %c0_217] : memref<18x18x8xf32, #tpu.memory_space<vmem>>, vector<16x16x8xf32>
    %218 = vector.shape_cast %217 : vector<16x16x8xf32> to vector<256x8xf32>
    %219 = arith.truncf %218 : vector<256x8xf32> to vector<256x8xbf16>
    %c0_218 = arith.constant 0 : index
    %c16_219 = arith.constant 16 : index
    %220 = vector.load %arg10[%c0_218, %c16_219] : memref<256x72xbf16, #tpu.memory_space<vmem>>, vector<256x8xbf16>
    tpu.vector_store %arg10[%c0_218, %c16_219], %219 {strides = array<i32>} : memref<256x72xbf16, #tpu.memory_space<vmem>>, vector<256x8xbf16>,
    %c1_220 = arith.constant 1 : index
    %c0_221 = arith.constant 0 : index
    %c0_222 = arith.constant 0 : index
    %221 = vector.load %arg9[%c1_220, %c0_221, %c0_222] : memref<18x18x8xf32, #tpu.memory_space<vmem>>, vector<16x16x8xf32>
    %222 = vector.shape_cast %221 : vector<16x16x8xf32> to vector<256x8xf32>
    %223 = arith.truncf %222 : vector<256x8xf32> to vector<256x8xbf16>
    %c0_223 = arith.constant 0 : index
    %c24_224 = arith.constant 24 : index
    %224 = vector.load %arg10[%c0_223, %c24_224] : memref<256x72xbf16, #tpu.memory_space<vmem>>, vector<256x8xbf16>
    tpu.vector_store %arg10[%c0_223, %c24_224], %223 {strides = array<i32>} : memref<256x72xbf16, #tpu.memory_space<vmem>>, vector<256x8xbf16>,
    %c1_225 = arith.constant 1 : index
    %c1_226 = arith.constant 1 : index
    %c0_227 = arith.constant 0 : index
    %225 = vector.load %arg9[%c1_225, %c1_226, %c0_227] : memref<18x18x8xf32, #tpu.memory_space<vmem>>, vector<16x16x8xf32>
    %226 = vector.shape_cast %225 : vector<16x16x8xf32> to vector<256x8xf32>
    %227 = arith.truncf %226 : vector<256x8xf32> to vector<256x8xbf16>
    %c0_228 = arith.constant 0 : index
    %c32_229 = arith.constant 32 : index
    %228 = vector.load %arg10[%c0_228, %c32_229] : memref<256x72xbf16, #tpu.memory_space<vmem>>, vector<256x8xbf16>
    tpu.vector_store %arg10[%c0_228, %c32_229], %227 {strides = array<i32>} : memref<256x72xbf16, #tpu.memory_space<vmem>>, vector<256x8xbf16>,
    %c1_230 = arith.constant 1 : index
    %c2_231 = arith.constant 2 : index
    %c0_232 = arith.constant 0 : index
    %229 = vector.load %arg9[%c1_230, %c2_231, %c0_232] : memref<18x18x8xf32, #tpu.memory_space<vmem>>, vector<16x16x8xf32>
    %230 = vector.shape_cast %229 : vector<16x16x8xf32> to vector<256x8xf32>
    %231 = arith.truncf %230 : vector<256x8xf32> to vector<256x8xbf16>
    %c0_233 = arith.constant 0 : index
    %c40_234 = arith.constant 40 : index
    %232 = vector.load %arg10[%c0_233, %c40_234] : memref<256x72xbf16, #tpu.memory_space<vmem>>, vector<256x8xbf16>
    tpu.vector_store %arg10[%c0_233, %c40_234], %231 {strides = array<i32>} : memref<256x72xbf16, #tpu.memory_space<vmem>>, vector<256x8xbf16>,
    %c2_235 = arith.constant 2 : index
    %c0_236 = arith.constant 0 : index
    %c0_237 = arith.constant 0 : index
    %233 = vector.load %arg9[%c2_235, %c0_236, %c0_237] : memref<18x18x8xf32, #tpu.memory_space<vmem>>, vector<16x16x8xf32>
    %234 = vector.shape_cast %233 : vector<16x16x8xf32> to vector<256x8xf32>
    %235 = arith.truncf %234 : vector<256x8xf32> to vector<256x8xbf16>
    %c0_238 = arith.constant 0 : index
    %c48_239 = arith.constant 48 : index
    %236 = vector.load %arg10[%c0_238, %c48_239] : memref<256x72xbf16, #tpu.memory_space<vmem>>, vector<256x8xbf16>
    tpu.vector_store %arg10[%c0_238, %c48_239], %235 {strides = array<i32>} : memref<256x72xbf16, #tpu.memory_space<vmem>>, vector<256x8xbf16>,
    %c2_240 = arith.constant 2 : index
    %c1_241 = arith.constant 1 : index
    %c0_242 = arith.constant 0 : index
    %237 = vector.load %arg9[%c2_240, %c1_241, %c0_242] : memref<18x18x8xf32, #tpu.memory_space<vmem>>, vector<16x16x8xf32>
    %238 = vector.shape_cast %237 : vector<16x16x8xf32> to vector<256x8xf32>
    %239 = arith.truncf %238 : vector<256x8xf32> to vector<256x8xbf16>
    %c0_243 = arith.constant 0 : index
    %c56_244 = arith.constant 56 : index
    %240 = vector.load %arg10[%c0_243, %c56_244] : memref<256x72xbf16, #tpu.memory_space<vmem>>, vector<256x8xbf16>
    tpu.vector_store %arg10[%c0_243, %c56_244], %239 {strides = array<i32>} : memref<256x72xbf16, #tpu.memory_space<vmem>>, vector<256x8xbf16>,
    %c2_245 = arith.constant 2 : index
    %c2_246 = arith.constant 2 : index
    %c0_247 = arith.constant 0 : index
    %241 = vector.load %arg9[%c2_245, %c2_246, %c0_247] : memref<18x18x8xf32, #tpu.memory_space<vmem>>, vector<16x16x8xf32>
    %242 = vector.shape_cast %241 : vector<16x16x8xf32> to vector<256x8xf32>
    %243 = arith.truncf %242 : vector<256x8xf32> to vector<256x8xbf16>
    %c0_248 = arith.constant 0 : index
    %c64_249 = arith.constant 64 : index
    %244 = vector.load %arg10[%c0_248, %c64_249] : memref<256x72xbf16, #tpu.memory_space<vmem>>, vector<256x8xbf16>
    tpu.vector_store %arg10[%c0_248, %c64_249], %243 {strides = array<i32>} : memref<256x72xbf16, #tpu.memory_space<vmem>>, vector<256x8xbf16>,
    %c0_250 = arith.constant 0 : index
    %c0_251 = arith.constant 0 : index
    %245 = vector.load %arg10[%c0_250, %c0_251] : memref<256x72xbf16, #tpu.memory_space<vmem>>, vector<256x72xbf16>
    %c3 = arith.constant 3 : index
    %c0_252 = arith.constant 0 : index
    %c0_253 = arith.constant 0 : index
    %246 = vector.load %arg4[%c3, %c0_252, %c0_253] : memref<4x72x8xbf16, #tpu.memory_space<vmem>>, vector<1x72x8xbf16>
    %247 = vector.shape_cast %246 : vector<1x72x8xbf16> to vector<72x8xbf16>
    %cst_254 = arith.constant dense<0.000000e+00> : vector<256x8xf32>
    %248 = tpu.matmul %245, %247, %cst_254 {dimension_numbers = #tpu.dot_dimension_numbers<[1], [0], [0], [1], [0, 0, 1, 1], [], []>} : vector<256x72xbf16>, vector<72x8xbf16>, vector<256x8xf32> -> vector<256x8xf32>
    %c3_255 = arith.constant 3 : index
    %c0_256 = arith.constant 0 : index
    %c0_257 = arith.constant 0 : index
    %249 = vector.load %arg5[%c3_255, %c0_256, %c0_257] : memref<4x1x8xf32, #tpu.memory_space<vmem>>, vector<1x1x8xf32>
    %250 = vector.shape_cast %249 : vector<1x1x8xf32> to vector<1x8xf32>
    %251 = vector.broadcast %250 : vector<1x8xf32> to vector<256x8xf32>
    %252 = arith.addf %248, %251 : vector<256x8xf32>
    %cst_258 = arith.constant 0.000000e+00 : f32
    %253 = vector.broadcast %cst_258 : f32 to vector<256x8xf32>
    %254 = arith.subf %253, %252 : vector<256x8xf32>
    %255 = math.exp %254 : vector<256x8xf32>
    %cst_259 = arith.constant 1.000000e+00 : f32
    %256 = vector.broadcast %cst_259 : f32 to vector<256x8xf32>
    %257 = arith.addf %256, %255 : vector<256x8xf32>
    %258 = tpu.reciprocal %257 {approx = true} : vector<256x8xf32> -> vector<256x8xf32>
    %259 = arith.mulf %252, %258 : vector<256x8xf32>
    %260 = arith.addf %148, %259 : vector<256x8xf32>
    %261 = arith.truncf %260 : vector<256x8xf32> to vector<256x8xbf16>
    %c3_260 = arith.constant 3 : index
    %c0_261 = arith.constant 0 : index
    %c0_262 = arith.constant 0 : index
    %262 = vector.load %arg6[%c3_260, %c0_261, %c0_262] : memref<4x8x16xbf16, #tpu.memory_space<vmem>>, vector<1x8x16xbf16>
    %263 = vector.shape_cast %262 : vector<1x8x16xbf16> to vector<8x16xbf16>
    %cst_263 = arith.constant dense<0.000000e+00> : vector<256x16xf32>
    %264 = tpu.matmul %261, %263, %cst_263 {dimension_numbers = #tpu.dot_dimension_numbers<[1], [0], [0], [1], [0, 0, 1, 1], [], []>} : vector<256x8xbf16>, vector<8x16xbf16>, vector<256x16xf32> -> vector<256x16xf32>
    %265 = arith.addf %153, %264 : vector<256x16xf32>
    %c0_264 = arith.constant 0 : index
    %c0_265 = arith.constant 0 : index
    %266 = vector.load %arg7[%c0_264, %c0_265] : memref<1x16xf32, #tpu.memory_space<vmem>>, vector<1x16xf32>
    %267 = vector.broadcast %266 : vector<1x16xf32> to vector<256x16xf32>
    %268 = arith.addf %265, %267 : vector<256x16xf32>
    %cst_266 = arith.constant 0.000000e+00 : f32
    %269 = vector.broadcast %cst_266 : f32 to vector<256x16xf32>
    %270 = arith.subf %269, %268 : vector<256x16xf32>
    %271 = math.exp %270 : vector<256x16xf32>
    %cst_267 = arith.constant 1.000000e+00 : f32
    %272 = vector.broadcast %cst_267 : f32 to vector<256x16xf32>
    %273 = arith.addf %272, %271 : vector<256x16xf32>
    %274 = tpu.reciprocal %273 {approx = true} : vector<256x16xf32> -> vector<256x16xf32>
    %275 = arith.mulf %268, %274 : vector<256x16xf32>
    %c0_268 = arith.constant 0 : index
    %c0_269 = arith.constant 0 : index
    %c0_270 = arith.constant 0 : index
    %276 = vector.load %arg8[%c0_268, %c0_269, %c0_270] : memref<1x256x16xf32, #tpu.memory_space<vmem>>, vector<1x256x16xf32>
    %277 = vector.shape_cast %276 : vector<1x256x16xf32> to vector<256x16xf32>
    %278 = vector.shape_cast %275 : vector<256x16xf32> to vector<1x256x16xf32>
    tpu.vector_store %arg8[%c0_268, %c0_269, %c0_270], %278 {strides = array<i32>} : memref<1x256x16xf32, #tpu.memory_space<vmem>>, vector<1x256x16xf32>,
    return
  }
  func.func @transform_0(%arg0: i32) -> (i32, i32, i32) {
    %c0_i32 = arith.constant 0 : i32
    %c0_i32_0 = arith.constant 0 : i32
    %c0_i32_1 = arith.constant 0 : i32
    return %arg0, %c0_i32, %c0_i32_0 : i32, i32, i32
  }
  func.func @transform_1(%arg0: i32) -> (i32, i32, i32) {
    %c0_i32 = arith.constant 0 : i32
    %c0_i32_0 = arith.constant 0 : i32
    %c0_i32_1 = arith.constant 0 : i32
    %c0_i32_2 = arith.constant 0 : i32
    return %c0_i32, %c0_i32_0, %c0_i32_1 : i32, i32, i32
  }
  func.func @transform_2(%arg0: i32) -> (i32, i32, i32) {
    %c0_i32 = arith.constant 0 : i32
    %c0_i32_0 = arith.constant 0 : i32
    %c0_i32_1 = arith.constant 0 : i32
    %c0_i32_2 = arith.constant 0 : i32
    return %c0_i32, %c0_i32_0, %c0_i32_1 : i32, i32, i32
  }
  func.func @transform_3(%arg0: i32) -> (i32, i32, i32) {
    %c0_i32 = arith.constant 0 : i32
    %c0_i32_0 = arith.constant 0 : i32
    %c0_i32_1 = arith.constant 0 : i32
    %c0_i32_2 = arith.constant 0 : i32
    return %c0_i32, %c0_i32_0, %c0_i32_1 : i32, i32, i32
  }
  func.func @transform_4(%arg0: i32) -> (i32, i32, i32) {
    %c0_i32 = arith.constant 0 : i32
    %c0_i32_0 = arith.constant 0 : i32
    %c0_i32_1 = arith.constant 0 : i32
    %c0_i32_2 = arith.constant 0 : i32
    return %c0_i32, %c0_i32_0, %c0_i32_1 : i32, i32, i32
  }
  func.func @transform_5(%arg0: i32) -> (i32, i32, i32) {
    %c0_i32 = arith.constant 0 : i32
    %c0_i32_0 = arith.constant 0 : i32
    %c0_i32_1 = arith.constant 0 : i32
    %c0_i32_2 = arith.constant 0 : i32
    return %c0_i32, %c0_i32_0, %c0_i32_1 : i32, i32, i32
  }
  func.func @transform_6(%arg0: i32) -> (i32, i32) {
    %c0_i32 = arith.constant 0 : i32
    %c0_i32_0 = arith.constant 0 : i32
    %c0_i32_1 = arith.constant 0 : i32
    return %c0_i32, %c0_i32_0 : i32, i32
  }
  func.func @transform_7(%arg0: i32) -> (i32, i32, i32) {
    %c0_i32 = arith.constant 0 : i32
    %c0_i32_0 = arith.constant 0 : i32
    %c0_i32_1 = arith.constant 0 : i32
    return %arg0, %c0_i32, %c0_i32_0 : i32, i32, i32
  }
}

</mosaic_0001>

<llo_original>
// kernel: csp_forward.1
$region0: #{csp_forward.1}
  #allocation0 [shape = 'u32[]', space=smem, size = 0x4, offset = 0x4, fixed_abs, tag = 'smem constant byte address 0x4 - core index']
  #allocation1 [shape = 'u32[144,128]{1,0:T(1,128)}', space=vmem, size = 0x12000, scoped, tag = 'internal scratch']
  #allocation2 [shape = 'f32[18,18,8]{2,1,0:T(8,128)}', space=vmem, size = 0x36000, scoped, tag = 'scratch operand']
  #allocation3 [shape = 'bf16[256,72]{1,0:T(16,128)(2,1)}', space=vmem, size = 0x10000, scoped, tag = 'scratch operand']
  %s0 = inlined_call_operand.vmem [shape: f32[2,256,16], index: 0, kind: input, shape index: {}]
  %s1 = inlined_call_operand.vmem [shape: bf16[2,16,8], index: 1, kind: input, shape index: {}]
  %s2 = inlined_call_operand.vmem [shape: f32[2,1,8], index: 2, kind: input, shape index: {}]
  %s3 = inlined_call_operand.vmem [shape: bf16[4,72,8], index: 3, kind: input, shape index: {}]
  %s4 = inlined_call_operand.vmem [shape: f32[4,1,8], index: 4, kind: input, shape index: {}]
  %s5 = inlined_call_operand.vmem [shape: bf16[4,8,16], index: 5, kind: input, shape index: {}]
  %s6 = inlined_call_operand.vmem [shape: f32[1,16], index: 6, kind: input, shape index: {}]
  %s7 = inlined_call_operand.vmem [shape: f32[2,256,16], index: 7, kind: output, shape index: {}]
  %s8 = sld [smem:[#allocation0]]
  $region61: #{csp_forward.1} parent=0
    _
  %s10 = ssub.s32 1, %s8
  %s11 = scalar_select 0, %s10, %s8
  loop: start=0, step=1, limit=4
  $region2: #{csp_forward.1} parent=0 // loop_pre_header
    _
  $region3: #{csp_forward.1} parent=0 // loop_header
    %s13 = sphi 0, %s17
    %p14 = scmp.ge.s32.totalorder %s13, 4
    %s23 = sphi 0, %s25
    %s26 = sphi 0, %s23
    %s27 = sphi 0, %s26
    %s43 = sphi 0, %s27
    %s47 = sphi 0, %s47
    %s49 = sphi 0, %s47
    %s50 = sphi 0, %s49
    %s64 = sphi 0, %s50
    %s68 = sphi 0, %s68
    %s70 = sphi 0, %s68
    %s71 = sphi 0, %s70
    %s85 = sphi 0, %s71
    %s89 = sphi 0, %s89
    %s91 = sphi 0, %s89
    %s92 = sphi 0, %s91
    %s106 = sphi 0, %s92
    %s110 = sphi 0, %s110
    %s112 = sphi 0, %s110
    %s113 = sphi 0, %s112
    %s127 = sphi 0, %s113
    %s131 = sphi 0, %s131
    %s133 = sphi 0, %s131
    %s134 = sphi 0, %s133
    %s148 = sphi 0, %s134
    %s152 = sphi 0, %s152
    %s154 = sphi 0, %s152
    %s155 = sphi 0, %s154
    %s169 = sphi 0, %s155
    %s175 = sphi 0, %s177
    %s178 = sphi 0, %s175
    %s179 = sphi 0, %s178
    %s195 = sphi 0, %s179
  $region4: #{csp_forward.1} parent=0 // loop_header_branch
    %16 = sbr.rel (%p14) target = $region8
  $region5: #{csp_forward.1} parent=0 // loop_body
    %s18 = ssub.s32 %s13, 1
    %s19 = ssub.s32 %s13, 2
    %s20 = sadd.s32 %s13, 1
    %s21 = ssub.s32 %s13, %s20
    %p22 = scmp.eq.s32.totalorder %s21, 0
    %s24 = sadd.s32 %s23, 1
    %s25 = scalar_select %p22, %s23, %s24
    %p28 = pneg %p22
    %p29 = scmp.eq.s32.totalorder %s13, 1
    %p30 = por %p28, %p29
    %p31 = scmp.ne.s32.totalorder %s23, %s26
    %p32 = scmp.eq.s32.totalorder %s13, 0
    %p33 = por %p31, %p32
    %p34 = scmp.ne.s32.totalorder %s23, %s26
    %p35 = scmp.eq.s32.totalorder %s18, 1
    %p36 = por %p34, %p35
    %p37 = scmp.ne.s32.totalorder %s26, %s27
    %p38 = scmp.eq.s32.totalorder %s18, 0
    %p39 = por %p37, %p38
    %p40 = scmp.ne.s32.totalorder %s26, %s27
    %p41 = scmp.eq.s32.totalorder %s19, 1
    %p42 = por %p40, %p41
    %p44 = scmp.ne.s32.totalorder %s27, %s43
    %p45 = scmp.eq.s32.totalorder %s19, 0
    %p46 = por %p44, %p45
    %s48 = sadd.s32 %s47, 1
    %p51 = scmp.eq.s32.totalorder %s13, 1
    %p52 = scmp.ne.s32.totalorder %s47, %s49
    %p53 = scmp.eq.s32.totalorder %s13, 0
    %p54 = por %p52, %p53
    %p55 = scmp.ne.s32.totalorder %s47, %s49
    %p56 = scmp.eq.s32.totalorder %s18, 1
    %p57 = por %p55, %p56
    %p58 = scmp.ne.s32.totalorder %s49, %s50
    %p59 = scmp.eq.s32.totalorder %s18, 0
    %p60 = por %p58, %p59
    %p61 = scmp.ne.s32.totalorder %s49, %s50
    %p62 = scmp.eq.s32.totalorder %s19, 1
    %p63 = por %p61, %p62
    %p65 = scmp.ne.s32.totalorder %s50, %s64
    %p66 = scmp.eq.s32.totalorder %s19, 0
    %p67 = por %p65, %p66
    %s69 = sadd.s32 %s68, 1
    %p72 = scmp.eq.s32.totalorder %s13, 1
    %p73 = scmp.ne.s32.totalorder %s68, %s70
    %p74 = scmp.eq.s32.totalorder %s13, 0
    %p75 = por %p73, %p74
    %p76 = scmp.ne.s32.totalorder %s68, %s70
    %p77 = scmp.eq.s32.totalorder %s18, 1
    %p78 = por %p76, %p77
    %p79 = scmp.ne.s32.totalorder %s70, %s71
    %p80 = scmp.eq.s32.totalorder %s18, 0
    %p81 = por %p79, %p80
    %p82 = scmp.ne.s32.totalorder %s70, %s71
    %p83 = scmp.eq.s32.totalorder %s19, 1
    %p84 = por %p82, %p83
    %p86 = scmp.ne.s32.totalorder %s71, %s85
    %p87 = scmp.eq.s32.totalorder %s19, 0
    %p88 = por %p86, %p87
    %s90 = sadd.s32 %s89, 1
    %p93 = scmp.eq.s32.totalorder %s13, 1
    %p94 = scmp.ne.s32.totalorder %s89, %s91
    %p95 = scmp.eq.s32.totalorder %s13, 0
    %p96 = por %p94, %p95
    %p97 = scmp.ne.s32.totalorder %s89, %s91
    %p98 = scmp.eq.s32.totalorder %s18, 1
    %p99 = por %p97, %p98
    %p100 = scmp.ne.s32.totalorder %s91, %s92
    %p101 = scmp.eq.s32.totalorder %s18, 0
    %p102 = por %p100, %p101
    %p103 = scmp.ne.s32.totalorder %s91, %s92
    %p104 = scmp.eq.s32.totalorder %s19, 1
    %p105 = por %p103, %p104
    %p107 = scmp.ne.s32.totalorder %s92, %s106
    %p108 = scmp.eq.s32.totalorder %s19, 0
    %p109 = por %p107, %p108
    %s111 = sadd.s32 %s110, 1
    %p114 = scmp.eq.s32.totalorder %s13, 1
    %p115 = scmp.ne.s32.totalorder %s110, %s112
    %p116 = scmp.eq.s32.totalorder %s13, 0
    %p117 = por %p115, %p116
    %p118 = scmp.ne.s32.totalorder %s110, %s112
    %p119 = scmp.eq.s32.totalorder %s18, 1
    %p120 = por %p118, %p119
    %p121 = scmp.ne.s32.totalorder %s112, %s113
    %p122 = scmp.eq.s32.totalorder %s18, 0
    %p123 = por %p121, %p122
    %p124 = scmp.ne.s32.totalorder %s112, %s113
    %p125 = scmp.eq.s32.totalorder %s19, 1
    %p126 = por %p124, %p125
    %p128 = scmp.ne.s32.totalorder %s113, %s127
    %p129 = scmp.eq.s32.totalorder %s19, 0
    %p130 = por %p128, %p129
    %s132 = sadd.s32 %s131, 1
    %p135 = scmp.eq.s32.totalorder %s13, 1
    %p136 = scmp.ne.s32.totalorder %s131, %s133
    %p137 = scmp.eq.s32.totalorder %s13, 0
    %p138 = por %p136, %p137
    %p139 = scmp.ne.s32.totalorder %s131, %s133
    %p140 = scmp.eq.s32.totalorder %s18, 1
    %p141 = por %p139, %p140
    %p142 = scmp.ne.s32.totalorder %s133, %s134
    %p143 = scmp.eq.s32.totalorder %s18, 0
    %p144 = por %p142, %p143
    %p145 = scmp.ne.s32.totalorder %s133, %s134
    %p146 = scmp.eq.s32.totalorder %s19, 1
    %p147 = por %p145, %p146
    %p149 = scmp.ne.s32.totalorder %s134, %s148
    %p150 = scmp.eq.s32.totalorder %s19, 0
    %p151 = por %p149, %p150
    %s153 = sadd.s32 %s152, 1
    %p156 = scmp.eq.s32.totalorder %s13, 1
    %p157 = scmp.ne.s32.totalorder %s152, %s154
    %p158 = scmp.eq.s32.totalorder %s13, 0
    %p159 = por %p157, %p158
    %p160 = scmp.ne.s32.totalorder %s152, %s154
    %p161 = scmp.eq.s32.totalorder %s18, 1
    %p162 = por %p160, %p161
    %p163 = scmp.ne.s32.totalorder %s154, %s155
    %p164 = scmp.eq.s32.totalorder %s18, 0
    %p165 = por %p163, %p164
    %p166 = scmp.ne.s32.totalorder %s154, %s155
    %p167 = scmp.eq.s32.totalorder %s19, 1
    %p168 = por %p166, %p167
    %p170 = scmp.ne.s32.totalorder %s155, %s169
    %p171 = scmp.eq.s32.totalorder %s19, 0
    %p172 = por %p170, %p171
    %s173 = ssub.s32 %s13, %s20
    %p174 = scmp.eq.s32.totalorder %s173, 0
    %s176 = sadd.s32 %s175, 1
    %s177 = scalar_select %p174, %s175, %s176
    %p180 = pneg %p174
    %p181 = scmp.eq.s32.totalorder %s13, 1
    %p182 = por %p180, %p181
    %p183 = scmp.ne.s32.totalorder %s175, %s178
    %p184 = scmp.eq.s32.totalorder %s13, 0
    %p185 = por %p183, %p184
    %p186 = scmp.ne.s32.totalorder %s175, %s178
    %p187 = scmp.eq.s32.totalorder %s18, 1
    %p188 = por %p186, %p187
    %p189 = scmp.ne.s32.totalorder %s178, %s179
    %p190 = scmp.eq.s32.totalorder %s18, 0
    %p191 = por %p189, %p190
    %p192 = scmp.ne.s32.totalorder %s178, %s179
    %p193 = scmp.eq.s32.totalorder %s19, 1
    %p194 = por %p192, %p193
    %p196 = scmp.ne.s32.totalorder %s179, %s195
    %p197 = scmp.eq.s32.totalorder %s19, 0
    %p198 = por %p196, %p197
    %p199 = scmp.le.s32.totalorder 1, %s13
    %p200 = scmp.lt.s32.totalorder %s13, 3
    %p201 = pnand %p199, %p200
    %p202 = pneg %p201
    // Predicated region
    $region9: #{csp_forward.1} parent=5 // pred_check
      _
    $region10: #{csp_forward.1} parent=5 // pred_check_branch
      %204 = sbr.rel (%p201) target = $region12
    $region11: #{csp_forward.1} parent=5 // pred_region
      %s205 = ssub.s32 %s13, 1
      // Predicated region
      $region13: #{csp_forward.1} parent=11 // pred_check
        %p206 = pneg %p60
      $region14: #{csp_forward.1} parent=11 // pred_check_branch
        %208 = sbr.rel (%p206) target = $region16
      $region15: #{csp_forward.1} parent=11 // pred_region
        _
      $region16: #{csp_forward.1} parent=11 // pred_fallthru
        _
      // Predicated region
      $region17: #{csp_forward.1} parent=11 // pred_check
        %p209 = pneg %p81
      $region18: #{csp_forward.1} parent=11 // pred_check_branch
        %211 = sbr.rel (%p209) target = $region20
      $region19: #{csp_forward.1} parent=11 // pred_region
        _
      $region20: #{csp_forward.1} parent=11 // pred_fallthru
        _
      // Predicated region
      $region21: #{csp_forward.1} parent=11 // pred_check
        %p212 = pneg %p102
      $region22: #{csp_forward.1} parent=11 // pred_check_branch
        %214 = sbr.rel (%p212) target = $region24
      $region23: #{csp_forward.1} parent=11 // pred_region
        _
      $region24: #{csp_forward.1} parent=11 // pred_fallthru
        _
      // Predicated region
      $region25: #{csp_forward.1} parent=11 // pred_check
        %p215 = pneg %p123
      $region26: #{csp_forward.1} parent=11 // pred_check_branch
        %217 = sbr.rel (%p215) target = $region28
      $region27: #{csp_forward.1} parent=11 // pred_region
        _
      $region28: #{csp_forward.1} parent=11 // pred_fallthru
        _
      // Predicated region
      $region29: #{csp_forward.1} parent=11 // pred_check
        %p218 = pneg %p144
      $region30: #{csp_forward.1} parent=11 // pred_check_branch
        %220 = sbr.rel (%p218) target = $region32
      $region31: #{csp_forward.1} parent=11 // pred_region
        _
      $region32: #{csp_forward.1} parent=11 // pred_fallthru
        _
      // Predicated region
      $region33: #{csp_forward.1} parent=11 // pred_check
        %p221 = pneg %p165
      $region34: #{csp_forward.1} parent=11 // pred_check_branch
        %223 = sbr.rel (%p221) target = $region36
      $region35: #{csp_forward.1} parent=11 // pred_region
        _
      $region36: #{csp_forward.1} parent=11 // pred_fallthru
        _
    $region12: #{csp_forward.1} parent=5 // pred_fallthru
      _
    %p224 = scmp.lt.s32.totalorder %s13, 2
    // Predicated region
    $region37: #{csp_forward.1} parent=5 // pred_check
      %p225 = pneg %p224
    $region38: #{csp_forward.1} parent=5 // pred_check_branch
      %227 = sbr.rel (%p225) target = $region40
    $region39: #{csp_forward.1} parent=5 // pred_region
      // Predicated region
      $region41: #{csp_forward.1} parent=39 // pred_check
        %p228 = pneg %p33
      $region42: #{csp_forward.1} parent=39 // pred_check_branch
        %230 = sbr.rel (%p228) target = $region44
      $region43: #{csp_forward.1} parent=39 // pred_region
        %p231 = scmp.lt.s32.totalorder %s13, 1
        %s232 = scalar_select %p231, %s13, 1
        %s233 = smul.addr %s232, 32
        %s234 = smul.addr %s233, 8
        %s235 = scalar_lea.vmem %s0, %s234
      $region44: #{csp_forward.1} parent=39 // pred_fallthru
        _
    $region40: #{csp_forward.1} parent=5 // pred_fallthru
      _
    %p236 = scmp.le.s32.totalorder 1, %s13
    %p237 = scmp.lt.s32.totalorder %s13, 3
    %p238 = pnand %p236, %p237
    %p239 = pneg %p238
    // Predicated region
    $region45: #{csp_forward.1} parent=5 // pred_check
      _
    $region46: #{csp_forward.1} parent=5 // pred_check_branch
      %241 = sbr.rel (%p238) target = $region48
    $region47: #{csp_forward.1} parent=5 // pred_region
      %s242 = ssub.s32 %s13, 1
      %p243 = scmp.lt.s32.totalorder %s18, 1
      %s244 = scalar_select %p243, %s18, 1
      %s245 = smul.addr %s244, 32
      %s246 = smul.addr %s245, 8
      %s247 = scalar_lea.vmem %s0, %s246
      %p248 = pneg %p39
      %p249 = pneg %p36
      %p250 = pneg %p60
      %p251 = pneg %p57
      %p252 = pneg %p81
      %p253 = pneg %p78
      %p254 = pneg %p102
      %p255 = pneg %p99
      %p256 = pneg %p123
      %p257 = pneg %p120
      %p258 = pneg %p144
      %p259 = pneg %p141
      %p260 = pneg %p165
      %p261 = pneg %p162
      %p262 = pneg %p191
      %p263 = pneg %p188
      %p264 = scmp.lt.s32.totalorder %s18, 1
      %s265 = scalar_select %p264, %s18, 1
      %s266 = smul.addr %s265, 32
      %s267 = smul.addr %s266, 8
      %s268 = scalar_lea.vmem %s7, %s267
      %p269 = scmp.lt.s32.totalorder %s18, 1
      %s270 = scalar_select %p269, %s18, 1
      %s271 = smul.addr %s270, 32
      %s272 = smul.addr %s271, 8
      %s273 = scalar_lea.vmem %s0, %s272
      %p274 = scmp.lt.s32.totalorder %s18, 1
      %s275 = scalar_select %p274, %s18, 1
      %s276 = smul.addr %s275, 32
      %s277 = smul.addr %s276, 8
      %s278 = scalar_lea.vmem %s7, %s277
      %vm280 = vcmask 64512
      %281 = vst.msk [vmem:[#allocation2] sm:$0xff] %vm280, 0.0
      %282 = vst.msk [vmem:[#allocation2 + $0x8] sm:$0xff] %vm280, 0.0
      %vm283 = vcmask 58368
      %284 = vst.msk [vmem:[#allocation2 + $0x10] sm:$0x3] %vm283, 0.0
      %285 = vst.msk [vmem:[#allocation2 + $0x18] sm:$0xff] %vm280, 0.0
      %286 = vst.msk [vmem:[#allocation2 + $0x20] sm:$0xff] %vm280, 0.0
      %287 = vst.msk [vmem:[#allocation2 + $0x28] sm:$0x3] %vm283, 0.0
      %288 = vst.msk [vmem:[#allocation2 + $0x30] sm:$0xff] %vm280, 0.0
      %289 = vst.msk [vmem:[#allocation2 + $0x38] sm:$0xff] %vm280, 0.0
      %290 = vst.msk [vmem:[#allocation2 + $0x40] sm:$0x3] %vm283, 0.0
      %291 = vst.msk [vmem:[#allocation2 + $0x48] sm:$0xff] %vm280, 0.0
      %292 = vst.msk [vmem:[#allocation2 + $0x50] sm:$0xff] %vm280, 0.0
      %293 = vst.msk [vmem:[#allocation2 + $0x58] sm:$0x3] %vm283, 0.0
      %294 = vst.msk [vmem:[#allocation2 + $0x60] sm:$0xff] %vm280, 0.0
      %295 = vst.msk [vmem:[#allocation2 + $0x68] sm:$0xff] %vm280, 0.0
      %296 = vst.msk [vmem:[#allocation2 + $0x70] sm:$0x3] %vm283, 0.0
      %297 = vst.msk [vmem:[#allocation2 + $0x78] sm:$0xff] %vm280, 0.0
      %298 = vst.msk [vmem:[#allocation2 + $0x80] sm:$0xff] %vm280, 0.0
      %299 = vst.msk [vmem:[#allocation2 + $0x88] sm:$0x3] %vm283, 0.0
      %300 = vst.msk [vmem:[#allocation2 + $0x90] sm:$0xff] %vm280, 0.0
      %301 = vst.msk [vmem:[#allocation2 + $0x98] sm:$0xff] %vm280, 0.0
      %302 = vst.msk [vmem:[#allocation2 + $0xa0] sm:$0x3] %vm283, 0.0
      %303 = vst.msk [vmem:[#allocation2 + $0xa8] sm:$0xff] %vm280, 0.0
      %304 = vst.msk [vmem:[#allocation2 + $0xb0] sm:$0xff] %vm280, 0.0
      %305 = vst.msk [vmem:[#allocation2 + $0xb8] sm:$0x3] %vm283, 0.0
      %306 = vst.msk [vmem:[#allocation2 + $0xc0] sm:$0xff] %vm280, 0.0
      %307 = vst.msk [vmem:[#allocation2 + $0xc8] sm:$0xff] %vm280, 0.0
      %308 = vst.msk [vmem:[#allocation2 + $0xd0] sm:$0x3] %vm283, 0.0
      %309 = vst.msk [vmem:[#allocation2 + $0xd8] sm:$0xff] %vm280, 0.0
      %310 = vst.msk [vmem:[#allocation2 + $0xe0] sm:$0xff] %vm280, 0.0
      %311 = vst.msk [vmem:[#allocation2 + $0xe8] sm:$0x3] %vm283, 0.0
      %312 = vst.msk [vmem:[#allocation2 + $0xf0] sm:$0xff] %vm280, 0.0
      %313 = vst.msk [vmem:[#allocation2 + $0xf8] sm:$0xff] %vm280, 0.0
      %314 = vst.msk [vmem:[#allocation2 + $0x100] sm:$0x3] %vm283, 0.0
      %315 = vst.msk [vmem:[#allocation2 + $0x108] sm:$0xff] %vm280, 0.0
      %316 = vst.msk [vmem:[#allocation2 + $0x110] sm:$0xff] %vm280, 0.0
      %317 = vst.msk [vmem:[#allocation2 + $0x118] sm:$0x3] %vm283, 0.0
      %318 = vst.msk [vmem:[#allocation2 + $0x120] sm:$0xff] %vm280, 0.0
      %319 = vst.msk [vmem:[#allocation2 + $0x128] sm:$0xff] %vm280, 0.0
      %320 = vst.msk [vmem:[#allocation2 + $0x130] sm:$0x3] %vm283, 0.0
      %321 = vst.msk [vmem:[#allocation2 + $0x138] sm:$0xff] %vm280, 0.0
      %322 = vst.msk [vmem:[#allocation2 + $0x140] sm:$0xff] %vm280, 0.0
      %323 = vst.msk [vmem:[#allocation2 + $0x148] sm:$0x3] %vm283, 0.0
      %324 = vst.msk [vmem:[#allocation2 + $0x150] sm:$0xff] %vm280, 0.0
      %325 = vst.msk [vmem:[#allocation2 + $0x158] sm:$0xff] %vm280, 0.0
      %326 = vst.msk [vmem:[#allocation2 + $0x160] sm:$0x3] %vm283, 0.0
      %327 = vst.msk [vmem:[#allocation2 + $0x168] sm:$0xff] %vm280, 0.0
      %328 = vst.msk [vmem:[#allocation2 + $0x170] sm:$0xff] %vm280, 0.0
      %329 = vst.msk [vmem:[#allocation2 + $0x178] sm:$0x3] %vm283, 0.0
      %330 = vst.msk [vmem:[#allocation2 + $0x180] sm:$0xff] %vm280, 0.0
      %331 = vst.msk [vmem:[#allocation2 + $0x188] sm:$0xff] %vm280, 0.0
      %332 = vst.msk [vmem:[#allocation2 + $0x190] sm:$0x3] %vm283, 0.0
      %333 = vst.msk [vmem:[#allocation2 + $0x198] sm:$0xff] %vm280, 0.0
      %334 = vst.msk [vmem:[#allocation2 + $0x1a0] sm:$0xff] %vm280, 0.0
      %335 = vst.msk [vmem:[#allocation2 + $0x1a8] sm:$0x3] %vm283, 0.0
      %v336 = vld [vmem:[%s273] sm:$0xff]
      %v337 = vld [vmem:[%s273 + $0x8] sm:$0xff]
      %v338 = vld [vmem:[%s273 + $0x10] sm:$0xff]
      %v339 = vld [vmem:[%s273 + $0x18] sm:$0xff]
      %v340 = vld [vmem:[%s273 + $0x20] sm:$0xff]
      %v341 = vld [vmem:[%s273 + $0x28] sm:$0xff]
      %v342 = vld [vmem:[%s273 + $0x30] sm:$0xff]
      %v343 = vld [vmem:[%s273 + $0x38] sm:$0xff]
      %v344 = vld [vmem:[%s273 + $0x40] sm:$0xff]
      %v345 = vld [vmem:[%s273 + $0x48] sm:$0xff]
      %v346 = vld [vmem:[%s273 + $0x50] sm:$0xff]
      %v347 = vld [vmem:[%s273 + $0x58] sm:$0xff]
      %v348 = vld [vmem:[%s273 + $0x60] sm:$0xff]
      %v349 = vld [vmem:[%s273 + $0x68] sm:$0xff]
      %v350 = vld [vmem:[%s273 + $0x70] sm:$0xff]
      %v351 = vld [vmem:[%s273 + $0x78] sm:$0xff]
      %v352 = vld [vmem:[%s273 + $0x80] sm:$0xff]
      %v353 = vld [vmem:[%s273 + $0x88] sm:$0xff]
      %v354 = vld [vmem:[%s273 + $0x90] sm:$0xff]
      %v355 = vld [vmem:[%s273 + $0x98] sm:$0xff]
      %v356 = vld [vmem:[%s273 + $0xa0] sm:$0xff]
      %v357 = vld [vmem:[%s273 + $0xa8] sm:$0xff]
      %v358 = vld [vmem:[%s273 + $0xb0] sm:$0xff]
      %v359 = vld [vmem:[%s273 + $0xb8] sm:$0xff]
      %v360 = vld [vmem:[%s273 + $0xc0] sm:$0xff]
      %v361 = vld [vmem:[%s273 + $0xc8] sm:$0xff]
      %v362 = vld [vmem:[%s273 + $0xd0] sm:$0xff]
      %v363 = vld [vmem:[%s273 + $0xd8] sm:$0xff]
      %v364 = vld [vmem:[%s273 + $0xe0] sm:$0xff]
      %v365 = vld [vmem:[%s273 + $0xe8] sm:$0xff]
      %v366 = vld [vmem:[%s273 + $0xf0] sm:$0xff]
      %v367 = vld [vmem:[%s273 + $0xf8] sm:$0xff]
      %v368 = vpack.c.bf16 %v337, %v336
      %v369 = vpack.c.bf16 %v339, %v338
      %v370 = vpack.c.bf16 %v341, %v340
      %v371 = vpack.c.bf16 %v343, %v342
      %v372 = vpack.c.bf16 %v345, %v344
      %v373 = vpack.c.bf16 %v347, %v346
      %v374 = vpack.c.bf16 %v349, %v348
      %v375 = vpack.c.bf16 %v351, %v350
      %v376 = vpack.c.bf16 %v353, %v352
      %v377 = vpack.c.bf16 %v355, %v354
      %v378 = vpack.c.bf16 %v357, %v356
      %v379 = vpack.c.bf16 %v359, %v358
      %v380 = vpack.c.bf16 %v361, %v360
      %v381 = vpack.c.bf16 %v363, %v362
      %v382 = vpack.c.bf16 %v365, %v364
      %v383 = vpack.c.bf16 %v367, %v366
      %v384 = vld [vmem:[%s1] sm:$0xf]
      %v385 = vld [vmem:[%s1 + $0x4] sm:$0xf]
      %v386 = vld [vmem:[%s2] sm:$0x1]
      %v388 = vlaneseq
      %v389 = vshrl.u32 %v388, 7
      %v390 = vsub.s32 0, %v389
      %v391 = vrot.slane %v386, %v390
      %v395 = vunpack.c.l.b16 %v384
      %v396 = vunpack.c.l.b16 %v385
      %v397 = vpack.c.b16 %v396, %v395
      %vm399 = vcmask 130048
      %v401 = vsel %vm399, %v368, 0
      %v404 = vsel %vm399, %v369, 0
      %v407 = vsel %vm399, %v370, 0
      %v410 = vsel %vm399, %v371, 0
      %v413 = vsel %vm399, %v372, 0
      %v416 = vsel %vm399, %v373, 0
      %v419 = vsel %vm399, %v374, 0
      %v422 = vsel %vm399, %v375, 0
      %v425 = vsel %vm399, %v376, 0
      %v428 = vsel %vm399, %v377, 0
      %v431 = vsel %vm399, %v378, 0
      %v434 = vsel %vm399, %v379, 0
      %v437 = vsel %vm399, %v380, 0
      %v440 = vsel %vm399, %v381, 0
      %v443 = vsel %vm399, %v382, 0
      %v446 = vsel %vm399, %v383, 0
      %448 = vmatprep.subr.bf16.mxu0 0
      %449 = vmatpush1.bf16.msra.mxu0 %v397
      %450 = vmatprep.subr.bf16.mxu0 0
      %451 = vmatpush1.bf16.msra.mxu0 0
      %452 = vmatprep.subr.bf16.mxu0 0
      %453 = vmatpush1.bf16.msra.mxu0 0
      %454 = vmatprep.subr.bf16.mxu0 0
      %455 = vmatpush1.bf16.msra.mxu0 0
      %456 = vmatprep.subr.bf16.mxu0 0
      %457 = vmatpush1.bf16.msra.mxu0 0
      %458 = vmatprep.subr.bf16.mxu0 0
      %459 = vmatpush1.bf16.msra.mxu0 0
      %460 = vmatprep.subr.bf16.mxu0 0
      %461 = vmatpush1.bf16.msra.mxu0 0
      %462 = vmatprep.subr.bf16.mxu0 0
      %463 = vmatpush1.bf16.msra.mxu0 0
      %464 = vmatprep.subr.bf16.mxu0 0
      %465 = vmatpush1.bf16.msra.mxu0 0
      %466 = vmatprep.subr.bf16.mxu0 0
      %467 = vmatpush1.bf16.msra.mxu0 0
      %468 = vmatprep.subr.bf16.mxu0 0
      %469 = vmatpush1.bf16.msra.mxu0 0
      %470 = vmatprep.subr.bf16.mxu0 0
      %471 = vmatpush1.bf16.msra.mxu0 0
      %472 = vmatprep.subr.bf16.mxu0 0
      %473 = vmatpush1.bf16.msra.mxu0 0
      %474 = vmatprep.subr.bf16.mxu0 0
      %475 = vmatpush1.bf16.msra.mxu0 0
      %476 = vmatprep.subr.bf16.mxu0 0
      %477 = vmatpush1.bf16.msra.mxu0 0
      %478 = vmatprep.subr.bf16.mxu0 0
      %479 = vmatpush1.bf16.msra.mxu0 0
      %480 = vmatprep.mubr.bf16.mxu0 0
      %481 = vmatmul.mubr.bf16.gmra.mrb[0].mxu0 %v401
      %v482 = vpop.f32.mrb[0].mxu0
      %v483 = vadd.f32 %v391, %v482
      %v484 = vpop.f32.mrb[0].mxu0
      %v485 = vpop.f32.mrb[0].mxu0
      %v486 = vadd.f32 %v391, %v485
      %v487 = vpop.f32.mrb[0].mxu0
      %488 = vmatprep.mubr.bf16.mxu0 0
      %489 = vmatmul.mubr.bf16.gmra.mrb[0].mxu0 %v404
      %v490 = vpop.f32.mrb[0].mxu0
      %v491 = vadd.f32 %v391, %v490
      %v492 = vpop.f32.mrb[0].mxu0
      %v493 = vpop.f32.mrb[0].mxu0
      %v494 = vadd.f32 %v391, %v493
      %v495 = vpop.f32.mrb[0].mxu0
      %496 = vmatprep.mubr.bf16.mxu0 0
      %497 = vmatmul.mubr.bf16.gmra.mrb[0].mxu0 %v407
      %v498 = vpop.f32.mrb[0].mxu0
      %v499 = vadd.f32 %v391, %v498
      %v500 = vpop.f32.mrb[0].mxu0
      %v501 = vpop.f32.mrb[0].mxu0
      %v502 = vadd.f32 %v391, %v501
      %v503 = vpop.f32.mrb[0].mxu0
      %504 = vmatprep.mubr.bf16.mxu0 0
      %505 = vmatmul.mubr.bf16.gmra.mrb[0].mxu0 %v410
      %v506 = vpop.f32.mrb[0].mxu0
      %v507 = vadd.f32 %v391, %v506
      %v508 = vpop.f32.mrb[0].mxu0
      %v509 = vpop.f32.mrb[0].mxu0
      %v510 = vadd.f32 %v391, %v509
      %v511 = vpop.f32.mrb[0].mxu0
      %512 = vmatprep.mubr.bf16.mxu0 0
      %513 = vmatmul.mubr.bf16.gmra.mrb[0].mxu0 %v413
      %v514 = vpop.f32.mrb[0].mxu0
      %v515 = vadd.f32 %v391, %v514
      %v516 = vpop.f32.mrb[0].mxu0
      %v517 = vpop.f32.mrb[0].mxu0
      %v518 = vadd.f32 %v391, %v517
      %v519 = vpop.f32.mrb[0].mxu0
      %520 = vmatprep.mubr.bf16.mxu0 0
      %521 = vmatmul.mubr.bf16.gmra.mrb[0].mxu0 %v416
      %v522 = vpop.f32.mrb[0].mxu0
      %v523 = vadd.f32 %v391, %v522
      %v524 = vpop.f32.mrb[0].mxu0
      %v525 = vpop.f32.mrb[0].mxu0
      %v526 = vadd.f32 %v391, %v525
      %v527 = vpop.f32.mrb[0].mxu0
      %528 = vmatprep.mubr.bf16.mxu0 0
      %529 = vmatmul.mubr.bf16.gmra.mrb[0].mxu0 %v419
      %v530 = vpop.f32.mrb[0].mxu0
      %v531 = vadd.f32 %v391, %v530
      %v532 = vpop.f32.mrb[0].mxu0
      %v533 = vpop.f32.mrb[0].mxu0
      %v534 = vadd.f32 %v391, %v533
      %v535 = vpop.f32.mrb[0].mxu0
      %536 = vmatprep.mubr.bf16.mxu0 0
      %537 = vmatmul.mubr.bf16.gmra.mrb[0].mxu0 %v422
      %v538 = vpop.f32.mrb[0].mxu0
      %v539 = vadd.f32 %v391, %v538
      %v540 = vpop.f32.mrb[0].mxu0
      %v541 = vpop.f32.mrb[0].mxu0
      %v542 = vadd.f32 %v391, %v541
      %v543 = vpop.f32.mrb[0].mxu0
      %544 = vmatprep.mubr.bf16.mxu0 0
      %545 = vmatmul.mubr.bf16.gmra.mrb[0].mxu0 %v425
      %v546 = vpop.f32.mrb[0].mxu0
      %v547 = vadd.f32 %v391, %v546
      %v548 = vpop.f32.mrb[0].mxu0
      %v549 = vpop.f32.mrb[0].mxu0
      %v550 = vadd.f32 %v391, %v549
      %v551 = vpop.f32.mrb[0].mxu0
      %552 = vmatprep.mubr.bf16.mxu0 0
      %553 = vmatmul.mubr.bf16.gmra.mrb[0].mxu0 %v428
      %v554 = vpop.f32.mrb[0].mxu0
      %v555 = vadd.f32 %v391, %v554
      %v556 = vpop.f32.mrb[0].mxu0
      %v557 = vpop.f32.mrb[0].mxu0
      %v558 = vadd.f32 %v391, %v557
      %v559 = vpop.f32.mrb[0].mxu0
      %560 = vmatprep.mubr.bf16.mxu0 0
      %561 = vmatmul.mubr.bf16.gmra.mrb[0].mxu0 %v431
      %v562 = vpop.f32.mrb[0].mxu0
      %v563 = vadd.f32 %v391, %v562
      %v564 = vpop.f32.mrb[0].mxu0
      %v565 = vpop.f32.mrb[0].mxu0
      %v566 = vadd.f32 %v391, %v565
      %v567 = vpop.f32.mrb[0].mxu0
      %568 = vmatprep.mubr.bf16.mxu0 0
      %569 = vmatmul.mubr.bf16.gmra.mrb[0].mxu0 %v434
      %v570 = vpop.f32.mrb[0].mxu0
      %v571 = vadd.f32 %v391, %v570
      %v572 = vpop.f32.mrb[0].mxu0
      %v573 = vpop.f32.mrb[0].mxu0
      %v574 = vadd.f32 %v391, %v573
      %v575 = vpop.f32.mrb[0].mxu0
      %576 = vmatprep.mubr.bf16.mxu0 0
      %577 = vmatmul.mubr.bf16.gmra.mrb[0].mxu0 %v437
      %v578 = vpop.f32.mrb[0].mxu0
      %v579 = vadd.f32 %v391, %v578
      %v580 = vpop.f32.mrb[0].mxu0
      %v581 = vpop.f32.mrb[0].mxu0
      %v582 = vadd.f32 %v391, %v581
      %v583 = vpop.f32.mrb[0].mxu0
      %584 = vmatprep.mubr.bf16.mxu0 0
      %585 = vmatmul.mubr.bf16.gmra.mrb[0].mxu0 %v440
      %v586 = vpop.f32.mrb[0].mxu0
      %v587 = vadd.f32 %v391, %v586
      %v588 = vpop.f32.mrb[0].mxu0
      %v589 = vpop.f32.mrb[0].mxu0
      %v590 = vadd.f32 %v391, %v589
      %v591 = vpop.f32.mrb[0].mxu0
      %592 = vmatprep.mubr.bf16.mxu0 0
      %593 = vmatmul.mubr.bf16.gmra.mrb[0].mxu0 %v443
      %v594 = vpop.f32.mrb[0].mxu0
      %v595 = vadd.f32 %v391, %v594
      %v596 = vpop.f32.mrb[0].mxu0
      %v597 = vpop.f32.mrb[0].mxu0
      %v598 = vadd.f32 %v391, %v597
      %v599 = vpop.f32.mrb[0].mxu0
      %600 = vmatprep.mubr.bf16.mxu0 0
      %601 = vmatmul.mubr.bf16.gmra.mrb[0].mxu0 %v446
      %v602 = vpop.f32.mrb[0].mxu0
      %v603 = vadd.f32 %v391, %v602
      %v604 = vpop.f32.mrb[0].mxu0
      %v605 = vpop.f32.mrb[0].mxu0
      %v606 = vadd.f32 %v391, %v605
      %v607 = vpop.f32.mrb[0].mxu0
      %608 = vdwg.mxu0
      %v609 = vsub.f32 0.0, %v483
      %v610 = vsub.f32 0.0, %v486
      %v611 = vsub.f32 0.0, %v491
      %v612 = vsub.f32 0.0, %v494
      %v613 = vsub.f32 0.0, %v499
      %v614 = vsub.f32 0.0, %v502
      %v615 = vsub.f32 0.0, %v507
      %v616 = vsub.f32 0.0, %v510
      %v617 = vsub.f32 0.0, %v515
      %v618 = vsub.f32 0.0, %v518
      %v619 = vsub.f32 0.0, %v523
      %v620 = vsub.f32 0.0, %v526
      %v621 = vsub.f32 0.0, %v531
      %v622 = vsub.f32 0.0, %v534
      %v623 = vsub.f32 0.0, %v539
      %v624 = vsub.f32 0.0, %v542
      %v625 = vsub.f32 0.0, %v547
      %v626 = vsub.f32 0.0, %v550
      %v627 = vsub.f32 0.0, %v555
      %v628 = vsub.f32 0.0, %v558
      %v629 = vsub.f32 0.0, %v563
      %v630 = vsub.f32 0.0, %v566
      %v631 = vsub.f32 0.0, %v571
      %v632 = vsub.f32 0.0, %v574
      %v633 = vsub.f32 0.0, %v579
      %v634 = vsub.f32 0.0, %v582
      %v635 = vsub.f32 0.0, %v587
      %v636 = vsub.f32 0.0, %v590
      %v637 = vsub.f32 0.0, %v595
      %v638 = vsub.f32 0.0, %v598
      %v639 = vsub.f32 0.0, %v603
      %v640 = vsub.f32 0.0, %v606
      %v641 = vmul.f32 %v609, 1.442695
      %v642 = vpow.pop %v641
      %v643 = vmul.f32 %v610, 1.442695
      %v644 = vpow.pop %v643
      %v645 = vmul.f32 %v611, 1.442695
      %v646 = vpow.pop %v645
      %v647 = vmul.f32 %v612, 1.442695
      %v648 = vpow.pop %v647
      %v649 = vmul.f32 %v613, 1.442695
      %v650 = vpow.pop %v649
      %v651 = vmul.f32 %v614, 1.442695
      %v652 = vpow.pop %v651
      %v653 = vmul.f32 %v615, 1.442695
      %v654 = vpow.pop %v653
      %v655 = vmul.f32 %v616, 1.442695
      %v656 = vpow.pop %v655
      %v657 = vmul.f32 %v617, 1.442695
      %v658 = vpow.pop %v657
      %v659 = vmul.f32 %v618, 1.442695
      %v660 = vpow.pop %v659
      %v661 = vmul.f32 %v619, 1.442695
      %v662 = vpow.pop %v661
      %v663 = vmul.f32 %v620, 1.442695
      %v664 = vpow.pop %v663
      %v665 = vmul.f32 %v621, 1.442695
      %v666 = vpow.pop %v665
      %v667 = vmul.f32 %v622, 1.442695
      %v668 = vpow.pop %v667
      %v669 = vmul.f32 %v623, 1.442695
      %v670 = vpow.pop %v669
      %v671 = vmul.f32 %v624, 1.442695
      %v672 = vpow.pop %v671
      %v673 = vmul.f32 %v625, 1.442695
      %v674 = vpow.pop %v673
      %v675 = vmul.f32 %v626, 1.442695
      %v676 = vpow.pop %v675
      %v677 = vmul.f32 %v627, 1.442695
      %v678 = vpow.pop %v677
      %v679 = vmul.f32 %v628, 1.442695
      %v680 = vpow.pop %v679
      %v681 = vmul.f32 %v629, 1.442695
      %v682 = vpow.pop %v681
      %v683 = vmul.f32 %v630, 1.442695
      %v684 = vpow.pop %v683
      %v685 = vmul.f32 %v631, 1.442695
      %v686 = vpow.pop %v685
      %v687 = vmul.f32 %v632, 1.442695
      %v688 = vpow.pop %v687
      %v689 = vmul.f32 %v633, 1.442695
      %v690 = vpow.pop %v689
      %v691 = vmul.f32 %v634, 1.442695
      %v692 = vpow.pop %v691
      %v693 = vmul.f32 %v635, 1.442695
      %v694 = vpow.pop %v693
      %v695 = vmul.f32 %v636, 1.442695
      %v696 = vpow.pop %v695
      %v697 = vmul.f32 %v637, 1.442695
      %v698 = vpow.pop %v697
      %v699 = vmul.f32 %v638, 1.442695
      %v700 = vpow.pop %v699
      %v701 = vmul.f32 %v639, 1.442695
      %v702 = vpow.pop %v701
      %v703 = vmul.f32 %v640, 1.442695
      %v704 = vpow.pop %v703
      %v705 = vadd.f32 %v642, 1.0
      %v706 = vadd.f32 %v644, 1.0
      %v707 = vadd.f32 %v646, 1.0
      %v708 = vadd.f32 %v648, 1.0
      %v709 = vadd.f32 %v650, 1.0
      %v710 = vadd.f32 %v652, 1.0
      %v711 = vadd.f32 %v654, 1.0
      %v712 = vadd.f32 %v656, 1.0
      %v713 = vadd.f32 %v658, 1.0
      %v714 = vadd.f32 %v660, 1.0
      %v715 = vadd.f32 %v662, 1.0
      %v716 = vadd.f32 %v664, 1.0
      %v717 = vadd.f32 %v666, 1.0
      %v718 = vadd.f32 %v668, 1.0
      %v719 = vadd.f32 %v670, 1.0
      %v720 = vadd.f32 %v672, 1.0
      %v721 = vadd.f32 %v674, 1.0
      %v722 = vadd.f32 %v676, 1.0
      %v723 = vadd.f32 %v678, 1.0
      %v724 = vadd.f32 %v680, 1.0
      %v725 = vadd.f32 %v682, 1.0
      %v726 = vadd.f32 %v684, 1.0
      %v727 = vadd.f32 %v686, 1.0
      %v728 = vadd.f32 %v688, 1.0
      %v729 = vadd.f32 %v690, 1.0
      %v730 = vadd.f32 %v692, 1.0
      %v731 = vadd.f32 %v694, 1.0
      %v732 = vadd.f32 %v696, 1.0
      %v733 = vadd.f32 %v698, 1.0
      %v734 = vadd.f32 %v700, 1.0
      %v735 = vadd.f32 %v702, 1.0
      %v736 = vadd.f32 %v704, 1.0
      %v737 = vrcp.pop %v705
      %v738 = vrcp.pop %v706
      %v739 = vrcp.pop %v707
      %v740 = vrcp.pop %v708
      %v741 = vrcp.pop %v709
      %v742 = vrcp.pop %v710
      %v743 = vrcp.pop %v711
      %v744 = vrcp.pop %v712
      %v745 = vrcp.pop %v713
      %v746 = vrcp.pop %v714
      %v747 = vrcp.pop %v715
      %v748 = vrcp.pop %v716
      %v749 = vrcp.pop %v717
      %v750 = vrcp.pop %v718
      %v751 = vrcp.pop %v719
      %v752 = vrcp.pop %v720
      %v753 = vrcp.pop %v721
      %v754 = vrcp.pop %v722
      %v755 = vrcp.pop %v723
      %v756 = vrcp.pop %v724
      %v757 = vrcp.pop %v725
      %v758 = vrcp.pop %v726
      %v759 = vrcp.pop %v727
      %v760 = vrcp.pop %v728
      %v761 = vrcp.pop %v729
      %v762 = vrcp.pop %v730
      %v763 = vrcp.pop %v731
      %v764 = vrcp.pop %v732
      %v765 = vrcp.pop %v733
      %v766 = vrcp.pop %v734
      %v767 = vrcp.pop %v735
      %v768 = vrcp.pop %v736
      %v769 = vmul.f32 %v483, %v737
      %v770 = vmul.f32 %v486, %v738
      %v771 = vmul.f32 %v491, %v739
      %v772 = vmul.f32 %v494, %v740
      %v773 = vmul.f32 %v499, %v741
      %v774 = vmul.f32 %v502, %v742
      %v775 = vmul.f32 %v507, %v743
      %v776 = vmul.f32 %v510, %v744
      %v777 = vmul.f32 %v515, %v745
      %v778 = vmul.f32 %v518, %v746
      %v779 = vmul.f32 %v523, %v747
      %v780 = vmul.f32 %v526, %v748
      %v781 = vmul.f32 %v531, %v749
      %v782 = vmul.f32 %v534, %v750
      %v783 = vmul.f32 %v539, %v751
      %v784 = vmul.f32 %v542, %v752
      %v785 = vmul.f32 %v547, %v753
      %v786 = vmul.f32 %v550, %v754
      %v787 = vmul.f32 %v555, %v755
      %v788 = vmul.f32 %v558, %v756
      %v789 = vmul.f32 %v563, %v757
      %v790 = vmul.f32 %v566, %v758
      %v791 = vmul.f32 %v571, %v759
      %v792 = vmul.f32 %v574, %v760
      %v793 = vmul.f32 %v579, %v761
      %v794 = vmul.f32 %v582, %v762
      %v795 = vmul.f32 %v587, %v763
      %v796 = vmul.f32 %v590, %v764
      %v797 = vmul.f32 %v595, %v765
      %v798 = vmul.f32 %v598, %v766
      %v799 = vmul.f32 %v603, %v767
      %v800 = vmul.f32 %v606, %v768
      %s801 = scalar_lea.vmem %s1, 8
      %v802 = vld [vmem:[%s801] sm:$0xf]
      %v803 = vld [vmem:[%s801 + $0x4] sm:$0xf]
      %s804 = scalar_lea.vmem %s2, 1
      %v805 = vld [vmem:[%s804] sm:$0x1]
      %v807 = vlaneseq
      %v808 = vshrl.u32 %v807, 7
      %v809 = vsub.s32 0, %v808
      %v810 = vrot.slane %v805, %v809
      %v814 = vunpack.c.l.b16 %v802
      %v815 = vunpack.c.l.b16 %v803
      %v816 = vpack.c.b16 %v815, %v814
      %818 = vmatprep.subr.bf16.mxu0 0
      %819 = vmatpush1.bf16.msra.mxu0 %v816
      %820 = vmatprep.subr.bf16.mxu0 0
      %821 = vmatpush1.bf16.msra.mxu0 0
      %822 = vmatprep.subr.bf16.mxu0 0
      %823 = vmatpush1.bf16.msra.mxu0 0
      %824 = vmatprep.subr.bf16.mxu0 0
      %825 = vmatpush1.bf16.msra.mxu0 0
      %826 = vmatprep.subr.bf16.mxu0 0
      %827 = vmatpush1.bf16.msra.mxu0 0
      %828 = vmatprep.subr.bf16.mxu0 0
      %829 = vmatpush1.bf16.msra.mxu0 0
      %830 = vmatprep.subr.bf16.mxu0 0
      %831 = vmatpush1.bf16.msra.mxu0 0
      %832 = vmatprep.subr.bf16.mxu0 0
      %833 = vmatpush1.bf16.msra.mxu0 0
      %834 = vmatprep.subr.bf16.mxu0 0
      %835 = vmatpush1.bf16.msra.mxu0 0
      %836 = vmatprep.subr.bf16.mxu0 0
      %837 = vmatpush1.bf16.msra.mxu0 0
      %838 = vmatprep.subr.bf16.mxu0 0
      %839 = vmatpush1.bf16.msra.mxu0 0
      %840 = vmatprep.subr.bf16.mxu0 0
      %841 = vmatpush1.bf16.msra.mxu0 0
      %842 = vmatprep.subr.bf16.mxu0 0
      %843 = vmatpush1.bf16.msra.mxu0 0
      %844 = vmatprep.subr.bf16.mxu0 0
      %845 = vmatpush1.bf16.msra.mxu0 0
      %846 = vmatprep.subr.bf16.mxu0 0
      %847 = vmatpush1.bf16.msra.mxu0 0
      %848 = vmatprep.subr.bf16.mxu0 0
      %849 = vmatpush1.bf16.msra.mxu0 0
      %850 = vmatprep.mubr.bf16.mxu0 0
      %851 = vmatmul.mubr.bf16.gmra.mrb[0].mxu0 %v401
      %v852 = vpop.f32.mrb[0].mxu0
      %v853 = vadd.f32 %v810, %v852
      %v854 = vpop.f32.mrb[0].mxu0
      %v855 = vpop.f32.mrb[0].mxu0
      %v856 = vadd.f32 %v810, %v855
      %v857 = vpop.f32.mrb[0].mxu0
      %858 = vmatprep.mubr.bf16.mxu0 0
      %859 = vmatmul.mubr.bf16.gmra.mrb[0].mxu0 %v404
      %v860 = vpop.f32.mrb[0].mxu0
      %v861 = vadd.f32 %v810, %v860
      %v862 = vpop.f32.mrb[0].mxu0
      %v863 = vpop.f32.mrb[0].mxu0
      %v864 = vadd.f32 %v810, %v863
      %v865 = vpop.f32.mrb[0].mxu0
      %866 = vmatprep.mubr.bf16.mxu0 0
      %867 = vmatmul.mubr.bf16.gmra.mrb[0].mxu0 %v407
      %v868 = vpop.f32.mrb[0].mxu0
      %v869 = vadd.f32 %v810, %v868
      %v870 = vpop.f32.mrb[0].mxu0
      %v871 = vpop.f32.mrb[0].mxu0
      %v872 = vadd.f32 %v810, %v871
      %v873 = vpop.f32.mrb[0].mxu0
      %874 = vmatprep.mubr.bf16.mxu0 0
      %875 = vmatmul.mubr.bf16.gmra.mrb[0].mxu0 %v410
      %v876 = vpop.f32.mrb[0].mxu0
      %v877 = vadd.f32 %v810, %v876
      %v878 = vpop.f32.mrb[0].mxu0
      %v879 = vpop.f32.mrb[0].mxu0
      %v880 = vadd.f32 %v810, %v879
      %v881 = vpop.f32.mrb[0].mxu0
      %882 = vmatprep.mubr.bf16.mxu0 0
      %883 = vmatmul.mubr.bf16.gmra.mrb[0].mxu0 %v413
      %v884 = vpop.f32.mrb[0].mxu0
      %v885 = vadd.f32 %v810, %v884
      %v886 = vpop.f32.mrb[0].mxu0
      %v887 = vpop.f32.mrb[0].mxu0
      %v888 = vadd.f32 %v810, %v887
      %v889 = vpop.f32.mrb[0].mxu0
      %890 = vmatprep.mubr.bf16.mxu0 0
      %891 = vmatmul.mubr.bf16.gmra.mrb[0].mxu0 %v416
      %v892 = vpop.f32.mrb[0].mxu0
      %v893 = vadd.f32 %v810, %v892
      %v894 = vpop.f32.mrb[0].mxu0
      %v895 = vpop.f32.mrb[0].mxu0
      %v896 = vadd.f32 %v810, %v895
      %v897 = vpop.f32.mrb[0].mxu0
      %898 = vmatprep.mubr.bf16.mxu0 0
      %899 = vmatmul.mubr.bf16.gmra.mrb[0].mxu0 %v419
      %v900 = vpop.f32.mrb[0].mxu0
      %v901 = vadd.f32 %v810, %v900
      %v902 = vpop.f32.mrb[0].mxu0
      %v903 = vpop.f32.mrb[0].mxu0
      %v904 = vadd.f32 %v810, %v903
      %v905 = vpop.f32.mrb[0].mxu0
      %906 = vmatprep.mubr.bf16.mxu0 0
      %907 = vmatmul.mubr.bf16.gmra.mrb[0].mxu0 %v422
      %v908 = vpop.f32.mrb[0].mxu0
      %v909 = vadd.f32 %v810, %v908
      %v910 = vpop.f32.mrb[0].mxu0
      %v911 = vpop.f32.mrb[0].mxu0
      %v912 = vadd.f32 %v810, %v911
      %v913 = vpop.f32.mrb[0].mxu0
      %914 = vmatprep.mubr.bf16.mxu0 0
      %915 = vmatmul.mubr.bf16.gmra.mrb[0].mxu0 %v425
      %v916 = vpop.f32.mrb[0].mxu0
      %v917 = vadd.f32 %v810, %v916
      %v918 = vpop.f32.mrb[0].mxu0
      %v919 = vpop.f32.mrb[0].mxu0
      %v920 = vadd.f32 %v810, %v919
      %v921 = vpop.f32.mrb[0].mxu0
      %922 = vmatprep.mubr.bf16.mxu0 0
      %923 = vmatmul.mubr.bf16.gmra.mrb[0].mxu0 %v428
      %v924 = vpop.f32.mrb[0].mxu0
      %v925 = vadd.f32 %v810, %v924
      %v926 = vpop.f32.mrb[0].mxu0
      %v927 = vpop.f32.mrb[0].mxu0
      %v928 = vadd.f32 %v810, %v927
      %v929 = vpop.f32.mrb[0].mxu0
      %930 = vmatprep.mubr.bf16.mxu0 0
      %931 = vmatmul.mubr.bf16.gmra.mrb[0].mxu0 %v431
      %v932 = vpop.f32.mrb[0].mxu0
      %v933 = vadd.f32 %v810, %v932
      %v934 = vpop.f32.mrb[0].mxu0
      %v935 = vpop.f32.mrb[0].mxu0
      %v936 = vadd.f32 %v810, %v935
      %v937 = vpop.f32.mrb[0].mxu0
      %938 = vmatprep.mubr.bf16.mxu0 0
      %939 = vmatmul.mubr.bf16.gmra.mrb[0].mxu0 %v434
      %v940 = vpop.f32.mrb[0].mxu0
      %v941 = vadd.f32 %v810, %v940
      %v942 = vpop.f32.mrb[0].mxu0
      %v943 = vpop.f32.mrb[0].mxu0
      %v944 = vadd.f32 %v810, %v943
      %v945 = vpop.f32.mrb[0].mxu0
      %946 = vmatprep.mubr.bf16.mxu0 0
      %947 = vmatmul.mubr.bf16.gmra.mrb[0].mxu0 %v437
      %v948 = vpop.f32.mrb[0].mxu0
      %v949 = vadd.f32 %v810, %v948
      %v950 = vpop.f32.mrb[0].mxu0
      %v951 = vpop.f32.mrb[0].mxu0
      %v952 = vadd.f32 %v810, %v951
      %v953 = vpop.f32.mrb[0].mxu0
      %954 = vmatprep.mubr.bf16.mxu0 0
      %955 = vmatmul.mubr.bf16.gmra.mrb[0].mxu0 %v440
      %v956 = vpop.f32.mrb[0].mxu0
      %v957 = vadd.f32 %v810, %v956
      %v958 = vpop.f32.mrb[0].mxu0
      %v959 = vpop.f32.mrb[0].mxu0
      %v960 = vadd.f32 %v810, %v959
      %v961 = vpop.f32.mrb[0].mxu0
      %962 = vmatprep.mubr.bf16.mxu0 0
      %963 = vmatmul.mubr.bf16.gmra.mrb[0].mxu0 %v443
      %v964 = vpop.f32.mrb[0].mxu0
      %v965 = vadd.f32 %v810, %v964
      %v966 = vpop.f32.mrb[0].mxu0
      %v967 = vpop.f32.mrb[0].mxu0
      %v968 = vadd.f32 %v810, %v967
      %v969 = vpop.f32.mrb[0].mxu0
      %970 = vmatprep.mubr.bf16.mxu0 0
      %971 = vmatmul.mubr.bf16.gmra.mrb[0].mxu0 %v446
      %v972 = vpop.f32.mrb[0].mxu0
      %v973 = vadd.f32 %v810, %v972
      %v974 = vpop.f32.mrb[0].mxu0
      %v975 = vpop.f32.mrb[0].mxu0
      %v976 = vadd.f32 %v810, %v975
      %v977 = vpop.f32.mrb[0].mxu0
      %978 = vdwg.mxu0
      %v979 = vsub.f32 0.0, %v853
      %v980 = vsub.f32 0.0, %v856
      %v981 = vsub.f32 0.0, %v861
      %v982 = vsub.f32 0.0, %v864
      %v983 = vsub.f32 0.0, %v869
      %v984 = vsub.f32 0.0, %v872
      %v985 = vsub.f32 0.0, %v877
      %v986 = vsub.f32 0.0, %v880
      %v987 = vsub.f32 0.0, %v885
      %v988 = vsub.f32 0.0, %v888
      %v989 = vsub.f32 0.0, %v893
      %v990 = vsub.f32 0.0, %v896
      %v991 = vsub.f32 0.0, %v901
      %v992 = vsub.f32 0.0, %v904
      %v993 = vsub.f32 0.0, %v909
      %v994 = vsub.f32 0.0, %v912
      %v995 = vsub.f32 0.0, %v917
      %v996 = vsub.f32 0.0, %v920
      %v997 = vsub.f32 0.0, %v925
      %v998 = vsub.f32 0.0, %v928
      %v999 = vsub.f32 0.0, %v933
      %v1000 = vsub.f32 0.0, %v936
      %v1001 = vsub.f32 0.0, %v941
      %v1002 = vsub.f32 0.0, %v944
      %v1003 = vsub.f32 0.0, %v949
      %v1004 = vsub.f32 0.0, %v952
      %v1005 = vsub.f32 0.0, %v957
      %v1006 = vsub.f32 0.0, %v960
      %v1007 = vsub.f32 0.0, %v965
      %v1008 = vsub.f32 0.0, %v968
      %v1009 = vsub.f32 0.0, %v973
      %v1010 = vsub.f32 0.0, %v976
      %v1011 = vmul.f32 %v979, 1.442695
      %v1012 = vpow.pop %v1011
      %v1013 = vmul.f32 %v980, 1.442695
      %v1014 = vpow.pop %v1013
      %v1015 = vmul.f32 %v981, 1.442695
      %v1016 = vpow.pop %v1015
      %v1017 = vmul.f32 %v982, 1.442695
      %v1018 = vpow.pop %v1017
      %v1019 = vmul.f32 %v983, 1.442695
      %v1020 = vpow.pop %v1019
      %v1021 = vmul.f32 %v984, 1.442695
      %v1022 = vpow.pop %v1021
      %v1023 = vmul.f32 %v985, 1.442695
      %v1024 = vpow.pop %v1023
      %v1025 = vmul.f32 %v986, 1.442695
      %v1026 = vpow.pop %v1025
      %v1027 = vmul.f32 %v987, 1.442695
      %v1028 = vpow.pop %v1027
      %v1029 = vmul.f32 %v988, 1.442695
      %v1030 = vpow.pop %v1029
      %v1031 = vmul.f32 %v989, 1.442695
      %v1032 = vpow.pop %v1031
      %v1033 = vmul.f32 %v990, 1.442695
      %v1034 = vpow.pop %v1033
      %v1035 = vmul.f32 %v991, 1.442695
      %v1036 = vpow.pop %v1035
      %v1037 = vmul.f32 %v992, 1.442695
      %v1038 = vpow.pop %v1037
      %v1039 = vmul.f32 %v993, 1.442695
      %v1040 = vpow.pop %v1039
      %v1041 = vmul.f32 %v994, 1.442695
      %v1042 = vpow.pop %v1041
      %v1043 = vmul.f32 %v995, 1.442695
      %v1044 = vpow.pop %v1043
      %v1045 = vmul.f32 %v996, 1.442695
      %v1046 = vpow.pop %v1045
      %v1047 = vmul.f32 %v997, 1.442695
      %v1048 = vpow.pop %v1047
      %v1049 = vmul.f32 %v998, 1.442695
      %v1050 = vpow.pop %v1049
      %v1051 = vmul.f32 %v999, 1.442695
      %v1052 = vpow.pop %v1051
      %v1053 = vmul.f32 %v1000, 1.442695
      %v1054 = vpow.pop %v1053
      %v1055 = vmul.f32 %v1001, 1.442695
      %v1056 = vpow.pop %v1055
      %v1057 = vmul.f32 %v1002, 1.442695
      %v1058 = vpow.pop %v1057
      %v1059 = vmul.f32 %v1003, 1.442695
      %v1060 = vpow.pop %v1059
      %v1061 = vmul.f32 %v1004, 1.442695
      %v1062 = vpow.pop %v1061
      %v1063 = vmul.f32 %v1005, 1.442695
      %v1064 = vpow.pop %v1063
      %v1065 = vmul.f32 %v1006, 1.442695
      %v1066 = vpow.pop %v1065
      %v1067 = vmul.f32 %v1007, 1.442695
      %v1068 = vpow.pop %v1067
      %v1069 = vmul.f32 %v1008, 1.442695
      %v1070 = vpow.pop %v1069
      %v1071 = vmul.f32 %v1009, 1.442695
      %v1072 = vpow.pop %v1071
      %v1073 = vmul.f32 %v1010, 1.442695
      %v1074 = vpow.pop %v1073
      %v1075 = vadd.f32 %v1012, 1.0
      %v1076 = vadd.f32 %v1014, 1.0
      %v1077 = vadd.f32 %v1016, 1.0
      %v1078 = vadd.f32 %v1018, 1.0
      %v1079 = vadd.f32 %v1020, 1.0
      %v1080 = vadd.f32 %v1022, 1.0
      %v1081 = vadd.f32 %v1024, 1.0
      %v1082 = vadd.f32 %v1026, 1.0
      %v1083 = vadd.f32 %v1028, 1.0
      %v1084 = vadd.f32 %v1030, 1.0
      %v1085 = vadd.f32 %v1032, 1.0
      %v1086 = vadd.f32 %v1034, 1.0
      %v1087 = vadd.f32 %v1036, 1.0
      %v1088 = vadd.f32 %v1038, 1.0
      %v1089 = vadd.f32 %v1040, 1.0
      %v1090 = vadd.f32 %v1042, 1.0
      %v1091 = vadd.f32 %v1044, 1.0
      %v1092 = vadd.f32 %v1046, 1.0
      %v1093 = vadd.f32 %v1048, 1.0
      %v1094 = vadd.f32 %v1050, 1.0
      %v1095 = vadd.f32 %v1052, 1.0
      %v1096 = vadd.f32 %v1054, 1.0
      %v1097 = vadd.f32 %v1056, 1.0
      %v1098 = vadd.f32 %v1058, 1.0
      %v1099 = vadd.f32 %v1060, 1.0
      %v1100 = vadd.f32 %v1062, 1.0
      %v1101 = vadd.f32 %v1064, 1.0
      %v1102 = vadd.f32 %v1066, 1.0
      %v1103 = vadd.f32 %v1068, 1.0
      %v1104 = vadd.f32 %v1070, 1.0
      %v1105 = vadd.f32 %v1072, 1.0
      %v1106 = vadd.f32 %v1074, 1.0
      %v1107 = vrcp.pop %v1075
      %v1108 = vrcp.pop %v1076
      %v1109 = vrcp.pop %v1077
      %v1110 = vrcp.pop %v1078
      %v1111 = vrcp.pop %v1079
      %v1112 = vrcp.pop %v1080
      %v1113 = vrcp.pop %v1081
      %v1114 = vrcp.pop %v1082
      %v1115 = vrcp.pop %v1083
      %v1116 = vrcp.pop %v1084
      %v1117 = vrcp.pop %v1085
      %v1118 = vrcp.pop %v1086
      %v1119 = vrcp.pop %v1087
      %v1120 = vrcp.pop %v1088
      %v1121 = vrcp.pop %v1089
      %v1122 = vrcp.pop %v1090
      %v1123 = vrcp.pop %v1091
      %v1124 = vrcp.pop %v1092
      %v1125 = vrcp.pop %v1093
      %v1126 = vrcp.pop %v1094
      %v1127 = vrcp.pop %v1095
      %v1128 = vrcp.pop %v1096
      %v1129 = vrcp.pop %v1097
      %v1130 = vrcp.pop %v1098
      %v1131 = vrcp.pop %v1099
      %v1132 = vrcp.pop %v1100
      %v1133 = vrcp.pop %v1101
      %v1134 = vrcp.pop %v1102
      %v1135 = vrcp.pop %v1103
      %v1136 = vrcp.pop %v1104
      %v1137 = vrcp.pop %v1105
      %v1138 = vrcp.pop %v1106
      %v1139 = vmul.f32 %v853, %v1107
      %v1140 = vmul.f32 %v856, %v1108
      %v1141 = vmul.f32 %v861, %v1109
      %v1142 = vmul.f32 %v864, %v1110
      %v1143 = vmul.f32 %v869, %v1111
      %v1144 = vmul.f32 %v872, %v1112
      %v1145 = vmul.f32 %v877, %v1113
      %v1146 = vmul.f32 %v880, %v1114
      %v1147 = vmul.f32 %v885, %v1115
      %v1148 = vmul.f32 %v888, %v1116
      %v1149 = vmul.f32 %v893, %v1117
      %v1150 = vmul.f32 %v896, %v1118
      %v1151 = vmul.f32 %v901, %v1119
      %v1152 = vmul.f32 %v904, %v1120
      %v1153 = vmul.f32 %v909, %v1121
      %v1154 = vmul.f32 %v912, %v1122
      %v1155 = vmul.f32 %v917, %v1123
      %v1156 = vmul.f32 %v920, %v1124
      %v1157 = vmul.f32 %v925, %v1125
      %v1158 = vmul.f32 %v928, %v1126
      %v1159 = vmul.f32 %v933, %v1127
      %v1160 = vmul.f32 %v936, %v1128
      %v1161 = vmul.f32 %v941, %v1129
      %v1162 = vmul.f32 %v944, %v1130
      %v1163 = vmul.f32 %v949, %v1131
      %v1164 = vmul.f32 %v952, %v1132
      %v1165 = vmul.f32 %v957, %v1133
      %v1166 = vmul.f32 %v960, %v1134
      %v1167 = vmul.f32 %v965, %v1135
      %v1168 = vmul.f32 %v968, %v1136
      %v1169 = vmul.f32 %v973, %v1137
      %v1170 = vmul.f32 %v976, %v1138
      %v1171 = vpack.c.bf16 %v770, %v769
      %v1172 = vpack.c.bf16 %v772, %v771
      %v1173 = vpack.c.bf16 %v774, %v773
      %v1174 = vpack.c.bf16 %v776, %v775
      %v1175 = vpack.c.bf16 %v778, %v777
      %v1176 = vpack.c.bf16 %v780, %v779
      %v1177 = vpack.c.bf16 %v782, %v781
      %v1178 = vpack.c.bf16 %v784, %v783
      %v1179 = vpack.c.bf16 %v786, %v785
      %v1180 = vpack.c.bf16 %v788, %v787
      %v1181 = vpack.c.bf16 %v790, %v789
      %v1182 = vpack.c.bf16 %v792, %v791
      %v1183 = vpack.c.bf16 %v794, %v793
      %v1184 = vpack.c.bf16 %v796, %v795
      %v1185 = vpack.c.bf16 %v798, %v797
      %v1186 = vpack.c.bf16 %v800, %v799
      %v1187 = vld [vmem:[%s5] sm:$0xf]
      %v1188 = vpack.c.bf16 %v1140, %v1139
      %v1189 = vpack.c.bf16 %v1142, %v1141
      %v1190 = vpack.c.bf16 %v1144, %v1143
      %v1191 = vpack.c.bf16 %v1146, %v1145
      %v1192 = vpack.c.bf16 %v1148, %v1147
      %v1193 = vpack.c.bf16 %v1150, %v1149
      %v1194 = vpack.c.bf16 %v1152, %v1151
      %v1195 = vpack.c.bf16 %v1154, %v1153
      %v1196 = vpack.c.bf16 %v1156, %v1155
      %v1197 = vpack.c.bf16 %v1158, %v1157
      %v1198 = vpack.c.bf16 %v1160, %v1159
      %v1199 = vpack.c.bf16 %v1162, %v1161
      %v1200 = vpack.c.bf16 %v1164, %v1163
      %v1201 = vpack.c.bf16 %v1166, %v1165
      %v1202 = vpack.c.bf16 %v1168, %v1167
      %v1203 = vpack.c.bf16 %v1170, %v1169
      %s1204 = scalar_lea.vmem %s5, 4
      %v1205 = vld [vmem:[%s1204] sm:$0xf]
      %v1207 = vsel %vm280, %v1188, 0
      %v1210 = vsel %vm280, %v1189, 0
      %v1213 = vsel %vm280, %v1190, 0
      %v1216 = vsel %vm280, %v1191, 0
      %v1219 = vsel %vm280, %v1192, 0
      %v1222 = vsel %vm280, %v1193, 0
      %v1225 = vsel %vm280, %v1194, 0
      %v1228 = vsel %vm280, %v1195, 0
      %v1231 = vsel %vm280, %v1196, 0
      %v1234 = vsel %vm280, %v1197, 0
      %v1237 = vsel %vm280, %v1198, 0
      %v1240 = vsel %vm280, %v1199, 0
      %v1243 = vsel %vm280, %v1200, 0
      %v1246 = vsel %vm280, %v1201, 0
      %v1249 = vsel %vm280, %v1202, 0
      %v1252 = vsel %vm280, %v1203, 0
      %vm1254 = vcmask 1043456
      %v1256 = vsel %vm1254, %v1205, 0
      %1258 = vmatprep.subr.bf16.mxu0 0
      %1259 = vmatpush1.bf16.msra.mxu0 %v1256
      %1260 = vmatprep.subr.bf16.mxu0 0
      %1261 = vmatpush1.bf16.msra.mxu0 0
      %1262 = vmatprep.subr.bf16.mxu0 0
      %1263 = vmatpush1.bf16.msra.mxu0 0
      %1264 = vmatprep.subr.bf16.mxu0 0
      %1265 = vmatpush1.bf16.msra.mxu0 0
      %1266 = vmatprep.subr.bf16.mxu0 0
      %1267 = vmatpush1.bf16.msra.mxu0 0
      %1268 = vmatprep.subr.bf16.mxu0 0
      %1269 = vmatpush1.bf16.msra.mxu0 0
      %1270 = vmatprep.subr.bf16.mxu0 0
      %1271 = vmatpush1.bf16.msra.mxu0 0
      %1272 = vmatprep.subr.bf16.mxu0 0
      %1273 = vmatpush1.bf16.msra.mxu0 0
      %1274 = vmatprep.subr.bf16.mxu0 0
      %1275 = vmatpush1.bf16.msra.mxu0 0
      %1276 = vmatprep.subr.bf16.mxu0 0
      %1277 = vmatpush1.bf16.msra.mxu0 0
      %1278 = vmatprep.subr.bf16.mxu0 0
      %1279 = vmatpush1.bf16.msra.mxu0 0
      %1280 = vmatprep.subr.bf16.mxu0 0
      %1281 = vmatpush1.bf16.msra.mxu0 0
      %1282 = vmatprep.subr.bf16.mxu0 0
      %1283 = vmatpush1.bf16.msra.mxu0 0
      %1284 = vmatprep.subr.bf16.mxu0 0
      %1285 = vmatpush1.bf16.msra.mxu0 0
      %1286 = vmatprep.subr.bf16.mxu0 0
      %1287 = vmatpush1.bf16.msra.mxu0 0
      %1288 = vmatprep.subr.bf16.mxu0 0
      %1289 = vmatpush1.bf16.msra.mxu0 0
      %1290 = vmatprep.mubr.bf16.mxu0 0
      %1291 = vmatmul.mubr.bf16.gmra.mrb[0].mxu0 %v1207
      %v1292 = vpop.f32.mrb[0].mxu0
      %v1293 = vadd.f32 0.0, %v1292
      %v1294 = vpop.f32.mrb[0].mxu0
      %v1295 = vpop.f32.mrb[0].mxu0
      %v1296 = vadd.f32 0.0, %v1295
      %v1297 = vpop.f32.mrb[0].mxu0
      %1298 = vmatprep.mubr.bf16.mxu0 0
      %1299 = vmatmul.mubr.bf16.gmra.mrb[0].mxu0 %v1210
      %v1300 = vpop.f32.mrb[0].mxu0
      %v1301 = vadd.f32 0.0, %v1300
      %v1302 = vpop.f32.mrb[0].mxu0
      %v1303 = vpop.f32.mrb[0].mxu0
      %v1304 = vadd.f32 0.0, %v1303
      %v1305 = vpop.f32.mrb[0].mxu0
      %1306 = vmatprep.mubr.bf16.mxu0 0
      %1307 = vmatmul.mubr.bf16.gmra.mrb[0].mxu0 %v1213
      %v1308 = vpop.f32.mrb[0].mxu0
      %v1309 = vadd.f32 0.0, %v1308
      %v1310 = vpop.f32.mrb[0].mxu0
      %v1311 = vpop.f32.mrb[0].mxu0
      %v1312 = vadd.f32 0.0, %v1311
      %v1313 = vpop.f32.mrb[0].mxu0
      %1314 = vmatprep.mubr.bf16.mxu0 0
      %1315 = vmatmul.mubr.bf16.gmra.mrb[0].mxu0 %v1216
      %v1316 = vpop.f32.mrb[0].mxu0
      %v1317 = vadd.f32 0.0, %v1316
      %v1318 = vpop.f32.mrb[0].mxu0
      %v1319 = vpop.f32.mrb[0].mxu0
      %v1320 = vadd.f32 0.0, %v1319
      %v1321 = vpop.f32.mrb[0].mxu0
      %1322 = vmatprep.mubr.bf16.mxu0 0
      %1323 = vmatmul.mubr.bf16.gmra.mrb[0].mxu0 %v1219
      %v1324 = vpop.f32.mrb[0].mxu0
      %v1325 = vadd.f32 0.0, %v1324
      %v1326 = vpop.f32.mrb[0].mxu0
      %v1327 = vpop.f32.mrb[0].mxu0
      %v1328 = vadd.f32 0.0, %v1327
      %v1329 = vpop.f32.mrb[0].mxu0
      %1330 = vmatprep.mubr.bf16.mxu0 0
      %1331 = vmatmul.mubr.bf16.gmra.mrb[0].mxu0 %v1222
      %v1332 = vpop.f32.mrb[0].mxu0
      %v1333 = vadd.f32 0.0, %v1332
      %v1334 = vpop.f32.mrb[0].mxu0
      %v1335 = vpop.f32.mrb[0].mxu0
      %v1336 = vadd.f32 0.0, %v1335
      %v1337 = vpop.f32.mrb[0].mxu0
      %1338 = vmatprep.mubr.bf16.mxu0 0
      %1339 = vmatmul.mubr.bf16.gmra.mrb[0].mxu0 %v1225
      %v1340 = vpop.f32.mrb[0].mxu0
      %v1341 = vadd.f32 0.0, %v1340
      %v1342 = vpop.f32.mrb[0].mxu0
      %v1343 = vpop.f32.mrb[0].mxu0
      %v1344 = vadd.f32 0.0, %v1343
      %v1345 = vpop.f32.mrb[0].mxu0
      %1346 = vmatprep.mubr.bf16.mxu0 0
      %1347 = vmatmul.mubr.bf16.gmra.mrb[0].mxu0 %v1228
      %v1348 = vpop.f32.mrb[0].mxu0
      %v1349 = vadd.f32 0.0, %v1348
      %v1350 = vpop.f32.mrb[0].mxu0
      %v1351 = vpop.f32.mrb[0].mxu0
      %v1352 = vadd.f32 0.0, %v1351
      %v1353 = vpop.f32.mrb[0].mxu0
      %1354 = vmatprep.mubr.bf16.mxu0 0
      %1355 = vmatmul.mubr.bf16.gmra.mrb[0].mxu0 %v1231
      %v1356 = vpop.f32.mrb[0].mxu0
      %v1357 = vadd.f32 0.0, %v1356
      %v1358 = vpop.f32.mrb[0].mxu0
      %v1359 = vpop.f32.mrb[0].mxu0
      %v1360 = vadd.f32 0.0, %v1359
      %v1361 = vpop.f32.mrb[0].mxu0
      %1362 = vmatprep.mubr.bf16.mxu0 0
      %1363 = vmatmul.mubr.bf16.gmra.mrb[0].mxu0 %v1234
      %v1364 = vpop.f32.mrb[0].mxu0
      %v1365 = vadd.f32 0.0, %v1364
      %v1366 = vpop.f32.mrb[0].mxu0
      %v1367 = vpop.f32.mrb[0].mxu0
      %v1368 = vadd.f32 0.0, %v1367
      %v1369 = vpop.f32.mrb[0].mxu0
      %1370 = vmatprep.mubr.bf16.mxu0 0
      %1371 = vmatmul.mubr.bf16.gmra.mrb[0].mxu0 %v1237
      %v1372 = vpop.f32.mrb[0].mxu0
      %v1373 = vadd.f32 0.0, %v1372
      %v1374 = vpop.f32.mrb[0].mxu0
      %v1375 = vpop.f32.mrb[0].mxu0
      %v1376 = vadd.f32 0.0, %v1375
      %v1377 = vpop.f32.mrb[0].mxu0
      %1378 = vmatprep.mubr.bf16.mxu0 0
      %1379 = vmatmul.mubr.bf16.gmra.mrb[0].mxu0 %v1240
      %v1380 = vpop.f32.mrb[0].mxu0
      %v1381 = vadd.f32 0.0, %v1380
      %v1382 = vpop.f32.mrb[0].mxu0
      %v1383 = vpop.f32.mrb[0].mxu0
      %v1384 = vadd.f32 0.0, %v1383
      %v1385 = vpop.f32.mrb[0].mxu0
      %1386 = vmatprep.mubr.bf16.mxu0 0
      %1387 = vmatmul.mubr.bf16.gmra.mrb[0].mxu0 %v1243
      %v1388 = vpop.f32.mrb[0].mxu0
      %v1389 = vadd.f32 0.0, %v1388
      %v1390 = vpop.f32.mrb[0].mxu0
      %v1391 = vpop.f32.mrb[0].mxu0
      %v1392 = vadd.f32 0.0, %v1391
      %v1393 = vpop.f32.mrb[0].mxu0
      %1394 = vmatprep.mubr.bf16.mxu0 0
      %1395 = vmatmul.mubr.bf16.gmra.mrb[0].mxu0 %v1246
      %v1396 = vpop.f32.mrb[0].mxu0
      %v1397 = vadd.f32 0.0, %v1396
      %v1398 = vpop.f32.mrb[0].mxu0
      %v1399 = vpop.f32.mrb[0].mxu0
      %v1400 = vadd.f32 0.0, %v1399
      %v1401 = vpop.f32.mrb[0].mxu0
      %1402 = vmatprep.mubr.bf16.mxu0 0
      %1403 = vmatmul.mubr.bf16.gmra.mrb[0].mxu0 %v1249
      %v1404 = vpop.f32.mrb[0].mxu0
      %v1405 = vadd.f32 0.0, %v1404
      %v1406 = vpop.f32.mrb[0].mxu0
      %v1407 = vpop.f32.mrb[0].mxu0
      %v1408 = vadd.f32 0.0, %v1407
      %v1409 = vpop.f32.mrb[0].mxu0
      %1410 = vmatprep.mubr.bf16.mxu0 0
      %1411 = vmatmul.mubr.bf16.gmra.mrb[0].mxu0 %v1252
      %v1412 = vpop.f32.mrb[0].mxu0
      %v1413 = vadd.f32 0.0, %v1412
      %v1414 = vpop.f32.mrb[0].mxu0
      %v1415 = vpop.f32.mrb[0].mxu0
      %v1416 = vadd.f32 0.0, %v1415
      %v1417 = vpop.f32.mrb[0].mxu0
      %1418 = vdwg.mxu0
      %v1420 = vsel %vm280, %v1171, 0
      %v1423 = vsel %vm280, %v1172, 0
      %v1426 = vsel %vm280, %v1173, 0
      %v1429 = vsel %vm280, %v1174, 0
      %v1432 = vsel %vm280, %v1175, 0
      %v1435 = vsel %vm280, %v1176, 0
      %v1438 = vsel %vm280, %v1177, 0
      %v1441 = vsel %vm280, %v1178, 0
      %v1444 = vsel %vm280, %v1179, 0
      %v1447 = vsel %vm280, %v1180, 0
      %v1450 = vsel %vm280, %v1181, 0
      %v1453 = vsel %vm280, %v1182, 0
      %v1456 = vsel %vm280, %v1183, 0
      %v1459 = vsel %vm280, %v1184, 0
      %v1462 = vsel %vm280, %v1185, 0
      %v1465 = vsel %vm280, %v1186, 0
      %v1468 = vsel %vm1254, %v1187, 0
      %1470 = vmatprep.subr.bf16.mxu0 0
      %1471 = vmatpush1.bf16.msra.mxu0 %v1468
      %1472 = vmatprep.subr.bf16.mxu0 0
      %1473 = vmatpush1.bf16.msra.mxu0 0
      %1474 = vmatprep.subr.bf16.mxu0 0
      %1475 = vmatpush1.bf16.msra.mxu0 0
      %1476 = vmatprep.subr.bf16.mxu0 0
      %1477 = vmatpush1.bf16.msra.mxu0 0
      %1478 = vmatprep.subr.bf16.mxu0 0
      %1479 = vmatpush1.bf16.msra.mxu0 0
      %1480 = vmatprep.subr.bf16.mxu0 0
      %1481 = vmatpush1.bf16.msra.mxu0 0
      %1482 = vmatprep.subr.bf16.mxu0 0
      %1483 = vmatpush1.bf16.msra.mxu0 0
      %1484 = vmatprep.subr.bf16.mxu0 0
      %1485 = vmatpush1.bf16.msra.mxu0 0
      %1486 = vmatprep.subr.bf16.mxu0 0
      %1487 = vmatpush1.bf16.msra.mxu0 0
      %1488 = vmatprep.subr.bf16.mxu0 0
      %1489 = vmatpush1.bf16.msra.mxu0 0
      %1490 = vmatprep.subr.bf16.mxu0 0
      %1491 = vmatpush1.bf16.msra.mxu0 0
      %1492 = vmatprep.subr.bf16.mxu0 0
      %1493 = vmatpush1.bf16.msra.mxu0 0
      %1494 = vmatprep.subr.bf16.mxu0 0
      %1495 = vmatpush1.bf16.msra.mxu0 0
      %1496 = vmatprep.subr.bf16.mxu0 0
      %1497 = vmatpush1.bf16.msra.mxu0 0
      %1498 = vmatprep.subr.bf16.mxu0 0
      %1499 = vmatpush1.bf16.msra.mxu0 0
      %1500 = vmatprep.subr.bf16.mxu0 0
      %1501 = vmatpush1.bf16.msra.mxu0 0
      %1502 = vmatprep.mubr.bf16.mxu0 0
      %1503 = vmatmul.mubr.bf16.gmra.mrb[0].mxu0 %v1420
      %v1504 = vpop.f32.mrb[0].mxu0
      %v1505 = vadd.f32 %v1293, %v1504
      %v1506 = vpop.f32.mrb[0].mxu0
      %v1507 = vpop.f32.mrb[0].mxu0
      %v1508 = vadd.f32 %v1296, %v1507
      %v1509 = vpop.f32.mrb[0].mxu0
      %1510 = vmatprep.mubr.bf16.mxu0 0
      %1511 = vmatmul.mubr.bf16.gmra.mrb[0].mxu0 %v1423
      %v1512 = vpop.f32.mrb[0].mxu0
      %v1513 = vadd.f32 %v1301, %v1512
      %v1514 = vpop.f32.mrb[0].mxu0
      %v1515 = vpop.f32.mrb[0].mxu0
      %v1516 = vadd.f32 %v1304, %v1515
      %v1517 = vpop.f32.mrb[0].mxu0
      %1518 = vmatprep.mubr.bf16.mxu0 0
      %1519 = vmatmul.mubr.bf16.gmra.mrb[0].mxu0 %v1426
      %v1520 = vpop.f32.mrb[0].mxu0
      %v1521 = vadd.f32 %v1309, %v1520
      %v1522 = vpop.f32.mrb[0].mxu0
      %v1523 = vpop.f32.mrb[0].mxu0
      %v1524 = vadd.f32 %v1312, %v1523
      %v1525 = vpop.f32.mrb[0].mxu0
      %1526 = vmatprep.mubr.bf16.mxu0 0
      %1527 = vmatmul.mubr.bf16.gmra.mrb[0].mxu0 %v1429
      %v1528 = vpop.f32.mrb[0].mxu0
      %v1529 = vadd.f32 %v1317, %v1528
      %v1530 = vpop.f32.mrb[0].mxu0
      %v1531 = vpop.f32.mrb[0].mxu0
      %v1532 = vadd.f32 %v1320, %v1531
      %v1533 = vpop.f32.mrb[0].mxu0
      %1534 = vmatprep.mubr.bf16.mxu0 0
      %1535 = vmatmul.mubr.bf16.gmra.mrb[0].mxu0 %v1432
      %v1536 = vpop.f32.mrb[0].mxu0
      %v1537 = vadd.f32 %v1325, %v1536
      %v1538 = vpop.f32.mrb[0].mxu0
      %v1539 = vpop.f32.mrb[0].mxu0
      %v1540 = vadd.f32 %v1328, %v1539
      %v1541 = vpop.f32.mrb[0].mxu0
      %1542 = vmatprep.mubr.bf16.mxu0 0
      %1543 = vmatmul.mubr.bf16.gmra.mrb[0].mxu0 %v1435
      %v1544 = vpop.f32.mrb[0].mxu0
      %v1545 = vadd.f32 %v1333, %v1544
      %v1546 = vpop.f32.mrb[0].mxu0
      %v1547 = vpop.f32.mrb[0].mxu0
      %v1548 = vadd.f32 %v1336, %v1547
      %v1549 = vpop.f32.mrb[0].mxu0
      %1550 = vmatprep.mubr.bf16.mxu0 0
      %1551 = vmatmul.mubr.bf16.gmra.mrb[0].mxu0 %v1438
      %v1552 = vpop.f32.mrb[0].mxu0
      %v1553 = vadd.f32 %v1341, %v1552
      %v1554 = vpop.f32.mrb[0].mxu0
      %v1555 = vpop.f32.mrb[0].mxu0
      %v1556 = vadd.f32 %v1344, %v1555
      %v1557 = vpop.f32.mrb[0].mxu0
      %1558 = vmatprep.mubr.bf16.mxu0 0
      %1559 = vmatmul.mubr.bf16.gmra.mrb[0].mxu0 %v1441
      %v1560 = vpop.f32.mrb[0].mxu0
      %v1561 = vadd.f32 %v1349, %v1560
      %v1562 = vpop.f32.mrb[0].mxu0
      %v1563 = vpop.f32.mrb[0].mxu0
      %v1564 = vadd.f32 %v1352, %v1563
      %v1565 = vpop.f32.mrb[0].mxu0
      %1566 = vmatprep.mubr.bf16.mxu0 0
      %1567 = vmatmul.mubr.bf16.gmra.mrb[0].mxu0 %v1444
      %v1568 = vpop.f32.mrb[0].mxu0
      %v1569 = vadd.f32 %v1357, %v1568
      %v1570 = vpop.f32.mrb[0].mxu0
      %v1571 = vpop.f32.mrb[0].mxu0
      %v1572 = vadd.f32 %v1360, %v1571
      %v1573 = vpop.f32.mrb[0].mxu0
      %1574 = vmatprep.mubr.bf16.mxu0 0
      %1575 = vmatmul.mubr.bf16.gmra.mrb[0].mxu0 %v1447
      %v1576 = vpop.f32.mrb[0].mxu0
      %v1577 = vadd.f32 %v1365, %v1576
      %v1578 = vpop.f32.mrb[0].mxu0
      %v1579 = vpop.f32.mrb[0].mxu0
      %v1580 = vadd.f32 %v1368, %v1579
      %v1581 = vpop.f32.mrb[0].mxu0
      %1582 = vmatprep.mubr.bf16.mxu0 0
      %1583 = vmatmul.mubr.bf16.gmra.mrb[0].mxu0 %v1450
      %v1584 = vpop.f32.mrb[0].mxu0
      %v1585 = vadd.f32 %v1373, %v1584
      %v1586 = vpop.f32.mrb[0].mxu0
      %v1587 = vpop.f32.mrb[0].mxu0
      %v1588 = vadd.f32 %v1376, %v1587
      %v1589 = vpop.f32.mrb[0].mxu0
      %1590 = vmatprep.mubr.bf16.mxu0 0
      %1591 = vmatmul.mubr.bf16.gmra.mrb[0].mxu0 %v1453
      %v1592 = vpop.f32.mrb[0].mxu0
      %v1593 = vadd.f32 %v1381, %v1592
      %v1594 = vpop.f32.mrb[0].mxu0
      %v1595 = vpop.f32.mrb[0].mxu0
      %v1596 = vadd.f32 %v1384, %v1595
      %v1597 = vpop.f32.mrb[0].mxu0
      %1598 = vmatprep.mubr.bf16.mxu0 0
      %1599 = vmatmul.mubr.bf16.gmra.mrb[0].mxu0 %v1456
      %v1600 = vpop.f32.mrb[0].mxu0
      %v1601 = vadd.f32 %v1389, %v1600
      %v1602 = vpop.f32.mrb[0].mxu0
      %v1603 = vpop.f32.mrb[0].mxu0
      %v1604 = vadd.f32 %v1392, %v1603
      %v1605 = vpop.f32.mrb[0].mxu0
      %1606 = vmatprep.mubr.bf16.mxu0 0
      %1607 = vmatmul.mubr.bf16.gmra.mrb[0].mxu0 %v1459
      %v1608 = vpop.f32.mrb[0].mxu0
      %v1609 = vadd.f32 %v1397, %v1608
      %v1610 = vpop.f32.mrb[0].mxu0
      %v1611 = vpop.f32.mrb[0].mxu0
      %v1612 = vadd.f32 %v1400, %v1611
      %v1613 = vpop.f32.mrb[0].mxu0
      %1614 = vmatprep.mubr.bf16.mxu0 0
      %1615 = vmatmul.mubr.bf16.gmra.mrb[0].mxu0 %v1462
      %v1616 = vpop.f32.mrb[0].mxu0
      %v1617 = vadd.f32 %v1405, %v1616
      %v1618 = vpop.f32.mrb[0].mxu0
      %v1619 = vpop.f32.mrb[0].mxu0
      %v1620 = vadd.f32 %v1408, %v1619
      %v1621 = vpop.f32.mrb[0].mxu0
      %1622 = vmatprep.mubr.bf16.mxu0 0
      %1623 = vmatmul.mubr.bf16.gmra.mrb[0].mxu0 %v1465
      %v1624 = vpop.f32.mrb[0].mxu0
      %v1625 = vadd.f32 %v1413, %v1624
      %v1626 = vpop.f32.mrb[0].mxu0
      %v1627 = vpop.f32.mrb[0].mxu0
      %v1628 = vadd.f32 %v1416, %v1627
      %v1629 = vpop.f32.mrb[0].mxu0
      %1630 = vdwg.mxu0
      %s1631 = scalar_lea.vmem [#allocation2], 24
      %1632 = vst.msk [vmem:[%s1631 + $0x1] sm:$0xff] %vm280, %v1139
      %1633 = vst.msk [vmem:[%s1631 + $0x9] sm:$0xff] %vm280, %v1140
      %1634 = vst.msk [vmem:[%s1631 + $0x19] sm:$0xff] %vm280, %v1141
      %1635 = vst.msk [vmem:[%s1631 + $0x21] sm:$0xff] %vm280, %v1142
      %1636 = vst.msk [vmem:[%s1631 + $0x31] sm:$0xff] %vm280, %v1143
      %1637 = vst.msk [vmem:[%s1631 + $0x39] sm:$0xff] %vm280, %v1144
      %1638 = vst.msk [vmem:[%s1631 + $0x49] sm:$0xff] %vm280, %v1145
      %1639 = vst.msk [vmem:[%s1631 + $0x51] sm:$0xff] %vm280, %v1146
      %1640 = vst.msk [vmem:[%s1631 + $0x61] sm:$0xff] %vm280, %v1147
      %1641 = vst.msk [vmem:[%s1631 + $0x69] sm:$0xff] %vm280, %v1148
      %1642 = vst.msk [vmem:[%s1631 + $0x79] sm:$0xff] %vm280, %v1149
      %1643 = vst.msk [vmem:[%s1631 + $0x81] sm:$0xff] %vm280, %v1150
      %1644 = vst.msk [vmem:[%s1631 + $0x91] sm:$0xff] %vm280, %v1151
      %1645 = vst.msk [vmem:[%s1631 + $0x99] sm:$0xff] %vm280, %v1152
      %1646 = vst.msk [vmem:[%s1631 + $0xa9] sm:$0xff] %vm280, %v1153
      %1647 = vst.msk [vmem:[%s1631 + $0xb1] sm:$0xff] %vm280, %v1154
      %1648 = vst.msk [vmem:[%s1631 + $0xc1] sm:$0xff] %vm280, %v1155
      %1649 = vst.msk [vmem:[%s1631 + $0xc9] sm:$0xff] %vm280, %v1156
      %1650 = vst.msk [vmem:[%s1631 + $0xd9] sm:$0xff] %vm280, %v1157
      %1651 = vst.msk [vmem:[%s1631 + $0xe1] sm:$0xff] %vm280, %v1158
      %1652 = vst.msk [vmem:[%s1631 + $0xf1] sm:$0xff] %vm280, %v1159
      %1653 = vst.msk [vmem:[%s1631 + $0xf9] sm:$0xff] %vm280, %v1160
      %1654 = vst.msk [vmem:[%s1631 + $0x109] sm:$0xff] %vm280, %v1161
      %1655 = vst.msk [vmem:[%s1631 + $0x111] sm:$0xff] %vm280, %v1162
      %1656 = vst.msk [vmem:[%s1631 + $0x121] sm:$0xff] %vm280, %v1163
      %1657 = vst.msk [vmem:[%s1631 + $0x129] sm:$0xff] %vm280, %v1164
      %1658 = vst.msk [vmem:[%s1631 + $0x139] sm:$0xff] %vm280, %v1165
      %1659 = vst.msk [vmem:[%s1631 + $0x141] sm:$0xff] %vm280, %v1166
      %1660 = vst.msk [vmem:[%s1631 + $0x151] sm:$0xff] %vm280, %v1167
      %1661 = vst.msk [vmem:[%s1631 + $0x159] sm:$0xff] %vm280, %v1168
      %1662 = vst.msk [vmem:[%s1631 + $0x169] sm:$0xff] %vm280, %v1169
      %1663 = vst.msk [vmem:[%s1631 + $0x171] sm:$0xff] %vm280, %v1170
      %v1664 = vld [vmem:[#allocation2] sm:$0xff]
      %v1665 = vld [vmem:[#allocation2 + $0x8] sm:$0xff]
      %v1666 = vld [vmem:[#allocation2 + $0x18] sm:$0xff]
      %v1667 = vld [vmem:[#allocation2 + $0x20] sm:$0xff]
      %v1668 = vld [vmem:[#allocation2 + $0x30] sm:$0xff]
      %v1669 = vld [vmem:[#allocation2 + $0x38] sm:$0xff]
      %v1670 = vld [vmem:[#allocation2 + $0x48] sm:$0xff]
      %v1671 = vld [vmem:[#allocation2 + $0x50] sm:$0xff]
      %v1672 = vld [vmem:[#allocation2 + $0x60] sm:$0xff]
      %v1673 = vld [vmem:[#allocation2 + $0x68] sm:$0xff]
      %v1674 = vld [vmem:[#allocation2 + $0x78] sm:$0xff]
      %v1675 = vld [vmem:[#allocation2 + $0x80] sm:$0xff]
      %v1676 = vld [vmem:[#allocation2 + $0x90] sm:$0xff]
      %v1677 = vld [vmem:[#allocation2 + $0x98] sm:$0xff]
      %v1678 = vld [vmem:[#allocation2 + $0xa8] sm:$0xff]
      %v1679 = vld [vmem:[#allocation2 + $0xb0] sm:$0xff]
      %v1680 = vld [vmem:[#allocation2 + $0xc0] sm:$0xff]
      %v1681 = vld [vmem:[#allocation2 + $0xc8] sm:$0xff]
      %v1682 = vld [vmem:[#allocation2 + $0xd8] sm:$0xff]
      %v1683 = vld [vmem:[#allocation2 + $0xe0] sm:$0xff]
      %v1684 = vld [vmem:[#allocation2 + $0xf0] sm:$0xff]
      %v1685 = vld [vmem:[#allocation2 + $0xf8] sm:$0xff]
      %v1686 = vld [vmem:[#allocation2 + $0x108] sm:$0xff]
      %v1687 = vld [vmem:[#allocation2 + $0x110] sm:$0xff]
      %v1688 = vld [vmem:[#allocation2 + $0x120] sm:$0xff]
      %v1689 = vld [vmem:[#allocation2 + $0x128] sm:$0xff]
      %v1690 = vld [vmem:[#allocation2 + $0x138] sm:$0xff]
      %v1691 = vld [vmem:[#allocation2 + $0x140] sm:$0xff]
      %v1692 = vld [vmem:[#allocation2 + $0x150] sm:$0xff]
      %v1693 = vld [vmem:[#allocation2 + $0x158] sm:$0xff]
      %v1694 = vld [vmem:[#allocation2 + $0x168] sm:$0xff]
      %v1695 = vld [vmem:[#allocation2 + $0x170] sm:$0xff]
      %v1696 = vpack.c.bf16 %v1665, %v1664
      %v1697 = vpack.c.bf16 %v1667, %v1666
      %v1698 = vpack.c.bf16 %v1669, %v1668
      %v1699 = vpack.c.bf16 %v1671, %v1670
      %v1700 = vpack.c.bf16 %v1673, %v1672
      %v1701 = vpack.c.bf16 %v1675, %v1674
      %v1702 = vpack.c.bf16 %v1677, %v1676
      %v1703 = vpack.c.bf16 %v1679, %v1678
      %v1704 = vpack.c.bf16 %v1681, %v1680
      %v1705 = vpack.c.bf16 %v1683, %v1682
      %v1706 = vpack.c.bf16 %v1685, %v1684
      %v1707 = vpack.c.bf16 %v1687, %v1686
      %v1708 = vpack.c.bf16 %v1689, %v1688
      %v1709 = vpack.c.bf16 %v1691, %v1690
      %v1710 = vpack.c.bf16 %v1693, %v1692
      %v1711 = vpack.c.bf16 %v1695, %v1694
      %1712 = vst.msk [vmem:[#allocation3] sm:$0xff] %vm280, %v1696
      %1713 = vst.msk [vmem:[#allocation3 + $0x8] sm:$0xff] %vm280, %v1697
      %1714 = vst.msk [vmem:[#allocation3 + $0x10] sm:$0xff] %vm280, %v1698
      %1715 = vst.msk [vmem:[#allocation3 + $0x18] sm:$0xff] %vm280, %v1699
      %1716 = vst.msk [vmem:[#allocation3 + $0x20] sm:$0xff] %vm280, %v1700
      %1717 = vst.msk [vmem:[#allocation3 + $0x28] sm:$0xff] %vm280, %v1701
      %1718 = vst.msk [vmem:[#allocation3 + $0x30] sm:$0xff] %vm280, %v1702
      %1719 = vst.msk [vmem:[#allocation3 + $0x38] sm:$0xff] %vm280, %v1703
      %1720 = vst.msk [vmem:[#allocation3 + $0x40] sm:$0xff] %vm280, %v1704
      %1721 = vst.msk [vmem:[#allocation3 + $0x48] sm:$0xff] %vm280, %v1705
      %1722 = vst.msk [vmem:[#allocation3 + $0x50] sm:$0xff] %vm280, %v1706
      %1723 = vst.msk [vmem:[#allocation3 + $0x58] sm:$0xff] %vm280, %v1707
      %1724 = vst.msk [vmem:[#allocation3 + $0x60] sm:$0xff] %vm280, %v1708
      %1725 = vst.msk [vmem:[#allocation3 + $0x68] sm:$0xff] %vm280, %v1709
      %1726 = vst.msk [vmem:[#allocation3 + $0x70] sm:$0xff] %vm280, %v1710
      %1727 = vst.msk [vmem:[#allocation3 + $0x78] sm:$0xff] %vm280, %v1711
      %v1728 = vld [vmem:[#allocation2 + $0x1] sm:$0xff]
      %v1729 = vld [vmem:[#allocation2 + $0x9] sm:$0xff]
      %v1730 = vld [vmem:[#allocation2 + $0x19] sm:$0xff]
      %v1731 = vld [vmem:[#allocation2 + $0x21] sm:$0xff]
      %v1732 = vld [vmem:[#allocation2 + $0x31] sm:$0xff]
      %v1733 = vld [vmem:[#allocation2 + $0x39] sm:$0xff]
      %v1734 = vld [vmem:[#allocation2 + $0x49] sm:$0xff]
      %v1735 = vld [vmem:[#allocation2 + $0x51] sm:$0xff]
      %v1736 = vld [vmem:[#allocation2 + $0x61] sm:$0xff]
      %v1737 = vld [vmem:[#allocation2 + $0x69] sm:$0xff]
      %v1738 = vld [vmem:[#allocation2 + $0x79] sm:$0xff]
      %v1739 = vld [vmem:[#allocation2 + $0x81] sm:$0xff]
      %v1740 = vld [vmem:[#allocation2 + $0x91] sm:$0xff]
      %v1741 = vld [vmem:[#allocation2 + $0x99] sm:$0xff]
      %v1742 = vld [vmem:[#allocation2 + $0xa9] sm:$0xff]
      %v1743 = vld [vmem:[#allocation2 + $0xb1] sm:$0xff]
      %v1744 = vld [vmem:[#allocation2 + $0xc1] sm:$0xff]
      %v1745 = vld [vmem:[#allocation2 + $0xc9] sm:$0xff]
      %v1746 = vld [vmem:[#allocation2 + $0xd9] sm:$0xff]
      %v1747 = vld [vmem:[#allocation2 + $0xe1] sm:$0xff]
      %v1748 = vld [vmem:[#allocation2 + $0xf1] sm:$0xff]
      %v1749 = vld [vmem:[#allocation2 + $0xf9] sm:$0xff]
      %v1750 = vld [vmem:[#allocation2 + $0x109] sm:$0xff]
      %v1751 = vld [vmem:[#allocation2 + $0x111] sm:$0xff]
      %v1752 = vld [vmem:[#allocation2 + $0x121] sm:$0xff]
      %v1753 = vld [vmem:[#allocation2 + $0x129] sm:$0xff]
      %v1754 = vld [vmem:[#allocation2 + $0x139] sm:$0xff]
      %v1755 = vld [vmem:[#allocation2 + $0x141] sm:$0xff]
      %v1756 = vld [vmem:[#allocation2 + $0x151] sm:$0xff]
      %v1757 = vld [vmem:[#allocation2 + $0x159] sm:$0xff]
      %v1758 = vld [vmem:[#allocation2 + $0x169] sm:$0xff]
      %v1759 = vld [vmem:[#allocation2 + $0x171] sm:$0xff]
      %v1760 = vpack.c.bf16 %v1729, %v1728
      %v1761 = vpack.c.bf16 %v1731, %v1730
      %v1762 = vpack.c.bf16 %v1733, %v1732
      %v1763 = vpack.c.bf16 %v1735, %v1734
      %v1764 = vpack.c.bf16 %v1737, %v1736
      %v1765 = vpack.c.bf16 %v1739, %v1738
      %v1766 = vpack.c.bf16 %v1741, %v1740
      %v1767 = vpack.c.bf16 %v1743, %v1742
      %v1768 = vpack.c.bf16 %v1745, %v1744
      %v1769 = vpack.c.bf16 %v1747, %v1746
      %v1770 = vpack.c.bf16 %v1749, %v1748
      %v1771 = vpack.c.bf16 %v1751, %v1750
      %v1772 = vpack.c.bf16 %v1753, %v1752
      %v1773 = vpack.c.bf16 %v1755, %v1754
      %v1774 = vpack.c.bf16 %v1757, %v1756
      %v1775 = vpack.c.bf16 %v1759, %v1758
      %1792 = vrot.lane.b32.xlu0 %v1760, 8
      %v1793 = vpop.permute.xlu0 %1792
      %1794 = vrot.lane.b32.xlu0 %v1761, 8
      %v1795 = vpop.permute.xlu0 %1794
      %1796 = vrot.lane.b32.xlu0 %v1762, 8
      %v1797 = vpop.permute.xlu0 %1796
      %1798 = vrot.lane.b32.xlu0 %v1763, 8
      %v1799 = vpop.permute.xlu0 %1798
      %1800 = vrot.lane.b32.xlu0 %v1764, 8
      %v1801 = vpop.permute.xlu0 %1800
      %1802 = vrot.lane.b32.xlu0 %v1765, 8
      %v1803 = vpop.permute.xlu0 %1802
      %1804 = vrot.lane.b32.xlu0 %v1766, 8
      %v1805 = vpop.permute.xlu0 %1804
      %1806 = vrot.lane.b32.xlu0 %v1767, 8
      %v1807 = vpop.permute.xlu0 %1806
      %1808 = vrot.lane.b32.xlu0 %v1768, 8
      %v1809 = vpop.permute.xlu0 %1808
      %1810 = vrot.lane.b32.xlu0 %v1769, 8
      %v1811 = vpop.permute.xlu0 %1810
      %1812 = vrot.lane.b32.xlu0 %v1770, 8
      %v1813 = vpop.permute.xlu0 %1812
      %1814 = vrot.lane.b32.xlu0 %v1771, 8
      %v1815 = vpop.permute.xlu0 %1814
      %1816 = vrot.lane.b32.xlu0 %v1772, 8
      %v1817 = vpop.permute.xlu0 %1816
      %1818 = vrot.lane.b32.xlu0 %v1773, 8
      %v1819 = vpop.permute.xlu0 %1818
      %1820 = vrot.lane.b32.xlu0 %v1774, 8
      %v1821 = vpop.permute.xlu0 %1820
      %1822 = vrot.lane.b32.xlu0 %v1775, 8
      %v1823 = vpop.permute.xlu0 %1822
      %vm1840 = vcmask 130112
      %1841 = vst.msk [vmem:[#allocation3] sm:$0xff] %vm1840, %v1793
      %1842 = vst.msk [vmem:[#allocation3 + $0x8] sm:$0xff] %vm1840, %v1795
      %1843 = vst.msk [vmem:[#allocation3 + $0x10] sm:$0xff] %vm1840, %v1797
      %1844 = vst.msk [vmem:[#allocation3 + $0x18] sm:$0xff] %vm1840, %v1799
      %1845 = vst.msk [vmem:[#allocation3 + $0x20] sm:$0xff] %vm1840, %v1801
      %1846 = vst.msk [vmem:[#allocation3 + $0x28] sm:$0xff] %vm1840, %v1803
      %1847 = vst.msk [vmem:[#allocation3 + $0x30] sm:$0xff] %vm1840, %v1805
      %1848 = vst.msk [vmem:[#allocation3 + $0x38] sm:$0xff] %vm1840, %v1807
      %1849 = vst.msk [vmem:[#allocation3 + $0x40] sm:$0xff] %vm1840, %v1809
      %1850 = vst.msk [vmem:[#allocation3 + $0x48] sm:$0xff] %vm1840, %v1811
      %1851 = vst.msk [vmem:[#allocation3 + $0x50] sm:$0xff] %vm1840, %v1813
      %1852 = vst.msk [vmem:[#allocation3 + $0x58] sm:$0xff] %vm1840, %v1815
      %1853 = vst.msk [vmem:[#allocation3 + $0x60] sm:$0xff] %vm1840, %v1817
      %1854 = vst.msk [vmem:[#allocation3 + $0x68] sm:$0xff] %vm1840, %v1819
      %1855 = vst.msk [vmem:[#allocation3 + $0x70] sm:$0xff] %vm1840, %v1821
      %1856 = vst.msk [vmem:[#allocation3 + $0x78] sm:$0xff] %vm1840, %v1823
      %v1857 = vld [vmem:[#allocation2 + $0x2] sm:$0xff]
      %v1858 = vld [vmem:[#allocation2 + $0xa] sm:$0xff]
      %v1859 = vld [vmem:[#allocation2 + $0x1a] sm:$0xff]
      %v1860 = vld [vmem:[#allocation2 + $0x22] sm:$0xff]
      %v1861 = vld [vmem:[#allocation2 + $0x32] sm:$0xff]
      %v1862 = vld [vmem:[#allocation2 + $0x3a] sm:$0xff]
      %v1863 = vld [vmem:[#allocation2 + $0x4a] sm:$0xff]
      %v1864 = vld [vmem:[#allocation2 + $0x52] sm:$0xff]
      %v1865 = vld [vmem:[#allocation2 + $0x62] sm:$0xff]
      %v1866 = vld [vmem:[#allocation2 + $0x6a] sm:$0xff]
      %v1867 = vld [vmem:[#allocation2 + $0x7a] sm:$0xff]
      %v1868 = vld [vmem:[#allocation2 + $0x82] sm:$0xff]
      %v1869 = vld [vmem:[#allocation2 + $0x92] sm:$0xff]
      %v1870 = vld [vmem:[#allocation2 + $0x9a] sm:$0xff]
      %v1871 = vld [vmem:[#allocation2 + $0xaa] sm:$0xff]
      %v1872 = vld [vmem:[#allocation2 + $0xb2] sm:$0xff]
      %v1873 = vld [vmem:[#allocation2 + $0xc2] sm:$0xff]
      %v1874 = vld [vmem:[#allocation2 + $0xca] sm:$0xff]
      %v1875 = vld [vmem:[#allocation2 + $0xda] sm:$0xff]
      %v1876 = vld [vmem:[#allocation2 + $0xe2] sm:$0xff]
      %v1877 = vld [vmem:[#allocation2 + $0xf2] sm:$0xff]
      %v1878 = vld [vmem:[#allocation2 + $0xfa] sm:$0xff]
      %v1879 = vld [vmem:[#allocation2 + $0x10a] sm:$0xff]
      %v1880 = vld [vmem:[#allocation2 + $0x112] sm:$0xff]
      %v1881 = vld [vmem:[#allocation2 + $0x122] sm:$0xff]
      %v1882 = vld [vmem:[#allocation2 + $0x12a] sm:$0xff]
      %v1883 = vld [vmem:[#allocation2 + $0x13a] sm:$0xff]
      %v1884 = vld [vmem:[#allocation2 + $0x142] sm:$0xff]
      %v1885 = vld [vmem:[#allocation2 + $0x152] sm:$0xff]
      %v1886 = vld [vmem:[#allocation2 + $0x15a] sm:$0xff]
      %v1887 = vld [vmem:[#allocation2 + $0x16a] sm:$0xff]
      %v1888 = vld [vmem:[#allocation2 + $0x172] sm:$0xff]
      %v1889 = vpack.c.bf16 %v1858, %v1857
      %v1890 = vpack.c.bf16 %v1860, %v1859
      %v1891 = vpack.c.bf16 %v1862, %v1861
      %v1892 = vpack.c.bf16 %v1864, %v1863
      %v1893 = vpack.c.bf16 %v1866, %v1865
      %v1894 = vpack.c.bf16 %v1868, %v1867
      %v1895 = vpack.c.bf16 %v1870, %v1869
      %v1896 = vpack.c.bf16 %v1872, %v1871
      %v1897 = vpack.c.bf16 %v1874, %v1873
      %v1898 = vpack.c.bf16 %v1876, %v1875
      %v1899 = vpack.c.bf16 %v1878, %v1877
      %v1900 = vpack.c.bf16 %v1880, %v1879
      %v1901 = vpack.c.bf16 %v1882, %v1881
      %v1902 = vpack.c.bf16 %v1884, %v1883
      %v1903 = vpack.c.bf16 %v1886, %v1885
      %v1904 = vpack.c.bf16 %v1888, %v1887
      %1921 = vrot.lane.b32.xlu0 %v1889, 16
      %v1922 = vpop.permute.xlu0 %1921
      %1923 = vrot.lane.b32.xlu0 %v1890, 16
      %v1924 = vpop.permute.xlu0 %1923
      %1925 = vrot.lane.b32.xlu0 %v1891, 16
      %v1926 = vpop.permute.xlu0 %1925
      %1927 = vrot.lane.b32.xlu0 %v1892, 16
      %v1928 = vpop.permute.xlu0 %1927
      %1929 = vrot.lane.b32.xlu0 %v1893, 16
      %v1930 = vpop.permute.xlu0 %1929
      %1931 = vrot.lane.b32.xlu0 %v1894, 16
      %v1932 = vpop.permute.xlu0 %1931
      %1933 = vrot.lane.b32.xlu0 %v1895, 16
      %v1934 = vpop.permute.xlu0 %1933
      %1935 = vrot.lane.b32.xlu0 %v1896, 16
      %v1936 = vpop.permute.xlu0 %1935
      %1937 = vrot.lane.b32.xlu0 %v1897, 16
      %v1938 = vpop.permute.xlu0 %1937
      %1939 = vrot.lane.b32.xlu0 %v1898, 16
      %v1940 = vpop.permute.xlu0 %1939
      %1941 = vrot.lane.b32.xlu0 %v1899, 16
      %v1942 = vpop.permute.xlu0 %1941
      %1943 = vrot.lane.b32.xlu0 %v1900, 16
      %v1944 = vpop.permute.xlu0 %1943
      %1945 = vrot.lane.b32.xlu0 %v1901, 16
      %v1946 = vpop.permute.xlu0 %1945
      %1947 = vrot.lane.b32.xlu0 %v1902, 16
      %v1948 = vpop.permute.xlu0 %1947
      %1949 = vrot.lane.b32.xlu0 %v1903, 16
      %v1950 = vpop.permute.xlu0 %1949
      %1951 = vrot.lane.b32.xlu0 %v1904, 16
      %v1952 = vpop.permute.xlu0 %1951
      %vm1969 = vcmask 195712
      %1970 = vst.msk [vmem:[#allocation3] sm:$0xff] %vm1969, %v1922
      %1971 = vst.msk [vmem:[#allocation3 + $0x8] sm:$0xff] %vm1969, %v1924
      %1972 = vst.msk [vmem:[#allocation3 + $0x10] sm:$0xff] %vm1969, %v1926
      %1973 = vst.msk [vmem:[#allocation3 + $0x18] sm:$0xff] %vm1969, %v1928
      %1974 = vst.msk [vmem:[#allocation3 + $0x20] sm:$0xff] %vm1969, %v1930
      %1975 = vst.msk [vmem:[#allocation3 + $0x28] sm:$0xff] %vm1969, %v1932
      %1976 = vst.msk [vmem:[#allocation3 + $0x30] sm:$0xff] %vm1969, %v1934
      %1977 = vst.msk [vmem:[#allocation3 + $0x38] sm:$0xff] %vm1969, %v1936
      %1978 = vst.msk [vmem:[#allocation3 + $0x40] sm:$0xff] %vm1969, %v1938
      %1979 = vst.msk [vmem:[#allocation3 + $0x48] sm:$0xff] %vm1969, %v1940
      %1980 = vst.msk [vmem:[#allocation3 + $0x50] sm:$0xff] %vm1969, %v1942
      %1981 = vst.msk [vmem:[#allocation3 + $0x58] sm:$0xff] %vm1969, %v1944
      %1982 = vst.msk [vmem:[#allocation3 + $0x60] sm:$0xff] %vm1969, %v1946
      %1983 = vst.msk [vmem:[#allocation3 + $0x68] sm:$0xff] %vm1969, %v1948
      %1984 = vst.msk [vmem:[#allocation3 + $0x70] sm:$0xff] %vm1969, %v1950
      %1985 = vst.msk [vmem:[#allocation3 + $0x78] sm:$0xff] %vm1969, %v1952
      %v1986 = vld [vmem:[%s1631] sm:$0xff]
      %v1987 = vld [vmem:[%s1631 + $0x8] sm:$0xff]
      %v1988 = vld [vmem:[%s1631 + $0x18] sm:$0xff]
      %v1989 = vld [vmem:[%s1631 + $0x20] sm:$0xff]
      %v1990 = vld [vmem:[%s1631 + $0x30] sm:$0xff]
      %v1991 = vld [vmem:[%s1631 + $0x38] sm:$0xff]
      %v1992 = vld [vmem:[%s1631 + $0x48] sm:$0xff]
      %v1993 = vld [vmem:[%s1631 + $0x50] sm:$0xff]
      %v1994 = vld [vmem:[%s1631 + $0x60] sm:$0xff]
      %v1995 = vld [vmem:[%s1631 + $0x68] sm:$0xff]
      %v1996 = vld [vmem:[%s1631 + $0x78] sm:$0xff]
      %v1997 = vld [vmem:[%s1631 + $0x80] sm:$0xff]
      %v1998 = vld [vmem:[%s1631 + $0x90] sm:$0xff]
      %v1999 = vld [vmem:[%s1631 + $0x98] sm:$0xff]
      %v2000 = vld [vmem:[%s1631 + $0xa8] sm:$0xff]
      %v2001 = vld [vmem:[%s1631 + $0xb0] sm:$0xff]
      %v2002 = vld [vmem:[%s1631 + $0xc0] sm:$0xff]
      %v2003 = vld [vmem:[%s1631 + $0xc8] sm:$0xff]
      %v2004 = vld [vmem:[%s1631 + $0xd8] sm:$0xff]
      %v2005 = vld [vmem:[%s1631 + $0xe0] sm:$0xff]
      %v2006 = vld [vmem:[%s1631 + $0xf0] sm:$0xff]
      %v2007 = vld [vmem:[%s1631 + $0xf8] sm:$0xff]
      %v2008 = vld [vmem:[%s1631 + $0x108] sm:$0xff]
      %v2009 = vld [vmem:[%s1631 + $0x110] sm:$0xff]
      %v2010 = vld [vmem:[%s1631 + $0x120] sm:$0xff]
      %v2011 = vld [vmem:[%s1631 + $0x128] sm:$0xff]
      %v2012 = vld [vmem:[%s1631 + $0x138] sm:$0xff]
      %v2013 = vld [vmem:[%s1631 + $0x140] sm:$0xff]
      %v2014 = vld [vmem:[%s1631 + $0x150] sm:$0xff]
      %v2015 = vld [vmem:[%s1631 + $0x158] sm:$0xff]
      %v2016 = vld [vmem:[%s1631 + $0x168] sm:$0xff]
      %v2017 = vld [vmem:[%s1631 + $0x170] sm:$0xff]
      %v2018 = vpack.c.bf16 %v1987, %v1986
      %v2019 = vpack.c.bf16 %v1989, %v1988
      %v2020 = vpack.c.bf16 %v1991, %v1990
      %v2021 = vpack.c.bf16 %v1993, %v1992
      %v2022 = vpack.c.bf16 %v1995, %v1994
      %v2023 = vpack.c.bf16 %v1997, %v1996
      %v2024 = vpack.c.bf16 %v1999, %v1998
      %v2025 = vpack.c.bf16 %v2001, %v2000
      %v2026 = vpack.c.bf16 %v2003, %v2002
      %v2027 = vpack.c.bf16 %v2005, %v2004
      %v2028 = vpack.c.bf16 %v2007, %v2006
      %v2029 = vpack.c.bf16 %v2009, %v2008
      %v2030 = vpack.c.bf16 %v2011, %v2010
      %v2031 = vpack.c.bf16 %v2013, %v2012
      %v2032 = vpack.c.bf16 %v2015, %v2014
      %v2033 = vpack.c.bf16 %v2017, %v2016
      %2050 = vrot.lane.b32.xlu0 %v2018, 24
      %v2051 = vpop.permute.xlu0 %2050
      %2052 = vrot.lane.b32.xlu0 %v2019, 24
      %v2053 = vpop.permute.xlu0 %2052
      %2054 = vrot.lane.b32.xlu0 %v2020, 24
      %v2055 = vpop.permute.xlu0 %2054
      %2056 = vrot.lane.b32.xlu0 %v2021, 24
      %v2057 = vpop.permute.xlu0 %2056
      %2058 = vrot.lane.b32.xlu0 %v2022, 24
      %v2059 = vpop.permute.xlu0 %2058
      %2060 = vrot.lane.b32.xlu0 %v2023, 24
      %v2061 = vpop.permute.xlu0 %2060
      %2062 = vrot.lane.b32.xlu0 %v2024, 24
      %v2063 = vpop.permute.xlu0 %2062
      %2064 = vrot.lane.b32.xlu0 %v2025, 24
      %v2065 = vpop.permute.xlu0 %2064
      %2066 = vrot.lane.b32.xlu0 %v2026, 24
      %v2067 = vpop.permute.xlu0 %2066
      %2068 = vrot.lane.b32.xlu0 %v2027, 24
      %v2069 = vpop.permute.xlu0 %2068
      %2070 = vrot.lane.b32.xlu0 %v2028, 24
      %v2071 = vpop.permute.xlu0 %2070
      %2072 = vrot.lane.b32.xlu0 %v2029, 24
      %v2073 = vpop.permute.xlu0 %2072
      %2074 = vrot.lane.b32.xlu0 %v2030, 24
      %v2075 = vpop.permute.xlu0 %2074
      %2076 = vrot.lane.b32.xlu0 %v2031, 24
      %v2077 = vpop.permute.xlu0 %2076
      %2078 = vrot.lane.b32.xlu0 %v2032, 24
      %v2079 = vpop.permute.xlu0 %2078
      %2080 = vrot.lane.b32.xlu0 %v2033, 24
      %v2081 = vpop.permute.xlu0 %2080
      %vm2098 = vcmask 261312
      %2099 = vst.msk [vmem:[#allocation3] sm:$0xff] %vm2098, %v2051
      %2100 = vst.msk [vmem:[#allocation3 + $0x8] sm:$0xff] %vm2098, %v2053
      %2101 = vst.msk [vmem:[#allocation3 + $0x10] sm:$0xff] %vm2098, %v2055
      %2102 = vst.msk [vmem:[#allocation3 + $0x18] sm:$0xff] %vm2098, %v2057
      %2103 = vst.msk [vmem:[#allocation3 + $0x20] sm:$0xff] %vm2098, %v2059
      %2104 = vst.msk [vmem:[#allocation3 + $0x28] sm:$0xff] %vm2098, %v2061
      %2105 = vst.msk [vmem:[#allocation3 + $0x30] sm:$0xff] %vm2098, %v2063
      %2106 = vst.msk [vmem:[#allocation3 + $0x38] sm:$0xff] %vm2098, %v2065
      %2107 = vst.msk [vmem:[#allocation3 + $0x40] sm:$0xff] %vm2098, %v2067
      %2108 = vst.msk [vmem:[#allocation3 + $0x48] sm:$0xff] %vm2098, %v2069
      %2109 = vst.msk [vmem:[#allocation3 + $0x50] sm:$0xff] %vm2098, %v2071
      %2110 = vst.msk [vmem:[#allocation3 + $0x58] sm:$0xff] %vm2098, %v2073
      %2111 = vst.msk [vmem:[#allocation3 + $0x60] sm:$0xff] %vm2098, %v2075
      %2112 = vst.msk [vmem:[#allocation3 + $0x68] sm:$0xff] %vm2098, %v2077
      %2113 = vst.msk [vmem:[#allocation3 + $0x70] sm:$0xff] %vm2098, %v2079
      %2114 = vst.msk [vmem:[#allocation3 + $0x78] sm:$0xff] %vm2098, %v2081
      %v2115 = vld [vmem:[%s1631 + $0x1] sm:$0xff]
      %v2116 = vld [vmem:[%s1631 + $0x9] sm:$0xff]
      %v2117 = vld [vmem:[%s1631 + $0x19] sm:$0xff]
      %v2118 = vld [vmem:[%s1631 + $0x21] sm:$0xff]
      %v2119 = vld [vmem:[%s1631 + $0x31] sm:$0xff]
      %v2120 = vld [vmem:[%s1631 + $0x39] sm:$0xff]
      %v2121 = vld [vmem:[%s1631 + $0x49] sm:$0xff]
      %v2122 = vld [vmem:[%s1631 + $0x51] sm:$0xff]
      %v2123 = vld [vmem:[%s1631 + $0x61] sm:$0xff]
      %v2124 = vld [vmem:[%s1631 + $0x69] sm:$0xff]
      %v2125 = vld [vmem:[%s1631 + $0x79] sm:$0xff]
      %v2126 = vld [vmem:[%s1631 + $0x81] sm:$0xff]
      %v2127 = vld [vmem:[%s1631 + $0x91] sm:$0xff]
      %v2128 = vld [vmem:[%s1631 + $0x99] sm:$0xff]
      %v2129 = vld [vmem:[%s1631 + $0xa9] sm:$0xff]
      %v2130 = vld [vmem:[%s1631 + $0xb1] sm:$0xff]
      %v2131 = vld [vmem:[%s1631 + $0xc1] sm:$0xff]
      %v2132 = vld [vmem:[%s1631 + $0xc9] sm:$0xff]
      %v2133 = vld [vmem:[%s1631 + $0xd9] sm:$0xff]
      %v2134 = vld [vmem:[%s1631 + $0xe1] sm:$0xff]
      %v2135 = vld [vmem:[%s1631 + $0xf1] sm:$0xff]
      %v2136 = vld [vmem:[%s1631 + $0xf9] sm:$0xff]
      %v2137 = vld [vmem:[%s1631 + $0x109] sm:$0xff]
      %v2138 = vld [vmem:[%s1631 + $0x111] sm:$0xff]
      %v2139 = vld [vmem:[%s1631 + $0x121] sm:$0xff]
      %v2140 = vld [vmem:[%s1631 + $0x129] sm:$0xff]
      %v2141 = vld [vmem:[%s1631 + $0x139] sm:$0xff]
      %v2142 = vld [vmem:[%s1631 + $0x141] sm:$0xff]
      %v2143 = vld [vmem:[%s1631 + $0x151] sm:$0xff]
      %v2144 = vld [vmem:[%s1631 + $0x159] sm:$0xff]
      %v2145 = vld [vmem:[%s1631 + $0x169] sm:$0xff]
      %v2146 = vld [vmem:[%s1631 + $0x171] sm:$0xff]
      %v2147 = vpack.c.bf16 %v2116, %v2115
      %v2148 = vpack.c.bf16 %v2118, %v2117
      %v2149 = vpack.c.bf16 %v2120, %v2119
      %v2150 = vpack.c.bf16 %v2122, %v2121
      %v2151 = vpack.c.bf16 %v2124, %v2123
      %v2152 = vpack.c.bf16 %v2126, %v2125
      %v2153 = vpack.c.bf16 %v2128, %v2127
      %v2154 = vpack.c.bf16 %v2130, %v2129
      %v2155 = vpack.c.bf16 %v2132, %v2131
      %v2156 = vpack.c.bf16 %v2134, %v2133
      %v2157 = vpack.c.bf16 %v2136, %v2135
      %v2158 = vpack.c.bf16 %v2138, %v2137
      %v2159 = vpack.c.bf16 %v2140, %v2139
      %v2160 = vpack.c.bf16 %v2142, %v2141
      %v2161 = vpack.c.bf16 %v2144, %v2143
      %v2162 = vpack.c.bf16 %v2146, %v2145
      %2179 = vrot.lane.b32.xlu0 %v2147, 32
      %v2180 = vpop.permute.xlu0 %2179
      %2181 = vrot.lane.b32.xlu0 %v2148, 32
      %v2182 = vpop.permute.xlu0 %2181
      %2183 = vrot.lane.b32.xlu0 %v2149, 32
      %v2184 = vpop.permute.xlu0 %2183
      %2185 = vrot.lane.b32.xlu0 %v2150, 32
      %v2186 = vpop.permute.xlu0 %2185
      %2187 = vrot.lane.b32.xlu0 %v2151, 32
      %v2188 = vpop.permute.xlu0 %2187
      %2189 = vrot.lane.b32.xlu0 %v2152, 32
      %v2190 = vpop.permute.xlu0 %2189
      %2191 = vrot.lane.b32.xlu0 %v2153, 32
      %v2192 = vpop.permute.xlu0 %2191
      %2193 = vrot.lane.b32.xlu0 %v2154, 32
      %v2194 = vpop.permute.xlu0 %2193
      %2195 = vrot.lane.b32.xlu0 %v2155, 32
      %v2196 = vpop.permute.xlu0 %2195
      %2197 = vrot.lane.b32.xlu0 %v2156, 32
      %v2198 = vpop.permute.xlu0 %2197
      %2199 = vrot.lane.b32.xlu0 %v2157, 32
      %v2200 = vpop.permute.xlu0 %2199
      %2201 = vrot.lane.b32.xlu0 %v2158, 32
      %v2202 = vpop.permute.xlu0 %2201
      %2203 = vrot.lane.b32.xlu0 %v2159, 32
      %v2204 = vpop.permute.xlu0 %2203
      %2205 = vrot.lane.b32.xlu0 %v2160, 32
      %v2206 = vpop.permute.xlu0 %2205
      %2207 = vrot.lane.b32.xlu0 %v2161, 32
      %v2208 = vpop.permute.xlu0 %2207
      %2209 = vrot.lane.b32.xlu0 %v2162, 32
      %v2210 = vpop.permute.xlu0 %2209
      %vm2227 = vcmask 326912
      %2228 = vst.msk [vmem:[#allocation3] sm:$0xff] %vm2227, %v2180
      %2229 = vst.msk [vmem:[#allocation3 + $0x8] sm:$0xff] %vm2227, %v2182
      %2230 = vst.msk [vmem:[#allocation3 + $0x10] sm:$0xff] %vm2227, %v2184
      %2231 = vst.msk [vmem:[#allocation3 + $0x18] sm:$0xff] %vm2227, %v2186
      %2232 = vst.msk [vmem:[#allocation3 + $0x20] sm:$0xff] %vm2227, %v2188
      %2233 = vst.msk [vmem:[#allocation3 + $0x28] sm:$0xff] %vm2227, %v2190
      %2234 = vst.msk [vmem:[#allocation3 + $0x30] sm:$0xff] %vm2227, %v2192
      %2235 = vst.msk [vmem:[#allocation3 + $0x38] sm:$0xff] %vm2227, %v2194
      %2236 = vst.msk [vmem:[#allocation3 + $0x40] sm:$0xff] %vm2227, %v2196
      %2237 = vst.msk [vmem:[#allocation3 + $0x48] sm:$0xff] %vm2227, %v2198
      %2238 = vst.msk [vmem:[#allocation3 + $0x50] sm:$0xff] %vm2227, %v2200
      %2239 = vst.msk [vmem:[#allocation3 + $0x58] sm:$0xff] %vm2227, %v2202
      %2240 = vst.msk [vmem:[#allocation3 + $0x60] sm:$0xff] %vm2227, %v2204
      %2241 = vst.msk [vmem:[#allocation3 + $0x68] sm:$0xff] %vm2227, %v2206
      %2242 = vst.msk [vmem:[#allocation3 + $0x70] sm:$0xff] %vm2227, %v2208
      %2243 = vst.msk [vmem:[#allocation3 + $0x78] sm:$0xff] %vm2227, %v2210
      %v2244 = vld [vmem:[%s1631 + $0x2] sm:$0xff]
      %v2245 = vld [vmem:[%s1631 + $0xa] sm:$0xff]
      %v2246 = vld [vmem:[%s1631 + $0x1a] sm:$0xff]
      %v2247 = vld [vmem:[%s1631 + $0x22] sm:$0xff]
      %v2248 = vld [vmem:[%s1631 + $0x32] sm:$0xff]
      %v2249 = vld [vmem:[%s1631 + $0x3a] sm:$0xff]
      %v2250 = vld [vmem:[%s1631 + $0x4a] sm:$0xff]
      %v2251 = vld [vmem:[%s1631 + $0x52] sm:$0xff]
      %v2252 = vld [vmem:[%s1631 + $0x62] sm:$0xff]
      %v2253 = vld [vmem:[%s1631 + $0x6a] sm:$0xff]
      %v2254 = vld [vmem:[%s1631 + $0x7a] sm:$0xff]
      %v2255 = vld [vmem:[%s1631 + $0x82] sm:$0xff]
      %v2256 = vld [vmem:[%s1631 + $0x92] sm:$0xff]
      %v2257 = vld [vmem:[%s1631 + $0x9a] sm:$0xff]
      %v2258 = vld [vmem:[%s1631 + $0xaa] sm:$0xff]
      %v2259 = vld [vmem:[%s1631 + $0xb2] sm:$0xff]
      %v2260 = vld [vmem:[%s1631 + $0xc2] sm:$0xff]
      %v2261 = vld [vmem:[%s1631 + $0xca] sm:$0xff]
      %v2262 = vld [vmem:[%s1631 + $0xda] sm:$0xff]
      %v2263 = vld [vmem:[%s1631 + $0xe2] sm:$0xff]
      %v2264 = vld [vmem:[%s1631 + $0xf2] sm:$0xff]
      %v2265 = vld [vmem:[%s1631 + $0xfa] sm:$0xff]
      %v2266 = vld [vmem:[%s1631 + $0x10a] sm:$0xff]
      %v2267 = vld [vmem:[%s1631 + $0x112] sm:$0xff]
      %v2268 = vld [vmem:[%s1631 + $0x122] sm:$0xff]
      %v2269 = vld [vmem:[%s1631 + $0x12a] sm:$0xff]
      %v2270 = vld [vmem:[%s1631 + $0x13a] sm:$0xff]
      %v2271 = vld [vmem:[%s1631 + $0x142] sm:$0xff]
      %v2272 = vld [vmem:[%s1631 + $0x152] sm:$0xff]
      %v2273 = vld [vmem:[%s1631 + $0x15a] sm:$0xff]
      %v2274 = vld [vmem:[%s1631 + $0x16a] sm:$0xff]
      %v2275 = vld [vmem:[%s1631 + $0x172] sm:$0xff]
      %v2276 = vpack.c.bf16 %v2245, %v2244
      %v2277 = vpack.c.bf16 %v2247, %v2246
      %v2278 = vpack.c.bf16 %v2249, %v2248
      %v2279 = vpack.c.bf16 %v2251, %v2250
      %v2280 = vpack.c.bf16 %v2253, %v2252
      %v2281 = vpack.c.bf16 %v2255, %v2254
      %v2282 = vpack.c.bf16 %v2257, %v2256
      %v2283 = vpack.c.bf16 %v2259, %v2258
      %v2284 = vpack.c.bf16 %v2261, %v2260
      %v2285 = vpack.c.bf16 %v2263, %v2262
      %v2286 = vpack.c.bf16 %v2265, %v2264
      %v2287 = vpack.c.bf16 %v2267, %v2266
      %v2288 = vpack.c.bf16 %v2269, %v2268
      %v2289 = vpack.c.bf16 %v2271, %v2270
      %v2290 = vpack.c.bf16 %v2273, %v2272
      %v2291 = vpack.c.bf16 %v2275, %v2274
      %2308 = vrot.lane.b32.xlu0 %v2276, 40
      %v2309 = vpop.permute.xlu0 %2308
      %2310 = vrot.lane.b32.xlu0 %v2277, 40
      %v2311 = vpop.permute.xlu0 %2310
      %2312 = vrot.lane.b32.xlu0 %v2278, 40
      %v2313 = vpop.permute.xlu0 %2312
      %2314 = vrot.lane.b32.xlu0 %v2279, 40
      %v2315 = vpop.permute.xlu0 %2314
      %2316 = vrot.lane.b32.xlu0 %v2280, 40
      %v2317 = vpop.permute.xlu0 %2316
      %2318 = vrot.lane.b32.xlu0 %v2281, 40
      %v2319 = vpop.permute.xlu0 %2318
      %2320 = vrot.lane.b32.xlu0 %v2282, 40
      %v2321 = vpop.permute.xlu0 %2320
      %2322 = vrot.lane.b32.xlu0 %v2283, 40
      %v2323 = vpop.permute.xlu0 %2322
      %2324 = vrot.lane.b32.xlu0 %v2284, 40
      %v2325 = vpop.permute.xlu0 %2324
      %2326 = vrot.lane.b32.xlu0 %v2285, 40
      %v2327 = vpop.permute.xlu0 %2326
      %2328 = vrot.lane.b32.xlu0 %v2286, 40
      %v2329 = vpop.permute.xlu0 %2328
      %2330 = vrot.lane.b32.xlu0 %v2287, 40
      %v2331 = vpop.permute.xlu0 %2330
      %2332 = vrot.lane.b32.xlu0 %v2288, 40
      %v2333 = vpop.permute.xlu0 %2332
      %2334 = vrot.lane.b32.xlu0 %v2289, 40
      %v2335 = vpop.permute.xlu0 %2334
      %2336 = vrot.lane.b32.xlu0 %v2290, 40
      %v2337 = vpop.permute.xlu0 %2336
      %2338 = vrot.lane.b32.xlu0 %v2291, 40
      %v2339 = vpop.permute.xlu0 %2338
      %vm2356 = vcmask 392512
      %2357 = vst.msk [vmem:[#allocation3] sm:$0xff] %vm2356, %v2309
      %2358 = vst.msk [vmem:[#allocation3 + $0x8] sm:$0xff] %vm2356, %v2311
      %2359 = vst.msk [vmem:[#allocation3 + $0x10] sm:$0xff] %vm2356, %v2313
      %2360 = vst.msk [vmem:[#allocation3 + $0x18] sm:$0xff] %vm2356, %v2315
      %2361 = vst.msk [vmem:[#allocation3 + $0x20] sm:$0xff] %vm2356, %v2317
      %2362 = vst.msk [vmem:[#allocation3 + $0x28] sm:$0xff] %vm2356, %v2319
      %2363 = vst.msk [vmem:[#allocation3 + $0x30] sm:$0xff] %vm2356, %v2321
      %2364 = vst.msk [vmem:[#allocation3 + $0x38] sm:$0xff] %vm2356, %v2323
      %2365 = vst.msk [vmem:[#allocation3 + $0x40] sm:$0xff] %vm2356, %v2325
      %2366 = vst.msk [vmem:[#allocation3 + $0x48] sm:$0xff] %vm2356, %v2327
      %2367 = vst.msk [vmem:[#allocation3 + $0x50] sm:$0xff] %vm2356, %v2329
      %2368 = vst.msk [vmem:[#allocation3 + $0x58] sm:$0xff] %vm2356, %v2331
      %2369 = vst.msk [vmem:[#allocation3 + $0x60] sm:$0xff] %vm2356, %v2333
      %2370 = vst.msk [vmem:[#allocation3 + $0x68] sm:$0xff] %vm2356, %v2335
      %2371 = vst.msk [vmem:[#allocation3 + $0x70] sm:$0xff] %vm2356, %v2337
      %2372 = vst.msk [vmem:[#allocation3 + $0x78] sm:$0xff] %vm2356, %v2339
      %s2373 = scalar_lea.vmem [#allocation2], 48
      %v2374 = vld [vmem:[%s2373] sm:$0xff]
      %v2375 = vld [vmem:[%s2373 + $0x8] sm:$0xff]
      %v2376 = vld [vmem:[%s2373 + $0x18] sm:$0xff]
      %v2377 = vld [vmem:[%s2373 + $0x20] sm:$0xff]
      %v2378 = vld [vmem:[%s2373 + $0x30] sm:$0xff]
      %v2379 = vld [vmem:[%s2373 + $0x38] sm:$0xff]
      %v2380 = vld [vmem:[%s2373 + $0x48] sm:$0xff]
      %v2381 = vld [vmem:[%s2373 + $0x50] sm:$0xff]
      %v2382 = vld [vmem:[%s2373 + $0x60] sm:$0xff]
      %v2383 = vld [vmem:[%s2373 + $0x68] sm:$0xff]
      %v2384 = vld [vmem:[%s2373 + $0x78] sm:$0xff]
      %v2385 = vld [vmem:[%s2373 + $0x80] sm:$0xff]
      %v2386 = vld [vmem:[%s2373 + $0x90] sm:$0xff]
      %v2387 = vld [vmem:[%s2373 + $0x98] sm:$0xff]
      %v2388 = vld [vmem:[%s2373 + $0xa8] sm:$0xff]
      %v2389 = vld [vmem:[%s2373 + $0xb0] sm:$0xff]
      %v2390 = vld [vmem:[%s2373 + $0xc0] sm:$0xff]
      %v2391 = vld [vmem:[%s2373 + $0xc8] sm:$0xff]
      %v2392 = vld [vmem:[%s2373 + $0xd8] sm:$0xff]
      %v2393 = vld [vmem:[%s2373 + $0xe0] sm:$0xff]
      %v2394 = vld [vmem:[%s2373 + $0xf0] sm:$0xff]
      %v2395 = vld [vmem:[%s2373 + $0xf8] sm:$0xff]
      %v2396 = vld [vmem:[%s2373 + $0x108] sm:$0xff]
      %v2397 = vld [vmem:[%s2373 + $0x110] sm:$0xff]
      %v2398 = vld [vmem:[%s2373 + $0x120] sm:$0xff]
      %v2399 = vld [vmem:[%s2373 + $0x128] sm:$0xff]
      %v2400 = vld [vmem:[%s2373 + $0x138] sm:$0xff]
      %v2401 = vld [vmem:[%s2373 + $0x140] sm:$0xff]
      %v2402 = vld [vmem:[%s2373 + $0x150] sm:$0xff]
      %v2403 = vld [vmem:[%s2373 + $0x158] sm:$0xff]
      %v2404 = vld [vmem:[%s2373 + $0x168] sm:$0xff]
      %v2405 = vld [vmem:[%s2373 + $0x170] sm:$0xff]
      %v2406 = vpack.c.bf16 %v2375, %v2374
      %v2407 = vpack.c.bf16 %v2377, %v2376
      %v2408 = vpack.c.bf16 %v2379, %v2378
      %v2409 = vpack.c.bf16 %v2381, %v2380
      %v2410 = vpack.c.bf16 %v2383, %v2382
      %v2411 = vpack.c.bf16 %v2385, %v2384
      %v2412 = vpack.c.bf16 %v2387, %v2386
      %v2413 = vpack.c.bf16 %v2389, %v2388
      %v2414 = vpack.c.bf16 %v2391, %v2390
      %v2415 = vpack.c.bf16 %v2393, %v2392
      %v2416 = vpack.c.bf16 %v2395, %v2394
      %v2417 = vpack.c.bf16 %v2397, %v2396
      %v2418 = vpack.c.bf16 %v2399, %v2398
      %v2419 = vpack.c.bf16 %v2401, %v2400
      %v2420 = vpack.c.bf16 %v2403, %v2402
      %v2421 = vpack.c.bf16 %v2405, %v2404
      %2438 = vrot.lane.b32.xlu0 %v2406, 48
      %v2439 = vpop.permute.xlu0 %2438
      %2440 = vrot.lane.b32.xlu0 %v2407, 48
      %v2441 = vpop.permute.xlu0 %2440
      %2442 = vrot.lane.b32.xlu0 %v2408, 48
      %v2443 = vpop.permute.xlu0 %2442
      %2444 = vrot.lane.b32.xlu0 %v2409, 48
      %v2445 = vpop.permute.xlu0 %2444
      %2446 = vrot.lane.b32.xlu0 %v2410, 48
      %v2447 = vpop.permute.xlu0 %2446
      %2448 = vrot.lane.b32.xlu0 %v2411, 48
      %v2449 = vpop.permute.xlu0 %2448
      %2450 = vrot.lane.b32.xlu0 %v2412, 48
      %v2451 = vpop.permute.xlu0 %2450
      %2452 = vrot.lane.b32.xlu0 %v2413, 48
      %v2453 = vpop.permute.xlu0 %2452
      %2454 = vrot.lane.b32.xlu0 %v2414, 48
      %v2455 = vpop.permute.xlu0 %2454
      %2456 = vrot.lane.b32.xlu0 %v2415, 48
      %v2457 = vpop.permute.xlu0 %2456
      %2458 = vrot.lane.b32.xlu0 %v2416, 48
      %v2459 = vpop.permute.xlu0 %2458
      %2460 = vrot.lane.b32.xlu0 %v2417, 48
      %v2461 = vpop.permute.xlu0 %2460
      %2462 = vrot.lane.b32.xlu0 %v2418, 48
      %v2463 = vpop.permute.xlu0 %2462
      %2464 = vrot.lane.b32.xlu0 %v2419, 48
      %v2465 = vpop.permute.xlu0 %2464
      %2466 = vrot.lane.b32.xlu0 %v2420, 48
      %v2467 = vpop.permute.xlu0 %2466
      %2468 = vrot.lane.b32.xlu0 %v2421, 48
      %v2469 = vpop.permute.xlu0 %2468
      %vm2486 = vcmask 458112
      %2487 = vst.msk [vmem:[#allocation3] sm:$0xff] %vm2486, %v2439
      %2488 = vst.msk [vmem:[#allocation3 + $0x8] sm:$0xff] %vm2486, %v2441
      %2489 = vst.msk [vmem:[#allocation3 + $0x10] sm:$0xff] %vm2486, %v2443
      %2490 = vst.msk [vmem:[#allocation3 + $0x18] sm:$0xff] %vm2486, %v2445
      %2491 = vst.msk [vmem:[#allocation3 + $0x20] sm:$0xff] %vm2486, %v2447
      %2492 = vst.msk [vmem:[#allocation3 + $0x28] sm:$0xff] %vm2486, %v2449
      %2493 = vst.msk [vmem:[#allocation3 + $0x30] sm:$0xff] %vm2486, %v2451
      %2494 = vst.msk [vmem:[#allocation3 + $0x38] sm:$0xff] %vm2486, %v2453
      %2495 = vst.msk [vmem:[#allocation3 + $0x40] sm:$0xff] %vm2486, %v2455
      %2496 = vst.msk [vmem:[#allocation3 + $0x48] sm:$0xff] %vm2486, %v2457
      %2497 = vst.msk [vmem:[#allocation3 + $0x50] sm:$0xff] %vm2486, %v2459
      %2498 = vst.msk [vmem:[#allocation3 + $0x58] sm:$0xff] %vm2486, %v2461
      %2499 = vst.msk [vmem:[#allocation3 + $0x60] sm:$0xff] %vm2486, %v2463
      %2500 = vst.msk [vmem:[#allocation3 + $0x68] sm:$0xff] %vm2486, %v2465
      %2501 = vst.msk [vmem:[#allocation3 + $0x70] sm:$0xff] %vm2486, %v2467
      %2502 = vst.msk [vmem:[#allocation3 + $0x78] sm:$0xff] %vm2486, %v2469
      %v2503 = vld [vmem:[%s2373 + $0x1] sm:$0xff]
      %v2504 = vld [vmem:[%s2373 + $0x9] sm:$0xff]
      %v2505 = vld [vmem:[%s2373 + $0x19] sm:$0xff]
      %v2506 = vld [vmem:[%s2373 + $0x21] sm:$0xff]
      %v2507 = vld [vmem:[%s2373 + $0x31] sm:$0xff]
      %v2508 = vld [vmem:[%s2373 + $0x39] sm:$0xff]
      %v2509 = vld [vmem:[%s2373 + $0x49] sm:$0xff]
      %v2510 = vld [vmem:[%s2373 + $0x51] sm:$0xff]
      %v2511 = vld [vmem:[%s2373 + $0x61] sm:$0xff]
      %v2512 = vld [vmem:[%s2373 + $0x69] sm:$0xff]
      %v2513 = vld [vmem:[%s2373 + $0x79] sm:$0xff]
      %v2514 = vld [vmem:[%s2373 + $0x81] sm:$0xff]
      %v2515 = vld [vmem:[%s2373 + $0x91] sm:$0xff]
      %v2516 = vld [vmem:[%s2373 + $0x99] sm:$0xff]
      %v2517 = vld [vmem:[%s2373 + $0xa9] sm:$0xff]
      %v2518 = vld [vmem:[%s2373 + $0xb1] sm:$0xff]
      %v2519 = vld [vmem:[%s2373 + $0xc1] sm:$0xff]
      %v2520 = vld [vmem:[%s2373 + $0xc9] sm:$0xff]
      %v2521 = vld [vmem:[%s2373 + $0xd9] sm:$0xff]
      %v2522 = vld [vmem:[%s2373 + $0xe1] sm:$0xff]
      %v2523 = vld [vmem:[%s2373 + $0xf1] sm:$0xff]
      %v2524 = vld [vmem:[%s2373 + $0xf9] sm:$0xff]
      %v2525 = vld [vmem:[%s2373 + $0x109] sm:$0xff]
      %v2526 = vld [vmem:[%s2373 + $0x111] sm:$0xff]
      %v2527 = vld [vmem:[%s2373 + $0x121] sm:$0xff]
      %v2528 = vld [vmem:[%s2373 + $0x129] sm:$0xff]
      %v2529 = vld [vmem:[%s2373 + $0x139] sm:$0xff]
      %v2530 = vld [vmem:[%s2373 + $0x141] sm:$0xff]
      %v2531 = vld [vmem:[%s2373 + $0x151] sm:$0xff]
      %v2532 = vld [vmem:[%s2373 + $0x159] sm:$0xff]
      %v2533 = vld [vmem:[%s2373 + $0x169] sm:$0xff]
      %v2534 = vld [vmem:[%s2373 + $0x171] sm:$0xff]
      %v2535 = vpack.c.bf16 %v2504, %v2503
      %v2536 = vpack.c.bf16 %v2506, %v2505
      %v2537 = vpack.c.bf16 %v2508, %v2507
      %v2538 = vpack.c.bf16 %v2510, %v2509
      %v2539 = vpack.c.bf16 %v2512, %v2511
      %v2540 = vpack.c.bf16 %v2514, %v2513
      %v2541 = vpack.c.bf16 %v2516, %v2515
      %v2542 = vpack.c.bf16 %v2518, %v2517
      %v2543 = vpack.c.bf16 %v2520, %v2519
      %v2544 = vpack.c.bf16 %v2522, %v2521
      %v2545 = vpack.c.bf16 %v2524, %v2523
      %v2546 = vpack.c.bf16 %v2526, %v2525
      %v2547 = vpack.c.bf16 %v2528, %v2527
      %v2548 = vpack.c.bf16 %v2530, %v2529
      %v2549 = vpack.c.bf16 %v2532, %v2531
      %v2550 = vpack.c.bf16 %v2534, %v2533
      %2567 = vrot.lane.b32.xlu0 %v2535, 56
      %v2568 = vpop.permute.xlu0 %2567
      %2569 = vrot.lane.b32.xlu0 %v2536, 56
      %v2570 = vpop.permute.xlu0 %2569
      %2571 = vrot.lane.b32.xlu0 %v2537, 56
      %v2572 = vpop.permute.xlu0 %2571
      %2573 = vrot.lane.b32.xlu0 %v2538, 56
      %v2574 = vpop.permute.xlu0 %2573
      %2575 = vrot.lane.b32.xlu0 %v2539, 56
      %v2576 = vpop.permute.xlu0 %2575
      %2577 = vrot.lane.b32.xlu0 %v2540, 56
      %v2578 = vpop.permute.xlu0 %2577
      %2579 = vrot.lane.b32.xlu0 %v2541, 56
      %v2580 = vpop.permute.xlu0 %2579
      %2581 = vrot.lane.b32.xlu0 %v2542, 56
      %v2582 = vpop.permute.xlu0 %2581
      %2583 = vrot.lane.b32.xlu0 %v2543, 56
      %v2584 = vpop.permute.xlu0 %2583
      %2585 = vrot.lane.b32.xlu0 %v2544, 56
      %v2586 = vpop.permute.xlu0 %2585
      %2587 = vrot.lane.b32.xlu0 %v2545, 56
      %v2588 = vpop.permute.xlu0 %2587
      %2589 = vrot.lane.b32.xlu0 %v2546, 56
      %v2590 = vpop.permute.xlu0 %2589
      %2591 = vrot.lane.b32.xlu0 %v2547, 56
      %v2592 = vpop.permute.xlu0 %2591
      %2593 = vrot.lane.b32.xlu0 %v2548, 56
      %v2594 = vpop.permute.xlu0 %2593
      %2595 = vrot.lane.b32.xlu0 %v2549, 56
      %v2596 = vpop.permute.xlu0 %2595
      %2597 = vrot.lane.b32.xlu0 %v2550, 56
      %v2598 = vpop.permute.xlu0 %2597
      %vm2615 = vcmask 523712
      %2616 = vst.msk [vmem:[#allocation3] sm:$0xff] %vm2615, %v2568
      %2617 = vst.msk [vmem:[#allocation3 + $0x8] sm:$0xff] %vm2615, %v2570
      %2618 = vst.msk [vmem:[#allocation3 + $0x10] sm:$0xff] %vm2615, %v2572
      %2619 = vst.msk [vmem:[#allocation3 + $0x18] sm:$0xff] %vm2615, %v2574
      %2620 = vst.msk [vmem:[#allocation3 + $0x20] sm:$0xff] %vm2615, %v2576
      %2621 = vst.msk [vmem:[#allocation3 + $0x28] sm:$0xff] %vm2615, %v2578
      %2622 = vst.msk [vmem:[#allocation3 + $0x30] sm:$0xff] %vm2615, %v2580
      %2623 = vst.msk [vmem:[#allocation3 + $0x38] sm:$0xff] %vm2615, %v2582
      %2624 = vst.msk [vmem:[#allocation3 + $0x40] sm:$0xff] %vm2615, %v2584
      %2625 = vst.msk [vmem:[#allocation3 + $0x48] sm:$0xff] %vm2615, %v2586
      %2626 = vst.msk [vmem:[#allocation3 + $0x50] sm:$0xff] %vm2615, %v2588
      %2627 = vst.msk [vmem:[#allocation3 + $0x58] sm:$0xff] %vm2615, %v2590
      %2628 = vst.msk [vmem:[#allocation3 + $0x60] sm:$0xff] %vm2615, %v2592
      %2629 = vst.msk [vmem:[#allocation3 + $0x68] sm:$0xff] %vm2615, %v2594
      %2630 = vst.msk [vmem:[#allocation3 + $0x70] sm:$0xff] %vm2615, %v2596
      %2631 = vst.msk [vmem:[#allocation3 + $0x78] sm:$0xff] %vm2615, %v2598
      %v2632 = vld [vmem:[%s2373 + $0x2] sm:$0xff]
      %v2633 = vld [vmem:[%s2373 + $0xa] sm:$0xff]
      %v2634 = vld [vmem:[%s2373 + $0x1a] sm:$0xff]
      %v2635 = vld [vmem:[%s2373 + $0x22] sm:$0xff]
      %v2636 = vld [vmem:[%s2373 + $0x32] sm:$0xff]
      %v2637 = vld [vmem:[%s2373 + $0x3a] sm:$0xff]
      %v2638 = vld [vmem:[%s2373 + $0x4a] sm:$0xff]
      %v2639 = vld [vmem:[%s2373 + $0x52] sm:$0xff]
      %v2640 = vld [vmem:[%s2373 + $0x62] sm:$0xff]
      %v2641 = vld [vmem:[%s2373 + $0x6a] sm:$0xff]
      %v2642 = vld [vmem:[%s2373 + $0x7a] sm:$0xff]
      %v2643 = vld [vmem:[%s2373 + $0x82] sm:$0xff]
      %v2644 = vld [vmem:[%s2373 + $0x92] sm:$0xff]
      %v2645 = vld [vmem:[%s2373 + $0x9a] sm:$0xff]
      %v2646 = vld [vmem:[%s2373 + $0xaa] sm:$0xff]
      %v2647 = vld [vmem:[%s2373 + $0xb2] sm:$0xff]
      %v2648 = vld [vmem:[%s2373 + $0xc2] sm:$0xff]
      %v2649 = vld [vmem:[%s2373 + $0xca] sm:$0xff]
      %v2650 = vld [vmem:[%s2373 + $0xda] sm:$0xff]
      %v2651 = vld [vmem:[%s2373 + $0xe2] sm:$0xff]
      %v2652 = vld [vmem:[%s2373 + $0xf2] sm:$0xff]
      %v2653 = vld [vmem:[%s2373 + $0xfa] sm:$0xff]
      %v2654 = vld [vmem:[%s2373 + $0x10a] sm:$0xff]
      %v2655 = vld [vmem:[%s2373 + $0x112] sm:$0xff]
      %v2656 = vld [vmem:[%s2373 + $0x122] sm:$0xff]
      %v2657 = vld [vmem:[%s2373 + $0x12a] sm:$0xff]
      %v2658 = vld [vmem:[%s2373 + $0x13a] sm:$0xff]
      %v2659 = vld [vmem:[%s2373 + $0x142] sm:$0xff]
      %v2660 = vld [vmem:[%s2373 + $0x152] sm:$0xff]
      %v2661 = vld [vmem:[%s2373 + $0x15a] sm:$0xff]
      %v2662 = vld [vmem:[%s2373 + $0x16a] sm:$0xff]
      %v2663 = vld [vmem:[%s2373 + $0x172] sm:$0xff]
      %v2664 = vpack.c.bf16 %v2633, %v2632
      %v2665 = vpack.c.bf16 %v2635, %v2634
      %v2666 = vpack.c.bf16 %v2637, %v2636
      %v2667 = vpack.c.bf16 %v2639, %v2638
      %v2668 = vpack.c.bf16 %v2641, %v2640
      %v2669 = vpack.c.bf16 %v2643, %v2642
      %v2670 = vpack.c.bf16 %v2645, %v2644
      %v2671 = vpack.c.bf16 %v2647, %v2646
      %v2672 = vpack.c.bf16 %v2649, %v2648
      %v2673 = vpack.c.bf16 %v2651, %v2650
      %v2674 = vpack.c.bf16 %v2653, %v2652
      %v2675 = vpack.c.bf16 %v2655, %v2654
      %v2676 = vpack.c.bf16 %v2657, %v2656
      %v2677 = vpack.c.bf16 %v2659, %v2658
      %v2678 = vpack.c.bf16 %v2661, %v2660
      %v2679 = vpack.c.bf16 %v2663, %v2662
      %2696 = vrot.lane.b32.xlu0 %v2664, 64
      %v2697 = vpop.permute.xlu0 %2696
      %2698 = vrot.lane.b32.xlu0 %v2665, 64
      %v2699 = vpop.permute.xlu0 %2698
      %2700 = vrot.lane.b32.xlu0 %v2666, 64
      %v2701 = vpop.permute.xlu0 %2700
      %2702 = vrot.lane.b32.xlu0 %v2667, 64
      %v2703 = vpop.permute.xlu0 %2702
      %2704 = vrot.lane.b32.xlu0 %v2668, 64
      %v2705 = vpop.permute.xlu0 %2704
      %2706 = vrot.lane.b32.xlu0 %v2669, 64
      %v2707 = vpop.permute.xlu0 %2706
      %2708 = vrot.lane.b32.xlu0 %v2670, 64
      %v2709 = vpop.permute.xlu0 %2708
      %2710 = vrot.lane.b32.xlu0 %v2671, 64
      %v2711 = vpop.permute.xlu0 %2710
      %2712 = vrot.lane.b32.xlu0 %v2672, 64
      %v2713 = vpop.permute.xlu0 %2712
      %2714 = vrot.lane.b32.xlu0 %v2673, 64
      %v2715 = vpop.permute.xlu0 %2714
      %2716 = vrot.lane.b32.xlu0 %v2674, 64
      %v2717 = vpop.permute.xlu0 %2716
      %2718 = vrot.lane.b32.xlu0 %v2675, 64
      %v2719 = vpop.permute.xlu0 %2718
      %2720 = vrot.lane.b32.xlu0 %v2676, 64
      %v2721 = vpop.permute.xlu0 %2720
      %2722 = vrot.lane.b32.xlu0 %v2677, 64
      %v2723 = vpop.permute.xlu0 %2722
      %2724 = vrot.lane.b32.xlu0 %v2678, 64
      %v2725 = vpop.permute.xlu0 %2724
      %2726 = vrot.lane.b32.xlu0 %v2679, 64
      %v2727 = vpop.permute.xlu0 %2726
      %vm2744 = vcmask 589312
      %2745 = vst.msk [vmem:[#allocation3] sm:$0xff] %vm2744, %v2697
      %2746 = vst.msk [vmem:[#allocation3 + $0x8] sm:$0xff] %vm2744, %v2699
      %2747 = vst.msk [vmem:[#allocation3 + $0x10] sm:$0xff] %vm2744, %v2701
      %2748 = vst.msk [vmem:[#allocation3 + $0x18] sm:$0xff] %vm2744, %v2703
      %2749 = vst.msk [vmem:[#allocation3 + $0x20] sm:$0xff] %vm2744, %v2705
      %2750 = vst.msk [vmem:[#allocation3 + $0x28] sm:$0xff] %vm2744, %v2707
      %2751 = vst.msk [vmem:[#allocation3 + $0x30] sm:$0xff] %vm2744, %v2709
      %2752 = vst.msk [vmem:[#allocation3 + $0x38] sm:$0xff] %vm2744, %v2711
      %2753 = vst.msk [vmem:[#allocation3 + $0x40] sm:$0xff] %vm2744, %v2713
      %2754 = vst.msk [vmem:[#allocation3 + $0x48] sm:$0xff] %vm2744, %v2715
      %2755 = vst.msk [vmem:[#allocation3 + $0x50] sm:$0xff] %vm2744, %v2717
      %2756 = vst.msk [vmem:[#allocation3 + $0x58] sm:$0xff] %vm2744, %v2719
      %2757 = vst.msk [vmem:[#allocation3 + $0x60] sm:$0xff] %vm2744, %v2721
      %2758 = vst.msk [vmem:[#allocation3 + $0x68] sm:$0xff] %vm2744, %v2723
      %2759 = vst.msk [vmem:[#allocation3 + $0x70] sm:$0xff] %vm2744, %v2725
      %2760 = vst.msk [vmem:[#allocation3 + $0x78] sm:$0xff] %vm2744, %v2727
      %v2761 = vld [vmem:[#allocation3] sm:$0xff]
      %v2762 = vld [vmem:[#allocation3 + $0x8] sm:$0xff]
      %v2763 = vld [vmem:[#allocation3 + $0x10] sm:$0xff]
      %v2764 = vld [vmem:[#allocation3 + $0x18] sm:$0xff]
      %v2765 = vld [vmem:[#allocation3 + $0x20] sm:$0xff]
      %v2766 = vld [vmem:[#allocation3 + $0x28] sm:$0xff]
      %v2767 = vld [vmem:[#allocation3 + $0x30] sm:$0xff]
      %v2768 = vld [vmem:[#allocation3 + $0x38] sm:$0xff]
      %v2769 = vld [vmem:[#allocation3 + $0x40] sm:$0xff]
      %v2770 = vld [vmem:[#allocation3 + $0x48] sm:$0xff]
      %v2771 = vld [vmem:[#allocation3 + $0x50] sm:$0xff]
      %v2772 = vld [vmem:[#allocation3 + $0x58] sm:$0xff]
      %v2773 = vld [vmem:[#allocation3 + $0x60] sm:$0xff]
      %v2774 = vld [vmem:[#allocation3 + $0x68] sm:$0xff]
      %v2775 = vld [vmem:[#allocation3 + $0x70] sm:$0xff]
      %v2776 = vld [vmem:[#allocation3 + $0x78] sm:$0xff]
      %v2777 = vld [vmem:[%s3] sm:$0xf]
      %v2778 = vld [vmem:[%s3 + $0x4] sm:$0xf]
      %v2779 = vld [vmem:[%s3 + $0x8] sm:$0xf]
      %v2780 = vld [vmem:[%s3 + $0xc] sm:$0xf]
      %v2781 = vld [vmem:[%s3 + $0x10] sm:$0xf]
      %v2782 = vld [vmem:[%s3 + $0x14] sm:$0xf]
      %v2783 = vld [vmem:[%s3 + $0x18] sm:$0xf]
      %v2784 = vld [vmem:[%s3 + $0x1c] sm:$0xf]
      %v2785 = vld [vmem:[%s3 + $0x20] sm:$0xf]
      %v2786 = vld [vmem:[%s4] sm:$0x1]
      %v2788 = vlaneseq
      %v2789 = vshrl.u32 %v2788, 7
      %v2790 = vsub.s32 0, %v2789
      %v2791 = vrot.slane %v2786, %v2790
      %v2802 = vunpack.c.l.b16 %v2777
      %v2803 = vunpack.c.l.b16 %v2778
      %v2804 = vunpack.c.l.b16 %v2779
      %v2805 = vunpack.c.l.b16 %v2780
      %v2806 = vunpack.c.l.b16 %v2781
      %v2807 = vunpack.c.l.b16 %v2782
      %v2808 = vunpack.c.l.b16 %v2783
      %v2809 = vunpack.c.l.b16 %v2784
      %v2810 = vunpack.c.l.b16 %v2785
      %v2811 = vpack.c.b16 %v2803, %v2802
      %v2812 = vpack.c.b16 %v2805, %v2804
      %v2813 = vpack.c.b16 %v2807, %v2806
      %v2814 = vpack.c.b16 %v2809, %v2808
      %v2815 = vpack.c.b16 %v2810, %v2810
      %vm2820 = vcmask 588800
      %v2822 = vsel %vm2820, %v2761, 0
      %v2825 = vsel %vm2820, %v2762, 0
      %v2828 = vsel %vm2820, %v2763, 0
      %v2831 = vsel %vm2820, %v2764, 0
      %v2834 = vsel %vm2820, %v2765, 0
      %v2837 = vsel %vm2820, %v2766, 0
      %v2840 = vsel %vm2820, %v2767, 0
      %v2843 = vsel %vm2820, %v2768, 0
      %v2846 = vsel %vm2820, %v2769, 0
      %v2849 = vsel %vm2820, %v2770, 0
      %v2852 = vsel %vm2820, %v2771, 0
      %v2855 = vsel %vm2820, %v2772, 0
      %v2858 = vsel %vm2820, %v2773, 0
      %v2861 = vsel %vm2820, %v2774, 0
      %v2864 = vsel %vm2820, %v2775, 0
      %v2867 = vsel %vm2820, %v2776, 0
      %v2870 = vsel %vm1254, %v2815, 0
      %2872 = vmatprep.subr.bf16.mxu0 0
      %2873 = vmatpush1.bf16.msra.mxu0 %v2811
      %2874 = vmatprep.subr.bf16.mxu0 0
      %2875 = vmatpush1.bf16.msra.mxu0 %v2812
      %2876 = vmatprep.subr.bf16.mxu0 0
      %2877 = vmatpush1.bf16.msra.mxu0 %v2813
      %2878 = vmatprep.subr.bf16.mxu0 0
      %2879 = vmatpush1.bf16.msra.mxu0 %v2814
      %2880 = vmatprep.subr.bf16.mxu0 0
      %2881 = vmatpush1.bf16.msra.mxu0 %v2870
      %2882 = vmatprep.subr.bf16.mxu0 0
      %2883 = vmatpush1.bf16.msra.mxu0 0
      %2884 = vmatprep.subr.bf16.mxu0 0
      %2885 = vmatpush1.bf16.msra.mxu0 0
      %2886 = vmatprep.subr.bf16.mxu0 0
      %2887 = vmatpush1.bf16.msra.mxu0 0
      %2888 = vmatprep.subr.bf16.mxu0 0
      %2889 = vmatpush1.bf16.msra.mxu0 0
      %2890 = vmatprep.subr.bf16.mxu0 0
      %2891 = vmatpush1.bf16.msra.mxu0 0
      %2892 = vmatprep.subr.bf16.mxu0 0
      %2893 = vmatpush1.bf16.msra.mxu0 0
      %2894 = vmatprep.subr.bf16.mxu0 0
      %2895 = vmatpush1.bf16.msra.mxu0 0
      %2896 = vmatprep.subr.bf16.mxu0 0
      %2897 = vmatpush1.bf16.msra.mxu0 0
      %2898 = vmatprep.subr.bf16.mxu0 0
      %2899 = vmatpush1.bf16.msra.mxu0 0
      %2900 = vmatprep.subr.bf16.mxu0 0
      %2901 = vmatpush1.bf16.msra.mxu0 0
      %2902 = vmatprep.subr.bf16.mxu0 0
      %2903 = vmatpush1.bf16.msra.mxu0 0
      %2904 = vmatprep.mubr.bf16.mxu0 0
      %2905 = vmatmul.mubr.bf16.gmra.mrb[0].mxu0 %v2822
      %v2906 = vpop.f32.mrb[0].mxu0
      %v2907 = vadd.f32 %v2791, %v2906
      %v2908 = vpop.f32.mrb[0].mxu0
      %v2909 = vpop.f32.mrb[0].mxu0
      %v2910 = vadd.f32 %v2791, %v2909
      %v2911 = vpop.f32.mrb[0].mxu0
      %2912 = vmatprep.mubr.bf16.mxu0 0
      %2913 = vmatmul.mubr.bf16.gmra.mrb[0].mxu0 %v2825
      %v2914 = vpop.f32.mrb[0].mxu0
      %v2915 = vadd.f32 %v2791, %v2914
      %v2916 = vpop.f32.mrb[0].mxu0
      %v2917 = vpop.f32.mrb[0].mxu0
      %v2918 = vadd.f32 %v2791, %v2917
      %v2919 = vpop.f32.mrb[0].mxu0
      %2920 = vmatprep.mubr.bf16.mxu0 0
      %2921 = vmatmul.mubr.bf16.gmra.mrb[0].mxu0 %v2828
      %v2922 = vpop.f32.mrb[0].mxu0
      %v2923 = vadd.f32 %v2791, %v2922
      %v2924 = vpop.f32.mrb[0].mxu0
      %v2925 = vpop.f32.mrb[0].mxu0
      %v2926 = vadd.f32 %v2791, %v2925
      %v2927 = vpop.f32.mrb[0].mxu0
      %2928 = vmatprep.mubr.bf16.mxu0 0
      %2929 = vmatmul.mubr.bf16.gmra.mrb[0].mxu0 %v2831
      %v2930 = vpop.f32.mrb[0].mxu0
      %v2931 = vadd.f32 %v2791, %v2930
      %v2932 = vpop.f32.mrb[0].mxu0
      %v2933 = vpop.f32.mrb[0].mxu0
      %v2934 = vadd.f32 %v2791, %v2933
      %v2935 = vpop.f32.mrb[0].mxu0
      %2936 = vmatprep.mubr.bf16.mxu0 0
      %2937 = vmatmul.mubr.bf16.gmra.mrb[0].mxu0 %v2834
      %v2938 = vpop.f32.mrb[0].mxu0
      %v2939 = vadd.f32 %v2791, %v2938
      %v2940 = vpop.f32.mrb[0].mxu0
      %v2941 = vpop.f32.mrb[0].mxu0
      %v2942 = vadd.f32 %v2791, %v2941
      %v2943 = vpop.f32.mrb[0].mxu0
      %2944 = vmatprep.mubr.bf16.mxu0 0
      %2945 = vmatmul.mubr.bf16.gmra.mrb[0].mxu0 %v2837
      %v2946 = vpop.f32.mrb[0].mxu0
      %v2947 = vadd.f32 %v2791, %v2946
      %v2948 = vpop.f32.mrb[0].mxu0
      %v2949 = vpop.f32.mrb[0].mxu0
      %v2950 = vadd.f32 %v2791, %v2949
      %v2951 = vpop.f32.mrb[0].mxu0
      %2952 = vmatprep.mubr.bf16.mxu0 0
      %2953 = vmatmul.mubr.bf16.gmra.mrb[0].mxu0 %v2840
      %v2954 = vpop.f32.mrb[0].mxu0
      %v2955 = vadd.f32 %v2791, %v2954
      %v2956 = vpop.f32.mrb[0].mxu0
      %v2957 = vpop.f32.mrb[0].mxu0
      %v2958 = vadd.f32 %v2791, %v2957
      %v2959 = vpop.f32.mrb[0].mxu0
      %2960 = vmatprep.mubr.bf16.mxu0 0
      %2961 = vmatmul.mubr.bf16.gmra.mrb[0].mxu0 %v2843
      %v2962 = vpop.f32.mrb[0].mxu0
      %v2963 = vadd.f32 %v2791, %v2962
      %v2964 = vpop.f32.mrb[0].mxu0
      %v2965 = vpop.f32.mrb[0].mxu0
      %v2966 = vadd.f32 %v2791, %v2965
      %v2967 = vpop.f32.mrb[0].mxu0
      %2968 = vmatprep.mubr.bf16.mxu0 0
      %2969 = vmatmul.mubr.bf16.gmra.mrb[0].mxu0 %v2846
      %v2970 = vpop.f32.mrb[0].mxu0
      %v2971 = vadd.f32 %v2791, %v2970
      %v2972 = vpop.f32.mrb[0].mxu0
      %v2973 = vpop.f32.mrb[0].mxu0
      %v2974 = vadd.f32 %v2791, %v2973
      %v2975 = vpop.f32.mrb[0].mxu0
      %2976 = vmatprep.mubr.bf16.mxu0 0
      %2977 = vmatmul.mubr.bf16.gmra.mrb[0].mxu0 %v2849
      %v2978 = vpop.f32.mrb[0].mxu0
      %v2979 = vadd.f32 %v2791, %v2978
      %v2980 = vpop.f32.mrb[0].mxu0
      %v2981 = vpop.f32.mrb[0].mxu0
      %v2982 = vadd.f32 %v2791, %v2981
      %v2983 = vpop.f32.mrb[0].mxu0
      %2984 = vmatprep.mubr.bf16.mxu0 0
      %2985 = vmatmul.mubr.bf16.gmra.mrb[0].mxu0 %v2852
      %v2986 = vpop.f32.mrb[0].mxu0
      %v2987 = vadd.f32 %v2791, %v2986
      %v2988 = vpop.f32.mrb[0].mxu0
      %v2989 = vpop.f32.mrb[0].mxu0
      %v2990 = vadd.f32 %v2791, %v2989
      %v2991 = vpop.f32.mrb[0].mxu0
      %2992 = vmatprep.mubr.bf16.mxu0 0
      %2993 = vmatmul.mubr.bf16.gmra.mrb[0].mxu0 %v2855
      %v2994 = vpop.f32.mrb[0].mxu0
      %v2995 = vadd.f32 %v2791, %v2994
      %v2996 = vpop.f32.mrb[0].mxu0
      %v2997 = vpop.f32.mrb[0].mxu0
      %v2998 = vadd.f32 %v2791, %v2997
      %v2999 = vpop.f32.mrb[0].mxu0
      %3000 = vmatprep.mubr.bf16.mxu0 0
      %3001 = vmatmul.mubr.bf16.gmra.mrb[0].mxu0 %v2858
      %v3002 = vpop.f32.mrb[0].mxu0
      %v3003 = vadd.f32 %v2791, %v3002
      %v3004 = vpop.f32.mrb[0].mxu0
      %v3005 = vpop.f32.mrb[0].mxu0
      %v3006 = vadd.f32 %v2791, %v3005
      %v3007 = vpop.f32.mrb[0].mxu0
      %3008 = vmatprep.mubr.bf16.mxu0 0
      %3009 = vmatmul.mubr.bf16.gmra.mrb[0].mxu0 %v2861
      %v3010 = vpop.f32.mrb[0].mxu0
      %v3011 = vadd.f32 %v2791, %v3010
      %v3012 = vpop.f32.mrb[0].mxu0
      %v3013 = vpop.f32.mrb[0].mxu0
      %v3014 = vadd.f32 %v2791, %v3013
      %v3015 = vpop.f32.mrb[0].mxu0
      %3016 = vmatprep.mubr.bf16.mxu0 0
      %3017 = vmatmul.mubr.bf16.gmra.mrb[0].mxu0 %v2864
      %v3018 = vpop.f32.mrb[0].mxu0
      %v3019 = vadd.f32 %v2791, %v3018
      %v3020 = vpop.f32.mrb[0].mxu0
      %v3021 = vpop.f32.mrb[0].mxu0
      %v3022 = vadd.f32 %v2791, %v3021
      %v3023 = vpop.f32.mrb[0].mxu0
      %3024 = vmatprep.mubr.bf16.mxu0 0
      %3025 = vmatmul.mubr.bf16.gmra.mrb[0].mxu0 %v2867
      %v3026 = vpop.f32.mrb[0].mxu0
      %v3027 = vadd.f32 %v2791, %v3026
      %v3028 = vpop.f32.mrb[0].mxu0
      %v3029 = vpop.f32.mrb[0].mxu0
      %v3030 = vadd.f32 %v2791, %v3029
      %v3031 = vpop.f32.mrb[0].mxu0
      %3032 = vdwg.mxu0
      %v3033 = vsub.f32 0.0, %v2907
      %v3034 = vsub.f32 0.0, %v2910
      %v3035 = vsub.f32 0.0, %v2915
      %v3036 = vsub.f32 0.0, %v2918
      %v3037 = vsub.f32 0.0, %v2923
      %v3038 = vsub.f32 0.0, %v2926
      %v3039 = vsub.f32 0.0, %v2931
      %v3040 = vsub.f32 0.0, %v2934
      %v3041 = vsub.f32 0.0, %v2939
      %v3042 = vsub.f32 0.0, %v2942
      %v3043 = vsub.f32 0.0, %v2947
      %v3044 = vsub.f32 0.0, %v2950
      %v3045 = vsub.f32 0.0, %v2955
      %v3046 = vsub.f32 0.0, %v2958
      %v3047 = vsub.f32 0.0, %v2963
      %v3048 = vsub.f32 0.0, %v2966
      %v3049 = vsub.f32 0.0, %v2971
      %v3050 = vsub.f32 0.0, %v2974
      %v3051 = vsub.f32 0.0, %v2979
      %v3052 = vsub.f32 0.0, %v2982
      %v3053 = vsub.f32 0.0, %v2987
      %v3054 = vsub.f32 0.0, %v2990
      %v3055 = vsub.f32 0.0, %v2995
      %v3056 = vsub.f32 0.0, %v2998
      %v3057 = vsub.f32 0.0, %v3003
      %v3058 = vsub.f32 0.0, %v3006
      %v3059 = vsub.f32 0.0, %v3011
      %v3060 = vsub.f32 0.0, %v3014
      %v3061 = vsub.f32 0.0, %v3019
      %v3062 = vsub.f32 0.0, %v3022
      %v3063 = vsub.f32 0.0, %v3027
      %v3064 = vsub.f32 0.0, %v3030
      %v3065 = vmul.f32 %v3033, 1.442695
      %v3066 = vpow.pop %v3065
      %v3067 = vmul.f32 %v3034, 1.442695
      %v3068 = vpow.pop %v3067
      %v3069 = vmul.f32 %v3035, 1.442695
      %v3070 = vpow.pop %v3069
      %v3071 = vmul.f32 %v3036, 1.442695
      %v3072 = vpow.pop %v3071
      %v3073 = vmul.f32 %v3037, 1.442695
      %v3074 = vpow.pop %v3073
      %v3075 = vmul.f32 %v3038, 1.442695
      %v3076 = vpow.pop %v3075
      %v3077 = vmul.f32 %v3039, 1.442695
      %v3078 = vpow.pop %v3077
      %v3079 = vmul.f32 %v3040, 1.442695
      %v3080 = vpow.pop %v3079
      %v3081 = vmul.f32 %v3041, 1.442695
      %v3082 = vpow.pop %v3081
      %v3083 = vmul.f32 %v3042, 1.442695
      %v3084 = vpow.pop %v3083
      %v3085 = vmul.f32 %v3043, 1.442695
      %v3086 = vpow.pop %v3085
      %v3087 = vmul.f32 %v3044, 1.442695
      %v3088 = vpow.pop %v3087
      %v3089 = vmul.f32 %v3045, 1.442695
      %v3090 = vpow.pop %v3089
      %v3091 = vmul.f32 %v3046, 1.442695
      %v3092 = vpow.pop %v3091
      %v3093 = vmul.f32 %v3047, 1.442695
      %v3094 = vpow.pop %v3093
      %v3095 = vmul.f32 %v3048, 1.442695
      %v3096 = vpow.pop %v3095
      %v3097 = vmul.f32 %v3049, 1.442695
      %v3098 = vpow.pop %v3097
      %v3099 = vmul.f32 %v3050, 1.442695
      %v3100 = vpow.pop %v3099
      %v3101 = vmul.f32 %v3051, 1.442695
      %v3102 = vpow.pop %v3101
      %v3103 = vmul.f32 %v3052, 1.442695
      %v3104 = vpow.pop %v3103
      %v3105 = vmul.f32 %v3053, 1.442695
      %v3106 = vpow.pop %v3105
      %v3107 = vmul.f32 %v3054, 1.442695
      %v3108 = vpow.pop %v3107
      %v3109 = vmul.f32 %v3055, 1.442695
      %v3110 = vpow.pop %v3109
      %v3111 = vmul.f32 %v3056, 1.442695
      %v3112 = vpow.pop %v3111
      %v3113 = vmul.f32 %v3057, 1.442695
      %v3114 = vpow.pop %v3113
      %v3115 = vmul.f32 %v3058, 1.442695
      %v3116 = vpow.pop %v3115
      %v3117 = vmul.f32 %v3059, 1.442695
      %v3118 = vpow.pop %v3117
      %v3119 = vmul.f32 %v3060, 1.442695
      %v3120 = vpow.pop %v3119
      %v3121 = vmul.f32 %v3061, 1.442695
      %v3122 = vpow.pop %v3121
      %v3123 = vmul.f32 %v3062, 1.442695
      %v3124 = vpow.pop %v3123
      %v3125 = vmul.f32 %v3063, 1.442695
      %v3126 = vpow.pop %v3125
      %v3127 = vmul.f32 %v3064, 1.442695
      %v3128 = vpow.pop %v3127
      %v3129 = vadd.f32 %v3066, 1.0
      %v3130 = vadd.f32 %v3068, 1.0
      %v3131 = vadd.f32 %v3070, 1.0
      %v3132 = vadd.f32 %v3072, 1.0
      %v3133 = vadd.f32 %v3074, 1.0
      %v3134 = vadd.f32 %v3076, 1.0
      %v3135 = vadd.f32 %v3078, 1.0
      %v3136 = vadd.f32 %v3080, 1.0
      %v3137 = vadd.f32 %v3082, 1.0
      %v3138 = vadd.f32 %v3084, 1.0
      %v3139 = vadd.f32 %v3086, 1.0
      %v3140 = vadd.f32 %v3088, 1.0
      %v3141 = vadd.f32 %v3090, 1.0
      %v3142 = vadd.f32 %v3092, 1.0
      %v3143 = vadd.f32 %v3094, 1.0
      %v3144 = vadd.f32 %v3096, 1.0
      %v3145 = vadd.f32 %v3098, 1.0
      %v3146 = vadd.f32 %v3100, 1.0
      %v3147 = vadd.f32 %v3102, 1.0
      %v3148 = vadd.f32 %v3104, 1.0
      %v3149 = vadd.f32 %v3106, 1.0
      %v3150 = vadd.f32 %v3108, 1.0
      %v3151 = vadd.f32 %v3110, 1.0
      %v3152 = vadd.f32 %v3112, 1.0
      %v3153 = vadd.f32 %v3114, 1.0
      %v3154 = vadd.f32 %v3116, 1.0
      %v3155 = vadd.f32 %v3118, 1.0
      %v3156 = vadd.f32 %v3120, 1.0
      %v3157 = vadd.f32 %v3122, 1.0
      %v3158 = vadd.f32 %v3124, 1.0
      %v3159 = vadd.f32 %v3126, 1.0
      %v3160 = vadd.f32 %v3128, 1.0
      %v3161 = vrcp.pop %v3129
      %v3162 = vrcp.pop %v3130
      %v3163 = vrcp.pop %v3131
      %v3164 = vrcp.pop %v3132
      %v3165 = vrcp.pop %v3133
      %v3166 = vrcp.pop %v3134
      %v3167 = vrcp.pop %v3135
      %v3168 = vrcp.pop %v3136
      %v3169 = vrcp.pop %v3137
      %v3170 = vrcp.pop %v3138
      %v3171 = vrcp.pop %v3139
      %v3172 = vrcp.pop %v3140
      %v3173 = vrcp.pop %v3141
      %v3174 = vrcp.pop %v3142
      %v3175 = vrcp.pop %v3143
      %v3176 = vrcp.pop %v3144
      %v3177 = vrcp.pop %v3145
      %v3178 = vrcp.pop %v3146
      %v3179 = vrcp.pop %v3147
      %v3180 = vrcp.pop %v3148
      %v3181 = vrcp.pop %v3149
      %v3182 = vrcp.pop %v3150
      %v3183 = vrcp.pop %v3151
      %v3184 = vrcp.pop %v3152
      %v3185 = vrcp.pop %v3153
      %v3186 = vrcp.pop %v3154
      %v3187 = vrcp.pop %v3155
      %v3188 = vrcp.pop %v3156
      %v3189 = vrcp.pop %v3157
      %v3190 = vrcp.pop %v3158
      %v3191 = vrcp.pop %v3159
      %v3192 = vrcp.pop %v3160
      %v3193 = vmul.f32 %v2907, %v3161
      %v3194 = vmul.f32 %v2910, %v3162
      %v3195 = vmul.f32 %v2915, %v3163
      %v3196 = vmul.f32 %v2918, %v3164
      %v3197 = vmul.f32 %v2923, %v3165
      %v3198 = vmul.f32 %v2926, %v3166
      %v3199 = vmul.f32 %v2931, %v3167
      %v3200 = vmul.f32 %v2934, %v3168
      %v3201 = vmul.f32 %v2939, %v3169
      %v3202 = vmul.f32 %v2942, %v3170
      %v3203 = vmul.f32 %v2947, %v3171
      %v3204 = vmul.f32 %v2950, %v3172
      %v3205 = vmul.f32 %v2955, %v3173
      %v3206 = vmul.f32 %v2958, %v3174
      %v3207 = vmul.f32 %v2963, %v3175
      %v3208 = vmul.f32 %v2966, %v3176
      %v3209 = vmul.f32 %v2971, %v3177
      %v3210 = vmul.f32 %v2974, %v3178
      %v3211 = vmul.f32 %v2979, %v3179
      %v3212 = vmul.f32 %v2982, %v3180
      %v3213 = vmul.f32 %v2987, %v3181
      %v3214 = vmul.f32 %v2990, %v3182
      %v3215 = vmul.f32 %v2995, %v3183
      %v3216 = vmul.f32 %v2998, %v3184
      %v3217 = vmul.f32 %v3003, %v3185
      %v3218 = vmul.f32 %v3006, %v3186
      %v3219 = vmul.f32 %v3011, %v3187
      %v3220 = vmul.f32 %v3014, %v3188
      %v3221 = vmul.f32 %v3019, %v3189
      %v3222 = vmul.f32 %v3022, %v3190
      %v3223 = vmul.f32 %v3027, %v3191
      %v3224 = vmul.f32 %v3030, %v3192
      %3225 = vst.msk [vmem:[%s1631 + $0x1] sm:$0xff] %vm280, %v3193
      %3226 = vst.msk [vmem:[%s1631 + $0x9] sm:$0xff] %vm280, %v3194
      %3227 = vst.msk [vmem:[%s1631 + $0x19] sm:$0xff] %vm280, %v3195
      %3228 = vst.msk [vmem:[%s1631 + $0x21] sm:$0xff] %vm280, %v3196
      %3229 = vst.msk [vmem:[%s1631 + $0x31] sm:$0xff] %vm280, %v3197
      %3230 = vst.msk [vmem:[%s1631 + $0x39] sm:$0xff] %vm280, %v3198
      %3231 = vst.msk [vmem:[%s1631 + $0x49] sm:$0xff] %vm280, %v3199
      %3232 = vst.msk [vmem:[%s1631 + $0x51] sm:$0xff] %vm280, %v3200
      %3233 = vst.msk [vmem:[%s1631 + $0x61] sm:$0xff] %vm280, %v3201
      %3234 = vst.msk [vmem:[%s1631 + $0x69] sm:$0xff] %vm280, %v3202
      %3235 = vst.msk [vmem:[%s1631 + $0x79] sm:$0xff] %vm280, %v3203
      %3236 = vst.msk [vmem:[%s1631 + $0x81] sm:$0xff] %vm280, %v3204
      %3237 = vst.msk [vmem:[%s1631 + $0x91] sm:$0xff] %vm280, %v3205
      %3238 = vst.msk [vmem:[%s1631 + $0x99] sm:$0xff] %vm280, %v3206
      %3239 = vst.msk [vmem:[%s1631 + $0xa9] sm:$0xff] %vm280, %v3207
      %3240 = vst.msk [vmem:[%s1631 + $0xb1] sm:$0xff] %vm280, %v3208
      %3241 = vst.msk [vmem:[%s1631 + $0xc1] sm:$0xff] %vm280, %v3209
      %3242 = vst.msk [vmem:[%s1631 + $0xc9] sm:$0xff] %vm280, %v3210
      %3243 = vst.msk [vmem:[%s1631 + $0xd9] sm:$0xff] %vm280, %v3211
      %3244 = vst.msk [vmem:[%s1631 + $0xe1] sm:$0xff] %vm280, %v3212
      %3245 = vst.msk [vmem:[%s1631 + $0xf1] sm:$0xff] %vm280, %v3213
      %3246 = vst.msk [vmem:[%s1631 + $0xf9] sm:$0xff] %vm280, %v3214
      %3247 = vst.msk [vmem:[%s1631 + $0x109] sm:$0xff] %vm280, %v3215
      %3248 = vst.msk [vmem:[%s1631 + $0x111] sm:$0xff] %vm280, %v3216
      %3249 = vst.msk [vmem:[%s1631 + $0x121] sm:$0xff] %vm280, %v3217
      %3250 = vst.msk [vmem:[%s1631 + $0x129] sm:$0xff] %vm280, %v3218
      %3251 = vst.msk [vmem:[%s1631 + $0x139] sm:$0xff] %vm280, %v3219
      %3252 = vst.msk [vmem:[%s1631 + $0x141] sm:$0xff] %vm280, %v3220
      %3253 = vst.msk [vmem:[%s1631 + $0x151] sm:$0xff] %vm280, %v3221
      %3254 = vst.msk [vmem:[%s1631 + $0x159] sm:$0xff] %vm280, %v3222
      %3255 = vst.msk [vmem:[%s1631 + $0x169] sm:$0xff] %vm280, %v3223
      %3256 = vst.msk [vmem:[%s1631 + $0x171] sm:$0xff] %vm280, %v3224
      %v3257 = vld [vmem:[#allocation2] sm:$0xff]
      %v3258 = vld [vmem:[#allocation2 + $0x8] sm:$0xff]
      %v3259 = vld [vmem:[#allocation2 + $0x18] sm:$0xff]
      %v3260 = vld [vmem:[#allocation2 + $0x20] sm:$0xff]
      %v3261 = vld [vmem:[#allocation2 + $0x30] sm:$0xff]
      %v3262 = vld [vmem:[#allocation2 + $0x38] sm:$0xff]
      %v3263 = vld [vmem:[#allocation2 + $0x48] sm:$0xff]
      %v3264 = vld [vmem:[#allocation2 + $0x50] sm:$0xff]
      %v3265 = vld [vmem:[#allocation2 + $0x60] sm:$0xff]
      %v3266 = vld [vmem:[#allocation2 + $0x68] sm:$0xff]
      %v3267 = vld [vmem:[#allocation2 + $0x78] sm:$0xff]
      %v3268 = vld [vmem:[#allocation2 + $0x80] sm:$0xff]
      %v3269 = vld [vmem:[#allocation2 + $0x90] sm:$0xff]
      %v3270 = vld [vmem:[#allocation2 + $0x98] sm:$0xff]
      %v3271 = vld [vmem:[#allocation2 + $0xa8] sm:$0xff]
      %v3272 = vld [vmem:[#allocation2 + $0xb0] sm:$0xff]
      %v3273 = vld [vmem:[#allocation2 + $0xc0] sm:$0xff]
      %v3274 = vld [vmem:[#allocation2 + $0xc8] sm:$0xff]
      %v3275 = vld [vmem:[#allocation2 + $0xd8] sm:$0xff]
      %v3276 = vld [vmem:[#allocation2 + $0xe0] sm:$0xff]
      %v3277 = vld [vmem:[#allocation2 + $0xf0] sm:$0xff]
      %v3278 = vld [vmem:[#allocation2 + $0xf8] sm:$0xff]
      %v3279 = vld [vmem:[#allocation2 + $0x108] sm:$0xff]
      %v3280 = vld [vmem:[#allocation2 + $0x110] sm:$0xff]
      %v3281 = vld [vmem:[#allocation2 + $0x120] sm:$0xff]
      %v3282 = vld [vmem:[#allocation2 + $0x128] sm:$0xff]
      %v3283 = vld [vmem:[#allocation2 + $0x138] sm:$0xff]
      %v3284 = vld [vmem:[#allocation2 + $0x140] sm:$0xff]
      %v3285 = vld [vmem:[#allocation2 + $0x150] sm:$0xff]
      %v3286 = vld [vmem:[#allocation2 + $0x158] sm:$0xff]
      %v3287 = vld [vmem:[#allocation2 + $0x168] sm:$0xff]
      %v3288 = vld [vmem:[#allocation2 + $0x170] sm:$0xff]
      %v3289 = vpack.c.bf16 %v3258, %v3257
      %v3290 = vpack.c.bf16 %v3260, %v3259
      %v3291 = vpack.c.bf16 %v3262, %v3261
      %v3292 = vpack.c.bf16 %v3264, %v3263
      %v3293 = vpack.c.bf16 %v3266, %v3265
      %v3294 = vpack.c.bf16 %v3268, %v3267
      %v3295 = vpack.c.bf16 %v3270, %v3269
      %v3296 = vpack.c.bf16 %v3272, %v3271
      %v3297 = vpack.c.bf16 %v3274, %v3273
      %v3298 = vpack.c.bf16 %v3276, %v3275
      %v3299 = vpack.c.bf16 %v3278, %v3277
      %v3300 = vpack.c.bf16 %v3280, %v3279
      %v3301 = vpack.c.bf16 %v3282, %v3281
      %v3302 = vpack.c.bf16 %v3284, %v3283
      %v3303 = vpack.c.bf16 %v3286, %v3285
      %v3304 = vpack.c.bf16 %v3288, %v3287
      %3305 = vst.msk [vmem:[#allocation3] sm:$0xff] %vm280, %v3289
      %3306 = vst.msk [vmem:[#allocation3 + $0x8] sm:$0xff] %vm280, %v3290
      %3307 = vst.msk [vmem:[#allocation3 + $0x10] sm:$0xff] %vm280, %v3291
      %3308 = vst.msk [vmem:[#allocation3 + $0x18] sm:$0xff] %vm280, %v3292
      %3309 = vst.msk [vmem:[#allocation3 + $0x20] sm:$0xff] %vm280, %v3293
      %3310 = vst.msk [vmem:[#allocation3 + $0x28] sm:$0xff] %vm280, %v3294
      %3311 = vst.msk [vmem:[#allocation3 + $0x30] sm:$0xff] %vm280, %v3295
      %3312 = vst.msk [vmem:[#allocation3 + $0x38] sm:$0xff] %vm280, %v3296
      %3313 = vst.msk [vmem:[#allocation3 + $0x40] sm:$0xff] %vm280, %v3297
      %3314 = vst.msk [vmem:[#allocation3 + $0x48] sm:$0xff] %vm280, %v3298
      %3315 = vst.msk [vmem:[#allocation3 + $0x50] sm:$0xff] %vm280, %v3299
      %3316 = vst.msk [vmem:[#allocation3 + $0x58] sm:$0xff] %vm280, %v3300
      %3317 = vst.msk [vmem:[#allocation3 + $0x60] sm:$0xff] %vm280, %v3301
      %3318 = vst.msk [vmem:[#allocation3 + $0x68] sm:$0xff] %vm280, %v3302
      %3319 = vst.msk [vmem:[#allocation3 + $0x70] sm:$0xff] %vm280, %v3303
      %3320 = vst.msk [vmem:[#allocation3 + $0x78] sm:$0xff] %vm280, %v3304
      %v3321 = vld [vmem:[#allocation2 + $0x1] sm:$0xff]
      %v3322 = vld [vmem:[#allocation2 + $0x9] sm:$0xff]
      %v3323 = vld [vmem:[#allocation2 + $0x19] sm:$0xff]
      %v3324 = vld [vmem:[#allocation2 + $0x21] sm:$0xff]
      %v3325 = vld [vmem:[#allocation2 + $0x31] sm:$0xff]
      %v3326 = vld [vmem:[#allocation2 + $0x39] sm:$0xff]
      %v3327 = vld [vmem:[#allocation2 + $0x49] sm:$0xff]
      %v3328 = vld [vmem:[#allocation2 + $0x51] sm:$0xff]
      %v3329 = vld [vmem:[#allocation2 + $0x61] sm:$0xff]
      %v3330 = vld [vmem:[#allocation2 + $0x69] sm:$0xff]
      %v3331 = vld [vmem:[#allocation2 + $0x79] sm:$0xff]
      %v3332 = vld [vmem:[#allocation2 + $0x81] sm:$0xff]
      %v3333 = vld [vmem:[#allocation2 + $0x91] sm:$0xff]
      %v3334 = vld [vmem:[#allocation2 + $0x99] sm:$0xff]
      %v3335 = vld [vmem:[#allocation2 + $0xa9] sm:$0xff]
      %v3336 = vld [vmem:[#allocation2 + $0xb1] sm:$0xff]
      %v3337 = vld [vmem:[#allocation2 + $0xc1] sm:$0xff]
      %v3338 = vld [vmem:[#allocation2 + $0xc9] sm:$0xff]
      %v3339 = vld [vmem:[#allocation2 + $0xd9] sm:$0xff]
      %v3340 = vld [vmem:[#allocation2 + $0xe1] sm:$0xff]
      %v3341 = vld [vmem:[#allocation2 + $0xf1] sm:$0xff]
      %v3342 = vld [vmem:[#allocation2 + $0xf9] sm:$0xff]
      %v3343 = vld [vmem:[#allocation2 + $0x109] sm:$0xff]
      %v3344 = vld [vmem:[#allocation2 + $0x111] sm:$0xff]
      %v3345 = vld [vmem:[#allocation2 + $0x121] sm:$0xff]
      %v3346 = vld [vmem:[#allocation2 + $0x129] sm:$0xff]
      %v3347 = vld [vmem:[#allocation2 + $0x139] sm:$0xff]
      %v3348 = vld [vmem:[#allocation2 + $0x141] sm:$0xff]
      %v3349 = vld [vmem:[#allocation2 + $0x151] sm:$0xff]
      %v3350 = vld [vmem:[#allocation2 + $0x159] sm:$0xff]
      %v3351 = vld [vmem:[#allocation2 + $0x169] sm:$0xff]
      %v3352 = vld [vmem:[#allocation2 + $0x171] sm:$0xff]
      %v3353 = vpack.c.bf16 %v3322, %v3321
      %v3354 = vpack.c.bf16 %v3324, %v3323
      %v3355 = vpack.c.bf16 %v3326, %v3325
      %v3356 = vpack.c.bf16 %v3328, %v3327
      %v3357 = vpack.c.bf16 %v3330, %v3329
      %v3358 = vpack.c.bf16 %v3332, %v3331
      %v3359 = vpack.c.bf16 %v3334, %v3333
      %v3360 = vpack.c.bf16 %v3336, %v3335
      %v3361 = vpack.c.bf16 %v3338, %v3337
      %v3362 = vpack.c.bf16 %v3340, %v3339
      %v3363 = vpack.c.bf16 %v3342, %v3341
      %v3364 = vpack.c.bf16 %v3344, %v3343
      %v3365 = vpack.c.bf16 %v3346, %v3345
      %v3366 = vpack.c.bf16 %v3348, %v3347
      %v3367 = vpack.c.bf16 %v3350, %v3349
      %v3368 = vpack.c.bf16 %v3352, %v3351
      %3385 = vrot.lane.b32.xlu0 %v3353, 8
      %v3386 = vpop.permute.xlu0 %3385
      %3387 = vrot.lane.b32.xlu0 %v3354, 8
      %v3388 = vpop.permute.xlu0 %3387
      %3389 = vrot.lane.b32.xlu0 %v3355, 8
      %v3390 = vpop.permute.xlu0 %3389
      %3391 = vrot.lane.b32.xlu0 %v3356, 8
      %v3392 = vpop.permute.xlu0 %3391
      %3393 = vrot.lane.b32.xlu0 %v3357, 8
      %v3394 = vpop.permute.xlu0 %3393
      %3395 = vrot.lane.b32.xlu0 %v3358, 8
      %v3396 = vpop.permute.xlu0 %3395
      %3397 = vrot.lane.b32.xlu0 %v3359, 8
      %v3398 = vpop.permute.xlu0 %3397
      %3399 = vrot.lane.b32.xlu0 %v3360, 8
      %v3400 = vpop.permute.xlu0 %3399
      %3401 = vrot.lane.b32.xlu0 %v3361, 8
      %v3402 = vpop.permute.xlu0 %3401
      %3403 = vrot.lane.b32.xlu0 %v3362, 8
      %v3404 = vpop.permute.xlu0 %3403
      %3405 = vrot.lane.b32.xlu0 %v3363, 8
      %v3406 = vpop.permute.xlu0 %3405
      %3407 = vrot.lane.b32.xlu0 %v3364, 8
      %v3408 = vpop.permute.xlu0 %3407
      %3409 = vrot.lane.b32.xlu0 %v3365, 8
      %v3410 = vpop.permute.xlu0 %3409
      %3411 = vrot.lane.b32.xlu0 %v3366, 8
      %v3412 = vpop.permute.xlu0 %3411
      %3413 = vrot.lane.b32.xlu0 %v3367, 8
      %v3414 = vpop.permute.xlu0 %3413
      %3415 = vrot.lane.b32.xlu0 %v3368, 8
      %v3416 = vpop.permute.xlu0 %3415
      %3433 = vst.msk [vmem:[#allocation3] sm:$0xff] %vm1840, %v3386
      %3434 = vst.msk [vmem:[#allocation3 + $0x8] sm:$0xff] %vm1840, %v3388
      %3435 = vst.msk [vmem:[#allocation3 + $0x10] sm:$0xff] %vm1840, %v3390
      %3436 = vst.msk [vmem:[#allocation3 + $0x18] sm:$0xff] %vm1840, %v3392
      %3437 = vst.msk [vmem:[#allocation3 + $0x20] sm:$0xff] %vm1840, %v3394
      %3438 = vst.msk [vmem:[#allocation3 + $0x28] sm:$0xff] %vm1840, %v3396
      %3439 = vst.msk [vmem:[#allocation3 + $0x30] sm:$0xff] %vm1840, %v3398
      %3440 = vst.msk [vmem:[#allocation3 + $0x38] sm:$0xff] %vm1840, %v3400
      %3441 = vst.msk [vmem:[#allocation3 + $0x40] sm:$0xff] %vm1840, %v3402
      %3442 = vst.msk [vmem:[#allocation3 + $0x48] sm:$0xff] %vm1840, %v3404
      %3443 = vst.msk [vmem:[#allocation3 + $0x50] sm:$0xff] %vm1840, %v3406
      %3444 = vst.msk [vmem:[#allocation3 + $0x58] sm:$0xff] %vm1840, %v3408
      %3445 = vst.msk [vmem:[#allocation3 + $0x60] sm:$0xff] %vm1840, %v3410
      %3446 = vst.msk [vmem:[#allocation3 + $0x68] sm:$0xff] %vm1840, %v3412
      %3447 = vst.msk [vmem:[#allocation3 + $0x70] sm:$0xff] %vm1840, %v3414
      %3448 = vst.msk [vmem:[#allocation3 + $0x78] sm:$0xff] %vm1840, %v3416
      %v3449 = vld [vmem:[#allocation2 + $0x2] sm:$0xff]
      %v3450 = vld [vmem:[#allocation2 + $0xa] sm:$0xff]
      %v3451 = vld [vmem:[#allocation2 + $0x1a] sm:$0xff]
      %v3452 = vld [vmem:[#allocation2 + $0x22] sm:$0xff]
      %v3453 = vld [vmem:[#allocation2 + $0x32] sm:$0xff]
      %v3454 = vld [vmem:[#allocation2 + $0x3a] sm:$0xff]
      %v3455 = vld [vmem:[#allocation2 + $0x4a] sm:$0xff]
      %v3456 = vld [vmem:[#allocation2 + $0x52] sm:$0xff]
      %v3457 = vld [vmem:[#allocation2 + $0x62] sm:$0xff]
      %v3458 = vld [vmem:[#allocation2 + $0x6a] sm:$0xff]
      %v3459 = vld [vmem:[#allocation2 + $0x7a] sm:$0xff]
      %v3460 = vld [vmem:[#allocation2 + $0x82] sm:$0xff]
      %v3461 = vld [vmem:[#allocation2 + $0x92] sm:$0xff]
      %v3462 = vld [vmem:[#allocation2 + $0x9a] sm:$0xff]
      %v3463 = vld [vmem:[#allocation2 + $0xaa] sm:$0xff]
      %v3464 = vld [vmem:[#allocation2 + $0xb2] sm:$0xff]
      %v3465 = vld [vmem:[#allocation2 + $0xc2] sm:$0xff]
      %v3466 = vld [vmem:[#allocation2 + $0xca] sm:$0xff]
      %v3467 = vld [vmem:[#allocation2 + $0xda] sm:$0xff]
      %v3468 = vld [vmem:[#allocation2 + $0xe2] sm:$0xff]
      %v3469 = vld [vmem:[#allocation2 + $0xf2] sm:$0xff]
      %v3470 = vld [vmem:[#allocation2 + $0xfa] sm:$0xff]
      %v3471 = vld [vmem:[#allocation2 + $0x10a] sm:$0xff]
      %v3472 = vld [vmem:[#allocation2 + $0x112] sm:$0xff]
      %v3473 = vld [vmem:[#allocation2 + $0x122] sm:$0xff]
      %v3474 = vld [vmem:[#allocation2 + $0x12a] sm:$0xff]
      %v3475 = vld [vmem:[#allocation2 + $0x13a] sm:$0xff]
      %v3476 = vld [vmem:[#allocation2 + $0x142] sm:$0xff]
      %v3477 = vld [vmem:[#allocation2 + $0x152] sm:$0xff]
      %v3478 = vld [vmem:[#allocation2 + $0x15a] sm:$0xff]
      %v3479 = vld [vmem:[#allocation2 + $0x16a] sm:$0xff]
      %v3480 = vld [vmem:[#allocation2 + $0x172] sm:$0xff]
      %v3481 = vpack.c.bf16 %v3450, %v3449
      %v3482 = vpack.c.bf16 %v3452, %v3451
      %v3483 = vpack.c.bf16 %v3454, %v3453
      %v3484 = vpack.c.bf16 %v3456, %v3455
      %v3485 = vpack.c.bf16 %v3458, %v3457
      %v3486 = vpack.c.bf16 %v3460, %v3459
      %v3487 = vpack.c.bf16 %v3462, %v3461
      %v3488 = vpack.c.bf16 %v3464, %v3463
      %v3489 = vpack.c.bf16 %v3466, %v3465
      %v3490 = vpack.c.bf16 %v3468, %v3467
      %v3491 = vpack.c.bf16 %v3470, %v3469
      %v3492 = vpack.c.bf16 %v3472, %v3471
      %v3493 = vpack.c.bf16 %v3474, %v3473
      %v3494 = vpack.c.bf16 %v3476, %v3475
      %v3495 = vpack.c.bf16 %v3478, %v3477
      %v3496 = vpack.c.bf16 %v3480, %v3479
      %3513 = vrot.lane.b32.xlu0 %v3481, 16
      %v3514 = vpop.permute.xlu0 %3513
      %3515 = vrot.lane.b32.xlu0 %v3482, 16
      %v3516 = vpop.permute.xlu0 %3515
      %3517 = vrot.lane.b32.xlu0 %v3483, 16
      %v3518 = vpop.permute.xlu0 %3517
      %3519 = vrot.lane.b32.xlu0 %v3484, 16
      %v3520 = vpop.permute.xlu0 %3519
      %3521 = vrot.lane.b32.xlu0 %v3485, 16
      %v3522 = vpop.permute.xlu0 %3521
      %3523 = vrot.lane.b32.xlu0 %v3486, 16
      %v3524 = vpop.permute.xlu0 %3523
      %3525 = vrot.lane.b32.xlu0 %v3487, 16
      %v3526 = vpop.permute.xlu0 %3525
      %3527 = vrot.lane.b32.xlu0 %v3488, 16
      %v3528 = vpop.permute.xlu0 %3527
      %3529 = vrot.lane.b32.xlu0 %v3489, 16
      %v3530 = vpop.permute.xlu0 %3529
      %3531 = vrot.lane.b32.xlu0 %v3490, 16
      %v3532 = vpop.permute.xlu0 %3531
      %3533 = vrot.lane.b32.xlu0 %v3491, 16
      %v3534 = vpop.permute.xlu0 %3533
      %3535 = vrot.lane.b32.xlu0 %v3492, 16
      %v3536 = vpop.permute.xlu0 %3535
      %3537 = vrot.lane.b32.xlu0 %v3493, 16
      %v3538 = vpop.permute.xlu0 %3537
      %3539 = vrot.lane.b32.xlu0 %v3494, 16
      %v3540 = vpop.permute.xlu0 %3539
      %3541 = vrot.lane.b32.xlu0 %v3495, 16
      %v3542 = vpop.permute.xlu0 %3541
      %3543 = vrot.lane.b32.xlu0 %v3496, 16
      %v3544 = vpop.permute.xlu0 %3543
      %3561 = vst.msk [vmem:[#allocation3] sm:$0xff] %vm1969, %v3514
      %3562 = vst.msk [vmem:[#allocation3 + $0x8] sm:$0xff] %vm1969, %v3516
      %3563 = vst.msk [vmem:[#allocation3 + $0x10] sm:$0xff] %vm1969, %v3518
      %3564 = vst.msk [vmem:[#allocation3 + $0x18] sm:$0xff] %vm1969, %v3520
      %3565 = vst.msk [vmem:[#allocation3 + $0x20] sm:$0xff] %vm1969, %v3522
      %3566 = vst.msk [vmem:[#allocation3 + $0x28] sm:$0xff] %vm1969, %v3524
      %3567 = vst.msk [vmem:[#allocation3 + $0x30] sm:$0xff] %vm1969, %v3526
      %3568 = vst.msk [vmem:[#allocation3 + $0x38] sm:$0xff] %vm1969, %v3528
      %3569 = vst.msk [vmem:[#allocation3 + $0x40] sm:$0xff] %vm1969, %v3530
      %3570 = vst.msk [vmem:[#allocation3 + $0x48] sm:$0xff] %vm1969, %v3532
      %3571 = vst.msk [vmem:[#allocation3 + $0x50] sm:$0xff] %vm1969, %v3534
      %3572 = vst.msk [vmem:[#allocation3 + $0x58] sm:$0xff] %vm1969, %v3536
      %3573 = vst.msk [vmem:[#allocation3 + $0x60] sm:$0xff] %vm1969, %v3538
      %3574 = vst.msk [vmem:[#allocation3 + $0x68] sm:$0xff] %vm1969, %v3540
      %3575 = vst.msk [vmem:[#allocation3 + $0x70] sm:$0xff] %vm1969, %v3542
      %3576 = vst.msk [vmem:[#allocation3 + $0x78] sm:$0xff] %vm1969, %v3544
      %v3577 = vld [vmem:[%s1631] sm:$0xff]
      %v3578 = vld [vmem:[%s1631 + $0x8] sm:$0xff]
      %v3579 = vld [vmem:[%s1631 + $0x18] sm:$0xff]
      %v3580 = vld [vmem:[%s1631 + $0x20] sm:$0xff]
      %v3581 = vld [vmem:[%s1631 + $0x30] sm:$0xff]
      %v3582 = vld [vmem:[%s1631 + $0x38] sm:$0xff]
      %v3583 = vld [vmem:[%s1631 + $0x48] sm:$0xff]
      %v3584 = vld [vmem:[%s1631 + $0x50] sm:$0xff]
      %v3585 = vld [vmem:[%s1631 + $0x60] sm:$0xff]
      %v3586 = vld [vmem:[%s1631 + $0x68] sm:$0xff]
      %v3587 = vld [vmem:[%s1631 + $0x78] sm:$0xff]
      %v3588 = vld [vmem:[%s1631 + $0x80] sm:$0xff]
      %v3589 = vld [vmem:[%s1631 + $0x90] sm:$0xff]
      %v3590 = vld [vmem:[%s1631 + $0x98] sm:$0xff]
      %v3591 = vld [vmem:[%s1631 + $0xa8] sm:$0xff]
      %v3592 = vld [vmem:[%s1631 + $0xb0] sm:$0xff]
      %v3593 = vld [vmem:[%s1631 + $0xc0] sm:$0xff]
      %v3594 = vld [vmem:[%s1631 + $0xc8] sm:$0xff]
      %v3595 = vld [vmem:[%s1631 + $0xd8] sm:$0xff]
      %v3596 = vld [vmem:[%s1631 + $0xe0] sm:$0xff]
      %v3597 = vld [vmem:[%s1631 + $0xf0] sm:$0xff]
      %v3598 = vld [vmem:[%s1631 + $0xf8] sm:$0xff]
      %v3599 = vld [vmem:[%s1631 + $0x108] sm:$0xff]
      %v3600 = vld [vmem:[%s1631 + $0x110] sm:$0xff]
      %v3601 = vld [vmem:[%s1631 + $0x120] sm:$0xff]
      %v3602 = vld [vmem:[%s1631 + $0x128] sm:$0xff]
      %v3603 = vld [vmem:[%s1631 + $0x138] sm:$0xff]
      %v3604 = vld [vmem:[%s1631 + $0x140] sm:$0xff]
      %v3605 = vld [vmem:[%s1631 + $0x150] sm:$0xff]
      %v3606 = vld [vmem:[%s1631 + $0x158] sm:$0xff]
      %v3607 = vld [vmem:[%s1631 + $0x168] sm:$0xff]
      %v3608 = vld [vmem:[%s1631 + $0x170] sm:$0xff]
      %v3609 = vpack.c.bf16 %v3578, %v3577
      %v3610 = vpack.c.bf16 %v3580, %v3579
      %v3611 = vpack.c.bf16 %v3582, %v3581
      %v3612 = vpack.c.bf16 %v3584, %v3583
      %v3613 = vpack.c.bf16 %v3586, %v3585
      %v3614 = vpack.c.bf16 %v3588, %v3587
      %v3615 = vpack.c.bf16 %v3590, %v3589
      %v3616 = vpack.c.bf16 %v3592, %v3591
      %v3617 = vpack.c.bf16 %v3594, %v3593
      %v3618 = vpack.c.bf16 %v3596, %v3595
      %v3619 = vpack.c.bf16 %v3598, %v3597
      %v3620 = vpack.c.bf16 %v3600, %v3599
      %v3621 = vpack.c.bf16 %v3602, %v3601
      %v3622 = vpack.c.bf16 %v3604, %v3603
      %v3623 = vpack.c.bf16 %v3606, %v3605
      %v3624 = vpack.c.bf16 %v3608, %v3607
      %3641 = vrot.lane.b32.xlu0 %v3609, 24
      %v3642 = vpop.permute.xlu0 %3641
      %3643 = vrot.lane.b32.xlu0 %v3610, 24
      %v3644 = vpop.permute.xlu0 %3643
      %3645 = vrot.lane.b32.xlu0 %v3611, 24
      %v3646 = vpop.permute.xlu0 %3645
      %3647 = vrot.lane.b32.xlu0 %v3612, 24
      %v3648 = vpop.permute.xlu0 %3647
      %3649 = vrot.lane.b32.xlu0 %v3613, 24
      %v3650 = vpop.permute.xlu0 %3649
      %3651 = vrot.lane.b32.xlu0 %v3614, 24
      %v3652 = vpop.permute.xlu0 %3651
      %3653 = vrot.lane.b32.xlu0 %v3615, 24
      %v3654 = vpop.permute.xlu0 %3653
      %3655 = vrot.lane.b32.xlu0 %v3616, 24
      %v3656 = vpop.permute.xlu0 %3655
      %3657 = vrot.lane.b32.xlu0 %v3617, 24
      %v3658 = vpop.permute.xlu0 %3657
      %3659 = vrot.lane.b32.xlu0 %v3618, 24
      %v3660 = vpop.permute.xlu0 %3659
      %3661 = vrot.lane.b32.xlu0 %v3619, 24
      %v3662 = vpop.permute.xlu0 %3661
      %3663 = vrot.lane.b32.xlu0 %v3620, 24
      %v3664 = vpop.permute.xlu0 %3663
      %3665 = vrot.lane.b32.xlu0 %v3621, 24
      %v3666 = vpop.permute.xlu0 %3665
      %3667 = vrot.lane.b32.xlu0 %v3622, 24
      %v3668 = vpop.permute.xlu0 %3667
      %3669 = vrot.lane.b32.xlu0 %v3623, 24
      %v3670 = vpop.permute.xlu0 %3669
      %3671 = vrot.lane.b32.xlu0 %v3624, 24
      %v3672 = vpop.permute.xlu0 %3671
      %3689 = vst.msk [vmem:[#allocation3] sm:$0xff] %vm2098, %v3642
      %3690 = vst.msk [vmem:[#allocation3 + $0x8] sm:$0xff] %vm2098, %v3644
      %3691 = vst.msk [vmem:[#allocation3 + $0x10] sm:$0xff] %vm2098, %v3646
      %3692 = vst.msk [vmem:[#allocation3 + $0x18] sm:$0xff] %vm2098, %v3648
      %3693 = vst.msk [vmem:[#allocation3 + $0x20] sm:$0xff] %vm2098, %v3650
      %3694 = vst.msk [vmem:[#allocation3 + $0x28] sm:$0xff] %vm2098, %v3652
      %3695 = vst.msk [vmem:[#allocation3 + $0x30] sm:$0xff] %vm2098, %v3654
      %3696 = vst.msk [vmem:[#allocation3 + $0x38] sm:$0xff] %vm2098, %v3656
      %3697 = vst.msk [vmem:[#allocation3 + $0x40] sm:$0xff] %vm2098, %v3658
      %3698 = vst.msk [vmem:[#allocation3 + $0x48] sm:$0xff] %vm2098, %v3660
      %3699 = vst.msk [vmem:[#allocation3 + $0x50] sm:$0xff] %vm2098, %v3662
      %3700 = vst.msk [vmem:[#allocation3 + $0x58] sm:$0xff] %vm2098, %v3664
      %3701 = vst.msk [vmem:[#allocation3 + $0x60] sm:$0xff] %vm2098, %v3666
      %3702 = vst.msk [vmem:[#allocation3 + $0x68] sm:$0xff] %vm2098, %v3668
      %3703 = vst.msk [vmem:[#allocation3 + $0x70] sm:$0xff] %vm2098, %v3670
      %3704 = vst.msk [vmem:[#allocation3 + $0x78] sm:$0xff] %vm2098, %v3672
      %v3705 = vld [vmem:[%s1631 + $0x1] sm:$0xff]
      %v3706 = vld [vmem:[%s1631 + $0x9] sm:$0xff]
      %v3707 = vld [vmem:[%s1631 + $0x19] sm:$0xff]
      %v3708 = vld [vmem:[%s1631 + $0x21] sm:$0xff]
      %v3709 = vld [vmem:[%s1631 + $0x31] sm:$0xff]
      %v3710 = vld [vmem:[%s1631 + $0x39] sm:$0xff]
      %v3711 = vld [vmem:[%s1631 + $0x49] sm:$0xff]
      %v3712 = vld [vmem:[%s1631 + $0x51] sm:$0xff]
      %v3713 = vld [vmem:[%s1631 + $0x61] sm:$0xff]
      %v3714 = vld [vmem:[%s1631 + $0x69] sm:$0xff]
      %v3715 = vld [vmem:[%s1631 + $0x79] sm:$0xff]
      %v3716 = vld [vmem:[%s1631 + $0x81] sm:$0xff]
      %v3717 = vld [vmem:[%s1631 + $0x91] sm:$0xff]
      %v3718 = vld [vmem:[%s1631 + $0x99] sm:$0xff]
      %v3719 = vld [vmem:[%s1631 + $0xa9] sm:$0xff]
      %v3720 = vld [vmem:[%s1631 + $0xb1] sm:$0xff]
      %v3721 = vld [vmem:[%s1631 + $0xc1] sm:$0xff]
      %v3722 = vld [vmem:[%s1631 + $0xc9] sm:$0xff]
      %v3723 = vld [vmem:[%s1631 + $0xd9] sm:$0xff]
      %v3724 = vld [vmem:[%s1631 + $0xe1] sm:$0xff]
      %v3725 = vld [vmem:[%s1631 + $0xf1] sm:$0xff]
      %v3726 = vld [vmem:[%s1631 + $0xf9] sm:$0xff]
      %v3727 = vld [vmem:[%s1631 + $0x109] sm:$0xff]
      %v3728 = vld [vmem:[%s1631 + $0x111] sm:$0xff]
      %v3729 = vld [vmem:[%s1631 + $0x121] sm:$0xff]
      %v3730 = vld [vmem:[%s1631 + $0x129] sm:$0xff]
      %v3731 = vld [vmem:[%s1631 + $0x139] sm:$0xff]
      %v3732 = vld [vmem:[%s1631 + $0x141] sm:$0xff]
      %v3733 = vld [vmem:[%s1631 + $0x151] sm:$0xff]
      %v3734 = vld [vmem:[%s1631 + $0x159] sm:$0xff]
      %v3735 = vld [vmem:[%s1631 + $0x169] sm:$0xff]
      %v3736 = vld [vmem:[%s1631 + $0x171] sm:$0xff]
      %v3737 = vpack.c.bf16 %v3706, %v3705
      %v3738 = vpack.c.bf16 %v3708, %v3707
      %v3739 = vpack.c.bf16 %v3710, %v3709
      %v3740 = vpack.c.bf16 %v3712, %v3711
      %v3741 = vpack.c.bf16 %v3714, %v3713
      %v3742 = vpack.c.bf16 %v3716, %v3715
      %v3743 = vpack.c.bf16 %v3718, %v3717
      %v3744 = vpack.c.bf16 %v3720, %v3719
      %v3745 = vpack.c.bf16 %v3722, %v3721
      %v3746 = vpack.c.bf16 %v3724, %v3723
      %v3747 = vpack.c.bf16 %v3726, %v3725
      %v3748 = vpack.c.bf16 %v3728, %v3727
      %v3749 = vpack.c.bf16 %v3730, %v3729
      %v3750 = vpack.c.bf16 %v3732, %v3731
      %v3751 = vpack.c.bf16 %v3734, %v3733
      %v3752 = vpack.c.bf16 %v3736, %v3735
      %3769 = vrot.lane.b32.xlu0 %v3737, 32
      %v3770 = vpop.permute.xlu0 %3769
      %3771 = vrot.lane.b32.xlu0 %v3738, 32
      %v3772 = vpop.permute.xlu0 %3771
      %3773 = vrot.lane.b32.xlu0 %v3739, 32
      %v3774 = vpop.permute.xlu0 %3773
      %3775 = vrot.lane.b32.xlu0 %v3740, 32
      %v3776 = vpop.permute.xlu0 %3775
      %3777 = vrot.lane.b32.xlu0 %v3741, 32
      %v3778 = vpop.permute.xlu0 %3777
      %3779 = vrot.lane.b32.xlu0 %v3742, 32
      %v3780 = vpop.permute.xlu0 %3779
      %3781 = vrot.lane.b32.xlu0 %v3743, 32
      %v3782 = vpop.permute.xlu0 %3781
      %3783 = vrot.lane.b32.xlu0 %v3744, 32
      %v3784 = vpop.permute.xlu0 %3783
      %3785 = vrot.lane.b32.xlu0 %v3745, 32
      %v3786 = vpop.permute.xlu0 %3785
      %3787 = vrot.lane.b32.xlu0 %v3746, 32
      %v3788 = vpop.permute.xlu0 %3787
      %3789 = vrot.lane.b32.xlu0 %v3747, 32
      %v3790 = vpop.permute.xlu0 %3789
      %3791 = vrot.lane.b32.xlu0 %v3748, 32
      %v3792 = vpop.permute.xlu0 %3791
      %3793 = vrot.lane.b32.xlu0 %v3749, 32
      %v3794 = vpop.permute.xlu0 %3793
      %3795 = vrot.lane.b32.xlu0 %v3750, 32
      %v3796 = vpop.permute.xlu0 %3795
      %3797 = vrot.lane.b32.xlu0 %v3751, 32
      %v3798 = vpop.permute.xlu0 %3797
      %3799 = vrot.lane.b32.xlu0 %v3752, 32
      %v3800 = vpop.permute.xlu0 %3799
      %3817 = vst.msk [vmem:[#allocation3] sm:$0xff] %vm2227, %v3770
      %3818 = vst.msk [vmem:[#allocation3 + $0x8] sm:$0xff] %vm2227, %v3772
      %3819 = vst.msk [vmem:[#allocation3 + $0x10] sm:$0xff] %vm2227, %v3774
      %3820 = vst.msk [vmem:[#allocation3 + $0x18] sm:$0xff] %vm2227, %v3776
      %3821 = vst.msk [vmem:[#allocation3 + $0x20] sm:$0xff] %vm2227, %v3778
      %3822 = vst.msk [vmem:[#allocation3 + $0x28] sm:$0xff] %vm2227, %v3780
      %3823 = vst.msk [vmem:[#allocation3 + $0x30] sm:$0xff] %vm2227, %v3782
      %3824 = vst.msk [vmem:[#allocation3 + $0x38] sm:$0xff] %vm2227, %v3784
      %3825 = vst.msk [vmem:[#allocation3 + $0x40] sm:$0xff] %vm2227, %v3786
      %3826 = vst.msk [vmem:[#allocation3 + $0x48] sm:$0xff] %vm2227, %v3788
      %3827 = vst.msk [vmem:[#allocation3 + $0x50] sm:$0xff] %vm2227, %v3790
      %3828 = vst.msk [vmem:[#allocation3 + $0x58] sm:$0xff] %vm2227, %v3792
      %3829 = vst.msk [vmem:[#allocation3 + $0x60] sm:$0xff] %vm2227, %v3794
      %3830 = vst.msk [vmem:[#allocation3 + $0x68] sm:$0xff] %vm2227, %v3796
      %3831 = vst.msk [vmem:[#allocation3 + $0x70] sm:$0xff] %vm2227, %v3798
      %3832 = vst.msk [vmem:[#allocation3 + $0x78] sm:$0xff] %vm2227, %v3800
      %v3833 = vld [vmem:[%s1631 + $0x2] sm:$0xff]
      %v3834 = vld [vmem:[%s1631 + $0xa] sm:$0xff]
      %v3835 = vld [vmem:[%s1631 + $0x1a] sm:$0xff]
      %v3836 = vld [vmem:[%s1631 + $0x22] sm:$0xff]
      %v3837 = vld [vmem:[%s1631 + $0x32] sm:$0xff]
      %v3838 = vld [vmem:[%s1631 + $0x3a] sm:$0xff]
      %v3839 = vld [vmem:[%s1631 + $0x4a] sm:$0xff]
      %v3840 = vld [vmem:[%s1631 + $0x52] sm:$0xff]
      %v3841 = vld [vmem:[%s1631 + $0x62] sm:$0xff]
      %v3842 = vld [vmem:[%s1631 + $0x6a] sm:$0xff]
      %v3843 = vld [vmem:[%s1631 + $0x7a] sm:$0xff]
      %v3844 = vld [vmem:[%s1631 + $0x82] sm:$0xff]
      %v3845 = vld [vmem:[%s1631 + $0x92] sm:$0xff]
      %v3846 = vld [vmem:[%s1631 + $0x9a] sm:$0xff]
      %v3847 = vld [vmem:[%s1631 + $0xaa] sm:$0xff]
      %v3848 = vld [vmem:[%s1631 + $0xb2] sm:$0xff]
      %v3849 = vld [vmem:[%s1631 + $0xc2] sm:$0xff]
      %v3850 = vld [vmem:[%s1631 + $0xca] sm:$0xff]
      %v3851 = vld [vmem:[%s1631 + $0xda] sm:$0xff]
      %v3852 = vld [vmem:[%s1631 + $0xe2] sm:$0xff]
      %v3853 = vld [vmem:[%s1631 + $0xf2] sm:$0xff]
      %v3854 = vld [vmem:[%s1631 + $0xfa] sm:$0xff]
      %v3855 = vld [vmem:[%s1631 + $0x10a] sm:$0xff]
      %v3856 = vld [vmem:[%s1631 + $0x112] sm:$0xff]
      %v3857 = vld [vmem:[%s1631 + $0x122] sm:$0xff]
      %v3858 = vld [vmem:[%s1631 + $0x12a] sm:$0xff]
      %v3859 = vld [vmem:[%s1631 + $0x13a] sm:$0xff]
      %v3860 = vld [vmem:[%s1631 + $0x142] sm:$0xff]
      %v3861 = vld [vmem:[%s1631 + $0x152] sm:$0xff]
      %v3862 = vld [vmem:[%s1631 + $0x15a] sm:$0xff]
      %v3863 = vld [vmem:[%s1631 + $0x16a] sm:$0xff]
      %v3864 = vld [vmem:[%s1631 + $0x172] sm:$0xff]
      %v3865 = vpack.c.bf16 %v3834, %v3833
      %v3866 = vpack.c.bf16 %v3836, %v3835
      %v3867 = vpack.c.bf16 %v3838, %v3837
      %v3868 = vpack.c.bf16 %v3840, %v3839
      %v3869 = vpack.c.bf16 %v3842, %v3841
      %v3870 = vpack.c.bf16 %v3844, %v3843
      %v3871 = vpack.c.bf16 %v3846, %v3845
      %v3872 = vpack.c.bf16 %v3848, %v3847
      %v3873 = vpack.c.bf16 %v3850, %v3849
      %v3874 = vpack.c.bf16 %v3852, %v3851
      %v3875 = vpack.c.bf16 %v3854, %v3853
      %v3876 = vpack.c.bf16 %v3856, %v3855
      %v3877 = vpack.c.bf16 %v3858, %v3857
      %v3878 = vpack.c.bf16 %v3860, %v3859
      %v3879 = vpack.c.bf16 %v3862, %v3861
      %v3880 = vpack.c.bf16 %v3864, %v3863
      %3897 = vrot.lane.b32.xlu0 %v3865, 40
      %v3898 = vpop.permute.xlu0 %3897
      %3899 = vrot.lane.b32.xlu0 %v3866, 40
      %v3900 = vpop.permute.xlu0 %3899
      %3901 = vrot.lane.b32.xlu0 %v3867, 40
      %v3902 = vpop.permute.xlu0 %3901
      %3903 = vrot.lane.b32.xlu0 %v3868, 40
      %v3904 = vpop.permute.xlu0 %3903
      %3905 = vrot.lane.b32.xlu0 %v3869, 40
      %v3906 = vpop.permute.xlu0 %3905
      %3907 = vrot.lane.b32.xlu0 %v3870, 40
      %v3908 = vpop.permute.xlu0 %3907
      %3909 = vrot.lane.b32.xlu0 %v3871, 40
      %v3910 = vpop.permute.xlu0 %3909
      %3911 = vrot.lane.b32.xlu0 %v3872, 40
      %v3912 = vpop.permute.xlu0 %3911
      %3913 = vrot.lane.b32.xlu0 %v3873, 40
      %v3914 = vpop.permute.xlu0 %3913
      %3915 = vrot.lane.b32.xlu0 %v3874, 40
      %v3916 = vpop.permute.xlu0 %3915
      %3917 = vrot.lane.b32.xlu0 %v3875, 40
      %v3918 = vpop.permute.xlu0 %3917
      %3919 = vrot.lane.b32.xlu0 %v3876, 40
      %v3920 = vpop.permute.xlu0 %3919
      %3921 = vrot.lane.b32.xlu0 %v3877, 40
      %v3922 = vpop.permute.xlu0 %3921
      %3923 = vrot.lane.b32.xlu0 %v3878, 40
      %v3924 = vpop.permute.xlu0 %3923
      %3925 = vrot.lane.b32.xlu0 %v3879, 40
      %v3926 = vpop.permute.xlu0 %3925
      %3927 = vrot.lane.b32.xlu0 %v3880, 40
      %v3928 = vpop.permute.xlu0 %3927
      %3945 = vst.msk [vmem:[#allocation3] sm:$0xff] %vm2356, %v3898
      %3946 = vst.msk [vmem:[#allocation3 + $0x8] sm:$0xff] %vm2356, %v3900
      %3947 = vst.msk [vmem:[#allocation3 + $0x10] sm:$0xff] %vm2356, %v3902
      %3948 = vst.msk [vmem:[#allocation3 + $0x18] sm:$0xff] %vm2356, %v3904
      %3949 = vst.msk [vmem:[#allocation3 + $0x20] sm:$0xff] %vm2356, %v3906
      %3950 = vst.msk [vmem:[#allocation3 + $0x28] sm:$0xff] %vm2356, %v3908
      %3951 = vst.msk [vmem:[#allocation3 + $0x30] sm:$0xff] %vm2356, %v3910
      %3952 = vst.msk [vmem:[#allocation3 + $0x38] sm:$0xff] %vm2356, %v3912
      %3953 = vst.msk [vmem:[#allocation3 + $0x40] sm:$0xff] %vm2356, %v3914
      %3954 = vst.msk [vmem:[#allocation3 + $0x48] sm:$0xff] %vm2356, %v3916
      %3955 = vst.msk [vmem:[#allocation3 + $0x50] sm:$0xff] %vm2356, %v3918
      %3956 = vst.msk [vmem:[#allocation3 + $0x58] sm:$0xff] %vm2356, %v3920
      %3957 = vst.msk [vmem:[#allocation3 + $0x60] sm:$0xff] %vm2356, %v3922
      %3958 = vst.msk [vmem:[#allocation3 + $0x68] sm:$0xff] %vm2356, %v3924
      %3959 = vst.msk [vmem:[#allocation3 + $0x70] sm:$0xff] %vm2356, %v3926
      %3960 = vst.msk [vmem:[#allocation3 + $0x78] sm:$0xff] %vm2356, %v3928
      %v3961 = vld [vmem:[%s2373] sm:$0xff]
      %v3962 = vld [vmem:[%s2373 + $0x8] sm:$0xff]
      %v3963 = vld [vmem:[%s2373 + $0x18] sm:$0xff]
      %v3964 = vld [vmem:[%s2373 + $0x20] sm:$0xff]
      %v3965 = vld [vmem:[%s2373 + $0x30] sm:$0xff]
      %v3966 = vld [vmem:[%s2373 + $0x38] sm:$0xff]
      %v3967 = vld [vmem:[%s2373 + $0x48] sm:$0xff]
      %v3968 = vld [vmem:[%s2373 + $0x50] sm:$0xff]
      %v3969 = vld [vmem:[%s2373 + $0x60] sm:$0xff]
      %v3970 = vld [vmem:[%s2373 + $0x68] sm:$0xff]
      %v3971 = vld [vmem:[%s2373 + $0x78] sm:$0xff]
      %v3972 = vld [vmem:[%s2373 + $0x80] sm:$0xff]
      %v3973 = vld [vmem:[%s2373 + $0x90] sm:$0xff]
      %v3974 = vld [vmem:[%s2373 + $0x98] sm:$0xff]
      %v3975 = vld [vmem:[%s2373 + $0xa8] sm:$0xff]
      %v3976 = vld [vmem:[%s2373 + $0xb0] sm:$0xff]
      %v3977 = vld [vmem:[%s2373 + $0xc0] sm:$0xff]
      %v3978 = vld [vmem:[%s2373 + $0xc8] sm:$0xff]
      %v3979 = vld [vmem:[%s2373 + $0xd8] sm:$0xff]
      %v3980 = vld [vmem:[%s2373 + $0xe0] sm:$0xff]
      %v3981 = vld [vmem:[%s2373 + $0xf0] sm:$0xff]
      %v3982 = vld [vmem:[%s2373 + $0xf8] sm:$0xff]
      %v3983 = vld [vmem:[%s2373 + $0x108] sm:$0xff]
      %v3984 = vld [vmem:[%s2373 + $0x110] sm:$0xff]
      %v3985 = vld [vmem:[%s2373 + $0x120] sm:$0xff]
      %v3986 = vld [vmem:[%s2373 + $0x128] sm:$0xff]
      %v3987 = vld [vmem:[%s2373 + $0x138] sm:$0xff]
      %v3988 = vld [vmem:[%s2373 + $0x140] sm:$0xff]
      %v3989 = vld [vmem:[%s2373 + $0x150] sm:$0xff]
      %v3990 = vld [vmem:[%s2373 + $0x158] sm:$0xff]
      %v3991 = vld [vmem:[%s2373 + $0x168] sm:$0xff]
      %v3992 = vld [vmem:[%s2373 + $0x170] sm:$0xff]
      %v3993 = vpack.c.bf16 %v3962, %v3961
      %v3994 = vpack.c.bf16 %v3964, %v3963
      %v3995 = vpack.c.bf16 %v3966, %v3965
      %v3996 = vpack.c.bf16 %v3968, %v3967
      %v3997 = vpack.c.bf16 %v3970, %v3969
      %v3998 = vpack.c.bf16 %v3972, %v3971
      %v3999 = vpack.c.bf16 %v3974, %v3973
      %v4000 = vpack.c.bf16 %v3976, %v3975
      %v4001 = vpack.c.bf16 %v3978, %v3977
      %v4002 = vpack.c.bf16 %v3980, %v3979
      %v4003 = vpack.c.bf16 %v3982, %v3981
      %v4004 = vpack.c.bf16 %v3984, %v3983
      %v4005 = vpack.c.bf16 %v3986, %v3985
      %v4006 = vpack.c.bf16 %v3988, %v3987
      %v4007 = vpack.c.bf16 %v3990, %v3989
      %v4008 = vpack.c.bf16 %v3992, %v3991
      %4025 = vrot.lane.b32.xlu0 %v3993, 48
      %v4026 = vpop.permute.xlu0 %4025
      %4027 = vrot.lane.b32.xlu0 %v3994, 48
      %v4028 = vpop.permute.xlu0 %4027
      %4029 = vrot.lane.b32.xlu0 %v3995, 48
      %v4030 = vpop.permute.xlu0 %4029
      %4031 = vrot.lane.b32.xlu0 %v3996, 48
      %v4032 = vpop.permute.xlu0 %4031
      %4033 = vrot.lane.b32.xlu0 %v3997, 48
      %v4034 = vpop.permute.xlu0 %4033
      %4035 = vrot.lane.b32.xlu0 %v3998, 48
      %v4036 = vpop.permute.xlu0 %4035
      %4037 = vrot.lane.b32.xlu0 %v3999, 48
      %v4038 = vpop.permute.xlu0 %4037
      %4039 = vrot.lane.b32.xlu0 %v4000, 48
      %v4040 = vpop.permute.xlu0 %4039
      %4041 = vrot.lane.b32.xlu0 %v4001, 48
      %v4042 = vpop.permute.xlu0 %4041
      %4043 = vrot.lane.b32.xlu0 %v4002, 48
      %v4044 = vpop.permute.xlu0 %4043
      %4045 = vrot.lane.b32.xlu0 %v4003, 48
      %v4046 = vpop.permute.xlu0 %4045
      %4047 = vrot.lane.b32.xlu0 %v4004, 48
      %v4048 = vpop.permute.xlu0 %4047
      %4049 = vrot.lane.b32.xlu0 %v4005, 48
      %v4050 = vpop.permute.xlu0 %4049
      %4051 = vrot.lane.b32.xlu0 %v4006, 48
      %v4052 = vpop.permute.xlu0 %4051
      %4053 = vrot.lane.b32.xlu0 %v4007, 48
      %v4054 = vpop.permute.xlu0 %4053
      %4055 = vrot.lane.b32.xlu0 %v4008, 48
      %v4056 = vpop.permute.xlu0 %4055
      %4073 = vst.msk [vmem:[#allocation3] sm:$0xff] %vm2486, %v4026
      %4074 = vst.msk [vmem:[#allocation3 + $0x8] sm:$0xff] %vm2486, %v4028
      %4075 = vst.msk [vmem:[#allocation3 + $0x10] sm:$0xff] %vm2486, %v4030
      %4076 = vst.msk [vmem:[#allocation3 + $0x18] sm:$0xff] %vm2486, %v4032
      %4077 = vst.msk [vmem:[#allocation3 + $0x20] sm:$0xff] %vm2486, %v4034
      %4078 = vst.msk [vmem:[#allocation3 + $0x28] sm:$0xff] %vm2486, %v4036
      %4079 = vst.msk [vmem:[#allocation3 + $0x30] sm:$0xff] %vm2486, %v4038
      %4080 = vst.msk [vmem:[#allocation3 + $0x38] sm:$0xff] %vm2486, %v4040
      %4081 = vst.msk [vmem:[#allocation3 + $0x40] sm:$0xff] %vm2486, %v4042
      %4082 = vst.msk [vmem:[#allocation3 + $0x48] sm:$0xff] %vm2486, %v4044
      %4083 = vst.msk [vmem:[#allocation3 + $0x50] sm:$0xff] %vm2486, %v4046
      %4084 = vst.msk [vmem:[#allocation3 + $0x58] sm:$0xff] %vm2486, %v4048
      %4085 = vst.msk [vmem:[#allocation3 + $0x60] sm:$0xff] %vm2486, %v4050
      %4086 = vst.msk [vmem:[#allocation3 + $0x68] sm:$0xff] %vm2486, %v4052
      %4087 = vst.msk [vmem:[#allocation3 + $0x70] sm:$0xff] %vm2486, %v4054
      %4088 = vst.msk [vmem:[#allocation3 + $0x78] sm:$0xff] %vm2486, %v4056
      %v4089 = vld [vmem:[%s2373 + $0x1] sm:$0xff]
      %v4090 = vld [vmem:[%s2373 + $0x9] sm:$0xff]
      %v4091 = vld [vmem:[%s2373 + $0x19] sm:$0xff]
      %v4092 = vld [vmem:[%s2373 + $0x21] sm:$0xff]
      %v4093 = vld [vmem:[%s2373 + $0x31] sm:$0xff]
      %v4094 = vld [vmem:[%s2373 + $0x39] sm:$0xff]
      %v4095 = vld [vmem:[%s2373 + $0x49] sm:$0xff]
      %v4096 = vld [vmem:[%s2373 + $0x51] sm:$0xff]
      %v4097 = vld [vmem:[%s2373 + $0x61] sm:$0xff]
      %v4098 = vld [vmem:[%s2373 + $0x69] sm:$0xff]
      %v4099 = vld [vmem:[%s2373 + $0x79] sm:$0xff]
      %v4100 = vld [vmem:[%s2373 + $0x81] sm:$0xff]
      %v4101 = vld [vmem:[%s2373 + $0x91] sm:$0xff]
      %v4102 = vld [vmem:[%s2373 + $0x99] sm:$0xff]
      %v4103 = vld [vmem:[%s2373 + $0xa9] sm:$0xff]
      %v4104 = vld [vmem:[%s2373 + $0xb1] sm:$0xff]
      %v4105 = vld [vmem:[%s2373 + $0xc1] sm:$0xff]
      %v4106 = vld [vmem:[%s2373 + $0xc9] sm:$0xff]
      %v4107 = vld [vmem:[%s2373 + $0xd9] sm:$0xff]
      %v4108 = vld [vmem:[%s2373 + $0xe1] sm:$0xff]
      %v4109 = vld [vmem:[%s2373 + $0xf1] sm:$0xff]
      %v4110 = vld [vmem:[%s2373 + $0xf9] sm:$0xff]
      %v4111 = vld [vmem:[%s2373 + $0x109] sm:$0xff]
      %v4112 = vld [vmem:[%s2373 + $0x111] sm:$0xff]
      %v4113 = vld [vmem:[%s2373 + $0x121] sm:$0xff]
      %v4114 = vld [vmem:[%s2373 + $0x129] sm:$0xff]
      %v4115 = vld [vmem:[%s2373 + $0x139] sm:$0xff]
      %v4116 = vld [vmem:[%s2373 + $0x141] sm:$0xff]
      %v4117 = vld [vmem:[%s2373 + $0x151] sm:$0xff]
      %v4118 = vld [vmem:[%s2373 + $0x159] sm:$0xff]
      %v4119 = vld [vmem:[%s2373 + $0x169] sm:$0xff]
      %v4120 = vld [vmem:[%s2373 + $0x171] sm:$0xff]
      %v4121 = vpack.c.bf16 %v4090, %v4089
      %v4122 = vpack.c.bf16 %v4092, %v4091
      %v4123 = vpack.c.bf16 %v4094, %v4093
      %v4124 = vpack.c.bf16 %v4096, %v4095
      %v4125 = vpack.c.bf16 %v4098, %v4097
      %v4126 = vpack.c.bf16 %v4100, %v4099
      %v4127 = vpack.c.bf16 %v4102, %v4101
      %v4128 = vpack.c.bf16 %v4104, %v4103
      %v4129 = vpack.c.bf16 %v4106, %v4105
      %v4130 = vpack.c.bf16 %v4108, %v4107
      %v4131 = vpack.c.bf16 %v4110, %v4109
      %v4132 = vpack.c.bf16 %v4112, %v4111
      %v4133 = vpack.c.bf16 %v4114, %v4113
      %v4134 = vpack.c.bf16 %v4116, %v4115
      %v4135 = vpack.c.bf16 %v4118, %v4117
      %v4136 = vpack.c.bf16 %v4120, %v4119
      %4153 = vrot.lane.b32.xlu0 %v4121, 56
      %v4154 = vpop.permute.xlu0 %4153
      %4155 = vrot.lane.b32.xlu0 %v4122, 56
      %v4156 = vpop.permute.xlu0 %4155
      %4157 = vrot.lane.b32.xlu0 %v4123, 56
      %v4158 = vpop.permute.xlu0 %4157
      %4159 = vrot.lane.b32.xlu0 %v4124, 56
      %v4160 = vpop.permute.xlu0 %4159
      %4161 = vrot.lane.b32.xlu0 %v4125, 56
      %v4162 = vpop.permute.xlu0 %4161
      %4163 = vrot.lane.b32.xlu0 %v4126, 56
      %v4164 = vpop.permute.xlu0 %4163
      %4165 = vrot.lane.b32.xlu0 %v4127, 56
      %v4166 = vpop.permute.xlu0 %4165
      %4167 = vrot.lane.b32.xlu0 %v4128, 56
      %v4168 = vpop.permute.xlu0 %4167
      %4169 = vrot.lane.b32.xlu0 %v4129, 56
      %v4170 = vpop.permute.xlu0 %4169
      %4171 = vrot.lane.b32.xlu0 %v4130, 56
      %v4172 = vpop.permute.xlu0 %4171
      %4173 = vrot.lane.b32.xlu0 %v4131, 56
      %v4174 = vpop.permute.xlu0 %4173
      %4175 = vrot.lane.b32.xlu0 %v4132, 56
      %v4176 = vpop.permute.xlu0 %4175
      %4177 = vrot.lane.b32.xlu0 %v4133, 56
      %v4178 = vpop.permute.xlu0 %4177
      %4179 = vrot.lane.b32.xlu0 %v4134, 56
      %v4180 = vpop.permute.xlu0 %4179
      %4181 = vrot.lane.b32.xlu0 %v4135, 56
      %v4182 = vpop.permute.xlu0 %4181
      %4183 = vrot.lane.b32.xlu0 %v4136, 56
      %v4184 = vpop.permute.xlu0 %4183
      %4201 = vst.msk [vmem:[#allocation3] sm:$0xff] %vm2615, %v4154
      %4202 = vst.msk [vmem:[#allocation3 + $0x8] sm:$0xff] %vm2615, %v4156
      %4203 = vst.msk [vmem:[#allocation3 + $0x10] sm:$0xff] %vm2615, %v4158
      %4204 = vst.msk [vmem:[#allocation3 + $0x18] sm:$0xff] %vm2615, %v4160
      %4205 = vst.msk [vmem:[#allocation3 + $0x20] sm:$0xff] %vm2615, %v4162
      %4206 = vst.msk [vmem:[#allocation3 + $0x28] sm:$0xff] %vm2615, %v4164
      %4207 = vst.msk [vmem:[#allocation3 + $0x30] sm:$0xff] %vm2615, %v4166
      %4208 = vst.msk [vmem:[#allocation3 + $0x38] sm:$0xff] %vm2615, %v4168
      %4209 = vst.msk [vmem:[#allocation3 + $0x40] sm:$0xff] %vm2615, %v4170
      %4210 = vst.msk [vmem:[#allocation3 + $0x48] sm:$0xff] %vm2615, %v4172
      %4211 = vst.msk [vmem:[#allocation3 + $0x50] sm:$0xff] %vm2615, %v4174
      %4212 = vst.msk [vmem:[#allocation3 + $0x58] sm:$0xff] %vm2615, %v4176
      %4213 = vst.msk [vmem:[#allocation3 + $0x60] sm:$0xff] %vm2615, %v4178
      %4214 = vst.msk [vmem:[#allocation3 + $0x68] sm:$0xff] %vm2615, %v4180
      %4215 = vst.msk [vmem:[#allocation3 + $0x70] sm:$0xff] %vm2615, %v4182
      %4216 = vst.msk [vmem:[#allocation3 + $0x78] sm:$0xff] %vm2615, %v4184
      %v4217 = vld [vmem:[%s2373 + $0x2] sm:$0xff]
      %v4218 = vld [vmem:[%s2373 + $0xa] sm:$0xff]
      %v4219 = vld [vmem:[%s2373 + $0x1a] sm:$0xff]
      %v4220 = vld [vmem:[%s2373 + $0x22] sm:$0xff]
      %v4221 = vld [vmem:[%s2373 + $0x32] sm:$0xff]
      %v4222 = vld [vmem:[%s2373 + $0x3a] sm:$0xff]
      %v4223 = vld [vmem:[%s2373 + $0x4a] sm:$0xff]
      %v4224 = vld [vmem:[%s2373 + $0x52] sm:$0xff]
      %v4225 = vld [vmem:[%s2373 + $0x62] sm:$0xff]
      %v4226 = vld [vmem:[%s2373 + $0x6a] sm:$0xff]
      %v4227 = vld [vmem:[%s2373 + $0x7a] sm:$0xff]
      %v4228 = vld [vmem:[%s2373 + $0x82] sm:$0xff]
      %v4229 = vld [vmem:[%s2373 + $0x92] sm:$0xff]
      %v4230 = vld [vmem:[%s2373 + $0x9a] sm:$0xff]
      %v4231 = vld [vmem:[%s2373 + $0xaa] sm:$0xff]
      %v4232 = vld [vmem:[%s2373 + $0xb2] sm:$0xff]
      %v4233 = vld [vmem:[%s2373 + $0xc2] sm:$0xff]
      %v4234 = vld [vmem:[%s2373 + $0xca] sm:$0xff]
      %v4235 = vld [vmem:[%s2373 + $0xda] sm:$0xff]
      %v4236 = vld [vmem:[%s2373 + $0xe2] sm:$0xff]
      %v4237 = vld [vmem:[%s2373 + $0xf2] sm:$0xff]
      %v4238 = vld [vmem:[%s2373 + $0xfa] sm:$0xff]
      %v4239 = vld [vmem:[%s2373 + $0x10a] sm:$0xff]
      %v4240 = vld [vmem:[%s2373 + $0x112] sm:$0xff]
      %v4241 = vld [vmem:[%s2373 + $0x122] sm:$0xff]
      %v4242 = vld [vmem:[%s2373 + $0x12a] sm:$0xff]
      %v4243 = vld [vmem:[%s2373 + $0x13a] sm:$0xff]
      %v4244 = vld [vmem:[%s2373 + $0x142] sm:$0xff]
      %v4245 = vld [vmem:[%s2373 + $0x152] sm:$0xff]
      %v4246 = vld [vmem:[%s2373 + $0x15a] sm:$0xff]
      %v4247 = vld [vmem:[%s2373 + $0x16a] sm:$0xff]
      %v4248 = vld [vmem:[%s2373 + $0x172] sm:$0xff]
      %v4249 = vpack.c.bf16 %v4218, %v4217
      %v4250 = vpack.c.bf16 %v4220, %v4219
      %v4251 = vpack.c.bf16 %v4222, %v4221
      %v4252 = vpack.c.bf16 %v4224, %v4223
      %v4253 = vpack.c.bf16 %v4226, %v4225
      %v4254 = vpack.c.bf16 %v4228, %v4227
      %v4255 = vpack.c.bf16 %v4230, %v4229
      %v4256 = vpack.c.bf16 %v4232, %v4231
      %v4257 = vpack.c.bf16 %v4234, %v4233
      %v4258 = vpack.c.bf16 %v4236, %v4235
      %v4259 = vpack.c.bf16 %v4238, %v4237
      %v4260 = vpack.c.bf16 %v4240, %v4239
      %v4261 = vpack.c.bf16 %v4242, %v4241
      %v4262 = vpack.c.bf16 %v4244, %v4243
      %v4263 = vpack.c.bf16 %v4246, %v4245
      %v4264 = vpack.c.bf16 %v4248, %v4247
      %4281 = vrot.lane.b32.xlu0 %v4249, 64
      %v4282 = vpop.permute.xlu0 %4281
      %4283 = vrot.lane.b32.xlu0 %v4250, 64
      %v4284 = vpop.permute.xlu0 %4283
      %4285 = vrot.lane.b32.xlu0 %v4251, 64
      %v4286 = vpop.permute.xlu0 %4285
      %4287 = vrot.lane.b32.xlu0 %v4252, 64
      %v4288 = vpop.permute.xlu0 %4287
      %4289 = vrot.lane.b32.xlu0 %v4253, 64
      %v4290 = vpop.permute.xlu0 %4289
      %4291 = vrot.lane.b32.xlu0 %v4254, 64
      %v4292 = vpop.permute.xlu0 %4291
      %4293 = vrot.lane.b32.xlu0 %v4255, 64
      %v4294 = vpop.permute.xlu0 %4293
      %4295 = vrot.lane.b32.xlu0 %v4256, 64
      %v4296 = vpop.permute.xlu0 %4295
      %4297 = vrot.lane.b32.xlu0 %v4257, 64
      %v4298 = vpop.permute.xlu0 %4297
      %4299 = vrot.lane.b32.xlu0 %v4258, 64
      %v4300 = vpop.permute.xlu0 %4299
      %4301 = vrot.lane.b32.xlu0 %v4259, 64
      %v4302 = vpop.permute.xlu0 %4301
      %4303 = vrot.lane.b32.xlu0 %v4260, 64
      %v4304 = vpop.permute.xlu0 %4303
      %4305 = vrot.lane.b32.xlu0 %v4261, 64
      %v4306 = vpop.permute.xlu0 %4305
      %4307 = vrot.lane.b32.xlu0 %v4262, 64
      %v4308 = vpop.permute.xlu0 %4307
      %4309 = vrot.lane.b32.xlu0 %v4263, 64
      %v4310 = vpop.permute.xlu0 %4309
      %4311 = vrot.lane.b32.xlu0 %v4264, 64
      %v4312 = vpop.permute.xlu0 %4311
      %4329 = vst.msk [vmem:[#allocation3] sm:$0xff] %vm2744, %v4282
      %4330 = vst.msk [vmem:[#allocation3 + $0x8] sm:$0xff] %vm2744, %v4284
      %4331 = vst.msk [vmem:[#allocation3 + $0x10] sm:$0xff] %vm2744, %v4286
      %4332 = vst.msk [vmem:[#allocation3 + $0x18] sm:$0xff] %vm2744, %v4288
      %4333 = vst.msk [vmem:[#allocation3 + $0x20] sm:$0xff] %vm2744, %v4290
      %4334 = vst.msk [vmem:[#allocation3 + $0x28] sm:$0xff] %vm2744, %v4292
      %4335 = vst.msk [vmem:[#allocation3 + $0x30] sm:$0xff] %vm2744, %v4294
      %4336 = vst.msk [vmem:[#allocation3 + $0x38] sm:$0xff] %vm2744, %v4296
      %4337 = vst.msk [vmem:[#allocation3 + $0x40] sm:$0xff] %vm2744, %v4298
      %4338 = vst.msk [vmem:[#allocation3 + $0x48] sm:$0xff] %vm2744, %v4300
      %4339 = vst.msk [vmem:[#allocation3 + $0x50] sm:$0xff] %vm2744, %v4302
      %4340 = vst.msk [vmem:[#allocation3 + $0x58] sm:$0xff] %vm2744, %v4304
      %4341 = vst.msk [vmem:[#allocation3 + $0x60] sm:$0xff] %vm2744, %v4306
      %4342 = vst.msk [vmem:[#allocation3 + $0x68] sm:$0xff] %vm2744, %v4308
      %4343 = vst.msk [vmem:[#allocation3 + $0x70] sm:$0xff] %vm2744, %v4310
      %4344 = vst.msk [vmem:[#allocation3 + $0x78] sm:$0xff] %vm2744, %v4312
      %v4345 = vld [vmem:[#allocation3] sm:$0xff]
      %v4346 = vld [vmem:[#allocation3 + $0x8] sm:$0xff]
      %v4347 = vld [vmem:[#allocation3 + $0x10] sm:$0xff]
      %v4348 = vld [vmem:[#allocation3 + $0x18] sm:$0xff]
      %v4349 = vld [vmem:[#allocation3 + $0x20] sm:$0xff]
      %v4350 = vld [vmem:[#allocation3 + $0x28] sm:$0xff]
      %v4351 = vld [vmem:[#allocation3 + $0x30] sm:$0xff]
      %v4352 = vld [vmem:[#allocation3 + $0x38] sm:$0xff]
      %v4353 = vld [vmem:[#allocation3 + $0x40] sm:$0xff]
      %v4354 = vld [vmem:[#allocation3 + $0x48] sm:$0xff]
      %v4355 = vld [vmem:[#allocation3 + $0x50] sm:$0xff]
      %v4356 = vld [vmem:[#allocation3 + $0x58] sm:$0xff]
      %v4357 = vld [vmem:[#allocation3 + $0x60] sm:$0xff]
      %v4358 = vld [vmem:[#allocation3 + $0x68] sm:$0xff]
      %v4359 = vld [vmem:[#allocation3 + $0x70] sm:$0xff]
      %v4360 = vld [vmem:[#allocation3 + $0x78] sm:$0xff]
      %s4361 = scalar_lea.vmem %s3, 36
      %v4362 = vld [vmem:[%s4361] sm:$0xf]
      %v4363 = vld [vmem:[%s4361 + $0x4] sm:$0xf]
      %v4364 = vld [vmem:[%s4361 + $0x8] sm:$0xf]
      %v4365 = vld [vmem:[%s4361 + $0xc] sm:$0xf]
      %v4366 = vld [vmem:[%s4361 + $0x10] sm:$0xf]
      %v4367 = vld [vmem:[%s4361 + $0x14] sm:$0xf]
      %v4368 = vld [vmem:[%s4361 + $0x18] sm:$0xf]
      %v4369 = vld [vmem:[%s4361 + $0x1c] sm:$0xf]
      %v4370 = vld [vmem:[%s4361 + $0x20] sm:$0xf]
      %s4371 = scalar_lea.vmem %s4, 1
      %v4372 = vld [vmem:[%s4371] sm:$0x1]
      %v4374 = vlaneseq
      %v4375 = vshrl.u32 %v4374, 7
      %v4376 = vsub.s32 0, %v4375
      %v4377 = vrot.slane %v4372, %v4376
      %v4388 = vunpack.c.l.b16 %v4362
      %v4389 = vunpack.c.l.b16 %v4363
      %v4390 = vunpack.c.l.b16 %v4364
      %v4391 = vunpack.c.l.b16 %v4365
      %v4392 = vunpack.c.l.b16 %v4366
      %v4393 = vunpack.c.l.b16 %v4367
      %v4394 = vunpack.c.l.b16 %v4368
      %v4395 = vunpack.c.l.b16 %v4369
      %v4396 = vunpack.c.l.b16 %v4370
      %v4397 = vpack.c.b16 %v4389, %v4388
      %v4398 = vpack.c.b16 %v4391, %v4390
      %v4399 = vpack.c.b16 %v4393, %v4392
      %v4400 = vpack.c.b16 %v4395, %v4394
      %v4401 = vpack.c.b16 %v4396, %v4396
      %v4407 = vsel %vm2820, %v4345, 0
      %v4410 = vsel %vm2820, %v4346, 0
      %v4413 = vsel %vm2820, %v4347, 0
      %v4416 = vsel %vm2820, %v4348, 0
      %v4419 = vsel %vm2820, %v4349, 0
      %v4422 = vsel %vm2820, %v4350, 0
      %v4425 = vsel %vm2820, %v4351, 0
      %v4428 = vsel %vm2820, %v4352, 0
      %v4431 = vsel %vm2820, %v4353, 0
      %v4434 = vsel %vm2820, %v4354, 0
      %v4437 = vsel %vm2820, %v4355, 0
      %v4440 = vsel %vm2820, %v4356, 0
      %v4443 = vsel %vm2820, %v4357, 0
      %v4446 = vsel %vm2820, %v4358, 0
      %v4449 = vsel %vm2820, %v4359, 0
      %v4452 = vsel %vm2820, %v4360, 0
      %v4455 = vsel %vm1254, %v4401, 0
      %4457 = vmatprep.subr.bf16.mxu0 0
      %4458 = vmatpush1.bf16.msra.mxu0 %v4397
      %4459 = vmatprep.subr.bf16.mxu0 0
      %4460 = vmatpush1.bf16.msra.mxu0 %v4398
      %4461 = vmatprep.subr.bf16.mxu0 0
      %4462 = vmatpush1.bf16.msra.mxu0 %v4399
      %4463 = vmatprep.subr.bf16.mxu0 0
      %4464 = vmatpush1.bf16.msra.mxu0 %v4400
      %4465 = vmatprep.subr.bf16.mxu0 0
      %4466 = vmatpush1.bf16.msra.mxu0 %v4455
      %4467 = vmatprep.subr.bf16.mxu0 0
      %4468 = vmatpush1.bf16.msra.mxu0 0
      %4469 = vmatprep.subr.bf16.mxu0 0
      %4470 = vmatpush1.bf16.msra.mxu0 0
      %4471 = vmatprep.subr.bf16.mxu0 0
      %4472 = vmatpush1.bf16.msra.mxu0 0
      %4473 = vmatprep.subr.bf16.mxu0 0
      %4474 = vmatpush1.bf16.msra.mxu0 0
      %4475 = vmatprep.subr.bf16.mxu0 0
      %4476 = vmatpush1.bf16.msra.mxu0 0
      %4477 = vmatprep.subr.bf16.mxu0 0
      %4478 = vmatpush1.bf16.msra.mxu0 0
      %4479 = vmatprep.subr.bf16.mxu0 0
      %4480 = vmatpush1.bf16.msra.mxu0 0
      %4481 = vmatprep.subr.bf16.mxu0 0
      %4482 = vmatpush1.bf16.msra.mxu0 0
      %4483 = vmatprep.subr.bf16.mxu0 0
      %4484 = vmatpush1.bf16.msra.mxu0 0
      %4485 = vmatprep.subr.bf16.mxu0 0
      %4486 = vmatpush1.bf16.msra.mxu0 0
      %4487 = vmatprep.subr.bf16.mxu0 0
      %4488 = vmatpush1.bf16.msra.mxu0 0
      %4489 = vmatprep.mubr.bf16.mxu0 0
      %4490 = vmatmul.mubr.bf16.gmra.mrb[0].mxu0 %v4407
      %v4491 = vpop.f32.mrb[0].mxu0
      %v4492 = vadd.f32 %v4377, %v4491
      %v4493 = vpop.f32.mrb[0].mxu0
      %v4494 = vpop.f32.mrb[0].mxu0
      %v4495 = vadd.f32 %v4377, %v4494
      %v4496 = vpop.f32.mrb[0].mxu0
      %4497 = vmatprep.mubr.bf16.mxu0 0
      %4498 = vmatmul.mubr.bf16.gmra.mrb[0].mxu0 %v4410
      %v4499 = vpop.f32.mrb[0].mxu0
      %v4500 = vadd.f32 %v4377, %v4499
      %v4501 = vpop.f32.mrb[0].mxu0
      %v4502 = vpop.f32.mrb[0].mxu0
      %v4503 = vadd.f32 %v4377, %v4502
      %v4504 = vpop.f32.mrb[0].mxu0
      %4505 = vmatprep.mubr.bf16.mxu0 0
      %4506 = vmatmul.mubr.bf16.gmra.mrb[0].mxu0 %v4413
      %v4507 = vpop.f32.mrb[0].mxu0
      %v4508 = vadd.f32 %v4377, %v4507
      %v4509 = vpop.f32.mrb[0].mxu0
      %v4510 = vpop.f32.mrb[0].mxu0
      %v4511 = vadd.f32 %v4377, %v4510
      %v4512 = vpop.f32.mrb[0].mxu0
      %4513 = vmatprep.mubr.bf16.mxu0 0
      %4514 = vmatmul.mubr.bf16.gmra.mrb[0].mxu0 %v4416
      %v4515 = vpop.f32.mrb[0].mxu0
      %v4516 = vadd.f32 %v4377, %v4515
      %v4517 = vpop.f32.mrb[0].mxu0
      %v4518 = vpop.f32.mrb[0].mxu0
      %v4519 = vadd.f32 %v4377, %v4518
      %v4520 = vpop.f32.mrb[0].mxu0
      %4521 = vmatprep.mubr.bf16.mxu0 0
      %4522 = vmatmul.mubr.bf16.gmra.mrb[0].mxu0 %v4419
      %v4523 = vpop.f32.mrb[0].mxu0
      %v4524 = vadd.f32 %v4377, %v4523
      %v4525 = vpop.f32.mrb[0].mxu0
      %v4526 = vpop.f32.mrb[0].mxu0
      %v4527 = vadd.f32 %v4377, %v4526
      %v4528 = vpop.f32.mrb[0].mxu0
      %4529 = vmatprep.mubr.bf16.mxu0 0
      %4530 = vmatmul.mubr.bf16.gmra.mrb[0].mxu0 %v4422
      %v4531 = vpop.f32.mrb[0].mxu0
      %v4532 = vadd.f32 %v4377, %v4531
      %v4533 = vpop.f32.mrb[0].mxu0
      %v4534 = vpop.f32.mrb[0].mxu0
      %v4535 = vadd.f32 %v4377, %v4534
      %v4536 = vpop.f32.mrb[0].mxu0
      %4537 = vmatprep.mubr.bf16.mxu0 0
      %4538 = vmatmul.mubr.bf16.gmra.mrb[0].mxu0 %v4425
      %v4539 = vpop.f32.mrb[0].mxu0
      %v4540 = vadd.f32 %v4377, %v4539
      %v4541 = vpop.f32.mrb[0].mxu0
      %v4542 = vpop.f32.mrb[0].mxu0
      %v4543 = vadd.f32 %v4377, %v4542
      %v4544 = vpop.f32.mrb[0].mxu0
      %4545 = vmatprep.mubr.bf16.mxu0 0
      %4546 = vmatmul.mubr.bf16.gmra.mrb[0].mxu0 %v4428
      %v4547 = vpop.f32.mrb[0].mxu0
      %v4548 = vadd.f32 %v4377, %v4547
      %v4549 = vpop.f32.mrb[0].mxu0
      %v4550 = vpop.f32.mrb[0].mxu0
      %v4551 = vadd.f32 %v4377, %v4550
      %v4552 = vpop.f32.mrb[0].mxu0
      %4553 = vmatprep.mubr.bf16.mxu0 0
      %4554 = vmatmul.mubr.bf16.gmra.mrb[0].mxu0 %v4431
      %v4555 = vpop.f32.mrb[0].mxu0
      %v4556 = vadd.f32 %v4377, %v4555
      %v4557 = vpop.f32.mrb[0].mxu0
      %v4558 = vpop.f32.mrb[0].mxu0
      %v4559 = vadd.f32 %v4377, %v4558
      %v4560 = vpop.f32.mrb[0].mxu0
      %4561 = vmatprep.mubr.bf16.mxu0 0
      %4562 = vmatmul.mubr.bf16.gmra.mrb[0].mxu0 %v4434
      %v4563 = vpop.f32.mrb[0].mxu0
      %v4564 = vadd.f32 %v4377, %v4563
      %v4565 = vpop.f32.mrb[0].mxu0
      %v4566 = vpop.f32.mrb[0].mxu0
      %v4567 = vadd.f32 %v4377, %v4566
      %v4568 = vpop.f32.mrb[0].mxu0
      %4569 = vmatprep.mubr.bf16.mxu0 0
      %4570 = vmatmul.mubr.bf16.gmra.mrb[0].mxu0 %v4437
      %v4571 = vpop.f32.mrb[0].mxu0
      %v4572 = vadd.f32 %v4377, %v4571
      %v4573 = vpop.f32.mrb[0].mxu0
      %v4574 = vpop.f32.mrb[0].mxu0
      %v4575 = vadd.f32 %v4377, %v4574
      %v4576 = vpop.f32.mrb[0].mxu0
      %4577 = vmatprep.mubr.bf16.mxu0 0
      %4578 = vmatmul.mubr.bf16.gmra.mrb[0].mxu0 %v4440
      %v4579 = vpop.f32.mrb[0].mxu0
      %v4580 = vadd.f32 %v4377, %v4579
      %v4581 = vpop.f32.mrb[0].mxu0
      %v4582 = vpop.f32.mrb[0].mxu0
      %v4583 = vadd.f32 %v4377, %v4582
      %v4584 = vpop.f32.mrb[0].mxu0
      %4585 = vmatprep.mubr.bf16.mxu0 0
      %4586 = vmatmul.mubr.bf16.gmra.mrb[0].mxu0 %v4443
      %v4587 = vpop.f32.mrb[0].mxu0
      %v4588 = vadd.f32 %v4377, %v4587
      %v4589 = vpop.f32.mrb[0].mxu0
      %v4590 = vpop.f32.mrb[0].mxu0
      %v4591 = vadd.f32 %v4377, %v4590
      %v4592 = vpop.f32.mrb[0].mxu0
      %4593 = vmatprep.mubr.bf16.mxu0 0
      %4594 = vmatmul.mubr.bf16.gmra.mrb[0].mxu0 %v4446
      %v4595 = vpop.f32.mrb[0].mxu0
      %v4596 = vadd.f32 %v4377, %v4595
      %v4597 = vpop.f32.mrb[0].mxu0
      %v4598 = vpop.f32.mrb[0].mxu0
      %v4599 = vadd.f32 %v4377, %v4598
      %v4600 = vpop.f32.mrb[0].mxu0
      %4601 = vmatprep.mubr.bf16.mxu0 0
      %4602 = vmatmul.mubr.bf16.gmra.mrb[0].mxu0 %v4449
      %v4603 = vpop.f32.mrb[0].mxu0
      %v4604 = vadd.f32 %v4377, %v4603
      %v4605 = vpop.f32.mrb[0].mxu0
      %v4606 = vpop.f32.mrb[0].mxu0
      %v4607 = vadd.f32 %v4377, %v4606
      %v4608 = vpop.f32.mrb[0].mxu0
      %4609 = vmatprep.mubr.bf16.mxu0 0
      %4610 = vmatmul.mubr.bf16.gmra.mrb[0].mxu0 %v4452
      %v4611 = vpop.f32.mrb[0].mxu0
      %v4612 = vadd.f32 %v4377, %v4611
      %v4613 = vpop.f32.mrb[0].mxu0
      %v4614 = vpop.f32.mrb[0].mxu0
      %v4615 = vadd.f32 %v4377, %v4614
      %v4616 = vpop.f32.mrb[0].mxu0
      %4617 = vdwg.mxu0
      %v4618 = vsub.f32 0.0, %v4492
      %v4619 = vsub.f32 0.0, %v4495
      %v4620 = vsub.f32 0.0, %v4500
      %v4621 = vsub.f32 0.0, %v4503
      %v4622 = vsub.f32 0.0, %v4508
      %v4623 = vsub.f32 0.0, %v4511
      %v4624 = vsub.f32 0.0, %v4516
      %v4625 = vsub.f32 0.0, %v4519
      %v4626 = vsub.f32 0.0, %v4524
      %v4627 = vsub.f32 0.0, %v4527
      %v4628 = vsub.f32 0.0, %v4532
      %v4629 = vsub.f32 0.0, %v4535
      %v4630 = vsub.f32 0.0, %v4540
      %v4631 = vsub.f32 0.0, %v4543
      %v4632 = vsub.f32 0.0, %v4548
      %v4633 = vsub.f32 0.0, %v4551
      %v4634 = vsub.f32 0.0, %v4556
      %v4635 = vsub.f32 0.0, %v4559
      %v4636 = vsub.f32 0.0, %v4564
      %v4637 = vsub.f32 0.0, %v4567
      %v4638 = vsub.f32 0.0, %v4572
      %v4639 = vsub.f32 0.0, %v4575
      %v4640 = vsub.f32 0.0, %v4580
      %v4641 = vsub.f32 0.0, %v4583
      %v4642 = vsub.f32 0.0, %v4588
      %v4643 = vsub.f32 0.0, %v4591
      %v4644 = vsub.f32 0.0, %v4596
      %v4645 = vsub.f32 0.0, %v4599
      %v4646 = vsub.f32 0.0, %v4604
      %v4647 = vsub.f32 0.0, %v4607
      %v4648 = vsub.f32 0.0, %v4612
      %v4649 = vsub.f32 0.0, %v4615
      %v4650 = vmul.f32 %v4618, 1.442695
      %v4651 = vpow.pop %v4650
      %v4652 = vmul.f32 %v4619, 1.442695
      %v4653 = vpow.pop %v4652
      %v4654 = vmul.f32 %v4620, 1.442695
      %v4655 = vpow.pop %v4654
      %v4656 = vmul.f32 %v4621, 1.442695
      %v4657 = vpow.pop %v4656
      %v4658 = vmul.f32 %v4622, 1.442695
      %v4659 = vpow.pop %v4658
      %v4660 = vmul.f32 %v4623, 1.442695
      %v4661 = vpow.pop %v4660
      %v4662 = vmul.f32 %v4624, 1.442695
      %v4663 = vpow.pop %v4662
      %v4664 = vmul.f32 %v4625, 1.442695
      %v4665 = vpow.pop %v4664
      %v4666 = vmul.f32 %v4626, 1.442695
      %v4667 = vpow.pop %v4666
      %v4668 = vmul.f32 %v4627, 1.442695
      %v4669 = vpow.pop %v4668
      %v4670 = vmul.f32 %v4628, 1.442695
      %v4671 = vpow.pop %v4670
      %v4672 = vmul.f32 %v4629, 1.442695
      %v4673 = vpow.pop %v4672
      %v4674 = vmul.f32 %v4630, 1.442695
      %v4675 = vpow.pop %v4674
      %v4676 = vmul.f32 %v4631, 1.442695
      %v4677 = vpow.pop %v4676
      %v4678 = vmul.f32 %v4632, 1.442695
      %v4679 = vpow.pop %v4678
      %v4680 = vmul.f32 %v4633, 1.442695
      %v4681 = vpow.pop %v4680
      %v4682 = vmul.f32 %v4634, 1.442695
      %v4683 = vpow.pop %v4682
      %v4684 = vmul.f32 %v4635, 1.442695
      %v4685 = vpow.pop %v4684
      %v4686 = vmul.f32 %v4636, 1.442695
      %v4687 = vpow.pop %v4686
      %v4688 = vmul.f32 %v4637, 1.442695
      %v4689 = vpow.pop %v4688
      %v4690 = vmul.f32 %v4638, 1.442695
      %v4691 = vpow.pop %v4690
      %v4692 = vmul.f32 %v4639, 1.442695
      %v4693 = vpow.pop %v4692
      %v4694 = vmul.f32 %v4640, 1.442695
      %v4695 = vpow.pop %v4694
      %v4696 = vmul.f32 %v4641, 1.442695
      %v4697 = vpow.pop %v4696
      %v4698 = vmul.f32 %v4642, 1.442695
      %v4699 = vpow.pop %v4698
      %v4700 = vmul.f32 %v4643, 1.442695
      %v4701 = vpow.pop %v4700
      %v4702 = vmul.f32 %v4644, 1.442695
      %v4703 = vpow.pop %v4702
      %v4704 = vmul.f32 %v4645, 1.442695
      %v4705 = vpow.pop %v4704
      %v4706 = vmul.f32 %v4646, 1.442695
      %v4707 = vpow.pop %v4706
      %v4708 = vmul.f32 %v4647, 1.442695
      %v4709 = vpow.pop %v4708
      %v4710 = vmul.f32 %v4648, 1.442695
      %v4711 = vpow.pop %v4710
      %v4712 = vmul.f32 %v4649, 1.442695
      %v4713 = vpow.pop %v4712
      %v4714 = vadd.f32 %v4651, 1.0
      %v4715 = vadd.f32 %v4653, 1.0
      %v4716 = vadd.f32 %v4655, 1.0
      %v4717 = vadd.f32 %v4657, 1.0
      %v4718 = vadd.f32 %v4659, 1.0
      %v4719 = vadd.f32 %v4661, 1.0
      %v4720 = vadd.f32 %v4663, 1.0
      %v4721 = vadd.f32 %v4665, 1.0
      %v4722 = vadd.f32 %v4667, 1.0
      %v4723 = vadd.f32 %v4669, 1.0
      %v4724 = vadd.f32 %v4671, 1.0
      %v4725 = vadd.f32 %v4673, 1.0
      %v4726 = vadd.f32 %v4675, 1.0
      %v4727 = vadd.f32 %v4677, 1.0
      %v4728 = vadd.f32 %v4679, 1.0
      %v4729 = vadd.f32 %v4681, 1.0
      %v4730 = vadd.f32 %v4683, 1.0
      %v4731 = vadd.f32 %v4685, 1.0
      %v4732 = vadd.f32 %v4687, 1.0
      %v4733 = vadd.f32 %v4689, 1.0
      %v4734 = vadd.f32 %v4691, 1.0
      %v4735 = vadd.f32 %v4693, 1.0
      %v4736 = vadd.f32 %v4695, 1.0
      %v4737 = vadd.f32 %v4697, 1.0
      %v4738 = vadd.f32 %v4699, 1.0
      %v4739 = vadd.f32 %v4701, 1.0
      %v4740 = vadd.f32 %v4703, 1.0
      %v4741 = vadd.f32 %v4705, 1.0
      %v4742 = vadd.f32 %v4707, 1.0
      %v4743 = vadd.f32 %v4709, 1.0
      %v4744 = vadd.f32 %v4711, 1.0
      %v4745 = vadd.f32 %v4713, 1.0
      %v4746 = vrcp.pop %v4714
      %v4747 = vrcp.pop %v4715
      %v4748 = vrcp.pop %v4716
      %v4749 = vrcp.pop %v4717
      %v4750 = vrcp.pop %v4718
      %v4751 = vrcp.pop %v4719
      %v4752 = vrcp.pop %v4720
      %v4753 = vrcp.pop %v4721
      %v4754 = vrcp.pop %v4722
      %v4755 = vrcp.pop %v4723
      %v4756 = vrcp.pop %v4724
      %v4757 = vrcp.pop %v4725
      %v4758 = vrcp.pop %v4726
      %v4759 = vrcp.pop %v4727
      %v4760 = vrcp.pop %v4728
      %v4761 = vrcp.pop %v4729
      %v4762 = vrcp.pop %v4730
      %v4763 = vrcp.pop %v4731
      %v4764 = vrcp.pop %v4732
      %v4765 = vrcp.pop %v4733
      %v4766 = vrcp.pop %v4734
      %v4767 = vrcp.pop %v4735
      %v4768 = vrcp.pop %v4736
      %v4769 = vrcp.pop %v4737
      %v4770 = vrcp.pop %v4738
      %v4771 = vrcp.pop %v4739
      %v4772 = vrcp.pop %v4740
      %v4773 = vrcp.pop %v4741
      %v4774 = vrcp.pop %v4742
      %v4775 = vrcp.pop %v4743
      %v4776 = vrcp.pop %v4744
      %v4777 = vrcp.pop %v4745
      %v4778 = vmul.f32 %v4492, %v4746
      %v4779 = vmul.f32 %v4495, %v4747
      %v4780 = vmul.f32 %v4500, %v4748
      %v4781 = vmul.f32 %v4503, %v4749
      %v4782 = vmul.f32 %v4508, %v4750
      %v4783 = vmul.f32 %v4511, %v4751
      %v4784 = vmul.f32 %v4516, %v4752
      %v4785 = vmul.f32 %v4519, %v4753
      %v4786 = vmul.f32 %v4524, %v4754
      %v4787 = vmul.f32 %v4527, %v4755
      %v4788 = vmul.f32 %v4532, %v4756
      %v4789 = vmul.f32 %v4535, %v4757
      %v4790 = vmul.f32 %v4540, %v4758
      %v4791 = vmul.f32 %v4543, %v4759
      %v4792 = vmul.f32 %v4548, %v4760
      %v4793 = vmul.f32 %v4551, %v4761
      %v4794 = vmul.f32 %v4556, %v4762
      %v4795 = vmul.f32 %v4559, %v4763
      %v4796 = vmul.f32 %v4564, %v4764
      %v4797 = vmul.f32 %v4567, %v4765
      %v4798 = vmul.f32 %v4572, %v4766
      %v4799 = vmul.f32 %v4575, %v4767
      %v4800 = vmul.f32 %v4580, %v4768
      %v4801 = vmul.f32 %v4583, %v4769
      %v4802 = vmul.f32 %v4588, %v4770
      %v4803 = vmul.f32 %v4591, %v4771
      %v4804 = vmul.f32 %v4596, %v4772
      %v4805 = vmul.f32 %v4599, %v4773
      %v4806 = vmul.f32 %v4604, %v4774
      %v4807 = vmul.f32 %v4607, %v4775
      %v4808 = vmul.f32 %v4612, %v4776
      %v4809 = vmul.f32 %v4615, %v4777
      %v4810 = vadd.f32 %v1139, %v4778
      %v4811 = vadd.f32 %v1140, %v4779
      %v4812 = vadd.f32 %v1141, %v4780
      %v4813 = vadd.f32 %v1142, %v4781
      %v4814 = vadd.f32 %v1143, %v4782
      %v4815 = vadd.f32 %v1144, %v4783
      %v4816 = vadd.f32 %v1145, %v4784
      %v4817 = vadd.f32 %v1146, %v4785
      %v4818 = vadd.f32 %v1147, %v4786
      %v4819 = vadd.f32 %v1148, %v4787
      %v4820 = vadd.f32 %v1149, %v4788
      %v4821 = vadd.f32 %v1150, %v4789
      %v4822 = vadd.f32 %v1151, %v4790
      %v4823 = vadd.f32 %v1152, %v4791
      %v4824 = vadd.f32 %v1153, %v4792
      %v4825 = vadd.f32 %v1154, %v4793
      %v4826 = vadd.f32 %v1155, %v4794
      %v4827 = vadd.f32 %v1156, %v4795
      %v4828 = vadd.f32 %v1157, %v4796
      %v4829 = vadd.f32 %v1158, %v4797
      %v4830 = vadd.f32 %v1159, %v4798
      %v4831 = vadd.f32 %v1160, %v4799
      %v4832 = vadd.f32 %v1161, %v4800
      %v4833 = vadd.f32 %v1162, %v4801
      %v4834 = vadd.f32 %v1163, %v4802
      %v4835 = vadd.f32 %v1164, %v4803
      %v4836 = vadd.f32 %v1165, %v4804
      %v4837 = vadd.f32 %v1166, %v4805
      %v4838 = vadd.f32 %v1167, %v4806
      %v4839 = vadd.f32 %v1168, %v4807
      %v4840 = vadd.f32 %v1169, %v4808
      %v4841 = vadd.f32 %v1170, %v4809
      %v4842 = vpack.c.bf16 %v4811, %v4810
      %v4843 = vpack.c.bf16 %v4813, %v4812
      %v4844 = vpack.c.bf16 %v4815, %v4814
      %v4845 = vpack.c.bf16 %v4817, %v4816
      %v4846 = vpack.c.bf16 %v4819, %v4818
      %v4847 = vpack.c.bf16 %v4821, %v4820
      %v4848 = vpack.c.bf16 %v4823, %v4822
      %v4849 = vpack.c.bf16 %v4825, %v4824
      %v4850 = vpack.c.bf16 %v4827, %v4826
      %v4851 = vpack.c.bf16 %v4829, %v4828
      %v4852 = vpack.c.bf16 %v4831, %v4830
      %v4853 = vpack.c.bf16 %v4833, %v4832
      %v4854 = vpack.c.bf16 %v4835, %v4834
      %v4855 = vpack.c.bf16 %v4837, %v4836
      %v4856 = vpack.c.bf16 %v4839, %v4838
      %v4857 = vpack.c.bf16 %v4841, %v4840
      %s4858 = scalar_lea.vmem %s5, 8
      %v4859 = vld [vmem:[%s4858] sm:$0xf]
      %v4861 = vsel %vm280, %v4842, 0
      %v4864 = vsel %vm280, %v4843, 0
      %v4867 = vsel %vm280, %v4844, 0
      %v4870 = vsel %vm280, %v4845, 0
      %v4873 = vsel %vm280, %v4846, 0
      %v4876 = vsel %vm280, %v4847, 0
      %v4879 = vsel %vm280, %v4848, 0
      %v4882 = vsel %vm280, %v4849, 0
      %v4885 = vsel %vm280, %v4850, 0
      %v4888 = vsel %vm280, %v4851, 0
      %v4891 = vsel %vm280, %v4852, 0
      %v4894 = vsel %vm280, %v4853, 0
      %v4897 = vsel %vm280, %v4854, 0
      %v4900 = vsel %vm280, %v4855, 0
      %v4903 = vsel %vm280, %v4856, 0
      %v4906 = vsel %vm280, %v4857, 0
      %v4909 = vsel %vm1254, %v4859, 0
      %4911 = vmatprep.subr.bf16.mxu0 0
      %4912 = vmatpush1.bf16.msra.mxu0 %v4909
      %4913 = vmatprep.subr.bf16.mxu0 0
      %4914 = vmatpush1.bf16.msra.mxu0 0
      %4915 = vmatprep.subr.bf16.mxu0 0
      %4916 = vmatpush1.bf16.msra.mxu0 0
      %4917 = vmatprep.subr.bf16.mxu0 0
      %4918 = vmatpush1.bf16.msra.mxu0 0
      %4919 = vmatprep.subr.bf16.mxu0 0
      %4920 = vmatpush1.bf16.msra.mxu0 0
      %4921 = vmatprep.subr.bf16.mxu0 0
      %4922 = vmatpush1.bf16.msra.mxu0 0
      %4923 = vmatprep.subr.bf16.mxu0 0
      %4924 = vmatpush1.bf16.msra.mxu0 0
      %4925 = vmatprep.subr.bf16.mxu0 0
      %4926 = vmatpush1.bf16.msra.mxu0 0
      %4927 = vmatprep.subr.bf16.mxu0 0
      %4928 = vmatpush1.bf16.msra.mxu0 0
      %4929 = vmatprep.subr.bf16.mxu0 0
      %4930 = vmatpush1.bf16.msra.mxu0 0
      %4931 = vmatprep.subr.bf16.mxu0 0
      %4932 = vmatpush1.bf16.msra.mxu0 0
      %4933 = vmatprep.subr.bf16.mxu0 0
      %4934 = vmatpush1.bf16.msra.mxu0 0
      %4935 = vmatprep.subr.bf16.mxu0 0
      %4936 = vmatpush1.bf16.msra.mxu0 0
      %4937 = vmatprep.subr.bf16.mxu0 0
      %4938 = vmatpush1.bf16.msra.mxu0 0
      %4939 = vmatprep.subr.bf16.mxu0 0
      %4940 = vmatpush1.bf16.msra.mxu0 0
      %4941 = vmatprep.subr.bf16.mxu0 0
      %4942 = vmatpush1.bf16.msra.mxu0 0
      %4943 = vmatprep.mubr.bf16.mxu0 0
      %4944 = vmatmul.mubr.bf16.gmra.mrb[0].mxu0 %v4861
      %v4945 = vpop.f32.mrb[0].mxu0
      %v4946 = vadd.f32 0.0, %v4945
      %v4947 = vpop.f32.mrb[0].mxu0
      %v4948 = vpop.f32.mrb[0].mxu0
      %v4949 = vadd.f32 0.0, %v4948
      %v4950 = vpop.f32.mrb[0].mxu0
      %4951 = vmatprep.mubr.bf16.mxu0 0
      %4952 = vmatmul.mubr.bf16.gmra.mrb[0].mxu0 %v4864
      %v4953 = vpop.f32.mrb[0].mxu0
      %v4954 = vadd.f32 0.0, %v4953
      %v4955 = vpop.f32.mrb[0].mxu0
      %v4956 = vpop.f32.mrb[0].mxu0
      %v4957 = vadd.f32 0.0, %v4956
      %v4958 = vpop.f32.mrb[0].mxu0
      %4959 = vmatprep.mubr.bf16.mxu0 0
      %4960 = vmatmul.mubr.bf16.gmra.mrb[0].mxu0 %v4867
      %v4961 = vpop.f32.mrb[0].mxu0
      %v4962 = vadd.f32 0.0, %v4961
      %v4963 = vpop.f32.mrb[0].mxu0
      %v4964 = vpop.f32.mrb[0].mxu0
      %v4965 = vadd.f32 0.0, %v4964
      %v4966 = vpop.f32.mrb[0].mxu0
      %4967 = vmatprep.mubr.bf16.mxu0 0
      %4968 = vmatmul.mubr.bf16.gmra.mrb[0].mxu0 %v4870
      %v4969 = vpop.f32.mrb[0].mxu0
      %v4970 = vadd.f32 0.0, %v4969
      %v4971 = vpop.f32.mrb[0].mxu0
      %v4972 = vpop.f32.mrb[0].mxu0
      %v4973 = vadd.f32 0.0, %v4972
      %v4974 = vpop.f32.mrb[0].mxu0
      %4975 = vmatprep.mubr.bf16.mxu0 0
      %4976 = vmatmul.mubr.bf16.gmra.mrb[0].mxu0 %v4873
      %v4977 = vpop.f32.mrb[0].mxu0
      %v4978 = vadd.f32 0.0, %v4977
      %v4979 = vpop.f32.mrb[0].mxu0
      %v4980 = vpop.f32.mrb[0].mxu0
      %v4981 = vadd.f32 0.0, %v4980
      %v4982 = vpop.f32.mrb[0].mxu0
      %4983 = vmatprep.mubr.bf16.mxu0 0
      %4984 = vmatmul.mubr.bf16.gmra.mrb[0].mxu0 %v4876
      %v4985 = vpop.f32.mrb[0].mxu0
      %v4986 = vadd.f32 0.0, %v4985
      %v4987 = vpop.f32.mrb[0].mxu0
      %v4988 = vpop.f32.mrb[0].mxu0
      %v4989 = vadd.f32 0.0, %v4988
      %v4990 = vpop.f32.mrb[0].mxu0
      %4991 = vmatprep.mubr.bf16.mxu0 0
      %4992 = vmatmul.mubr.bf16.gmra.mrb[0].mxu0 %v4879
      %v4993 = vpop.f32.mrb[0].mxu0
      %v4994 = vadd.f32 0.0, %v4993
      %v4995 = vpop.f32.mrb[0].mxu0
      %v4996 = vpop.f32.mrb[0].mxu0
      %v4997 = vadd.f32 0.0, %v4996
      %v4998 = vpop.f32.mrb[0].mxu0
      %4999 = vmatprep.mubr.bf16.mxu0 0
      %5000 = vmatmul.mubr.bf16.gmra.mrb[0].mxu0 %v4882
      %v5001 = vpop.f32.mrb[0].mxu0
      %v5002 = vadd.f32 0.0, %v5001
      %v5003 = vpop.f32.mrb[0].mxu0
      %v5004 = vpop.f32.mrb[0].mxu0
      %v5005 = vadd.f32 0.0, %v5004
      %v5006 = vpop.f32.mrb[0].mxu0
      %5007 = vmatprep.mubr.bf16.mxu0 0
      %5008 = vmatmul.mubr.bf16.gmra.mrb[0].mxu0 %v4885
      %v5009 = vpop.f32.mrb[0].mxu0
      %v5010 = vadd.f32 0.0, %v5009
      %v5011 = vpop.f32.mrb[0].mxu0
      %v5012 = vpop.f32.mrb[0].mxu0
      %v5013 = vadd.f32 0.0, %v5012
      %v5014 = vpop.f32.mrb[0].mxu0
      %5015 = vmatprep.mubr.bf16.mxu0 0
      %5016 = vmatmul.mubr.bf16.gmra.mrb[0].mxu0 %v4888
      %v5017 = vpop.f32.mrb[0].mxu0
      %v5018 = vadd.f32 0.0, %v5017
      %v5019 = vpop.f32.mrb[0].mxu0
      %v5020 = vpop.f32.mrb[0].mxu0
      %v5021 = vadd.f32 0.0, %v5020
      %v5022 = vpop.f32.mrb[0].mxu0
      %5023 = vmatprep.mubr.bf16.mxu0 0
      %5024 = vmatmul.mubr.bf16.gmra.mrb[0].mxu0 %v4891
      %v5025 = vpop.f32.mrb[0].mxu0
      %v5026 = vadd.f32 0.0, %v5025
      %v5027 = vpop.f32.mrb[0].mxu0
      %v5028 = vpop.f32.mrb[0].mxu0
      %v5029 = vadd.f32 0.0, %v5028
      %v5030 = vpop.f32.mrb[0].mxu0
      %5031 = vmatprep.mubr.bf16.mxu0 0
      %5032 = vmatmul.mubr.bf16.gmra.mrb[0].mxu0 %v4894
      %v5033 = vpop.f32.mrb[0].mxu0
      %v5034 = vadd.f32 0.0, %v5033
      %v5035 = vpop.f32.mrb[0].mxu0
      %v5036 = vpop.f32.mrb[0].mxu0
      %v5037 = vadd.f32 0.0, %v5036
      %v5038 = vpop.f32.mrb[0].mxu0
      %5039 = vmatprep.mubr.bf16.mxu0 0
      %5040 = vmatmul.mubr.bf16.gmra.mrb[0].mxu0 %v4897
      %v5041 = vpop.f32.mrb[0].mxu0
      %v5042 = vadd.f32 0.0, %v5041
      %v5043 = vpop.f32.mrb[0].mxu0
      %v5044 = vpop.f32.mrb[0].mxu0
      %v5045 = vadd.f32 0.0, %v5044
      %v5046 = vpop.f32.mrb[0].mxu0
      %5047 = vmatprep.mubr.bf16.mxu0 0
      %5048 = vmatmul.mubr.bf16.gmra.mrb[0].mxu0 %v4900
      %v5049 = vpop.f32.mrb[0].mxu0
      %v5050 = vadd.f32 0.0, %v5049
      %v5051 = vpop.f32.mrb[0].mxu0
      %v5052 = vpop.f32.mrb[0].mxu0
      %v5053 = vadd.f32 0.0, %v5052
      %v5054 = vpop.f32.mrb[0].mxu0
      %5055 = vmatprep.mubr.bf16.mxu0 0
      %5056 = vmatmul.mubr.bf16.gmra.mrb[0].mxu0 %v4903
      %v5057 = vpop.f32.mrb[0].mxu0
      %v5058 = vadd.f32 0.0, %v5057
      %v5059 = vpop.f32.mrb[0].mxu0
      %v5060 = vpop.f32.mrb[0].mxu0
      %v5061 = vadd.f32 0.0, %v5060
      %v5062 = vpop.f32.mrb[0].mxu0
      %5063 = vmatprep.mubr.bf16.mxu0 0
      %5064 = vmatmul.mubr.bf16.gmra.mrb[0].mxu0 %v4906
      %v5065 = vpop.f32.mrb[0].mxu0
      %v5066 = vadd.f32 0.0, %v5065
      %v5067 = vpop.f32.mrb[0].mxu0
      %v5068 = vpop.f32.mrb[0].mxu0
      %v5069 = vadd.f32 0.0, %v5068
      %v5070 = vpop.f32.mrb[0].mxu0
      %5071 = vdwg.mxu0
      %v5072 = vadd.f32 %v1505, %v4946
      %v5073 = vadd.f32 %v1508, %v4949
      %v5074 = vadd.f32 %v1513, %v4954
      %v5075 = vadd.f32 %v1516, %v4957
      %v5076 = vadd.f32 %v1521, %v4962
      %v5077 = vadd.f32 %v1524, %v4965
      %v5078 = vadd.f32 %v1529, %v4970
      %v5079 = vadd.f32 %v1532, %v4973
      %v5080 = vadd.f32 %v1537, %v4978
      %v5081 = vadd.f32 %v1540, %v4981
      %v5082 = vadd.f32 %v1545, %v4986
      %v5083 = vadd.f32 %v1548, %v4989
      %v5084 = vadd.f32 %v1553, %v4994
      %v5085 = vadd.f32 %v1556, %v4997
      %v5086 = vadd.f32 %v1561, %v5002
      %v5087 = vadd.f32 %v1564, %v5005
      %v5088 = vadd.f32 %v1569, %v5010
      %v5089 = vadd.f32 %v1572, %v5013
      %v5090 = vadd.f32 %v1577, %v5018
      %v5091 = vadd.f32 %v1580, %v5021
      %v5092 = vadd.f32 %v1585, %v5026
      %v5093 = vadd.f32 %v1588, %v5029
      %v5094 = vadd.f32 %v1593, %v5034
      %v5095 = vadd.f32 %v1596, %v5037
      %v5096 = vadd.f32 %v1601, %v5042
      %v5097 = vadd.f32 %v1604, %v5045
      %v5098 = vadd.f32 %v1609, %v5050
      %v5099 = vadd.f32 %v1612, %v5053
      %v5100 = vadd.f32 %v1617, %v5058
      %v5101 = vadd.f32 %v1620, %v5061
      %v5102 = vadd.f32 %v1625, %v5066
      %v5103 = vadd.f32 %v1628, %v5069
      %5104 = vst.msk [vmem:[%s1631 + $0x1] sm:$0xff] %vm280, %v4810
      %5105 = vst.msk [vmem:[%s1631 + $0x9] sm:$0xff] %vm280, %v4811
      %5106 = vst.msk [vmem:[%s1631 + $0x19] sm:$0xff] %vm280, %v4812
      %5107 = vst.msk [vmem:[%s1631 + $0x21] sm:$0xff] %vm280, %v4813
      %5108 = vst.msk [vmem:[%s1631 + $0x31] sm:$0xff] %vm280, %v4814
      %5109 = vst.msk [vmem:[%s1631 + $0x39] sm:$0xff] %vm280, %v4815
      %5110 = vst.msk [vmem:[%s1631 + $0x49] sm:$0xff] %vm280, %v4816
      %5111 = vst.msk [vmem:[%s1631 + $0x51] sm:$0xff] %vm280, %v4817
      %5112 = vst.msk [vmem:[%s1631 + $0x61] sm:$0xff] %vm280, %v4818
      %5113 = vst.msk [vmem:[%s1631 + $0x69] sm:$0xff] %vm280, %v4819
      %5114 = vst.msk [vmem:[%s1631 + $0x79] sm:$0xff] %vm280, %v4820
      %5115 = vst.msk [vmem:[%s1631 + $0x81] sm:$0xff] %vm280, %v4821
      %5116 = vst.msk [vmem:[%s1631 + $0x91] sm:$0xff] %vm280, %v4822
      %5117 = vst.msk [vmem:[%s1631 + $0x99] sm:$0xff] %vm280, %v4823
      %5118 = vst.msk [vmem:[%s1631 + $0xa9] sm:$0xff] %vm280, %v4824
      %5119 = vst.msk [vmem:[%s1631 + $0xb1] sm:$0xff] %vm280, %v4825
      %5120 = vst.msk [vmem:[%s1631 + $0xc1] sm:$0xff] %vm280, %v4826
      %5121 = vst.msk [vmem:[%s1631 + $0xc9] sm:$0xff] %vm280, %v4827
      %5122 = vst.msk [vmem:[%s1631 + $0xd9] sm:$0xff] %vm280, %v4828
      %5123 = vst.msk [vmem:[%s1631 + $0xe1] sm:$0xff] %vm280, %v4829
      %5124 = vst.msk [vmem:[%s1631 + $0xf1] sm:$0xff] %vm280, %v4830
      %5125 = vst.msk [vmem:[%s1631 + $0xf9] sm:$0xff] %vm280, %v4831
      %5126 = vst.msk [vmem:[%s1631 + $0x109] sm:$0xff] %vm280, %v4832
      %5127 = vst.msk [vmem:[%s1631 + $0x111] sm:$0xff] %vm280, %v4833
      %5128 = vst.msk [vmem:[%s1631 + $0x121] sm:$0xff] %vm280, %v4834
      %5129 = vst.msk [vmem:[%s1631 + $0x129] sm:$0xff] %vm280, %v4835
      %5130 = vst.msk [vmem:[%s1631 + $0x139] sm:$0xff] %vm280, %v4836
      %5131 = vst.msk [vmem:[%s1631 + $0x141] sm:$0xff] %vm280, %v4837
      %5132 = vst.msk [vmem:[%s1631 + $0x151] sm:$0xff] %vm280, %v4838
      %5133 = vst.msk [vmem:[%s1631 + $0x159] sm:$0xff] %vm280, %v4839
      %5134 = vst.msk [vmem:[%s1631 + $0x169] sm:$0xff] %vm280, %v4840
      %5135 = vst.msk [vmem:[%s1631 + $0x171] sm:$0xff] %vm280, %v4841
      %v5136 = vld [vmem:[#allocation2] sm:$0xff]
      %v5137 = vld [vmem:[#allocation2 + $0x8] sm:$0xff]
      %v5138 = vld [vmem:[#allocation2 + $0x18] sm:$0xff]
      %v5139 = vld [vmem:[#allocation2 + $0x20] sm:$0xff]
      %v5140 = vld [vmem:[#allocation2 + $0x30] sm:$0xff]
      %v5141 = vld [vmem:[#allocation2 + $0x38] sm:$0xff]
      %v5142 = vld [vmem:[#allocation2 + $0x48] sm:$0xff]
      %v5143 = vld [vmem:[#allocation2 + $0x50] sm:$0xff]
      %v5144 = vld [vmem:[#allocation2 + $0x60] sm:$0xff]
      %v5145 = vld [vmem:[#allocation2 + $0x68] sm:$0xff]
      %v5146 = vld [vmem:[#allocation2 + $0x78] sm:$0xff]
      %v5147 = vld [vmem:[#allocation2 + $0x80] sm:$0xff]
      %v5148 = vld [vmem:[#allocation2 + $0x90] sm:$0xff]
      %v5149 = vld [vmem:[#allocation2 + $0x98] sm:$0xff]
      %v5150 = vld [vmem:[#allocation2 + $0xa8] sm:$0xff]
      %v5151 = vld [vmem:[#allocation2 + $0xb0] sm:$0xff]
      %v5152 = vld [vmem:[#allocation2 + $0xc0] sm:$0xff]
      %v5153 = vld [vmem:[#allocation2 + $0xc8] sm:$0xff]
      %v5154 = vld [vmem:[#allocation2 + $0xd8] sm:$0xff]
      %v5155 = vld [vmem:[#allocation2 + $0xe0] sm:$0xff]
      %v5156 = vld [vmem:[#allocation2 + $0xf0] sm:$0xff]
      %v5157 = vld [vmem:[#allocation2 + $0xf8] sm:$0xff]
      %v5158 = vld [vmem:[#allocation2 + $0x108] sm:$0xff]
      %v5159 = vld [vmem:[#allocation2 + $0x110] sm:$0xff]
      %v5160 = vld [vmem:[#allocation2 + $0x120] sm:$0xff]
      %v5161 = vld [vmem:[#allocation2 + $0x128] sm:$0xff]
      %v5162 = vld [vmem:[#allocation2 + $0x138] sm:$0xff]
      %v5163 = vld [vmem:[#allocation2 + $0x140] sm:$0xff]
      %v5164 = vld [vmem:[#allocation2 + $0x150] sm:$0xff]
      %v5165 = vld [vmem:[#allocation2 + $0x158] sm:$0xff]
      %v5166 = vld [vmem:[#allocation2 + $0x168] sm:$0xff]
      %v5167 = vld [vmem:[#allocation2 + $0x170] sm:$0xff]
      %v5168 = vpack.c.bf16 %v5137, %v5136
      %v5169 = vpack.c.bf16 %v5139, %v5138
      %v5170 = vpack.c.bf16 %v5141, %v5140
      %v5171 = vpack.c.bf16 %v5143, %v5142
      %v5172 = vpack.c.bf16 %v5145, %v5144
      %v5173 = vpack.c.bf16 %v5147, %v5146
      %v5174 = vpack.c.bf16 %v5149, %v5148
      %v5175 = vpack.c.bf16 %v5151, %v5150
      %v5176 = vpack.c.bf16 %v5153, %v5152
      %v5177 = vpack.c.bf16 %v5155, %v5154
      %v5178 = vpack.c.bf16 %v5157, %v5156
      %v5179 = vpack.c.bf16 %v5159, %v5158
      %v5180 = vpack.c.bf16 %v5161, %v5160
      %v5181 = vpack.c.bf16 %v5163, %v5162
      %v5182 = vpack.c.bf16 %v5165, %v5164
      %v5183 = vpack.c.bf16 %v5167, %v5166
      %5184 = vst.msk [vmem:[#allocation3] sm:$0xff] %vm280, %v5168
      %5185 = vst.msk [vmem:[#allocation3 + $0x8] sm:$0xff] %vm280, %v5169
      %5186 = vst.msk [vmem:[#allocation3 + $0x10] sm:$0xff] %vm280, %v5170
      %5187 = vst.msk [vmem:[#allocation3 + $0x18] sm:$0xff] %vm280, %v5171
      %5188 = vst.msk [vmem:[#allocation3 + $0x20] sm:$0xff] %vm280, %v5172
      %5189 = vst.msk [vmem:[#allocation3 + $0x28] sm:$0xff] %vm280, %v5173
      %5190 = vst.msk [vmem:[#allocation3 + $0x30] sm:$0xff] %vm280, %v5174
      %5191 = vst.msk [vmem:[#allocation3 + $0x38] sm:$0xff] %vm280, %v5175
      %5192 = vst.msk [vmem:[#allocation3 + $0x40] sm:$0xff] %vm280, %v5176
      %5193 = vst.msk [vmem:[#allocation3 + $0x48] sm:$0xff] %vm280, %v5177
      %5194 = vst.msk [vmem:[#allocation3 + $0x50] sm:$0xff] %vm280, %v5178
      %5195 = vst.msk [vmem:[#allocation3 + $0x58] sm:$0xff] %vm280, %v5179
      %5196 = vst.msk [vmem:[#allocation3 + $0x60] sm:$0xff] %vm280, %v5180
      %5197 = vst.msk [vmem:[#allocation3 + $0x68] sm:$0xff] %vm280, %v5181
      %5198 = vst.msk [vmem:[#allocation3 + $0x70] sm:$0xff] %vm280, %v5182
      %5199 = vst.msk [vmem:[#allocation3 + $0x78] sm:$0xff] %vm280, %v5183
      %v5200 = vld [vmem:[#allocation2 + $0x1] sm:$0xff]
      %v5201 = vld [vmem:[#allocation2 + $0x9] sm:$0xff]
      %v5202 = vld [vmem:[#allocation2 + $0x19] sm:$0xff]
      %v5203 = vld [vmem:[#allocation2 + $0x21] sm:$0xff]
      %v5204 = vld [vmem:[#allocation2 + $0x31] sm:$0xff]
      %v5205 = vld [vmem:[#allocation2 + $0x39] sm:$0xff]
      %v5206 = vld [vmem:[#allocation2 + $0x49] sm:$0xff]
      %v5207 = vld [vmem:[#allocation2 + $0x51] sm:$0xff]
      %v5208 = vld [vmem:[#allocation2 + $0x61] sm:$0xff]
      %v5209 = vld [vmem:[#allocation2 + $0x69] sm:$0xff]
      %v5210 = vld [vmem:[#allocation2 + $0x79] sm:$0xff]
      %v5211 = vld [vmem:[#allocation2 + $0x81] sm:$0xff]
      %v5212 = vld [vmem:[#allocation2 + $0x91] sm:$0xff]
      %v5213 = vld [vmem:[#allocation2 + $0x99] sm:$0xff]
      %v5214 = vld [vmem:[#allocation2 + $0xa9] sm:$0xff]
      %v5215 = vld [vmem:[#allocation2 + $0xb1] sm:$0xff]
      %v5216 = vld [vmem:[#allocation2 + $0xc1] sm:$0xff]
      %v5217 = vld [vmem:[#allocation2 + $0xc9] sm:$0xff]
      %v5218 = vld [vmem:[#allocation2 + $0xd9] sm:$0xff]
      %v5219 = vld [vmem:[#allocation2 + $0xe1] sm:$0xff]
      %v5220 = vld [vmem:[#allocation2 + $0xf1] sm:$0xff]
      %v5221 = vld [vmem:[#allocation2 + $0xf9] sm:$0xff]
      %v5222 = vld [vmem:[#allocation2 + $0x109] sm:$0xff]
      %v5223 = vld [vmem:[#allocation2 + $0x111] sm:$0xff]
      %v5224 = vld [vmem:[#allocation2 + $0x121] sm:$0xff]
      %v5225 = vld [vmem:[#allocation2 + $0x129] sm:$0xff]
      %v5226 = vld [vmem:[#allocation2 + $0x139] sm:$0xff]
      %v5227 = vld [vmem:[#allocation2 + $0x141] sm:$0xff]
      %v5228 = vld [vmem:[#allocation2 + $0x151] sm:$0xff]
      %v5229 = vld [vmem:[#allocation2 + $0x159] sm:$0xff]
      %v5230 = vld [vmem:[#allocation2 + $0x169] sm:$0xff]
      %v5231 = vld [vmem:[#allocation2 + $0x171] sm:$0xff]
      %v5232 = vpack.c.bf16 %v5201, %v5200
      %v5233 = vpack.c.bf16 %v5203, %v5202
      %v5234 = vpack.c.bf16 %v5205, %v5204
      %v5235 = vpack.c.bf16 %v5207, %v5206
      %v5236 = vpack.c.bf16 %v5209, %v5208
      %v5237 = vpack.c.bf16 %v5211, %v5210
      %v5238 = vpack.c.bf16 %v5213, %v5212
      %v5239 = vpack.c.bf16 %v5215, %v5214
      %v5240 = vpack.c.bf16 %v5217, %v5216
      %v5241 = vpack.c.bf16 %v5219, %v5218
      %v5242 = vpack.c.bf16 %v5221, %v5220
      %v5243 = vpack.c.bf16 %v5223, %v5222
      %v5244 = vpack.c.bf16 %v5225, %v5224
      %v5245 = vpack.c.bf16 %v5227, %v5226
      %v5246 = vpack.c.bf16 %v5229, %v5228
      %v5247 = vpack.c.bf16 %v5231, %v5230
      %5264 = vrot.lane.b32.xlu0 %v5232, 8
      %v5265 = vpop.permute.xlu0 %5264
      %5266 = vrot.lane.b32.xlu0 %v5233, 8
      %v5267 = vpop.permute.xlu0 %5266
      %5268 = vrot.lane.b32.xlu0 %v5234, 8
      %v5269 = vpop.permute.xlu0 %5268
      %5270 = vrot.lane.b32.xlu0 %v5235, 8
      %v5271 = vpop.permute.xlu0 %5270
      %5272 = vrot.lane.b32.xlu0 %v5236, 8
      %v5273 = vpop.permute.xlu0 %5272
      %5274 = vrot.lane.b32.xlu0 %v5237, 8
      %v5275 = vpop.permute.xlu0 %5274
      %5276 = vrot.lane.b32.xlu0 %v5238, 8
      %v5277 = vpop.permute.xlu0 %5276
      %5278 = vrot.lane.b32.xlu0 %v5239, 8
      %v5279 = vpop.permute.xlu0 %5278
      %5280 = vrot.lane.b32.xlu0 %v5240, 8
      %v5281 = vpop.permute.xlu0 %5280
      %5282 = vrot.lane.b32.xlu0 %v5241, 8
      %v5283 = vpop.permute.xlu0 %5282
      %5284 = vrot.lane.b32.xlu0 %v5242, 8
      %v5285 = vpop.permute.xlu0 %5284
      %5286 = vrot.lane.b32.xlu0 %v5243, 8
      %v5287 = vpop.permute.xlu0 %5286
      %5288 = vrot.lane.b32.xlu0 %v5244, 8
      %v5289 = vpop.permute.xlu0 %5288
      %5290 = vrot.lane.b32.xlu0 %v5245, 8
      %v5291 = vpop.permute.xlu0 %5290
      %5292 = vrot.lane.b32.xlu0 %v5246, 8
      %v5293 = vpop.permute.xlu0 %5292
      %5294 = vrot.lane.b32.xlu0 %v5247, 8
      %v5295 = vpop.permute.xlu0 %5294
      %5312 = vst.msk [vmem:[#allocation3] sm:$0xff] %vm1840, %v5265
      %5313 = vst.msk [vmem:[#allocation3 + $0x8] sm:$0xff] %vm1840, %v5267
      %5314 = vst.msk [vmem:[#allocation3 + $0x10] sm:$0xff] %vm1840, %v5269
      %5315 = vst.msk [vmem:[#allocation3 + $0x18] sm:$0xff] %vm1840, %v5271
      %5316 = vst.msk [vmem:[#allocation3 + $0x20] sm:$0xff] %vm1840, %v5273
      %5317 = vst.msk [vmem:[#allocation3 + $0x28] sm:$0xff] %vm1840, %v5275
      %5318 = vst.msk [vmem:[#allocation3 + $0x30] sm:$0xff] %vm1840, %v5277
      %5319 = vst.msk [vmem:[#allocation3 + $0x38] sm:$0xff] %vm1840, %v5279
      %5320 = vst.msk [vmem:[#allocation3 + $0x40] sm:$0xff] %vm1840, %v5281
      %5321 = vst.msk [vmem:[#allocation3 + $0x48] sm:$0xff] %vm1840, %v5283
      %5322 = vst.msk [vmem:[#allocation3 + $0x50] sm:$0xff] %vm1840, %v5285
      %5323 = vst.msk [vmem:[#allocation3 + $0x58] sm:$0xff] %vm1840, %v5287
      %5324 = vst.msk [vmem:[#allocation3 + $0x60] sm:$0xff] %vm1840, %v5289
      %5325 = vst.msk [vmem:[#allocation3 + $0x68] sm:$0xff] %vm1840, %v5291
      %5326 = vst.msk [vmem:[#allocation3 + $0x70] sm:$0xff] %vm1840, %v5293
      %5327 = vst.msk [vmem:[#allocation3 + $0x78] sm:$0xff] %vm1840, %v5295
      %v5328 = vld [vmem:[#allocation2 + $0x2] sm:$0xff]
      %v5329 = vld [vmem:[#allocation2 + $0xa] sm:$0xff]
      %v5330 = vld [vmem:[#allocation2 + $0x1a] sm:$0xff]
      %v5331 = vld [vmem:[#allocation2 + $0x22] sm:$0xff]
      %v5332 = vld [vmem:[#allocation2 + $0x32] sm:$0xff]
      %v5333 = vld [vmem:[#allocation2 + $0x3a] sm:$0xff]
      %v5334 = vld [vmem:[#allocation2 + $0x4a] sm:$0xff]
      %v5335 = vld [vmem:[#allocation2 + $0x52] sm:$0xff]
      %v5336 = vld [vmem:[#allocation2 + $0x62] sm:$0xff]
      %v5337 = vld [vmem:[#allocation2 + $0x6a] sm:$0xff]
      %v5338 = vld [vmem:[#allocation2 + $0x7a] sm:$0xff]
      %v5339 = vld [vmem:[#allocation2 + $0x82] sm:$0xff]
      %v5340 = vld [vmem:[#allocation2 + $0x92] sm:$0xff]
      %v5341 = vld [vmem:[#allocation2 + $0x9a] sm:$0xff]
      %v5342 = vld [vmem:[#allocation2 + $0xaa] sm:$0xff]
      %v5343 = vld [vmem:[#allocation2 + $0xb2] sm:$0xff]
      %v5344 = vld [vmem:[#allocation2 + $0xc2] sm:$0xff]
      %v5345 = vld [vmem:[#allocation2 + $0xca] sm:$0xff]
      %v5346 = vld [vmem:[#allocation2 + $0xda] sm:$0xff]
      %v5347 = vld [vmem:[#allocation2 + $0xe2] sm:$0xff]
      %v5348 = vld [vmem:[#allocation2 + $0xf2] sm:$0xff]
      %v5349 = vld [vmem:[#allocation2 + $0xfa] sm:$0xff]
      %v5350 = vld [vmem:[#allocation2 + $0x10a] sm:$0xff]
      %v5351 = vld [vmem:[#allocation2 + $0x112] sm:$0xff]
      %v5352 = vld [vmem:[#allocation2 + $0x122] sm:$0xff]
      %v5353 = vld [vmem:[#allocation2 + $0x12a] sm:$0xff]
      %v5354 = vld [vmem:[#allocation2 + $0x13a] sm:$0xff]
      %v5355 = vld [vmem:[#allocation2 + $0x142] sm:$0xff]
      %v5356 = vld [vmem:[#allocation2 + $0x152] sm:$0xff]
      %v5357 = vld [vmem:[#allocation2 + $0x15a] sm:$0xff]
      %v5358 = vld [vmem:[#allocation2 + $0x16a] sm:$0xff]
      %v5359 = vld [vmem:[#allocation2 + $0x172] sm:$0xff]
      %v5360 = vpack.c.bf16 %v5329, %v5328
      %v5361 = vpack.c.bf16 %v5331, %v5330
      %v5362 = vpack.c.bf16 %v5333, %v5332
      %v5363 = vpack.c.bf16 %v5335, %v5334
      %v5364 = vpack.c.bf16 %v5337, %v5336
      %v5365 = vpack.c.bf16 %v5339, %v5338
      %v5366 = vpack.c.bf16 %v5341, %v5340
      %v5367 = vpack.c.bf16 %v5343, %v5342
      %v5368 = vpack.c.bf16 %v5345, %v5344
      %v5369 = vpack.c.bf16 %v5347, %v5346
      %v5370 = vpack.c.bf16 %v5349, %v5348
      %v5371 = vpack.c.bf16 %v5351, %v5350
      %v5372 = vpack.c.bf16 %v5353, %v5352
      %v5373 = vpack.c.bf16 %v5355, %v5354
      %v5374 = vpack.c.bf16 %v5357, %v5356
      %v5375 = vpack.c.bf16 %v5359, %v5358
      %5392 = vrot.lane.b32.xlu0 %v5360, 16
      %v5393 = vpop.permute.xlu0 %5392
      %5394 = vrot.lane.b32.xlu0 %v5361, 16
      %v5395 = vpop.permute.xlu0 %5394
      %5396 = vrot.lane.b32.xlu0 %v5362, 16
      %v5397 = vpop.permute.xlu0 %5396
      %5398 = vrot.lane.b32.xlu0 %v5363, 16
      %v5399 = vpop.permute.xlu0 %5398
      %5400 = vrot.lane.b32.xlu0 %v5364, 16
      %v5401 = vpop.permute.xlu0 %5400
      %5402 = vrot.lane.b32.xlu0 %v5365, 16
      %v5403 = vpop.permute.xlu0 %5402
      %5404 = vrot.lane.b32.xlu0 %v5366, 16
      %v5405 = vpop.permute.xlu0 %5404
      %5406 = vrot.lane.b32.xlu0 %v5367, 16
      %v5407 = vpop.permute.xlu0 %5406
      %5408 = vrot.lane.b32.xlu0 %v5368, 16
      %v5409 = vpop.permute.xlu0 %5408
      %5410 = vrot.lane.b32.xlu0 %v5369, 16
      %v5411 = vpop.permute.xlu0 %5410
      %5412 = vrot.lane.b32.xlu0 %v5370, 16
      %v5413 = vpop.permute.xlu0 %5412
      %5414 = vrot.lane.b32.xlu0 %v5371, 16
      %v5415 = vpop.permute.xlu0 %5414
      %5416 = vrot.lane.b32.xlu0 %v5372, 16
      %v5417 = vpop.permute.xlu0 %5416
      %5418 = vrot.lane.b32.xlu0 %v5373, 16
      %v5419 = vpop.permute.xlu0 %5418
      %5420 = vrot.lane.b32.xlu0 %v5374, 16
      %v5421 = vpop.permute.xlu0 %5420
      %5422 = vrot.lane.b32.xlu0 %v5375, 16
      %v5423 = vpop.permute.xlu0 %5422
      %5440 = vst.msk [vmem:[#allocation3] sm:$0xff] %vm1969, %v5393
      %5441 = vst.msk [vmem:[#allocation3 + $0x8] sm:$0xff] %vm1969, %v5395
      %5442 = vst.msk [vmem:[#allocation3 + $0x10] sm:$0xff] %vm1969, %v5397
      %5443 = vst.msk [vmem:[#allocation3 + $0x18] sm:$0xff] %vm1969, %v5399
      %5444 = vst.msk [vmem:[#allocation3 + $0x20] sm:$0xff] %vm1969, %v5401
      %5445 = vst.msk [vmem:[#allocation3 + $0x28] sm:$0xff] %vm1969, %v5403
      %5446 = vst.msk [vmem:[#allocation3 + $0x30] sm:$0xff] %vm1969, %v5405
      %5447 = vst.msk [vmem:[#allocation3 + $0x38] sm:$0xff] %vm1969, %v5407
      %5448 = vst.msk [vmem:[#allocation3 + $0x40] sm:$0xff] %vm1969, %v5409
      %5449 = vst.msk [vmem:[#allocation3 + $0x48] sm:$0xff] %vm1969, %v5411
      %5450 = vst.msk [vmem:[#allocation3 + $0x50] sm:$0xff] %vm1969, %v5413
      %5451 = vst.msk [vmem:[#allocation3 + $0x58] sm:$0xff] %vm1969, %v5415
      %5452 = vst.msk [vmem:[#allocation3 + $0x60] sm:$0xff] %vm1969, %v5417
      %5453 = vst.msk [vmem:[#allocation3 + $0x68] sm:$0xff] %vm1969, %v5419
      %5454 = vst.msk [vmem:[#allocation3 + $0x70] sm:$0xff] %vm1969, %v5421
      %5455 = vst.msk [vmem:[#allocation3 + $0x78] sm:$0xff] %vm1969, %v5423
      %v5456 = vld [vmem:[%s1631] sm:$0xff]
      %v5457 = vld [vmem:[%s1631 + $0x8] sm:$0xff]
      %v5458 = vld [vmem:[%s1631 + $0x18] sm:$0xff]
      %v5459 = vld [vmem:[%s1631 + $0x20] sm:$0xff]
      %v5460 = vld [vmem:[%s1631 + $0x30] sm:$0xff]
      %v5461 = vld [vmem:[%s1631 + $0x38] sm:$0xff]
      %v5462 = vld [vmem:[%s1631 + $0x48] sm:$0xff]
      %v5463 = vld [vmem:[%s1631 + $0x50] sm:$0xff]
      %v5464 = vld [vmem:[%s1631 + $0x60] sm:$0xff]
      %v5465 = vld [vmem:[%s1631 + $0x68] sm:$0xff]
      %v5466 = vld [vmem:[%s1631 + $0x78] sm:$0xff]
      %v5467 = vld [vmem:[%s1631 + $0x80] sm:$0xff]
      %v5468 = vld [vmem:[%s1631 + $0x90] sm:$0xff]
      %v5469 = vld [vmem:[%s1631 + $0x98] sm:$0xff]
      %v5470 = vld [vmem:[%s1631 + $0xa8] sm:$0xff]
      %v5471 = vld [vmem:[%s1631 + $0xb0] sm:$0xff]
      %v5472 = vld [vmem:[%s1631 + $0xc0] sm:$0xff]
      %v5473 = vld [vmem:[%s1631 + $0xc8] sm:$0xff]
      %v5474 = vld [vmem:[%s1631 + $0xd8] sm:$0xff]
      %v5475 = vld [vmem:[%s1631 + $0xe0] sm:$0xff]
      %v5476 = vld [vmem:[%s1631 + $0xf0] sm:$0xff]
      %v5477 = vld [vmem:[%s1631 + $0xf8] sm:$0xff]
      %v5478 = vld [vmem:[%s1631 + $0x108] sm:$0xff]
      %v5479 = vld [vmem:[%s1631 + $0x110] sm:$0xff]
      %v5480 = vld [vmem:[%s1631 + $0x120] sm:$0xff]
      %v5481 = vld [vmem:[%s1631 + $0x128] sm:$0xff]
      %v5482 = vld [vmem:[%s1631 + $0x138] sm:$0xff]
      %v5483 = vld [vmem:[%s1631 + $0x140] sm:$0xff]
      %v5484 = vld [vmem:[%s1631 + $0x150] sm:$0xff]
      %v5485 = vld [vmem:[%s1631 + $0x158] sm:$0xff]
      %v5486 = vld [vmem:[%s1631 + $0x168] sm:$0xff]
      %v5487 = vld [vmem:[%s1631 + $0x170] sm:$0xff]
      %v5488 = vpack.c.bf16 %v5457, %v5456
      %v5489 = vpack.c.bf16 %v5459, %v5458
      %v5490 = vpack.c.bf16 %v5461, %v5460
      %v5491 = vpack.c.bf16 %v5463, %v5462
      %v5492 = vpack.c.bf16 %v5465, %v5464
      %v5493 = vpack.c.bf16 %v5467, %v5466
      %v5494 = vpack.c.bf16 %v5469, %v5468
      %v5495 = vpack.c.bf16 %v5471, %v5470
      %v5496 = vpack.c.bf16 %v5473, %v5472
      %v5497 = vpack.c.bf16 %v5475, %v5474
      %v5498 = vpack.c.bf16 %v5477, %v5476
      %v5499 = vpack.c.bf16 %v5479, %v5478
      %v5500 = vpack.c.bf16 %v5481, %v5480
      %v5501 = vpack.c.bf16 %v5483, %v5482
      %v5502 = vpack.c.bf16 %v5485, %v5484
      %v5503 = vpack.c.bf16 %v5487, %v5486
      %5520 = vrot.lane.b32.xlu0 %v5488, 24
      %v5521 = vpop.permute.xlu0 %5520
      %5522 = vrot.lane.b32.xlu0 %v5489, 24
      %v5523 = vpop.permute.xlu0 %5522
      %5524 = vrot.lane.b32.xlu0 %v5490, 24
      %v5525 = vpop.permute.xlu0 %5524
      %5526 = vrot.lane.b32.xlu0 %v5491, 24
      %v5527 = vpop.permute.xlu0 %5526
      %5528 = vrot.lane.b32.xlu0 %v5492, 24
      %v5529 = vpop.permute.xlu0 %5528
      %5530 = vrot.lane.b32.xlu0 %v5493, 24
      %v5531 = vpop.permute.xlu0 %5530
      %5532 = vrot.lane.b32.xlu0 %v5494, 24
      %v5533 = vpop.permute.xlu0 %5532
      %5534 = vrot.lane.b32.xlu0 %v5495, 24
      %v5535 = vpop.permute.xlu0 %5534
      %5536 = vrot.lane.b32.xlu0 %v5496, 24
      %v5537 = vpop.permute.xlu0 %5536
      %5538 = vrot.lane.b32.xlu0 %v5497, 24
      %v5539 = vpop.permute.xlu0 %5538
      %5540 = vrot.lane.b32.xlu0 %v5498, 24
      %v5541 = vpop.permute.xlu0 %5540
      %5542 = vrot.lane.b32.xlu0 %v5499, 24
      %v5543 = vpop.permute.xlu0 %5542
      %5544 = vrot.lane.b32.xlu0 %v5500, 24
      %v5545 = vpop.permute.xlu0 %5544
      %5546 = vrot.lane.b32.xlu0 %v5501, 24
      %v5547 = vpop.permute.xlu0 %5546
      %5548 = vrot.lane.b32.xlu0 %v5502, 24
      %v5549 = vpop.permute.xlu0 %5548
      %5550 = vrot.lane.b32.xlu0 %v5503, 24
      %v5551 = vpop.permute.xlu0 %5550
      %5568 = vst.msk [vmem:[#allocation3] sm:$0xff] %vm2098, %v5521
      %5569 = vst.msk [vmem:[#allocation3 + $0x8] sm:$0xff] %vm2098, %v5523
      %5570 = vst.msk [vmem:[#allocation3 + $0x10] sm:$0xff] %vm2098, %v5525
      %5571 = vst.msk [vmem:[#allocation3 + $0x18] sm:$0xff] %vm2098, %v5527
      %5572 = vst.msk [vmem:[#allocation3 + $0x20] sm:$0xff] %vm2098, %v5529
      %5573 = vst.msk [vmem:[#allocation3 + $0x28] sm:$0xff] %vm2098, %v5531
      %5574 = vst.msk [vmem:[#allocation3 + $0x30] sm:$0xff] %vm2098, %v5533
      %5575 = vst.msk [vmem:[#allocation3 + $0x38] sm:$0xff] %vm2098, %v5535
      %5576 = vst.msk [vmem:[#allocation3 + $0x40] sm:$0xff] %vm2098, %v5537
      %5577 = vst.msk [vmem:[#allocation3 + $0x48] sm:$0xff] %vm2098, %v5539
      %5578 = vst.msk [vmem:[#allocation3 + $0x50] sm:$0xff] %vm2098, %v5541
      %5579 = vst.msk [vmem:[#allocation3 + $0x58] sm:$0xff] %vm2098, %v5543
      %5580 = vst.msk [vmem:[#allocation3 + $0x60] sm:$0xff] %vm2098, %v5545
      %5581 = vst.msk [vmem:[#allocation3 + $0x68] sm:$0xff] %vm2098, %v5547
      %5582 = vst.msk [vmem:[#allocation3 + $0x70] sm:$0xff] %vm2098, %v5549
      %5583 = vst.msk [vmem:[#allocation3 + $0x78] sm:$0xff] %vm2098, %v5551
      %v5584 = vld [vmem:[%s1631 + $0x1] sm:$0xff]
      %v5585 = vld [vmem:[%s1631 + $0x9] sm:$0xff]
      %v5586 = vld [vmem:[%s1631 + $0x19] sm:$0xff]
      %v5587 = vld [vmem:[%s1631 + $0x21] sm:$0xff]
      %v5588 = vld [vmem:[%s1631 + $0x31] sm:$0xff]
      %v5589 = vld [vmem:[%s1631 + $0x39] sm:$0xff]
      %v5590 = vld [vmem:[%s1631 + $0x49] sm:$0xff]
      %v5591 = vld [vmem:[%s1631 + $0x51] sm:$0xff]
      %v5592 = vld [vmem:[%s1631 + $0x61] sm:$0xff]
      %v5593 = vld [vmem:[%s1631 + $0x69] sm:$0xff]
      %v5594 = vld [vmem:[%s1631 + $0x79] sm:$0xff]
      %v5595 = vld [vmem:[%s1631 + $0x81] sm:$0xff]
      %v5596 = vld [vmem:[%s1631 + $0x91] sm:$0xff]
      %v5597 = vld [vmem:[%s1631 + $0x99] sm:$0xff]
      %v5598 = vld [vmem:[%s1631 + $0xa9] sm:$0xff]
      %v5599 = vld [vmem:[%s1631 + $0xb1] sm:$0xff]
      %v5600 = vld [vmem:[%s1631 + $0xc1] sm:$0xff]
      %v5601 = vld [vmem:[%s1631 + $0xc9] sm:$0xff]
      %v5602 = vld [vmem:[%s1631 + $0xd9] sm:$0xff]
      %v5603 = vld [vmem:[%s1631 + $0xe1] sm:$0xff]
      %v5604 = vld [vmem:[%s1631 + $0xf1] sm:$0xff]
      %v5605 = vld [vmem:[%s1631 + $0xf9] sm:$0xff]
      %v5606 = vld [vmem:[%s1631 + $0x109] sm:$0xff]
      %v5607 = vld [vmem:[%s1631 + $0x111] sm:$0xff]
      %v5608 = vld [vmem:[%s1631 + $0x121] sm:$0xff]
      %v5609 = vld [vmem:[%s1631 + $0x129] sm:$0xff]
      %v5610 = vld [vmem:[%s1631 + $0x139] sm:$0xff]
      %v5611 = vld [vmem:[%s1631 + $0x141] sm:$0xff]
      %v5612 = vld [vmem:[%s1631 + $0x151] sm:$0xff]
      %v5613 = vld [vmem:[%s1631 + $0x159] sm:$0xff]
      %v5614 = vld [vmem:[%s1631 + $0x169] sm:$0xff]
      %v5615 = vld [vmem:[%s1631 + $0x171] sm:$0xff]
      %v5616 = vpack.c.bf16 %v5585, %v5584
      %v5617 = vpack.c.bf16 %v5587, %v5586
      %v5618 = vpack.c.bf16 %v5589, %v5588
      %v5619 = vpack.c.bf16 %v5591, %v5590
      %v5620 = vpack.c.bf16 %v5593, %v5592
      %v5621 = vpack.c.bf16 %v5595, %v5594
      %v5622 = vpack.c.bf16 %v5597, %v5596
      %v5623 = vpack.c.bf16 %v5599, %v5598
      %v5624 = vpack.c.bf16 %v5601, %v5600
      %v5625 = vpack.c.bf16 %v5603, %v5602
      %v5626 = vpack.c.bf16 %v5605, %v5604
      %v5627 = vpack.c.bf16 %v5607, %v5606
      %v5628 = vpack.c.bf16 %v5609, %v5608
      %v5629 = vpack.c.bf16 %v5611, %v5610
      %v5630 = vpack.c.bf16 %v5613, %v5612
      %v5631 = vpack.c.bf16 %v5615, %v5614
      %5648 = vrot.lane.b32.xlu0 %v5616, 32
      %v5649 = vpop.permute.xlu0 %5648
      %5650 = vrot.lane.b32.xlu0 %v5617, 32
      %v5651 = vpop.permute.xlu0 %5650
      %5652 = vrot.lane.b32.xlu0 %v5618, 32
      %v5653 = vpop.permute.xlu0 %5652
      %5654 = vrot.lane.b32.xlu0 %v5619, 32
      %v5655 = vpop.permute.xlu0 %5654
      %5656 = vrot.lane.b32.xlu0 %v5620, 32
      %v5657 = vpop.permute.xlu0 %5656
      %5658 = vrot.lane.b32.xlu0 %v5621, 32
      %v5659 = vpop.permute.xlu0 %5658
      %5660 = vrot.lane.b32.xlu0 %v5622, 32
      %v5661 = vpop.permute.xlu0 %5660
      %5662 = vrot.lane.b32.xlu0 %v5623, 32
      %v5663 = vpop.permute.xlu0 %5662
      %5664 = vrot.lane.b32.xlu0 %v5624, 32
      %v5665 = vpop.permute.xlu0 %5664
      %5666 = vrot.lane.b32.xlu0 %v5625, 32
      %v5667 = vpop.permute.xlu0 %5666
      %5668 = vrot.lane.b32.xlu0 %v5626, 32
      %v5669 = vpop.permute.xlu0 %5668
      %5670 = vrot.lane.b32.xlu0 %v5627, 32
      %v5671 = vpop.permute.xlu0 %5670
      %5672 = vrot.lane.b32.xlu0 %v5628, 32
      %v5673 = vpop.permute.xlu0 %5672
      %5674 = vrot.lane.b32.xlu0 %v5629, 32
      %v5675 = vpop.permute.xlu0 %5674
      %5676 = vrot.lane.b32.xlu0 %v5630, 32
      %v5677 = vpop.permute.xlu0 %5676
      %5678 = vrot.lane.b32.xlu0 %v5631, 32
      %v5679 = vpop.permute.xlu0 %5678
      %5696 = vst.msk [vmem:[#allocation3] sm:$0xff] %vm2227, %v5649
      %5697 = vst.msk [vmem:[#allocation3 + $0x8] sm:$0xff] %vm2227, %v5651
      %5698 = vst.msk [vmem:[#allocation3 + $0x10] sm:$0xff] %vm2227, %v5653
      %5699 = vst.msk [vmem:[#allocation3 + $0x18] sm:$0xff] %vm2227, %v5655
      %5700 = vst.msk [vmem:[#allocation3 + $0x20] sm:$0xff] %vm2227, %v5657
      %5701 = vst.msk [vmem:[#allocation3 + $0x28] sm:$0xff] %vm2227, %v5659
      %5702 = vst.msk [vmem:[#allocation3 + $0x30] sm:$0xff] %vm2227, %v5661
      %5703 = vst.msk [vmem:[#allocation3 + $0x38] sm:$0xff] %vm2227, %v5663
      %5704 = vst.msk [vmem:[#allocation3 + $0x40] sm:$0xff] %vm2227, %v5665
      %5705 = vst.msk [vmem:[#allocation3 + $0x48] sm:$0xff] %vm2227, %v5667
      %5706 = vst.msk [vmem:[#allocation3 + $0x50] sm:$0xff] %vm2227, %v5669
      %5707 = vst.msk [vmem:[#allocation3 + $0x58] sm:$0xff] %vm2227, %v5671
      %5708 = vst.msk [vmem:[#allocation3 + $0x60] sm:$0xff] %vm2227, %v5673
      %5709 = vst.msk [vmem:[#allocation3 + $0x68] sm:$0xff] %vm2227, %v5675
      %5710 = vst.msk [vmem:[#allocation3 + $0x70] sm:$0xff] %vm2227, %v5677
      %5711 = vst.msk [vmem:[#allocation3 + $0x78] sm:$0xff] %vm2227, %v5679
      %v5712 = vld [vmem:[%s1631 + $0x2] sm:$0xff]
      %v5713 = vld [vmem:[%s1631 + $0xa] sm:$0xff]
      %v5714 = vld [vmem:[%s1631 + $0x1a] sm:$0xff]
      %v5715 = vld [vmem:[%s1631 + $0x22] sm:$0xff]
      %v5716 = vld [vmem:[%s1631 + $0x32] sm:$0xff]
      %v5717 = vld [vmem:[%s1631 + $0x3a] sm:$0xff]
      %v5718 = vld [vmem:[%s1631 + $0x4a] sm:$0xff]
      %v5719 = vld [vmem:[%s1631 + $0x52] sm:$0xff]
      %v5720 = vld [vmem:[%s1631 + $0x62] sm:$0xff]
      %v5721 = vld [vmem:[%s1631 + $0x6a] sm:$0xff]
      %v5722 = vld [vmem:[%s1631 + $0x7a] sm:$0xff]
      %v5723 = vld [vmem:[%s1631 + $0x82] sm:$0xff]
      %v5724 = vld [vmem:[%s1631 + $0x92] sm:$0xff]
      %v5725 = vld [vmem:[%s1631 + $0x9a] sm:$0xff]
      %v5726 = vld [vmem:[%s1631 + $0xaa] sm:$0xff]
      %v5727 = vld [vmem:[%s1631 + $0xb2] sm:$0xff]
      %v5728 = vld [vmem:[%s1631 + $0xc2] sm:$0xff]
      %v5729 = vld [vmem:[%s1631 + $0xca] sm:$0xff]
      %v5730 = vld [vmem:[%s1631 + $0xda] sm:$0xff]
      %v5731 = vld [vmem:[%s1631 + $0xe2] sm:$0xff]
      %v5732 = vld [vmem:[%s1631 + $0xf2] sm:$0xff]
      %v5733 = vld [vmem:[%s1631 + $0xfa] sm:$0xff]
      %v5734 = vld [vmem:[%s1631 + $0x10a] sm:$0xff]
      %v5735 = vld [vmem:[%s1631 + $0x112] sm:$0xff]
      %v5736 = vld [vmem:[%s1631 + $0x122] sm:$0xff]
      %v5737 = vld [vmem:[%s1631 + $0x12a] sm:$0xff]
      %v5738 = vld [vmem:[%s1631 + $0x13a] sm:$0xff]
      %v5739 = vld [vmem:[%s1631 + $0x142] sm:$0xff]
      %v5740 = vld [vmem:[%s1631 + $0x152] sm:$0xff]
      %v5741 = vld [vmem:[%s1631 + $0x15a] sm:$0xff]
      %v5742 = vld [vmem:[%s1631 + $0x16a] sm:$0xff]
      %v5743 = vld [vmem:[%s1631 + $0x172] sm:$0xff]
      %v5744 = vpack.c.bf16 %v5713, %v5712
      %v5745 = vpack.c.bf16 %v5715, %v5714
      %v5746 = vpack.c.bf16 %v5717, %v5716
      %v5747 = vpack.c.bf16 %v5719, %v5718
      %v5748 = vpack.c.bf16 %v5721, %v5720
      %v5749 = vpack.c.bf16 %v5723, %v5722
      %v5750 = vpack.c.bf16 %v5725, %v5724
      %v5751 = vpack.c.bf16 %v5727, %v5726
      %v5752 = vpack.c.bf16 %v5729, %v5728
      %v5753 = vpack.c.bf16 %v5731, %v5730
      %v5754 = vpack.c.bf16 %v5733, %v5732
      %v5755 = vpack.c.bf16 %v5735, %v5734
      %v5756 = vpack.c.bf16 %v5737, %v5736
      %v5757 = vpack.c.bf16 %v5739, %v5738
      %v5758 = vpack.c.bf16 %v5741, %v5740
      %v5759 = vpack.c.bf16 %v5743, %v5742
      %5776 = vrot.lane.b32.xlu0 %v5744, 40
      %v5777 = vpop.permute.xlu0 %5776
      %5778 = vrot.lane.b32.xlu0 %v5745, 40
      %v5779 = vpop.permute.xlu0 %5778
      %5780 = vrot.lane.b32.xlu0 %v5746, 40
      %v5781 = vpop.permute.xlu0 %5780
      %5782 = vrot.lane.b32.xlu0 %v5747, 40
      %v5783 = vpop.permute.xlu0 %5782
      %5784 = vrot.lane.b32.xlu0 %v5748, 40
      %v5785 = vpop.permute.xlu0 %5784
      %5786 = vrot.lane.b32.xlu0 %v5749, 40
      %v5787 = vpop.permute.xlu0 %5786
      %5788 = vrot.lane.b32.xlu0 %v5750, 40
      %v5789 = vpop.permute.xlu0 %5788
      %5790 = vrot.lane.b32.xlu0 %v5751, 40
      %v5791 = vpop.permute.xlu0 %5790
      %5792 = vrot.lane.b32.xlu0 %v5752, 40
      %v5793 = vpop.permute.xlu0 %5792
      %5794 = vrot.lane.b32.xlu0 %v5753, 40
      %v5795 = vpop.permute.xlu0 %5794
      %5796 = vrot.lane.b32.xlu0 %v5754, 40
      %v5797 = vpop.permute.xlu0 %5796
      %5798 = vrot.lane.b32.xlu0 %v5755, 40
      %v5799 = vpop.permute.xlu0 %5798
      %5800 = vrot.lane.b32.xlu0 %v5756, 40
      %v5801 = vpop.permute.xlu0 %5800
      %5802 = vrot.lane.b32.xlu0 %v5757, 40
      %v5803 = vpop.permute.xlu0 %5802
      %5804 = vrot.lane.b32.xlu0 %v5758, 40
      %v5805 = vpop.permute.xlu0 %5804
      %5806 = vrot.lane.b32.xlu0 %v5759, 40
      %v5807 = vpop.permute.xlu0 %5806
      %5824 = vst.msk [vmem:[#allocation3] sm:$0xff] %vm2356, %v5777
      %5825 = vst.msk [vmem:[#allocation3 + $0x8] sm:$0xff] %vm2356, %v5779
      %5826 = vst.msk [vmem:[#allocation3 + $0x10] sm:$0xff] %vm2356, %v5781
      %5827 = vst.msk [vmem:[#allocation3 + $0x18] sm:$0xff] %vm2356, %v5783
      %5828 = vst.msk [vmem:[#allocation3 + $0x20] sm:$0xff] %vm2356, %v5785
      %5829 = vst.msk [vmem:[#allocation3 + $0x28] sm:$0xff] %vm2356, %v5787
      %5830 = vst.msk [vmem:[#allocation3 + $0x30] sm:$0xff] %vm2356, %v5789
      %5831 = vst.msk [vmem:[#allocation3 + $0x38] sm:$0xff] %vm2356, %v5791
      %5832 = vst.msk [vmem:[#allocation3 + $0x40] sm:$0xff] %vm2356, %v5793
      %5833 = vst.msk [vmem:[#allocation3 + $0x48] sm:$0xff] %vm2356, %v5795
      %5834 = vst.msk [vmem:[#allocation3 + $0x50] sm:$0xff] %vm2356, %v5797
      %5835 = vst.msk [vmem:[#allocation3 + $0x58] sm:$0xff] %vm2356, %v5799
      %5836 = vst.msk [vmem:[#allocation3 + $0x60] sm:$0xff] %vm2356, %v5801
      %5837 = vst.msk [vmem:[#allocation3 + $0x68] sm:$0xff] %vm2356, %v5803
      %5838 = vst.msk [vmem:[#allocation3 + $0x70] sm:$0xff] %vm2356, %v5805
      %5839 = vst.msk [vmem:[#allocation3 + $0x78] sm:$0xff] %vm2356, %v5807
      %v5840 = vld [vmem:[%s2373] sm:$0xff]
      %v5841 = vld [vmem:[%s2373 + $0x8] sm:$0xff]
      %v5842 = vld [vmem:[%s2373 + $0x18] sm:$0xff]
      %v5843 = vld [vmem:[%s2373 + $0x20] sm:$0xff]
      %v5844 = vld [vmem:[%s2373 + $0x30] sm:$0xff]
      %v5845 = vld [vmem:[%s2373 + $0x38] sm:$0xff]
      %v5846 = vld [vmem:[%s2373 + $0x48] sm:$0xff]
      %v5847 = vld [vmem:[%s2373 + $0x50] sm:$0xff]
      %v5848 = vld [vmem:[%s2373 + $0x60] sm:$0xff]
      %v5849 = vld [vmem:[%s2373 + $0x68] sm:$0xff]
      %v5850 = vld [vmem:[%s2373 + $0x78] sm:$0xff]
      %v5851 = vld [vmem:[%s2373 + $0x80] sm:$0xff]
      %v5852 = vld [vmem:[%s2373 + $0x90] sm:$0xff]
      %v5853 = vld [vmem:[%s2373 + $0x98] sm:$0xff]
      %v5854 = vld [vmem:[%s2373 + $0xa8] sm:$0xff]
      %v5855 = vld [vmem:[%s2373 + $0xb0] sm:$0xff]
      %v5856 = vld [vmem:[%s2373 + $0xc0] sm:$0xff]
      %v5857 = vld [vmem:[%s2373 + $0xc8] sm:$0xff]
      %v5858 = vld [vmem:[%s2373 + $0xd8] sm:$0xff]
      %v5859 = vld [vmem:[%s2373 + $0xe0] sm:$0xff]
      %v5860 = vld [vmem:[%s2373 + $0xf0] sm:$0xff]
      %v5861 = vld [vmem:[%s2373 + $0xf8] sm:$0xff]
      %v5862 = vld [vmem:[%s2373 + $0x108] sm:$0xff]
      %v5863 = vld [vmem:[%s2373 + $0x110] sm:$0xff]
      %v5864 = vld [vmem:[%s2373 + $0x120] sm:$0xff]
      %v5865 = vld [vmem:[%s2373 + $0x128] sm:$0xff]
      %v5866 = vld [vmem:[%s2373 + $0x138] sm:$0xff]
      %v5867 = vld [vmem:[%s2373 + $0x140] sm:$0xff]
      %v5868 = vld [vmem:[%s2373 + $0x150] sm:$0xff]
      %v5869 = vld [vmem:[%s2373 + $0x158] sm:$0xff]
      %v5870 = vld [vmem:[%s2373 + $0x168] sm:$0xff]
      %v5871 = vld [vmem:[%s2373 + $0x170] sm:$0xff]
      %v5872 = vpack.c.bf16 %v5841, %v5840
      %v5873 = vpack.c.bf16 %v5843, %v5842
      %v5874 = vpack.c.bf16 %v5845, %v5844
      %v5875 = vpack.c.bf16 %v5847, %v5846
      %v5876 = vpack.c.bf16 %v5849, %v5848
      %v5877 = vpack.c.bf16 %v5851, %v5850
      %v5878 = vpack.c.bf16 %v5853, %v5852
      %v5879 = vpack.c.bf16 %v5855, %v5854
      %v5880 = vpack.c.bf16 %v5857, %v5856
      %v5881 = vpack.c.bf16 %v5859, %v5858
      %v5882 = vpack.c.bf16 %v5861, %v5860
      %v5883 = vpack.c.bf16 %v5863, %v5862
      %v5884 = vpack.c.bf16 %v5865, %v5864
      %v5885 = vpack.c.bf16 %v5867, %v5866
      %v5886 = vpack.c.bf16 %v5869, %v5868
      %v5887 = vpack.c.bf16 %v5871, %v5870
      %5904 = vrot.lane.b32.xlu0 %v5872, 48
      %v5905 = vpop.permute.xlu0 %5904
      %5906 = vrot.lane.b32.xlu0 %v5873, 48
      %v5907 = vpop.permute.xlu0 %5906
      %5908 = vrot.lane.b32.xlu0 %v5874, 48
      %v5909 = vpop.permute.xlu0 %5908
      %5910 = vrot.lane.b32.xlu0 %v5875, 48
      %v5911 = vpop.permute.xlu0 %5910
      %5912 = vrot.lane.b32.xlu0 %v5876, 48
      %v5913 = vpop.permute.xlu0 %5912
      %5914 = vrot.lane.b32.xlu0 %v5877, 48
      %v5915 = vpop.permute.xlu0 %5914
      %5916 = vrot.lane.b32.xlu0 %v5878, 48
      %v5917 = vpop.permute.xlu0 %5916
      %5918 = vrot.lane.b32.xlu0 %v5879, 48
      %v5919 = vpop.permute.xlu0 %5918
      %5920 = vrot.lane.b32.xlu0 %v5880, 48
      %v5921 = vpop.permute.xlu0 %5920
      %5922 = vrot.lane.b32.xlu0 %v5881, 48
      %v5923 = vpop.permute.xlu0 %5922
      %5924 = vrot.lane.b32.xlu0 %v5882, 48
      %v5925 = vpop.permute.xlu0 %5924
      %5926 = vrot.lane.b32.xlu0 %v5883, 48
      %v5927 = vpop.permute.xlu0 %5926
      %5928 = vrot.lane.b32.xlu0 %v5884, 48
      %v5929 = vpop.permute.xlu0 %5928
      %5930 = vrot.lane.b32.xlu0 %v5885, 48
      %v5931 = vpop.permute.xlu0 %5930
      %5932 = vrot.lane.b32.xlu0 %v5886, 48
      %v5933 = vpop.permute.xlu0 %5932
      %5934 = vrot.lane.b32.xlu0 %v5887, 48
      %v5935 = vpop.permute.xlu0 %5934
      %5952 = vst.msk [vmem:[#allocation3] sm:$0xff] %vm2486, %v5905
      %5953 = vst.msk [vmem:[#allocation3 + $0x8] sm:$0xff] %vm2486, %v5907
      %5954 = vst.msk [vmem:[#allocation3 + $0x10] sm:$0xff] %vm2486, %v5909
      %5955 = vst.msk [vmem:[#allocation3 + $0x18] sm:$0xff] %vm2486, %v5911
      %5956 = vst.msk [vmem:[#allocation3 + $0x20] sm:$0xff] %vm2486, %v5913
      %5957 = vst.msk [vmem:[#allocation3 + $0x28] sm:$0xff] %vm2486, %v5915
      %5958 = vst.msk [vmem:[#allocation3 + $0x30] sm:$0xff] %vm2486, %v5917
      %5959 = vst.msk [vmem:[#allocation3 + $0x38] sm:$0xff] %vm2486, %v5919
      %5960 = vst.msk [vmem:[#allocation3 + $0x40] sm:$0xff] %vm2486, %v5921
      %5961 = vst.msk [vmem:[#allocation3 + $0x48] sm:$0xff] %vm2486, %v5923
      %5962 = vst.msk [vmem:[#allocation3 + $0x50] sm:$0xff] %vm2486, %v5925
      %5963 = vst.msk [vmem:[#allocation3 + $0x58] sm:$0xff] %vm2486, %v5927
      %5964 = vst.msk [vmem:[#allocation3 + $0x60] sm:$0xff] %vm2486, %v5929
      %5965 = vst.msk [vmem:[#allocation3 + $0x68] sm:$0xff] %vm2486, %v5931
      %5966 = vst.msk [vmem:[#allocation3 + $0x70] sm:$0xff] %vm2486, %v5933
      %5967 = vst.msk [vmem:[#allocation3 + $0x78] sm:$0xff] %vm2486, %v5935
      %v5968 = vld [vmem:[%s2373 + $0x1] sm:$0xff]
      %v5969 = vld [vmem:[%s2373 + $0x9] sm:$0xff]
      %v5970 = vld [vmem:[%s2373 + $0x19] sm:$0xff]
      %v5971 = vld [vmem:[%s2373 + $0x21] sm:$0xff]
      %v5972 = vld [vmem:[%s2373 + $0x31] sm:$0xff]
      %v5973 = vld [vmem:[%s2373 + $0x39] sm:$0xff]
      %v5974 = vld [vmem:[%s2373 + $0x49] sm:$0xff]
      %v5975 = vld [vmem:[%s2373 + $0x51] sm:$0xff]
      %v5976 = vld [vmem:[%s2373 + $0x61] sm:$0xff]
      %v5977 = vld [vmem:[%s2373 + $0x69] sm:$0xff]
      %v5978 = vld [vmem:[%s2373 + $0x79] sm:$0xff]
      %v5979 = vld [vmem:[%s2373 + $0x81] sm:$0xff]
      %v5980 = vld [vmem:[%s2373 + $0x91] sm:$0xff]
      %v5981 = vld [vmem:[%s2373 + $0x99] sm:$0xff]
      %v5982 = vld [vmem:[%s2373 + $0xa9] sm:$0xff]
      %v5983 = vld [vmem:[%s2373 + $0xb1] sm:$0xff]
      %v5984 = vld [vmem:[%s2373 + $0xc1] sm:$0xff]
      %v5985 = vld [vmem:[%s2373 + $0xc9] sm:$0xff]
      %v5986 = vld [vmem:[%s2373 + $0xd9] sm:$0xff]
      %v5987 = vld [vmem:[%s2373 + $0xe1] sm:$0xff]
      %v5988 = vld [vmem:[%s2373 + $0xf1] sm:$0xff]
      %v5989 = vld [vmem:[%s2373 + $0xf9] sm:$0xff]
      %v5990 = vld [vmem:[%s2373 + $0x109] sm:$0xff]
      %v5991 = vld [vmem:[%s2373 + $0x111] sm:$0xff]
      %v5992 = vld [vmem:[%s2373 + $0x121] sm:$0xff]
      %v5993 = vld [vmem:[%s2373 + $0x129] sm:$0xff]
      %v5994 = vld [vmem:[%s2373 + $0x139] sm:$0xff]
      %v5995 = vld [vmem:[%s2373 + $0x141] sm:$0xff]
      %v5996 = vld [vmem:[%s2373 + $0x151] sm:$0xff]
      %v5997 = vld [vmem:[%s2373 + $0x159] sm:$0xff]
      %v5998 = vld [vmem:[%s2373 + $0x169] sm:$0xff]
      %v5999 = vld [vmem:[%s2373 + $0x171] sm:$0xff]
      %v6000 = vpack.c.bf16 %v5969, %v5968
      %v6001 = vpack.c.bf16 %v5971, %v5970
      %v6002 = vpack.c.bf16 %v5973, %v5972
      %v6003 = vpack.c.bf16 %v5975, %v5974
      %v6004 = vpack.c.bf16 %v5977, %v5976
      %v6005 = vpack.c.bf16 %v5979, %v5978
      %v6006 = vpack.c.bf16 %v5981, %v5980
      %v6007 = vpack.c.bf16 %v5983, %v5982
      %v6008 = vpack.c.bf16 %v5985, %v5984
      %v6009 = vpack.c.bf16 %v5987, %v5986
      %v6010 = vpack.c.bf16 %v5989, %v5988
      %v6011 = vpack.c.bf16 %v5991, %v5990
      %v6012 = vpack.c.bf16 %v5993, %v5992
      %v6013 = vpack.c.bf16 %v5995, %v5994
      %v6014 = vpack.c.bf16 %v5997, %v5996
      %v6015 = vpack.c.bf16 %v5999, %v5998
      %6032 = vrot.lane.b32.xlu0 %v6000, 56
      %v6033 = vpop.permute.xlu0 %6032
      %6034 = vrot.lane.b32.xlu0 %v6001, 56
      %v6035 = vpop.permute.xlu0 %6034
      %6036 = vrot.lane.b32.xlu0 %v6002, 56
      %v6037 = vpop.permute.xlu0 %6036
      %6038 = vrot.lane.b32.xlu0 %v6003, 56
      %v6039 = vpop.permute.xlu0 %6038
      %6040 = vrot.lane.b32.xlu0 %v6004, 56
      %v6041 = vpop.permute.xlu0 %6040
      %6042 = vrot.lane.b32.xlu0 %v6005, 56
      %v6043 = vpop.permute.xlu0 %6042
      %6044 = vrot.lane.b32.xlu0 %v6006, 56
      %v6045 = vpop.permute.xlu0 %6044
      %6046 = vrot.lane.b32.xlu0 %v6007, 56
      %v6047 = vpop.permute.xlu0 %6046
      %6048 = vrot.lane.b32.xlu0 %v6008, 56
      %v6049 = vpop.permute.xlu0 %6048
      %6050 = vrot.lane.b32.xlu0 %v6009, 56
      %v6051 = vpop.permute.xlu0 %6050
      %6052 = vrot.lane.b32.xlu0 %v6010, 56
      %v6053 = vpop.permute.xlu0 %6052
      %6054 = vrot.lane.b32.xlu0 %v6011, 56
      %v6055 = vpop.permute.xlu0 %6054
      %6056 = vrot.lane.b32.xlu0 %v6012, 56
      %v6057 = vpop.permute.xlu0 %6056
      %6058 = vrot.lane.b32.xlu0 %v6013, 56
      %v6059 = vpop.permute.xlu0 %6058
      %6060 = vrot.lane.b32.xlu0 %v6014, 56
      %v6061 = vpop.permute.xlu0 %6060
      %6062 = vrot.lane.b32.xlu0 %v6015, 56
      %v6063 = vpop.permute.xlu0 %6062
      %6080 = vst.msk [vmem:[#allocation3] sm:$0xff] %vm2615, %v6033
      %6081 = vst.msk [vmem:[#allocation3 + $0x8] sm:$0xff] %vm2615, %v6035
      %6082 = vst.msk [vmem:[#allocation3 + $0x10] sm:$0xff] %vm2615, %v6037
      %6083 = vst.msk [vmem:[#allocation3 + $0x18] sm:$0xff] %vm2615, %v6039
      %6084 = vst.msk [vmem:[#allocation3 + $0x20] sm:$0xff] %vm2615, %v6041
      %6085 = vst.msk [vmem:[#allocation3 + $0x28] sm:$0xff] %vm2615, %v6043
      %6086 = vst.msk [vmem:[#allocation3 + $0x30] sm:$0xff] %vm2615, %v6045
      %6087 = vst.msk [vmem:[#allocation3 + $0x38] sm:$0xff] %vm2615, %v6047
      %6088 = vst.msk [vmem:[#allocation3 + $0x40] sm:$0xff] %vm2615, %v6049
      %6089 = vst.msk [vmem:[#allocation3 + $0x48] sm:$0xff] %vm2615, %v6051
      %6090 = vst.msk [vmem:[#allocation3 + $0x50] sm:$0xff] %vm2615, %v6053
      %6091 = vst.msk [vmem:[#allocation3 + $0x58] sm:$0xff] %vm2615, %v6055
      %6092 = vst.msk [vmem:[#allocation3 + $0x60] sm:$0xff] %vm2615, %v6057
      %6093 = vst.msk [vmem:[#allocation3 + $0x68] sm:$0xff] %vm2615, %v6059
      %6094 = vst.msk [vmem:[#allocation3 + $0x70] sm:$0xff] %vm2615, %v6061
      %6095 = vst.msk [vmem:[#allocation3 + $0x78] sm:$0xff] %vm2615, %v6063
      %v6096 = vld [vmem:[%s2373 + $0x2] sm:$0xff]
      %v6097 = vld [vmem:[%s2373 + $0xa] sm:$0xff]
      %v6098 = vld [vmem:[%s2373 + $0x1a] sm:$0xff]
      %v6099 = vld [vmem:[%s2373 + $0x22] sm:$0xff]
      %v6100 = vld [vmem:[%s2373 + $0x32] sm:$0xff]
      %v6101 = vld [vmem:[%s2373 + $0x3a] sm:$0xff]
      %v6102 = vld [vmem:[%s2373 + $0x4a] sm:$0xff]
      %v6103 = vld [vmem:[%s2373 + $0x52] sm:$0xff]
      %v6104 = vld [vmem:[%s2373 + $0x62] sm:$0xff]
      %v6105 = vld [vmem:[%s2373 + $0x6a] sm:$0xff]
      %v6106 = vld [vmem:[%s2373 + $0x7a] sm:$0xff]
      %v6107 = vld [vmem:[%s2373 + $0x82] sm:$0xff]
      %v6108 = vld [vmem:[%s2373 + $0x92] sm:$0xff]
      %v6109 = vld [vmem:[%s2373 + $0x9a] sm:$0xff]
      %v6110 = vld [vmem:[%s2373 + $0xaa] sm:$0xff]
      %v6111 = vld [vmem:[%s2373 + $0xb2] sm:$0xff]
      %v6112 = vld [vmem:[%s2373 + $0xc2] sm:$0xff]
      %v6113 = vld [vmem:[%s2373 + $0xca] sm:$0xff]
      %v6114 = vld [vmem:[%s2373 + $0xda] sm:$0xff]
      %v6115 = vld [vmem:[%s2373 + $0xe2] sm:$0xff]
      %v6116 = vld [vmem:[%s2373 + $0xf2] sm:$0xff]
      %v6117 = vld [vmem:[%s2373 + $0xfa] sm:$0xff]
      %v6118 = vld [vmem:[%s2373 + $0x10a] sm:$0xff]
      %v6119 = vld [vmem:[%s2373 + $0x112] sm:$0xff]
      %v6120 = vld [vmem:[%s2373 + $0x122] sm:$0xff]
      %v6121 = vld [vmem:[%s2373 + $0x12a] sm:$0xff]
      %v6122 = vld [vmem:[%s2373 + $0x13a] sm:$0xff]
      %v6123 = vld [vmem:[%s2373 + $0x142] sm:$0xff]
      %v6124 = vld [vmem:[%s2373 + $0x152] sm:$0xff]
      %v6125 = vld [vmem:[%s2373 + $0x15a] sm:$0xff]
      %v6126 = vld [vmem:[%s2373 + $0x16a] sm:$0xff]
      %v6127 = vld [vmem:[%s2373 + $0x172] sm:$0xff]
      %v6128 = vpack.c.bf16 %v6097, %v6096
      %v6129 = vpack.c.bf16 %v6099, %v6098
      %v6130 = vpack.c.bf16 %v6101, %v6100
      %v6131 = vpack.c.bf16 %v6103, %v6102
      %v6132 = vpack.c.bf16 %v6105, %v6104
      %v6133 = vpack.c.bf16 %v6107, %v6106
      %v6134 = vpack.c.bf16 %v6109, %v6108
      %v6135 = vpack.c.bf16 %v6111, %v6110
      %v6136 = vpack.c.bf16 %v6113, %v6112
      %v6137 = vpack.c.bf16 %v6115, %v6114
      %v6138 = vpack.c.bf16 %v6117, %v6116
      %v6139 = vpack.c.bf16 %v6119, %v6118
      %v6140 = vpack.c.bf16 %v6121, %v6120
      %v6141 = vpack.c.bf16 %v6123, %v6122
      %v6142 = vpack.c.bf16 %v6125, %v6124
      %v6143 = vpack.c.bf16 %v6127, %v6126
      %6160 = vrot.lane.b32.xlu0 %v6128, 64
      %v6161 = vpop.permute.xlu0 %6160
      %6162 = vrot.lane.b32.xlu0 %v6129, 64
      %v6163 = vpop.permute.xlu0 %6162
      %6164 = vrot.lane.b32.xlu0 %v6130, 64
      %v6165 = vpop.permute.xlu0 %6164
      %6166 = vrot.lane.b32.xlu0 %v6131, 64
      %v6167 = vpop.permute.xlu0 %6166
      %6168 = vrot.lane.b32.xlu0 %v6132, 64
      %v6169 = vpop.permute.xlu0 %6168
      %6170 = vrot.lane.b32.xlu0 %v6133, 64
      %v6171 = vpop.permute.xlu0 %6170
      %6172 = vrot.lane.b32.xlu0 %v6134, 64
      %v6173 = vpop.permute.xlu0 %6172
      %6174 = vrot.lane.b32.xlu0 %v6135, 64
      %v6175 = vpop.permute.xlu0 %6174
      %6176 = vrot.lane.b32.xlu0 %v6136, 64
      %v6177 = vpop.permute.xlu0 %6176
      %6178 = vrot.lane.b32.xlu0 %v6137, 64
      %v6179 = vpop.permute.xlu0 %6178
      %6180 = vrot.lane.b32.xlu0 %v6138, 64
      %v6181 = vpop.permute.xlu0 %6180
      %6182 = vrot.lane.b32.xlu0 %v6139, 64
      %v6183 = vpop.permute.xlu0 %6182
      %6184 = vrot.lane.b32.xlu0 %v6140, 64
      %v6185 = vpop.permute.xlu0 %6184
      %6186 = vrot.lane.b32.xlu0 %v6141, 64
      %v6187 = vpop.permute.xlu0 %6186
      %6188 = vrot.lane.b32.xlu0 %v6142, 64
      %v6189 = vpop.permute.xlu0 %6188
      %6190 = vrot.lane.b32.xlu0 %v6143, 64
      %v6191 = vpop.permute.xlu0 %6190
      %6208 = vst.msk [vmem:[#allocation3] sm:$0xff] %vm2744, %v6161
      %6209 = vst.msk [vmem:[#allocation3 + $0x8] sm:$0xff] %vm2744, %v6163
      %6210 = vst.msk [vmem:[#allocation3 + $0x10] sm:$0xff] %vm2744, %v6165
      %6211 = vst.msk [vmem:[#allocation3 + $0x18] sm:$0xff] %vm2744, %v6167
      %6212 = vst.msk [vmem:[#allocation3 + $0x20] sm:$0xff] %vm2744, %v6169
      %6213 = vst.msk [vmem:[#allocation3 + $0x28] sm:$0xff] %vm2744, %v6171
      %6214 = vst.msk [vmem:[#allocation3 + $0x30] sm:$0xff] %vm2744, %v6173
      %6215 = vst.msk [vmem:[#allocation3 + $0x38] sm:$0xff] %vm2744, %v6175
      %6216 = vst.msk [vmem:[#allocation3 + $0x40] sm:$0xff] %vm2744, %v6177
      %6217 = vst.msk [vmem:[#allocation3 + $0x48] sm:$0xff] %vm2744, %v6179
      %6218 = vst.msk [vmem:[#allocation3 + $0x50] sm:$0xff] %vm2744, %v6181
      %6219 = vst.msk [vmem:[#allocation3 + $0x58] sm:$0xff] %vm2744, %v6183
      %6220 = vst.msk [vmem:[#allocation3 + $0x60] sm:$0xff] %vm2744, %v6185
      %6221 = vst.msk [vmem:[#allocation3 + $0x68] sm:$0xff] %vm2744, %v6187
      %6222 = vst.msk [vmem:[#allocation3 + $0x70] sm:$0xff] %vm2744, %v6189
      %6223 = vst.msk [vmem:[#allocation3 + $0x78] sm:$0xff] %vm2744, %v6191
      %v6224 = vld [vmem:[#allocation3] sm:$0xff]
      %v6225 = vld [vmem:[#allocation3 + $0x8] sm:$0xff]
      %v6226 = vld [vmem:[#allocation3 + $0x10] sm:$0xff]
      %v6227 = vld [vmem:[#allocation3 + $0x18] sm:$0xff]
      %v6228 = vld [vmem:[#allocation3 + $0x20] sm:$0xff]
      %v6229 = vld [vmem:[#allocation3 + $0x28] sm:$0xff]
      %v6230 = vld [vmem:[#allocation3 + $0x30] sm:$0xff]
      %v6231 = vld [vmem:[#allocation3 + $0x38] sm:$0xff]
      %v6232 = vld [vmem:[#allocation3 + $0x40] sm:$0xff]
      %v6233 = vld [vmem:[#allocation3 + $0x48] sm:$0xff]
      %v6234 = vld [vmem:[#allocation3 + $0x50] sm:$0xff]
      %v6235 = vld [vmem:[#allocation3 + $0x58] sm:$0xff]
      %v6236 = vld [vmem:[#allocation3 + $0x60] sm:$0xff]
      %v6237 = vld [vmem:[#allocation3 + $0x68] sm:$0xff]
      %v6238 = vld [vmem:[#allocation3 + $0x70] sm:$0xff]
      %v6239 = vld [vmem:[#allocation3 + $0x78] sm:$0xff]
      %s6240 = scalar_lea.vmem %s3, 72
      %v6241 = vld [vmem:[%s6240] sm:$0xf]
      %v6242 = vld [vmem:[%s6240 + $0x4] sm:$0xf]
      %v6243 = vld [vmem:[%s6240 + $0x8] sm:$0xf]
      %v6244 = vld [vmem:[%s6240 + $0xc] sm:$0xf]
      %v6245 = vld [vmem:[%s6240 + $0x10] sm:$0xf]
      %v6246 = vld [vmem:[%s6240 + $0x14] sm:$0xf]
      %v6247 = vld [vmem:[%s6240 + $0x18] sm:$0xf]
      %v6248 = vld [vmem:[%s6240 + $0x1c] sm:$0xf]
      %v6249 = vld [vmem:[%s6240 + $0x20] sm:$0xf]
      %s6250 = scalar_lea.vmem %s4, 2
      %v6251 = vld [vmem:[%s6250] sm:$0x1]
      %v6253 = vlaneseq
      %v6254 = vshrl.u32 %v6253, 7
      %v6255 = vsub.s32 0, %v6254
      %v6256 = vrot.slane %v6251, %v6255
      %v6267 = vunpack.c.l.b16 %v6241
      %v6268 = vunpack.c.l.b16 %v6242
      %v6269 = vunpack.c.l.b16 %v6243
      %v6270 = vunpack.c.l.b16 %v6244
      %v6271 = vunpack.c.l.b16 %v6245
      %v6272 = vunpack.c.l.b16 %v6246
      %v6273 = vunpack.c.l.b16 %v6247
      %v6274 = vunpack.c.l.b16 %v6248
      %v6275 = vunpack.c.l.b16 %v6249
      %v6276 = vpack.c.b16 %v6268, %v6267
      %v6277 = vpack.c.b16 %v6270, %v6269
      %v6278 = vpack.c.b16 %v6272, %v6271
      %v6279 = vpack.c.b16 %v6274, %v6273
      %v6280 = vpack.c.b16 %v6275, %v6275
      %v6286 = vsel %vm2820, %v6224, 0
      %v6289 = vsel %vm2820, %v6225, 0
      %v6292 = vsel %vm2820, %v6226, 0
      %v6295 = vsel %vm2820, %v6227, 0
      %v6298 = vsel %vm2820, %v6228, 0
      %v6301 = vsel %vm2820, %v6229, 0
      %v6304 = vsel %vm2820, %v6230, 0
      %v6307 = vsel %vm2820, %v6231, 0
      %v6310 = vsel %vm2820, %v6232, 0
      %v6313 = vsel %vm2820, %v6233, 0
      %v6316 = vsel %vm2820, %v6234, 0
      %v6319 = vsel %vm2820, %v6235, 0
      %v6322 = vsel %vm2820, %v6236, 0
      %v6325 = vsel %vm2820, %v6237, 0
      %v6328 = vsel %vm2820, %v6238, 0
      %v6331 = vsel %vm2820, %v6239, 0
      %v6334 = vsel %vm1254, %v6280, 0
      %6336 = vmatprep.subr.bf16.mxu0 0
      %6337 = vmatpush1.bf16.msra.mxu0 %v6276
      %6338 = vmatprep.subr.bf16.mxu0 0
      %6339 = vmatpush1.bf16.msra.mxu0 %v6277
      %6340 = vmatprep.subr.bf16.mxu0 0
      %6341 = vmatpush1.bf16.msra.mxu0 %v6278
      %6342 = vmatprep.subr.bf16.mxu0 0
      %6343 = vmatpush1.bf16.msra.mxu0 %v6279
      %6344 = vmatprep.subr.bf16.mxu0 0
      %6345 = vmatpush1.bf16.msra.mxu0 %v6334
      %6346 = vmatprep.subr.bf16.mxu0 0
      %6347 = vmatpush1.bf16.msra.mxu0 0
      %6348 = vmatprep.subr.bf16.mxu0 0
      %6349 = vmatpush1.bf16.msra.mxu0 0
      %6350 = vmatprep.subr.bf16.mxu0 0
      %6351 = vmatpush1.bf16.msra.mxu0 0
      %6352 = vmatprep.subr.bf16.mxu0 0
      %6353 = vmatpush1.bf16.msra.mxu0 0
      %6354 = vmatprep.subr.bf16.mxu0 0
      %6355 = vmatpush1.bf16.msra.mxu0 0
      %6356 = vmatprep.subr.bf16.mxu0 0
      %6357 = vmatpush1.bf16.msra.mxu0 0
      %6358 = vmatprep.subr.bf16.mxu0 0
      %6359 = vmatpush1.bf16.msra.mxu0 0
      %6360 = vmatprep.subr.bf16.mxu0 0
      %6361 = vmatpush1.bf16.msra.mxu0 0
      %6362 = vmatprep.subr.bf16.mxu0 0
      %6363 = vmatpush1.bf16.msra.mxu0 0
      %6364 = vmatprep.subr.bf16.mxu0 0
      %6365 = vmatpush1.bf16.msra.mxu0 0
      %6366 = vmatprep.subr.bf16.mxu0 0
      %6367 = vmatpush1.bf16.msra.mxu0 0
      %6368 = vmatprep.mubr.bf16.mxu0 0
      %6369 = vmatmul.mubr.bf16.gmra.mrb[0].mxu0 %v6286
      %v6370 = vpop.f32.mrb[0].mxu0
      %v6371 = vadd.f32 %v6256, %v6370
      %v6372 = vpop.f32.mrb[0].mxu0
      %v6373 = vpop.f32.mrb[0].mxu0
      %v6374 = vadd.f32 %v6256, %v6373
      %v6375 = vpop.f32.mrb[0].mxu0
      %6376 = vmatprep.mubr.bf16.mxu0 0
      %6377 = vmatmul.mubr.bf16.gmra.mrb[0].mxu0 %v6289
      %v6378 = vpop.f32.mrb[0].mxu0
      %v6379 = vadd.f32 %v6256, %v6378
      %v6380 = vpop.f32.mrb[0].mxu0
      %v6381 = vpop.f32.mrb[0].mxu0
      %v6382 = vadd.f32 %v6256, %v6381
      %v6383 = vpop.f32.mrb[0].mxu0
      %6384 = vmatprep.mubr.bf16.mxu0 0
      %6385 = vmatmul.mubr.bf16.gmra.mrb[0].mxu0 %v6292
      %v6386 = vpop.f32.mrb[0].mxu0
      %v6387 = vadd.f32 %v6256, %v6386
      %v6388 = vpop.f32.mrb[0].mxu0
      %v6389 = vpop.f32.mrb[0].mxu0
      %v6390 = vadd.f32 %v6256, %v6389
      %v6391 = vpop.f32.mrb[0].mxu0
      %6392 = vmatprep.mubr.bf16.mxu0 0
      %6393 = vmatmul.mubr.bf16.gmra.mrb[0].mxu0 %v6295
      %v6394 = vpop.f32.mrb[0].mxu0
      %v6395 = vadd.f32 %v6256, %v6394
      %v6396 = vpop.f32.mrb[0].mxu0
      %v6397 = vpop.f32.mrb[0].mxu0
      %v6398 = vadd.f32 %v6256, %v6397
      %v6399 = vpop.f32.mrb[0].mxu0
      %6400 = vmatprep.mubr.bf16.mxu0 0
      %6401 = vmatmul.mubr.bf16.gmra.mrb[0].mxu0 %v6298
      %v6402 = vpop.f32.mrb[0].mxu0
      %v6403 = vadd.f32 %v6256, %v6402
      %v6404 = vpop.f32.mrb[0].mxu0
      %v6405 = vpop.f32.mrb[0].mxu0
      %v6406 = vadd.f32 %v6256, %v6405
      %v6407 = vpop.f32.mrb[0].mxu0
      %6408 = vmatprep.mubr.bf16.mxu0 0
      %6409 = vmatmul.mubr.bf16.gmra.mrb[0].mxu0 %v6301
      %v6410 = vpop.f32.mrb[0].mxu0
      %v6411 = vadd.f32 %v6256, %v6410
      %v6412 = vpop.f32.mrb[0].mxu0
      %v6413 = vpop.f32.mrb[0].mxu0
      %v6414 = vadd.f32 %v6256, %v6413
      %v6415 = vpop.f32.mrb[0].mxu0
      %6416 = vmatprep.mubr.bf16.mxu0 0
      %6417 = vmatmul.mubr.bf16.gmra.mrb[0].mxu0 %v6304
      %v6418 = vpop.f32.mrb[0].mxu0
      %v6419 = vadd.f32 %v6256, %v6418
      %v6420 = vpop.f32.mrb[0].mxu0
      %v6421 = vpop.f32.mrb[0].mxu0
      %v6422 = vadd.f32 %v6256, %v6421
      %v6423 = vpop.f32.mrb[0].mxu0
      %6424 = vmatprep.mubr.bf16.mxu0 0
      %6425 = vmatmul.mubr.bf16.gmra.mrb[0].mxu0 %v6307
      %v6426 = vpop.f32.mrb[0].mxu0
      %v6427 = vadd.f32 %v6256, %v6426
      %v6428 = vpop.f32.mrb[0].mxu0
      %v6429 = vpop.f32.mrb[0].mxu0
      %v6430 = vadd.f32 %v6256, %v6429
      %v6431 = vpop.f32.mrb[0].mxu0
      %6432 = vmatprep.mubr.bf16.mxu0 0
      %6433 = vmatmul.mubr.bf16.gmra.mrb[0].mxu0 %v6310
      %v6434 = vpop.f32.mrb[0].mxu0
      %v6435 = vadd.f32 %v6256, %v6434
      %v6436 = vpop.f32.mrb[0].mxu0
      %v6437 = vpop.f32.mrb[0].mxu0
      %v6438 = vadd.f32 %v6256, %v6437
      %v6439 = vpop.f32.mrb[0].mxu0
      %6440 = vmatprep.mubr.bf16.mxu0 0
      %6441 = vmatmul.mubr.bf16.gmra.mrb[0].mxu0 %v6313
      %v6442 = vpop.f32.mrb[0].mxu0
      %v6443 = vadd.f32 %v6256, %v6442
      %v6444 = vpop.f32.mrb[0].mxu0
      %v6445 = vpop.f32.mrb[0].mxu0
      %v6446 = vadd.f32 %v6256, %v6445
      %v6447 = vpop.f32.mrb[0].mxu0
      %6448 = vmatprep.mubr.bf16.mxu0 0
      %6449 = vmatmul.mubr.bf16.gmra.mrb[0].mxu0 %v6316
      %v6450 = vpop.f32.mrb[0].mxu0
      %v6451 = vadd.f32 %v6256, %v6450
      %v6452 = vpop.f32.mrb[0].mxu0
      %v6453 = vpop.f32.mrb[0].mxu0
      %v6454 = vadd.f32 %v6256, %v6453
      %v6455 = vpop.f32.mrb[0].mxu0
      %6456 = vmatprep.mubr.bf16.mxu0 0
      %6457 = vmatmul.mubr.bf16.gmra.mrb[0].mxu0 %v6319
      %v6458 = vpop.f32.mrb[0].mxu0
      %v6459 = vadd.f32 %v6256, %v6458
      %v6460 = vpop.f32.mrb[0].mxu0
      %v6461 = vpop.f32.mrb[0].mxu0
      %v6462 = vadd.f32 %v6256, %v6461
      %v6463 = vpop.f32.mrb[0].mxu0
      %6464 = vmatprep.mubr.bf16.mxu0 0
      %6465 = vmatmul.mubr.bf16.gmra.mrb[0].mxu0 %v6322
      %v6466 = vpop.f32.mrb[0].mxu0
      %v6467 = vadd.f32 %v6256, %v6466
      %v6468 = vpop.f32.mrb[0].mxu0
      %v6469 = vpop.f32.mrb[0].mxu0
      %v6470 = vadd.f32 %v6256, %v6469
      %v6471 = vpop.f32.mrb[0].mxu0
      %6472 = vmatprep.mubr.bf16.mxu0 0
      %6473 = vmatmul.mubr.bf16.gmra.mrb[0].mxu0 %v6325
      %v6474 = vpop.f32.mrb[0].mxu0
      %v6475 = vadd.f32 %v6256, %v6474
      %v6476 = vpop.f32.mrb[0].mxu0
      %v6477 = vpop.f32.mrb[0].mxu0
      %v6478 = vadd.f32 %v6256, %v6477
      %v6479 = vpop.f32.mrb[0].mxu0
      %6480 = vmatprep.mubr.bf16.mxu0 0
      %6481 = vmatmul.mubr.bf16.gmra.mrb[0].mxu0 %v6328
      %v6482 = vpop.f32.mrb[0].mxu0
      %v6483 = vadd.f32 %v6256, %v6482
      %v6484 = vpop.f32.mrb[0].mxu0
      %v6485 = vpop.f32.mrb[0].mxu0
      %v6486 = vadd.f32 %v6256, %v6485
      %v6487 = vpop.f32.mrb[0].mxu0
      %6488 = vmatprep.mubr.bf16.mxu0 0
      %6489 = vmatmul.mubr.bf16.gmra.mrb[0].mxu0 %v6331
      %v6490 = vpop.f32.mrb[0].mxu0
      %v6491 = vadd.f32 %v6256, %v6490
      %v6492 = vpop.f32.mrb[0].mxu0
      %v6493 = vpop.f32.mrb[0].mxu0
      %v6494 = vadd.f32 %v6256, %v6493
      %v6495 = vpop.f32.mrb[0].mxu0
      %6496 = vdwg.mxu0
      %v6497 = vsub.f32 0.0, %v6371
      %v6498 = vsub.f32 0.0, %v6374
      %v6499 = vsub.f32 0.0, %v6379
      %v6500 = vsub.f32 0.0, %v6382
      %v6501 = vsub.f32 0.0, %v6387
      %v6502 = vsub.f32 0.0, %v6390
      %v6503 = vsub.f32 0.0, %v6395
      %v6504 = vsub.f32 0.0, %v6398
      %v6505 = vsub.f32 0.0, %v6403
      %v6506 = vsub.f32 0.0, %v6406
      %v6507 = vsub.f32 0.0, %v6411
      %v6508 = vsub.f32 0.0, %v6414
      %v6509 = vsub.f32 0.0, %v6419
      %v6510 = vsub.f32 0.0, %v6422
      %v6511 = vsub.f32 0.0, %v6427
      %v6512 = vsub.f32 0.0, %v6430
      %v6513 = vsub.f32 0.0, %v6435
      %v6514 = vsub.f32 0.0, %v6438
      %v6515 = vsub.f32 0.0, %v6443
      %v6516 = vsub.f32 0.0, %v6446
      %v6517 = vsub.f32 0.0, %v6451
      %v6518 = vsub.f32 0.0, %v6454
      %v6519 = vsub.f32 0.0, %v6459
      %v6520 = vsub.f32 0.0, %v6462
      %v6521 = vsub.f32 0.0, %v6467
      %v6522 = vsub.f32 0.0, %v6470
      %v6523 = vsub.f32 0.0, %v6475
      %v6524 = vsub.f32 0.0, %v6478
      %v6525 = vsub.f32 0.0, %v6483
      %v6526 = vsub.f32 0.0, %v6486
      %v6527 = vsub.f32 0.0, %v6491
      %v6528 = vsub.f32 0.0, %v6494
      %v6529 = vmul.f32 %v6497, 1.442695
      %v6530 = vpow.pop %v6529
      %v6531 = vmul.f32 %v6498, 1.442695
      %v6532 = vpow.pop %v6531
      %v6533 = vmul.f32 %v6499, 1.442695
      %v6534 = vpow.pop %v6533
      %v6535 = vmul.f32 %v6500, 1.442695
      %v6536 = vpow.pop %v6535
      %v6537 = vmul.f32 %v6501, 1.442695
      %v6538 = vpow.pop %v6537
      %v6539 = vmul.f32 %v6502, 1.442695
      %v6540 = vpow.pop %v6539
      %v6541 = vmul.f32 %v6503, 1.442695
      %v6542 = vpow.pop %v6541
      %v6543 = vmul.f32 %v6504, 1.442695
      %v6544 = vpow.pop %v6543
      %v6545 = vmul.f32 %v6505, 1.442695
      %v6546 = vpow.pop %v6545
      %v6547 = vmul.f32 %v6506, 1.442695
      %v6548 = vpow.pop %v6547
      %v6549 = vmul.f32 %v6507, 1.442695
      %v6550 = vpow.pop %v6549
      %v6551 = vmul.f32 %v6508, 1.442695
      %v6552 = vpow.pop %v6551
      %v6553 = vmul.f32 %v6509, 1.442695
      %v6554 = vpow.pop %v6553
      %v6555 = vmul.f32 %v6510, 1.442695
      %v6556 = vpow.pop %v6555
      %v6557 = vmul.f32 %v6511, 1.442695
      %v6558 = vpow.pop %v6557
      %v6559 = vmul.f32 %v6512, 1.442695
      %v6560 = vpow.pop %v6559
      %v6561 = vmul.f32 %v6513, 1.442695
      %v6562 = vpow.pop %v6561
      %v6563 = vmul.f32 %v6514, 1.442695
      %v6564 = vpow.pop %v6563
      %v6565 = vmul.f32 %v6515, 1.442695
      %v6566 = vpow.pop %v6565
      %v6567 = vmul.f32 %v6516, 1.442695
      %v6568 = vpow.pop %v6567
      %v6569 = vmul.f32 %v6517, 1.442695
      %v6570 = vpow.pop %v6569
      %v6571 = vmul.f32 %v6518, 1.442695
      %v6572 = vpow.pop %v6571
      %v6573 = vmul.f32 %v6519, 1.442695
      %v6574 = vpow.pop %v6573
      %v6575 = vmul.f32 %v6520, 1.442695
      %v6576 = vpow.pop %v6575
      %v6577 = vmul.f32 %v6521, 1.442695
      %v6578 = vpow.pop %v6577
      %v6579 = vmul.f32 %v6522, 1.442695
      %v6580 = vpow.pop %v6579
      %v6581 = vmul.f32 %v6523, 1.442695
      %v6582 = vpow.pop %v6581
      %v6583 = vmul.f32 %v6524, 1.442695
      %v6584 = vpow.pop %v6583
      %v6585 = vmul.f32 %v6525, 1.442695
      %v6586 = vpow.pop %v6585
      %v6587 = vmul.f32 %v6526, 1.442695
      %v6588 = vpow.pop %v6587
      %v6589 = vmul.f32 %v6527, 1.442695
      %v6590 = vpow.pop %v6589
      %v6591 = vmul.f32 %v6528, 1.442695
      %v6592 = vpow.pop %v6591
      %v6593 = vadd.f32 %v6530, 1.0
      %v6594 = vadd.f32 %v6532, 1.0
      %v6595 = vadd.f32 %v6534, 1.0
      %v6596 = vadd.f32 %v6536, 1.0
      %v6597 = vadd.f32 %v6538, 1.0
      %v6598 = vadd.f32 %v6540, 1.0
      %v6599 = vadd.f32 %v6542, 1.0
      %v6600 = vadd.f32 %v6544, 1.0
      %v6601 = vadd.f32 %v6546, 1.0
      %v6602 = vadd.f32 %v6548, 1.0
      %v6603 = vadd.f32 %v6550, 1.0
      %v6604 = vadd.f32 %v6552, 1.0
      %v6605 = vadd.f32 %v6554, 1.0
      %v6606 = vadd.f32 %v6556, 1.0
      %v6607 = vadd.f32 %v6558, 1.0
      %v6608 = vadd.f32 %v6560, 1.0
      %v6609 = vadd.f32 %v6562, 1.0
      %v6610 = vadd.f32 %v6564, 1.0
      %v6611 = vadd.f32 %v6566, 1.0
      %v6612 = vadd.f32 %v6568, 1.0
      %v6613 = vadd.f32 %v6570, 1.0
      %v6614 = vadd.f32 %v6572, 1.0
      %v6615 = vadd.f32 %v6574, 1.0
      %v6616 = vadd.f32 %v6576, 1.0
      %v6617 = vadd.f32 %v6578, 1.0
      %v6618 = vadd.f32 %v6580, 1.0
      %v6619 = vadd.f32 %v6582, 1.0
      %v6620 = vadd.f32 %v6584, 1.0
      %v6621 = vadd.f32 %v6586, 1.0
      %v6622 = vadd.f32 %v6588, 1.0
      %v6623 = vadd.f32 %v6590, 1.0
      %v6624 = vadd.f32 %v6592, 1.0
      %v6625 = vrcp.pop %v6593
      %v6626 = vrcp.pop %v6594
      %v6627 = vrcp.pop %v6595
      %v6628 = vrcp.pop %v6596
      %v6629 = vrcp.pop %v6597
      %v6630 = vrcp.pop %v6598
      %v6631 = vrcp.pop %v6599
      %v6632 = vrcp.pop %v6600
      %v6633 = vrcp.pop %v6601
      %v6634 = vrcp.pop %v6602
      %v6635 = vrcp.pop %v6603
      %v6636 = vrcp.pop %v6604
      %v6637 = vrcp.pop %v6605
      %v6638 = vrcp.pop %v6606
      %v6639 = vrcp.pop %v6607
      %v6640 = vrcp.pop %v6608
      %v6641 = vrcp.pop %v6609
      %v6642 = vrcp.pop %v6610
      %v6643 = vrcp.pop %v6611
      %v6644 = vrcp.pop %v6612
      %v6645 = vrcp.pop %v6613
      %v6646 = vrcp.pop %v6614
      %v6647 = vrcp.pop %v6615
      %v6648 = vrcp.pop %v6616
      %v6649 = vrcp.pop %v6617
      %v6650 = vrcp.pop %v6618
      %v6651 = vrcp.pop %v6619
      %v6652 = vrcp.pop %v6620
      %v6653 = vrcp.pop %v6621
      %v6654 = vrcp.pop %v6622
      %v6655 = vrcp.pop %v6623
      %v6656 = vrcp.pop %v6624
      %v6657 = vmul.f32 %v6371, %v6625
      %v6658 = vmul.f32 %v6374, %v6626
      %v6659 = vmul.f32 %v6379, %v6627
      %v6660 = vmul.f32 %v6382, %v6628
      %v6661 = vmul.f32 %v6387, %v6629
      %v6662 = vmul.f32 %v6390, %v6630
      %v6663 = vmul.f32 %v6395, %v6631
      %v6664 = vmul.f32 %v6398, %v6632
      %v6665 = vmul.f32 %v6403, %v6633
      %v6666 = vmul.f32 %v6406, %v6634
      %v6667 = vmul.f32 %v6411, %v6635
      %v6668 = vmul.f32 %v6414, %v6636
      %v6669 = vmul.f32 %v6419, %v6637
      %v6670 = vmul.f32 %v6422, %v6638
      %v6671 = vmul.f32 %v6427, %v6639
      %v6672 = vmul.f32 %v6430, %v6640
      %v6673 = vmul.f32 %v6435, %v6641
      %v6674 = vmul.f32 %v6438, %v6642
      %v6675 = vmul.f32 %v6443, %v6643
      %v6676 = vmul.f32 %v6446, %v6644
      %v6677 = vmul.f32 %v6451, %v6645
      %v6678 = vmul.f32 %v6454, %v6646
      %v6679 = vmul.f32 %v6459, %v6647
      %v6680 = vmul.f32 %v6462, %v6648
      %v6681 = vmul.f32 %v6467, %v6649
      %v6682 = vmul.f32 %v6470, %v6650
      %v6683 = vmul.f32 %v6475, %v6651
      %v6684 = vmul.f32 %v6478, %v6652
      %v6685 = vmul.f32 %v6483, %v6653
      %v6686 = vmul.f32 %v6486, %v6654
      %v6687 = vmul.f32 %v6491, %v6655
      %v6688 = vmul.f32 %v6494, %v6656
      %6689 = vst.msk [vmem:[%s1631 + $0x1] sm:$0xff] %vm280, %v6657
      %6690 = vst.msk [vmem:[%s1631 + $0x9] sm:$0xff] %vm280, %v6658
      %6691 = vst.msk [vmem:[%s1631 + $0x19] sm:$0xff] %vm280, %v6659
      %6692 = vst.msk [vmem:[%s1631 + $0x21] sm:$0xff] %vm280, %v6660
      %6693 = vst.msk [vmem:[%s1631 + $0x31] sm:$0xff] %vm280, %v6661
      %6694 = vst.msk [vmem:[%s1631 + $0x39] sm:$0xff] %vm280, %v6662
      %6695 = vst.msk [vmem:[%s1631 + $0x49] sm:$0xff] %vm280, %v6663
      %6696 = vst.msk [vmem:[%s1631 + $0x51] sm:$0xff] %vm280, %v6664
      %6697 = vst.msk [vmem:[%s1631 + $0x61] sm:$0xff] %vm280, %v6665
      %6698 = vst.msk [vmem:[%s1631 + $0x69] sm:$0xff] %vm280, %v6666
      %6699 = vst.msk [vmem:[%s1631 + $0x79] sm:$0xff] %vm280, %v6667
      %6700 = vst.msk [vmem:[%s1631 + $0x81] sm:$0xff] %vm280, %v6668
      %6701 = vst.msk [vmem:[%s1631 + $0x91] sm:$0xff] %vm280, %v6669
      %6702 = vst.msk [vmem:[%s1631 + $0x99] sm:$0xff] %vm280, %v6670
      %6703 = vst.msk [vmem:[%s1631 + $0xa9] sm:$0xff] %vm280, %v6671
      %6704 = vst.msk [vmem:[%s1631 + $0xb1] sm:$0xff] %vm280, %v6672
      %6705 = vst.msk [vmem:[%s1631 + $0xc1] sm:$0xff] %vm280, %v6673
      %6706 = vst.msk [vmem:[%s1631 + $0xc9] sm:$0xff] %vm280, %v6674
      %6707 = vst.msk [vmem:[%s1631 + $0xd9] sm:$0xff] %vm280, %v6675
      %6708 = vst.msk [vmem:[%s1631 + $0xe1] sm:$0xff] %vm280, %v6676
      %6709 = vst.msk [vmem:[%s1631 + $0xf1] sm:$0xff] %vm280, %v6677
      %6710 = vst.msk [vmem:[%s1631 + $0xf9] sm:$0xff] %vm280, %v6678
      %6711 = vst.msk [vmem:[%s1631 + $0x109] sm:$0xff] %vm280, %v6679
      %6712 = vst.msk [vmem:[%s1631 + $0x111] sm:$0xff] %vm280, %v6680
      %6713 = vst.msk [vmem:[%s1631 + $0x121] sm:$0xff] %vm280, %v6681
      %6714 = vst.msk [vmem:[%s1631 + $0x129] sm:$0xff] %vm280, %v6682
      %6715 = vst.msk [vmem:[%s1631 + $0x139] sm:$0xff] %vm280, %v6683
      %6716 = vst.msk [vmem:[%s1631 + $0x141] sm:$0xff] %vm280, %v6684
      %6717 = vst.msk [vmem:[%s1631 + $0x151] sm:$0xff] %vm280, %v6685
      %6718 = vst.msk [vmem:[%s1631 + $0x159] sm:$0xff] %vm280, %v6686
      %6719 = vst.msk [vmem:[%s1631 + $0x169] sm:$0xff] %vm280, %v6687
      %6720 = vst.msk [vmem:[%s1631 + $0x171] sm:$0xff] %vm280, %v6688
      %v6721 = vld [vmem:[#allocation2] sm:$0xff]
      %v6722 = vld [vmem:[#allocation2 + $0x8] sm:$0xff]
      %v6723 = vld [vmem:[#allocation2 + $0x18] sm:$0xff]
      %v6724 = vld [vmem:[#allocation2 + $0x20] sm:$0xff]
      %v6725 = vld [vmem:[#allocation2 + $0x30] sm:$0xff]
      %v6726 = vld [vmem:[#allocation2 + $0x38] sm:$0xff]
      %v6727 = vld [vmem:[#allocation2 + $0x48] sm:$0xff]
      %v6728 = vld [vmem:[#allocation2 + $0x50] sm:$0xff]
      %v6729 = vld [vmem:[#allocation2 + $0x60] sm:$0xff]
      %v6730 = vld [vmem:[#allocation2 + $0x68] sm:$0xff]
      %v6731 = vld [vmem:[#allocation2 + $0x78] sm:$0xff]
      %v6732 = vld [vmem:[#allocation2 + $0x80] sm:$0xff]
      %v6733 = vld [vmem:[#allocation2 + $0x90] sm:$0xff]
      %v6734 = vld [vmem:[#allocation2 + $0x98] sm:$0xff]
      %v6735 = vld [vmem:[#allocation2 + $0xa8] sm:$0xff]
      %v6736 = vld [vmem:[#allocation2 + $0xb0] sm:$0xff]
      %v6737 = vld [vmem:[#allocation2 + $0xc0] sm:$0xff]
      %v6738 = vld [vmem:[#allocation2 + $0xc8] sm:$0xff]
      %v6739 = vld [vmem:[#allocation2 + $0xd8] sm:$0xff]
      %v6740 = vld [vmem:[#allocation2 + $0xe0] sm:$0xff]
      %v6741 = vld [vmem:[#allocation2 + $0xf0] sm:$0xff]
      %v6742 = vld [vmem:[#allocation2 + $0xf8] sm:$0xff]
      %v6743 = vld [vmem:[#allocation2 + $0x108] sm:$0xff]
      %v6744 = vld [vmem:[#allocation2 + $0x110] sm:$0xff]
      %v6745 = vld [vmem:[#allocation2 + $0x120] sm:$0xff]
      %v6746 = vld [vmem:[#allocation2 + $0x128] sm:$0xff]
      %v6747 = vld [vmem:[#allocation2 + $0x138] sm:$0xff]
      %v6748 = vld [vmem:[#allocation2 + $0x140] sm:$0xff]
      %v6749 = vld [vmem:[#allocation2 + $0x150] sm:$0xff]
      %v6750 = vld [vmem:[#allocation2 + $0x158] sm:$0xff]
      %v6751 = vld [vmem:[#allocation2 + $0x168] sm:$0xff]
      %v6752 = vld [vmem:[#allocation2 + $0x170] sm:$0xff]
      %v6753 = vpack.c.bf16 %v6722, %v6721
      %v6754 = vpack.c.bf16 %v6724, %v6723
      %v6755 = vpack.c.bf16 %v6726, %v6725
      %v6756 = vpack.c.bf16 %v6728, %v6727
      %v6757 = vpack.c.bf16 %v6730, %v6729
      %v6758 = vpack.c.bf16 %v6732, %v6731
      %v6759 = vpack.c.bf16 %v6734, %v6733
      %v6760 = vpack.c.bf16 %v6736, %v6735
      %v6761 = vpack.c.bf16 %v6738, %v6737
      %v6762 = vpack.c.bf16 %v6740, %v6739
      %v6763 = vpack.c.bf16 %v6742, %v6741
      %v6764 = vpack.c.bf16 %v6744, %v6743
      %v6765 = vpack.c.bf16 %v6746, %v6745
      %v6766 = vpack.c.bf16 %v6748, %v6747
      %v6767 = vpack.c.bf16 %v6750, %v6749
      %v6768 = vpack.c.bf16 %v6752, %v6751
      %6769 = vst.msk [vmem:[#allocation3] sm:$0xff] %vm280, %v6753
      %6770 = vst.msk [vmem:[#allocation3 + $0x8] sm:$0xff] %vm280, %v6754
      %6771 = vst.msk [vmem:[#allocation3 + $0x10] sm:$0xff] %vm280, %v6755
      %6772 = vst.msk [vmem:[#allocation3 + $0x18] sm:$0xff] %vm280, %v6756
      %6773 = vst.msk [vmem:[#allocation3 + $0x20] sm:$0xff] %vm280, %v6757
      %6774 = vst.msk [vmem:[#allocation3 + $0x28] sm:$0xff] %vm280, %v6758
      %6775 = vst.msk [vmem:[#allocation3 + $0x30] sm:$0xff] %vm280, %v6759
      %6776 = vst.msk [vmem:[#allocation3 + $0x38] sm:$0xff] %vm280, %v6760
      %6777 = vst.msk [vmem:[#allocation3 + $0x40] sm:$0xff] %vm280, %v6761
      %6778 = vst.msk [vmem:[#allocation3 + $0x48] sm:$0xff] %vm280, %v6762
      %6779 = vst.msk [vmem:[#allocation3 + $0x50] sm:$0xff] %vm280, %v6763
      %6780 = vst.msk [vmem:[#allocation3 + $0x58] sm:$0xff] %vm280, %v6764
      %6781 = vst.msk [vmem:[#allocation3 + $0x60] sm:$0xff] %vm280, %v6765
      %6782 = vst.msk [vmem:[#allocation3 + $0x68] sm:$0xff] %vm280, %v6766
      %6783 = vst.msk [vmem:[#allocation3 + $0x70] sm:$0xff] %vm280, %v6767
      %6784 = vst.msk [vmem:[#allocation3 + $0x78] sm:$0xff] %vm280, %v6768
      %v6785 = vld [vmem:[#allocation2 + $0x1] sm:$0xff]
      %v6786 = vld [vmem:[#allocation2 + $0x9] sm:$0xff]
      %v6787 = vld [vmem:[#allocation2 + $0x19] sm:$0xff]
      %v6788 = vld [vmem:[#allocation2 + $0x21] sm:$0xff]
      %v6789 = vld [vmem:[#allocation2 + $0x31] sm:$0xff]
      %v6790 = vld [vmem:[#allocation2 + $0x39] sm:$0xff]
      %v6791 = vld [vmem:[#allocation2 + $0x49] sm:$0xff]
      %v6792 = vld [vmem:[#allocation2 + $0x51] sm:$0xff]
      %v6793 = vld [vmem:[#allocation2 + $0x61] sm:$0xff]
      %v6794 = vld [vmem:[#allocation2 + $0x69] sm:$0xff]
      %v6795 = vld [vmem:[#allocation2 + $0x79] sm:$0xff]
      %v6796 = vld [vmem:[#allocation2 + $0x81] sm:$0xff]
      %v6797 = vld [vmem:[#allocation2 + $0x91] sm:$0xff]
      %v6798 = vld [vmem:[#allocation2 + $0x99] sm:$0xff]
      %v6799 = vld [vmem:[#allocation2 + $0xa9] sm:$0xff]
      %v6800 = vld [vmem:[#allocation2 + $0xb1] sm:$0xff]
      %v6801 = vld [vmem:[#allocation2 + $0xc1] sm:$0xff]
      %v6802 = vld [vmem:[#allocation2 + $0xc9] sm:$0xff]
      %v6803 = vld [vmem:[#allocation2 + $0xd9] sm:$0xff]
      %v6804 = vld [vmem:[#allocation2 + $0xe1] sm:$0xff]
      %v6805 = vld [vmem:[#allocation2 + $0xf1] sm:$0xff]
      %v6806 = vld [vmem:[#allocation2 + $0xf9] sm:$0xff]
      %v6807 = vld [vmem:[#allocation2 + $0x109] sm:$0xff]
      %v6808 = vld [vmem:[#allocation2 + $0x111] sm:$0xff]
      %v6809 = vld [vmem:[#allocation2 + $0x121] sm:$0xff]
      %v6810 = vld [vmem:[#allocation2 + $0x129] sm:$0xff]
      %v6811 = vld [vmem:[#allocation2 + $0x139] sm:$0xff]
      %v6812 = vld [vmem:[#allocation2 + $0x141] sm:$0xff]
      %v6813 = vld [vmem:[#allocation2 + $0x151] sm:$0xff]
      %v6814 = vld [vmem:[#allocation2 + $0x159] sm:$0xff]
      %v6815 = vld [vmem:[#allocation2 + $0x169] sm:$0xff]
      %v6816 = vld [vmem:[#allocation2 + $0x171] sm:$0xff]
      %v6817 = vpack.c.bf16 %v6786, %v6785
      %v6818 = vpack.c.bf16 %v6788, %v6787
      %v6819 = vpack.c.bf16 %v6790, %v6789
      %v6820 = vpack.c.bf16 %v6792, %v6791
      %v6821 = vpack.c.bf16 %v6794, %v6793
      %v6822 = vpack.c.bf16 %v6796, %v6795
      %v6823 = vpack.c.bf16 %v6798, %v6797
      %v6824 = vpack.c.bf16 %v6800, %v6799
      %v6825 = vpack.c.bf16 %v6802, %v6801
      %v6826 = vpack.c.bf16 %v6804, %v6803
      %v6827 = vpack.c.bf16 %v6806, %v6805
      %v6828 = vpack.c.bf16 %v6808, %v6807
      %v6829 = vpack.c.bf16 %v6810, %v6809
      %v6830 = vpack.c.bf16 %v6812, %v6811
      %v6831 = vpack.c.bf16 %v6814, %v6813
      %v6832 = vpack.c.bf16 %v6816, %v6815
      %6849 = vrot.lane.b32.xlu0 %v6817, 8
      %v6850 = vpop.permute.xlu0 %6849
      %6851 = vrot.lane.b32.xlu0 %v6818, 8
      %v6852 = vpop.permute.xlu0 %6851
      %6853 = vrot.lane.b32.xlu0 %v6819, 8
      %v6854 = vpop.permute.xlu0 %6853
      %6855 = vrot.lane.b32.xlu0 %v6820, 8
      %v6856 = vpop.permute.xlu0 %6855
      %6857 = vrot.lane.b32.xlu0 %v6821, 8
      %v6858 = vpop.permute.xlu0 %6857
      %6859 = vrot.lane.b32.xlu0 %v6822, 8
      %v6860 = vpop.permute.xlu0 %6859
      %6861 = vrot.lane.b32.xlu0 %v6823, 8
      %v6862 = vpop.permute.xlu0 %6861
      %6863 = vrot.lane.b32.xlu0 %v6824, 8
      %v6864 = vpop.permute.xlu0 %6863
      %6865 = vrot.lane.b32.xlu0 %v6825, 8
      %v6866 = vpop.permute.xlu0 %6865
      %6867 = vrot.lane.b32.xlu0 %v6826, 8
      %v6868 = vpop.permute.xlu0 %6867
      %6869 = vrot.lane.b32.xlu0 %v6827, 8
      %v6870 = vpop.permute.xlu0 %6869
      %6871 = vrot.lane.b32.xlu0 %v6828, 8
      %v6872 = vpop.permute.xlu0 %6871
      %6873 = vrot.lane.b32.xlu0 %v6829, 8
      %v6874 = vpop.permute.xlu0 %6873
      %6875 = vrot.lane.b32.xlu0 %v6830, 8
      %v6876 = vpop.permute.xlu0 %6875
      %6877 = vrot.lane.b32.xlu0 %v6831, 8
      %v6878 = vpop.permute.xlu0 %6877
      %6879 = vrot.lane.b32.xlu0 %v6832, 8
      %v6880 = vpop.permute.xlu0 %6879
      %6897 = vst.msk [vmem:[#allocation3] sm:$0xff] %vm1840, %v6850
      %6898 = vst.msk [vmem:[#allocation3 + $0x8] sm:$0xff] %vm1840, %v6852
      %6899 = vst.msk [vmem:[#allocation3 + $0x10] sm:$0xff] %vm1840, %v6854
      %6900 = vst.msk [vmem:[#allocation3 + $0x18] sm:$0xff] %vm1840, %v6856
      %6901 = vst.msk [vmem:[#allocation3 + $0x20] sm:$0xff] %vm1840, %v6858
      %6902 = vst.msk [vmem:[#allocation3 + $0x28] sm:$0xff] %vm1840, %v6860
      %6903 = vst.msk [vmem:[#allocation3 + $0x30] sm:$0xff] %vm1840, %v6862
      %6904 = vst.msk [vmem:[#allocation3 + $0x38] sm:$0xff] %vm1840, %v6864
      %6905 = vst.msk [vmem:[#allocation3 + $0x40] sm:$0xff] %vm1840, %v6866
      %6906 = vst.msk [vmem:[#allocation3 + $0x48] sm:$0xff] %vm1840, %v6868
      %6907 = vst.msk [vmem:[#allocation3 + $0x50] sm:$0xff] %vm1840, %v6870
      %6908 = vst.msk [vmem:[#allocation3 + $0x58] sm:$0xff] %vm1840, %v6872
      %6909 = vst.msk [vmem:[#allocation3 + $0x60] sm:$0xff] %vm1840, %v6874
      %6910 = vst.msk [vmem:[#allocation3 + $0x68] sm:$0xff] %vm1840, %v6876
      %6911 = vst.msk [vmem:[#allocation3 + $0x70] sm:$0xff] %vm1840, %v6878
      %6912 = vst.msk [vmem:[#allocation3 + $0x78] sm:$0xff] %vm1840, %v6880
      %v6913 = vld [vmem:[#allocation2 + $0x2] sm:$0xff]
      %v6914 = vld [vmem:[#allocation2 + $0xa] sm:$0xff]
      %v6915 = vld [vmem:[#allocation2 + $0x1a] sm:$0xff]
      %v6916 = vld [vmem:[#allocation2 + $0x22] sm:$0xff]
      %v6917 = vld [vmem:[#allocation2 + $0x32] sm:$0xff]
      %v6918 = vld [vmem:[#allocation2 + $0x3a] sm:$0xff]
      %v6919 = vld [vmem:[#allocation2 + $0x4a] sm:$0xff]
      %v6920 = vld [vmem:[#allocation2 + $0x52] sm:$0xff]
      %v6921 = vld [vmem:[#allocation2 + $0x62] sm:$0xff]
      %v6922 = vld [vmem:[#allocation2 + $0x6a] sm:$0xff]
      %v6923 = vld [vmem:[#allocation2 + $0x7a] sm:$0xff]
      %v6924 = vld [vmem:[#allocation2 + $0x82] sm:$0xff]
      %v6925 = vld [vmem:[#allocation2 + $0x92] sm:$0xff]
      %v6926 = vld [vmem:[#allocation2 + $0x9a] sm:$0xff]
      %v6927 = vld [vmem:[#allocation2 + $0xaa] sm:$0xff]
      %v6928 = vld [vmem:[#allocation2 + $0xb2] sm:$0xff]
      %v6929 = vld [vmem:[#allocation2 + $0xc2] sm:$0xff]
      %v6930 = vld [vmem:[#allocation2 + $0xca] sm:$0xff]
      %v6931 = vld [vmem:[#allocation2 + $0xda] sm:$0xff]
      %v6932 = vld [vmem:[#allocation2 + $0xe2] sm:$0xff]
      %v6933 = vld [vmem:[#allocation2 + $0xf2] sm:$0xff]
      %v6934 = vld [vmem:[#allocation2 + $0xfa] sm:$0xff]
      %v6935 = vld [vmem:[#allocation2 + $0x10a] sm:$0xff]
      %v6936 = vld [vmem:[#allocation2 + $0x112] sm:$0xff]
      %v6937 = vld [vmem:[#allocation2 + $0x122] sm:$0xff]
      %v6938 = vld [vmem:[#allocation2 + $0x12a] sm:$0xff]
      %v6939 = vld [vmem:[#allocation2 + $0x13a] sm:$0xff]
      %v6940 = vld [vmem:[#allocation2 + $0x142] sm:$0xff]
      %v6941 = vld [vmem:[#allocation2 + $0x152] sm:$0xff]
      %v6942 = vld [vmem:[#allocation2 + $0x15a] sm:$0xff]
      %v6943 = vld [vmem:[#allocation2 + $0x16a] sm:$0xff]
      %v6944 = vld [vmem:[#allocation2 + $0x172] sm:$0xff]
      %v6945 = vpack.c.bf16 %v6914, %v6913
      %v6946 = vpack.c.bf16 %v6916, %v6915
      %v6947 = vpack.c.bf16 %v6918, %v6917
      %v6948 = vpack.c.bf16 %v6920, %v6919
      %v6949 = vpack.c.bf16 %v6922, %v6921
      %v6950 = vpack.c.bf16 %v6924, %v6923
      %v6951 = vpack.c.bf16 %v6926, %v6925
      %v6952 = vpack.c.bf16 %v6928, %v6927
      %v6953 = vpack.c.bf16 %v6930, %v6929
      %v6954 = vpack.c.bf16 %v6932, %v6931
      %v6955 = vpack.c.bf16 %v6934, %v6933
      %v6956 = vpack.c.bf16 %v6936, %v6935
      %v6957 = vpack.c.bf16 %v6938, %v6937
      %v6958 = vpack.c.bf16 %v6940, %v6939
      %v6959 = vpack.c.bf16 %v6942, %v6941
      %v6960 = vpack.c.bf16 %v6944, %v6943
      %6977 = vrot.lane.b32.xlu0 %v6945, 16
      %v6978 = vpop.permute.xlu0 %6977
      %6979 = vrot.lane.b32.xlu0 %v6946, 16
      %v6980 = vpop.permute.xlu0 %6979
      %6981 = vrot.lane.b32.xlu0 %v6947, 16
      %v6982 = vpop.permute.xlu0 %6981
      %6983 = vrot.lane.b32.xlu0 %v6948, 16
      %v6984 = vpop.permute.xlu0 %6983
      %6985 = vrot.lane.b32.xlu0 %v6949, 16
      %v6986 = vpop.permute.xlu0 %6985
      %6987 = vrot.lane.b32.xlu0 %v6950, 16
      %v6988 = vpop.permute.xlu0 %6987
      %6989 = vrot.lane.b32.xlu0 %v6951, 16
      %v6990 = vpop.permute.xlu0 %6989
      %6991 = vrot.lane.b32.xlu0 %v6952, 16
      %v6992 = vpop.permute.xlu0 %6991
      %6993 = vrot.lane.b32.xlu0 %v6953, 16
      %v6994 = vpop.permute.xlu0 %6993
      %6995 = vrot.lane.b32.xlu0 %v6954, 16
      %v6996 = vpop.permute.xlu0 %6995
      %6997 = vrot.lane.b32.xlu0 %v6955, 16
      %v6998 = vpop.permute.xlu0 %6997
      %6999 = vrot.lane.b32.xlu0 %v6956, 16
      %v7000 = vpop.permute.xlu0 %6999
      %7001 = vrot.lane.b32.xlu0 %v6957, 16
      %v7002 = vpop.permute.xlu0 %7001
      %7003 = vrot.lane.b32.xlu0 %v6958, 16
      %v7004 = vpop.permute.xlu0 %7003
      %7005 = vrot.lane.b32.xlu0 %v6959, 16
      %v7006 = vpop.permute.xlu0 %7005
      %7007 = vrot.lane.b32.xlu0 %v6960, 16
      %v7008 = vpop.permute.xlu0 %7007
      %7025 = vst.msk [vmem:[#allocation3] sm:$0xff] %vm1969, %v6978
      %7026 = vst.msk [vmem:[#allocation3 + $0x8] sm:$0xff] %vm1969, %v6980
      %7027 = vst.msk [vmem:[#allocation3 + $0x10] sm:$0xff] %vm1969, %v6982
      %7028 = vst.msk [vmem:[#allocation3 + $0x18] sm:$0xff] %vm1969, %v6984
      %7029 = vst.msk [vmem:[#allocation3 + $0x20] sm:$0xff] %vm1969, %v6986
      %7030 = vst.msk [vmem:[#allocation3 + $0x28] sm:$0xff] %vm1969, %v6988
      %7031 = vst.msk [vmem:[#allocation3 + $0x30] sm:$0xff] %vm1969, %v6990
      %7032 = vst.msk [vmem:[#allocation3 + $0x38] sm:$0xff] %vm1969, %v6992
      %7033 = vst.msk [vmem:[#allocation3 + $0x40] sm:$0xff] %vm1969, %v6994
      %7034 = vst.msk [vmem:[#allocation3 + $0x48] sm:$0xff] %vm1969, %v6996
      %7035 = vst.msk [vmem:[#allocation3 + $0x50] sm:$0xff] %vm1969, %v6998
      %7036 = vst.msk [vmem:[#allocation3 + $0x58] sm:$0xff] %vm1969, %v7000
      %7037 = vst.msk [vmem:[#allocation3 + $0x60] sm:$0xff] %vm1969, %v7002
      %7038 = vst.msk [vmem:[#allocation3 + $0x68] sm:$0xff] %vm1969, %v7004
      %7039 = vst.msk [vmem:[#allocation3 + $0x70] sm:$0xff] %vm1969, %v7006
      %7040 = vst.msk [vmem:[#allocation3 + $0x78] sm:$0xff] %vm1969, %v7008
      %v7041 = vld [vmem:[%s1631] sm:$0xff]
      %v7042 = vld [vmem:[%s1631 + $0x8] sm:$0xff]
      %v7043 = vld [vmem:[%s1631 + $0x18] sm:$0xff]
      %v7044 = vld [vmem:[%s1631 + $0x20] sm:$0xff]
      %v7045 = vld [vmem:[%s1631 + $0x30] sm:$0xff]
      %v7046 = vld [vmem:[%s1631 + $0x38] sm:$0xff]
      %v7047 = vld [vmem:[%s1631 + $0x48] sm:$0xff]
      %v7048 = vld [vmem:[%s1631 + $0x50] sm:$0xff]
      %v7049 = vld [vmem:[%s1631 + $0x60] sm:$0xff]
      %v7050 = vld [vmem:[%s1631 + $0x68] sm:$0xff]
      %v7051 = vld [vmem:[%s1631 + $0x78] sm:$0xff]
      %v7052 = vld [vmem:[%s1631 + $0x80] sm:$0xff]
      %v7053 = vld [vmem:[%s1631 + $0x90] sm:$0xff]
      %v7054 = vld [vmem:[%s1631 + $0x98] sm:$0xff]
      %v7055 = vld [vmem:[%s1631 + $0xa8] sm:$0xff]
      %v7056 = vld [vmem:[%s1631 + $0xb0] sm:$0xff]
      %v7057 = vld [vmem:[%s1631 + $0xc0] sm:$0xff]
      %v7058 = vld [vmem:[%s1631 + $0xc8] sm:$0xff]
      %v7059 = vld [vmem:[%s1631 + $0xd8] sm:$0xff]
      %v7060 = vld [vmem:[%s1631 + $0xe0] sm:$0xff]
      %v7061 = vld [vmem:[%s1631 + $0xf0] sm:$0xff]
      %v7062 = vld [vmem:[%s1631 + $0xf8] sm:$0xff]
      %v7063 = vld [vmem:[%s1631 + $0x108] sm:$0xff]
      %v7064 = vld [vmem:[%s1631 + $0x110] sm:$0xff]
      %v7065 = vld [vmem:[%s1631 + $0x120] sm:$0xff]
      %v7066 = vld [vmem:[%s1631 + $0x128] sm:$0xff]
      %v7067 = vld [vmem:[%s1631 + $0x138] sm:$0xff]
      %v7068 = vld [vmem:[%s1631 + $0x140] sm:$0xff]
      %v7069 = vld [vmem:[%s1631 + $0x150] sm:$0xff]
      %v7070 = vld [vmem:[%s1631 + $0x158] sm:$0xff]
      %v7071 = vld [vmem:[%s1631 + $0x168] sm:$0xff]
      %v7072 = vld [vmem:[%s1631 + $0x170] sm:$0xff]
      %v7073 = vpack.c.bf16 %v7042, %v7041
      %v7074 = vpack.c.bf16 %v7044, %v7043
      %v7075 = vpack.c.bf16 %v7046, %v7045
      %v7076 = vpack.c.bf16 %v7048, %v7047
      %v7077 = vpack.c.bf16 %v7050, %v7049
      %v7078 = vpack.c.bf16 %v7052, %v7051
      %v7079 = vpack.c.bf16 %v7054, %v7053
      %v7080 = vpack.c.bf16 %v7056, %v7055
      %v7081 = vpack.c.bf16 %v7058, %v7057
      %v7082 = vpack.c.bf16 %v7060, %v7059
      %v7083 = vpack.c.bf16 %v7062, %v7061
      %v7084 = vpack.c.bf16 %v7064, %v7063
      %v7085 = vpack.c.bf16 %v7066, %v7065
      %v7086 = vpack.c.bf16 %v7068, %v7067
      %v7087 = vpack.c.bf16 %v7070, %v7069
      %v7088 = vpack.c.bf16 %v7072, %v7071
      %7105 = vrot.lane.b32.xlu0 %v7073, 24
      %v7106 = vpop.permute.xlu0 %7105
      %7107 = vrot.lane.b32.xlu0 %v7074, 24
      %v7108 = vpop.permute.xlu0 %7107
      %7109 = vrot.lane.b32.xlu0 %v7075, 24
      %v7110 = vpop.permute.xlu0 %7109
      %7111 = vrot.lane.b32.xlu0 %v7076, 24
      %v7112 = vpop.permute.xlu0 %7111
      %7113 = vrot.lane.b32.xlu0 %v7077, 24
      %v7114 = vpop.permute.xlu0 %7113
      %7115 = vrot.lane.b32.xlu0 %v7078, 24
      %v7116 = vpop.permute.xlu0 %7115
      %7117 = vrot.lane.b32.xlu0 %v7079, 24
      %v7118 = vpop.permute.xlu0 %7117
      %7119 = vrot.lane.b32.xlu0 %v7080, 24
      %v7120 = vpop.permute.xlu0 %7119
      %7121 = vrot.lane.b32.xlu0 %v7081, 24
      %v7122 = vpop.permute.xlu0 %7121
      %7123 = vrot.lane.b32.xlu0 %v7082, 24
      %v7124 = vpop.permute.xlu0 %7123
      %7125 = vrot.lane.b32.xlu0 %v7083, 24
      %v7126 = vpop.permute.xlu0 %7125
      %7127 = vrot.lane.b32.xlu0 %v7084, 24
      %v7128 = vpop.permute.xlu0 %7127
      %7129 = vrot.lane.b32.xlu0 %v7085, 24
      %v7130 = vpop.permute.xlu0 %7129
      %7131 = vrot.lane.b32.xlu0 %v7086, 24
      %v7132 = vpop.permute.xlu0 %7131
      %7133 = vrot.lane.b32.xlu0 %v7087, 24
      %v7134 = vpop.permute.xlu0 %7133
      %7135 = vrot.lane.b32.xlu0 %v7088, 24
      %v7136 = vpop.permute.xlu0 %7135
      %7153 = vst.msk [vmem:[#allocation3] sm:$0xff] %vm2098, %v7106
      %7154 = vst.msk [vmem:[#allocation3 + $0x8] sm:$0xff] %vm2098, %v7108
      %7155 = vst.msk [vmem:[#allocation3 + $0x10] sm:$0xff] %vm2098, %v7110
      %7156 = vst.msk [vmem:[#allocation3 + $0x18] sm:$0xff] %vm2098, %v7112
      %7157 = vst.msk [vmem:[#allocation3 + $0x20] sm:$0xff] %vm2098, %v7114
      %7158 = vst.msk [vmem:[#allocation3 + $0x28] sm:$0xff] %vm2098, %v7116
      %7159 = vst.msk [vmem:[#allocation3 + $0x30] sm:$0xff] %vm2098, %v7118
      %7160 = vst.msk [vmem:[#allocation3 + $0x38] sm:$0xff] %vm2098, %v7120
      %7161 = vst.msk [vmem:[#allocation3 + $0x40] sm:$0xff] %vm2098, %v7122
      %7162 = vst.msk [vmem:[#allocation3 + $0x48] sm:$0xff] %vm2098, %v7124
      %7163 = vst.msk [vmem:[#allocation3 + $0x50] sm:$0xff] %vm2098, %v7126
      %7164 = vst.msk [vmem:[#allocation3 + $0x58] sm:$0xff] %vm2098, %v7128
      %7165 = vst.msk [vmem:[#allocation3 + $0x60] sm:$0xff] %vm2098, %v7130
      %7166 = vst.msk [vmem:[#allocation3 + $0x68] sm:$0xff] %vm2098, %v7132
      %7167 = vst.msk [vmem:[#allocation3 + $0x70] sm:$0xff] %vm2098, %v7134
      %7168 = vst.msk [vmem:[#allocation3 + $0x78] sm:$0xff] %vm2098, %v7136
      %v7169 = vld [vmem:[%s1631 + $0x1] sm:$0xff]
      %v7170 = vld [vmem:[%s1631 + $0x9] sm:$0xff]
      %v7171 = vld [vmem:[%s1631 + $0x19] sm:$0xff]
      %v7172 = vld [vmem:[%s1631 + $0x21] sm:$0xff]
      %v7173 = vld [vmem:[%s1631 + $0x31] sm:$0xff]
      %v7174 = vld [vmem:[%s1631 + $0x39] sm:$0xff]
      %v7175 = vld [vmem:[%s1631 + $0x49] sm:$0xff]
      %v7176 = vld [vmem:[%s1631 + $0x51] sm:$0xff]
      %v7177 = vld [vmem:[%s1631 + $0x61] sm:$0xff]
      %v7178 = vld [vmem:[%s1631 + $0x69] sm:$0xff]
      %v7179 = vld [vmem:[%s1631 + $0x79] sm:$0xff]
      %v7180 = vld [vmem:[%s1631 + $0x81] sm:$0xff]
      %v7181 = vld [vmem:[%s1631 + $0x91] sm:$0xff]
      %v7182 = vld [vmem:[%s1631 + $0x99] sm:$0xff]
      %v7183 = vld [vmem:[%s1631 + $0xa9] sm:$0xff]
      %v7184 = vld [vmem:[%s1631 + $0xb1] sm:$0xff]
      %v7185 = vld [vmem:[%s1631 + $0xc1] sm:$0xff]
      %v7186 = vld [vmem:[%s1631 + $0xc9] sm:$0xff]
      %v7187 = vld [vmem:[%s1631 + $0xd9] sm:$0xff]
      %v7188 = vld [vmem:[%s1631 + $0xe1] sm:$0xff]
      %v7189 = vld [vmem:[%s1631 + $0xf1] sm:$0xff]
      %v7190 = vld [vmem:[%s1631 + $0xf9] sm:$0xff]
      %v7191 = vld [vmem:[%s1631 + $0x109] sm:$0xff]
      %v7192 = vld [vmem:[%s1631 + $0x111] sm:$0xff]
      %v7193 = vld [vmem:[%s1631 + $0x121] sm:$0xff]
      %v7194 = vld [vmem:[%s1631 + $0x129] sm:$0xff]
      %v7195 = vld [vmem:[%s1631 + $0x139] sm:$0xff]
      %v7196 = vld [vmem:[%s1631 + $0x141] sm:$0xff]
      %v7197 = vld [vmem:[%s1631 + $0x151] sm:$0xff]
      %v7198 = vld [vmem:[%s1631 + $0x159] sm:$0xff]
      %v7199 = vld [vmem:[%s1631 + $0x169] sm:$0xff]
      %v7200 = vld [vmem:[%s1631 + $0x171] sm:$0xff]
      %v7201 = vpack.c.bf16 %v7170, %v7169
      %v7202 = vpack.c.bf16 %v7172, %v7171
      %v7203 = vpack.c.bf16 %v7174, %v7173
      %v7204 = vpack.c.bf16 %v7176, %v7175
      %v7205 = vpack.c.bf16 %v7178, %v7177
      %v7206 = vpack.c.bf16 %v7180, %v7179
      %v7207 = vpack.c.bf16 %v7182, %v7181
      %v7208 = vpack.c.bf16 %v7184, %v7183
      %v7209 = vpack.c.bf16 %v7186, %v7185
      %v7210 = vpack.c.bf16 %v7188, %v7187
      %v7211 = vpack.c.bf16 %v7190, %v7189
      %v7212 = vpack.c.bf16 %v7192, %v7191
      %v7213 = vpack.c.bf16 %v7194, %v7193
      %v7214 = vpack.c.bf16 %v7196, %v7195
      %v7215 = vpack.c.bf16 %v7198, %v7197
      %v7216 = vpack.c.bf16 %v7200, %v7199
      %7233 = vrot.lane.b32.xlu0 %v7201, 32
      %v7234 = vpop.permute.xlu0 %7233
      %7235 = vrot.lane.b32.xlu0 %v7202, 32
      %v7236 = vpop.permute.xlu0 %7235
      %7237 = vrot.lane.b32.xlu0 %v7203, 32
      %v7238 = vpop.permute.xlu0 %7237
      %7239 = vrot.lane.b32.xlu0 %v7204, 32
      %v7240 = vpop.permute.xlu0 %7239
      %7241 = vrot.lane.b32.xlu0 %v7205, 32
      %v7242 = vpop.permute.xlu0 %7241
      %7243 = vrot.lane.b32.xlu0 %v7206, 32
      %v7244 = vpop.permute.xlu0 %7243
      %7245 = vrot.lane.b32.xlu0 %v7207, 32
      %v7246 = vpop.permute.xlu0 %7245
      %7247 = vrot.lane.b32.xlu0 %v7208, 32
      %v7248 = vpop.permute.xlu0 %7247
      %7249 = vrot.lane.b32.xlu0 %v7209, 32
      %v7250 = vpop.permute.xlu0 %7249
      %7251 = vrot.lane.b32.xlu0 %v7210, 32
      %v7252 = vpop.permute.xlu0 %7251
      %7253 = vrot.lane.b32.xlu0 %v7211, 32
      %v7254 = vpop.permute.xlu0 %7253
      %7255 = vrot.lane.b32.xlu0 %v7212, 32
      %v7256 = vpop.permute.xlu0 %7255
      %7257 = vrot.lane.b32.xlu0 %v7213, 32
      %v7258 = vpop.permute.xlu0 %7257
      %7259 = vrot.lane.b32.xlu0 %v7214, 32
      %v7260 = vpop.permute.xlu0 %7259
      %7261 = vrot.lane.b32.xlu0 %v7215, 32
      %v7262 = vpop.permute.xlu0 %7261
      %7263 = vrot.lane.b32.xlu0 %v7216, 32
      %v7264 = vpop.permute.xlu0 %7263
      %7281 = vst.msk [vmem:[#allocation3] sm:$0xff] %vm2227, %v7234
      %7282 = vst.msk [vmem:[#allocation3 + $0x8] sm:$0xff] %vm2227, %v7236
      %7283 = vst.msk [vmem:[#allocation3 + $0x10] sm:$0xff] %vm2227, %v7238
      %7284 = vst.msk [vmem:[#allocation3 + $0x18] sm:$0xff] %vm2227, %v7240
      %7285 = vst.msk [vmem:[#allocation3 + $0x20] sm:$0xff] %vm2227, %v7242
      %7286 = vst.msk [vmem:[#allocation3 + $0x28] sm:$0xff] %vm2227, %v7244
      %7287 = vst.msk [vmem:[#allocation3 + $0x30] sm:$0xff] %vm2227, %v7246
      %7288 = vst.msk [vmem:[#allocation3 + $0x38] sm:$0xff] %vm2227, %v7248
      %7289 = vst.msk [vmem:[#allocation3 + $0x40] sm:$0xff] %vm2227, %v7250
      %7290 = vst.msk [vmem:[#allocation3 + $0x48] sm:$0xff] %vm2227, %v7252
      %7291 = vst.msk [vmem:[#allocation3 + $0x50] sm:$0xff] %vm2227, %v7254
      %7292 = vst.msk [vmem:[#allocation3 + $0x58] sm:$0xff] %vm2227, %v7256
      %7293 = vst.msk [vmem:[#allocation3 + $0x60] sm:$0xff] %vm2227, %v7258
      %7294 = vst.msk [vmem:[#allocation3 + $0x68] sm:$0xff] %vm2227, %v7260
      %7295 = vst.msk [vmem:[#allocation3 + $0x70] sm:$0xff] %vm2227, %v7262
      %7296 = vst.msk [vmem:[#allocation3 + $0x78] sm:$0xff] %vm2227, %v7264
      %v7297 = vld [vmem:[%s1631 + $0x2] sm:$0xff]
      %v7298 = vld [vmem:[%s1631 + $0xa] sm:$0xff]
      %v7299 = vld [vmem:[%s1631 + $0x1a] sm:$0xff]
      %v7300 = vld [vmem:[%s1631 + $0x22] sm:$0xff]
      %v7301 = vld [vmem:[%s1631 + $0x32] sm:$0xff]
      %v7302 = vld [vmem:[%s1631 + $0x3a] sm:$0xff]
      %v7303 = vld [vmem:[%s1631 + $0x4a] sm:$0xff]
      %v7304 = vld [vmem:[%s1631 + $0x52] sm:$0xff]
      %v7305 = vld [vmem:[%s1631 + $0x62] sm:$0xff]
      %v7306 = vld [vmem:[%s1631 + $0x6a] sm:$0xff]
      %v7307 = vld [vmem:[%s1631 + $0x7a] sm:$0xff]
      %v7308 = vld [vmem:[%s1631 + $0x82] sm:$0xff]
      %v7309 = vld [vmem:[%s1631 + $0x92] sm:$0xff]
      %v7310 = vld [vmem:[%s1631 + $0x9a] sm:$0xff]
      %v7311 = vld [vmem:[%s1631 + $0xaa] sm:$0xff]
      %v7312 = vld [vmem:[%s1631 + $0xb2] sm:$0xff]
      %v7313 = vld [vmem:[%s1631 + $0xc2] sm:$0xff]
      %v7314 = vld [vmem:[%s1631 + $0xca] sm:$0xff]
      %v7315 = vld [vmem:[%s1631 + $0xda] sm:$0xff]
      %v7316 = vld [vmem:[%s1631 + $0xe2] sm:$0xff]
      %v7317 = vld [vmem:[%s1631 + $0xf2] sm:$0xff]
      %v7318 = vld [vmem:[%s1631 + $0xfa] sm:$0xff]
      %v7319 = vld [vmem:[%s1631 + $0x10a] sm:$0xff]
      %v7320 = vld [vmem:[%s1631 + $0x112] sm:$0xff]
      %v7321 = vld [vmem:[%s1631 + $0x122] sm:$0xff]
      %v7322 = vld [vmem:[%s1631 + $0x12a] sm:$0xff]
      %v7323 = vld [vmem:[%s1631 + $0x13a] sm:$0xff]
      %v7324 = vld [vmem:[%s1631 + $0x142] sm:$0xff]
      %v7325 = vld [vmem:[%s1631 + $0x152] sm:$0xff]
      %v7326 = vld [vmem:[%s1631 + $0x15a] sm:$0xff]
      %v7327 = vld [vmem:[%s1631 + $0x16a] sm:$0xff]
      %v7328 = vld [vmem:[%s1631 + $0x172] sm:$0xff]
      %v7329 = vpack.c.bf16 %v7298, %v7297
      %v7330 = vpack.c.bf16 %v7300, %v7299
      %v7331 = vpack.c.bf16 %v7302, %v7301
      %v7332 = vpack.c.bf16 %v7304, %v7303
      %v7333 = vpack.c.bf16 %v7306, %v7305
      %v7334 = vpack.c.bf16 %v7308, %v7307
      %v7335 = vpack.c.bf16 %v7310, %v7309
      %v7336 = vpack.c.bf16 %v7312, %v7311
      %v7337 = vpack.c.bf16 %v7314, %v7313
      %v7338 = vpack.c.bf16 %v7316, %v7315
      %v7339 = vpack.c.bf16 %v7318, %v7317
      %v7340 = vpack.c.bf16 %v7320, %v7319
      %v7341 = vpack.c.bf16 %v7322, %v7321
      %v7342 = vpack.c.bf16 %v7324, %v7323
      %v7343 = vpack.c.bf16 %v7326, %v7325
      %v7344 = vpack.c.bf16 %v7328, %v7327
      %7361 = vrot.lane.b32.xlu0 %v7329, 40
      %v7362 = vpop.permute.xlu0 %7361
      %7363 = vrot.lane.b32.xlu0 %v7330, 40
      %v7364 = vpop.permute.xlu0 %7363
      %7365 = vrot.lane.b32.xlu0 %v7331, 40
      %v7366 = vpop.permute.xlu0 %7365
      %7367 = vrot.lane.b32.xlu0 %v7332, 40
      %v7368 = vpop.permute.xlu0 %7367
      %7369 = vrot.lane.b32.xlu0 %v7333, 40
      %v7370 = vpop.permute.xlu0 %7369
      %7371 = vrot.lane.b32.xlu0 %v7334, 40
      %v7372 = vpop.permute.xlu0 %7371
      %7373 = vrot.lane.b32.xlu0 %v7335, 40
      %v7374 = vpop.permute.xlu0 %7373
      %7375 = vrot.lane.b32.xlu0 %v7336, 40
      %v7376 = vpop.permute.xlu0 %7375
      %7377 = vrot.lane.b32.xlu0 %v7337, 40
      %v7378 = vpop.permute.xlu0 %7377
      %7379 = vrot.lane.b32.xlu0 %v7338, 40
      %v7380 = vpop.permute.xlu0 %7379
      %7381 = vrot.lane.b32.xlu0 %v7339, 40
      %v7382 = vpop.permute.xlu0 %7381
      %7383 = vrot.lane.b32.xlu0 %v7340, 40
      %v7384 = vpop.permute.xlu0 %7383
      %7385 = vrot.lane.b32.xlu0 %v7341, 40
      %v7386 = vpop.permute.xlu0 %7385
      %7387 = vrot.lane.b32.xlu0 %v7342, 40
      %v7388 = vpop.permute.xlu0 %7387
      %7389 = vrot.lane.b32.xlu0 %v7343, 40
      %v7390 = vpop.permute.xlu0 %7389
      %7391 = vrot.lane.b32.xlu0 %v7344, 40
      %v7392 = vpop.permute.xlu0 %7391
      %7409 = vst.msk [vmem:[#allocation3] sm:$0xff] %vm2356, %v7362
      %7410 = vst.msk [vmem:[#allocation3 + $0x8] sm:$0xff] %vm2356, %v7364
      %7411 = vst.msk [vmem:[#allocation3 + $0x10] sm:$0xff] %vm2356, %v7366
      %7412 = vst.msk [vmem:[#allocation3 + $0x18] sm:$0xff] %vm2356, %v7368
      %7413 = vst.msk [vmem:[#allocation3 + $0x20] sm:$0xff] %vm2356, %v7370
      %7414 = vst.msk [vmem:[#allocation3 + $0x28] sm:$0xff] %vm2356, %v7372
      %7415 = vst.msk [vmem:[#allocation3 + $0x30] sm:$0xff] %vm2356, %v7374
      %7416 = vst.msk [vmem:[#allocation3 + $0x38] sm:$0xff] %vm2356, %v7376
      %7417 = vst.msk [vmem:[#allocation3 + $0x40] sm:$0xff] %vm2356, %v7378
      %7418 = vst.msk [vmem:[#allocation3 + $0x48] sm:$0xff] %vm2356, %v7380
      %7419 = vst.msk [vmem:[#allocation3 + $0x50] sm:$0xff] %vm2356, %v7382
      %7420 = vst.msk [vmem:[#allocation3 + $0x58] sm:$0xff] %vm2356, %v7384
      %7421 = vst.msk [vmem:[#allocation3 + $0x60] sm:$0xff] %vm2356, %v7386
      %7422 = vst.msk [vmem:[#allocation3 + $0x68] sm:$0xff] %vm2356, %v7388
      %7423 = vst.msk [vmem:[#allocation3 + $0x70] sm:$0xff] %vm2356, %v7390
      %7424 = vst.msk [vmem:[#allocation3 + $0x78] sm:$0xff] %vm2356, %v7392
      %v7425 = vld [vmem:[%s2373] sm:$0xff]
      %v7426 = vld [vmem:[%s2373 + $0x8] sm:$0xff]
      %v7427 = vld [vmem:[%s2373 + $0x18] sm:$0xff]
      %v7428 = vld [vmem:[%s2373 + $0x20] sm:$0xff]
      %v7429 = vld [vmem:[%s2373 + $0x30] sm:$0xff]
      %v7430 = vld [vmem:[%s2373 + $0x38] sm:$0xff]
      %v7431 = vld [vmem:[%s2373 + $0x48] sm:$0xff]
      %v7432 = vld [vmem:[%s2373 + $0x50] sm:$0xff]
      %v7433 = vld [vmem:[%s2373 + $0x60] sm:$0xff]
      %v7434 = vld [vmem:[%s2373 + $0x68] sm:$0xff]
      %v7435 = vld [vmem:[%s2373 + $0x78] sm:$0xff]
      %v7436 = vld [vmem:[%s2373 + $0x80] sm:$0xff]
      %v7437 = vld [vmem:[%s2373 + $0x90] sm:$0xff]
      %v7438 = vld [vmem:[%s2373 + $0x98] sm:$0xff]
      %v7439 = vld [vmem:[%s2373 + $0xa8] sm:$0xff]
      %v7440 = vld [vmem:[%s2373 + $0xb0] sm:$0xff]
      %v7441 = vld [vmem:[%s2373 + $0xc0] sm:$0xff]
      %v7442 = vld [vmem:[%s2373 + $0xc8] sm:$0xff]
      %v7443 = vld [vmem:[%s2373 + $0xd8] sm:$0xff]
      %v7444 = vld [vmem:[%s2373 + $0xe0] sm:$0xff]
      %v7445 = vld [vmem:[%s2373 + $0xf0] sm:$0xff]
      %v7446 = vld [vmem:[%s2373 + $0xf8] sm:$0xff]
      %v7447 = vld [vmem:[%s2373 + $0x108] sm:$0xff]
      %v7448 = vld [vmem:[%s2373 + $0x110] sm:$0xff]
      %v7449 = vld [vmem:[%s2373 + $0x120] sm:$0xff]
      %v7450 = vld [vmem:[%s2373 + $0x128] sm:$0xff]
      %v7451 = vld [vmem:[%s2373 + $0x138] sm:$0xff]
      %v7452 = vld [vmem:[%s2373 + $0x140] sm:$0xff]
      %v7453 = vld [vmem:[%s2373 + $0x150] sm:$0xff]
      %v7454 = vld [vmem:[%s2373 + $0x158] sm:$0xff]
      %v7455 = vld [vmem:[%s2373 + $0x168] sm:$0xff]
      %v7456 = vld [vmem:[%s2373 + $0x170] sm:$0xff]
      %v7457 = vpack.c.bf16 %v7426, %v7425
      %v7458 = vpack.c.bf16 %v7428, %v7427
      %v7459 = vpack.c.bf16 %v7430, %v7429
      %v7460 = vpack.c.bf16 %v7432, %v7431
      %v7461 = vpack.c.bf16 %v7434, %v7433
      %v7462 = vpack.c.bf16 %v7436, %v7435
      %v7463 = vpack.c.bf16 %v7438, %v7437
      %v7464 = vpack.c.bf16 %v7440, %v7439
      %v7465 = vpack.c.bf16 %v7442, %v7441
      %v7466 = vpack.c.bf16 %v7444, %v7443
      %v7467 = vpack.c.bf16 %v7446, %v7445
      %v7468 = vpack.c.bf16 %v7448, %v7447
      %v7469 = vpack.c.bf16 %v7450, %v7449
      %v7470 = vpack.c.bf16 %v7452, %v7451
      %v7471 = vpack.c.bf16 %v7454, %v7453
      %v7472 = vpack.c.bf16 %v7456, %v7455
      %7489 = vrot.lane.b32.xlu0 %v7457, 48
      %v7490 = vpop.permute.xlu0 %7489
      %7491 = vrot.lane.b32.xlu0 %v7458, 48
      %v7492 = vpop.permute.xlu0 %7491
      %7493 = vrot.lane.b32.xlu0 %v7459, 48
      %v7494 = vpop.permute.xlu0 %7493
      %7495 = vrot.lane.b32.xlu0 %v7460, 48
      %v7496 = vpop.permute.xlu0 %7495
      %7497 = vrot.lane.b32.xlu0 %v7461, 48
      %v7498 = vpop.permute.xlu0 %7497
      %7499 = vrot.lane.b32.xlu0 %v7462, 48
      %v7500 = vpop.permute.xlu0 %7499
      %7501 = vrot.lane.b32.xlu0 %v7463, 48
      %v7502 = vpop.permute.xlu0 %7501
      %7503 = vrot.lane.b32.xlu0 %v7464, 48
      %v7504 = vpop.permute.xlu0 %7503
      %7505 = vrot.lane.b32.xlu0 %v7465, 48
      %v7506 = vpop.permute.xlu0 %7505
      %7507 = vrot.lane.b32.xlu0 %v7466, 48
      %v7508 = vpop.permute.xlu0 %7507
      %7509 = vrot.lane.b32.xlu0 %v7467, 48
      %v7510 = vpop.permute.xlu0 %7509
      %7511 = vrot.lane.b32.xlu0 %v7468, 48
      %v7512 = vpop.permute.xlu0 %7511
      %7513 = vrot.lane.b32.xlu0 %v7469, 48
      %v7514 = vpop.permute.xlu0 %7513
      %7515 = vrot.lane.b32.xlu0 %v7470, 48
      %v7516 = vpop.permute.xlu0 %7515
      %7517 = vrot.lane.b32.xlu0 %v7471, 48
      %v7518 = vpop.permute.xlu0 %7517
      %7519 = vrot.lane.b32.xlu0 %v7472, 48
      %v7520 = vpop.permute.xlu0 %7519
      %7537 = vst.msk [vmem:[#allocation3] sm:$0xff] %vm2486, %v7490
      %7538 = vst.msk [vmem:[#allocation3 + $0x8] sm:$0xff] %vm2486, %v7492
      %7539 = vst.msk [vmem:[#allocation3 + $0x10] sm:$0xff] %vm2486, %v7494
      %7540 = vst.msk [vmem:[#allocation3 + $0x18] sm:$0xff] %vm2486, %v7496
      %7541 = vst.msk [vmem:[#allocation3 + $0x20] sm:$0xff] %vm2486, %v7498
      %7542 = vst.msk [vmem:[#allocation3 + $0x28] sm:$0xff] %vm2486, %v7500
      %7543 = vst.msk [vmem:[#allocation3 + $0x30] sm:$0xff] %vm2486, %v7502
      %7544 = vst.msk [vmem:[#allocation3 + $0x38] sm:$0xff] %vm2486, %v7504
      %7545 = vst.msk [vmem:[#allocation3 + $0x40] sm:$0xff] %vm2486, %v7506
      %7546 = vst.msk [vmem:[#allocation3 + $0x48] sm:$0xff] %vm2486, %v7508
      %7547 = vst.msk [vmem:[#allocation3 + $0x50] sm:$0xff] %vm2486, %v7510
      %7548 = vst.msk [vmem:[#allocation3 + $0x58] sm:$0xff] %vm2486, %v7512
      %7549 = vst.msk [vmem:[#allocation3 + $0x60] sm:$0xff] %vm2486, %v7514
      %7550 = vst.msk [vmem:[#allocation3 + $0x68] sm:$0xff] %vm2486, %v7516
      %7551 = vst.msk [vmem:[#allocation3 + $0x70] sm:$0xff] %vm2486, %v7518
      %7552 = vst.msk [vmem:[#allocation3 + $0x78] sm:$0xff] %vm2486, %v7520
      %v7553 = vld [vmem:[%s2373 + $0x1] sm:$0xff]
      %v7554 = vld [vmem:[%s2373 + $0x9] sm:$0xff]
      %v7555 = vld [vmem:[%s2373 + $0x19] sm:$0xff]
      %v7556 = vld [vmem:[%s2373 + $0x21] sm:$0xff]
      %v7557 = vld [vmem:[%s2373 + $0x31] sm:$0xff]
      %v7558 = vld [vmem:[%s2373 + $0x39] sm:$0xff]
      %v7559 = vld [vmem:[%s2373 + $0x49] sm:$0xff]
      %v7560 = vld [vmem:[%s2373 + $0x51] sm:$0xff]
      %v7561 = vld [vmem:[%s2373 + $0x61] sm:$0xff]
      %v7562 = vld [vmem:[%s2373 + $0x69] sm:$0xff]
      %v7563 = vld [vmem:[%s2373 + $0x79] sm:$0xff]
      %v7564 = vld [vmem:[%s2373 + $0x81] sm:$0xff]
      %v7565 = vld [vmem:[%s2373 + $0x91] sm:$0xff]
      %v7566 = vld [vmem:[%s2373 + $0x99] sm:$0xff]
      %v7567 = vld [vmem:[%s2373 + $0xa9] sm:$0xff]
      %v7568 = vld [vmem:[%s2373 + $0xb1] sm:$0xff]
      %v7569 = vld [vmem:[%s2373 + $0xc1] sm:$0xff]
      %v7570 = vld [vmem:[%s2373 + $0xc9] sm:$0xff]
      %v7571 = vld [vmem:[%s2373 + $0xd9] sm:$0xff]
      %v7572 = vld [vmem:[%s2373 + $0xe1] sm:$0xff]
      %v7573 = vld [vmem:[%s2373 + $0xf1] sm:$0xff]
      %v7574 = vld [vmem:[%s2373 + $0xf9] sm:$0xff]
      %v7575 = vld [vmem:[%s2373 + $0x109] sm:$0xff]
      %v7576 = vld [vmem:[%s2373 + $0x111] sm:$0xff]
      %v7577 = vld [vmem:[%s2373 + $0x121] sm:$0xff]
      %v7578 = vld [vmem:[%s2373 + $0x129] sm:$0xff]
      %v7579 = vld [vmem:[%s2373 + $0x139] sm:$0xff]
      %v7580 = vld [vmem:[%s2373 + $0x141] sm:$0xff]
      %v7581 = vld [vmem:[%s2373 + $0x151] sm:$0xff]
      %v7582 = vld [vmem:[%s2373 + $0x159] sm:$0xff]
      %v7583 = vld [vmem:[%s2373 + $0x169] sm:$0xff]
      %v7584 = vld [vmem:[%s2373 + $0x171] sm:$0xff]
      %v7585 = vpack.c.bf16 %v7554, %v7553
      %v7586 = vpack.c.bf16 %v7556, %v7555
      %v7587 = vpack.c.bf16 %v7558, %v7557
      %v7588 = vpack.c.bf16 %v7560, %v7559
      %v7589 = vpack.c.bf16 %v7562, %v7561
      %v7590 = vpack.c.bf16 %v7564, %v7563
      %v7591 = vpack.c.bf16 %v7566, %v7565
      %v7592 = vpack.c.bf16 %v7568, %v7567
      %v7593 = vpack.c.bf16 %v7570, %v7569
      %v7594 = vpack.c.bf16 %v7572, %v7571
      %v7595 = vpack.c.bf16 %v7574, %v7573
      %v7596 = vpack.c.bf16 %v7576, %v7575
      %v7597 = vpack.c.bf16 %v7578, %v7577
      %v7598 = vpack.c.bf16 %v7580, %v7579
      %v7599 = vpack.c.bf16 %v7582, %v7581
      %v7600 = vpack.c.bf16 %v7584, %v7583
      %7617 = vrot.lane.b32.xlu0 %v7585, 56
      %v7618 = vpop.permute.xlu0 %7617
      %7619 = vrot.lane.b32.xlu0 %v7586, 56
      %v7620 = vpop.permute.xlu0 %7619
      %7621 = vrot.lane.b32.xlu0 %v7587, 56
      %v7622 = vpop.permute.xlu0 %7621
      %7623 = vrot.lane.b32.xlu0 %v7588, 56
      %v7624 = vpop.permute.xlu0 %7623
      %7625 = vrot.lane.b32.xlu0 %v7589, 56
      %v7626 = vpop.permute.xlu0 %7625
      %7627 = vrot.lane.b32.xlu0 %v7590, 56
      %v7628 = vpop.permute.xlu0 %7627
      %7629 = vrot.lane.b32.xlu0 %v7591, 56
      %v7630 = vpop.permute.xlu0 %7629
      %7631 = vrot.lane.b32.xlu0 %v7592, 56
      %v7632 = vpop.permute.xlu0 %7631
      %7633 = vrot.lane.b32.xlu0 %v7593, 56
      %v7634 = vpop.permute.xlu0 %7633
      %7635 = vrot.lane.b32.xlu0 %v7594, 56
      %v7636 = vpop.permute.xlu0 %7635
      %7637 = vrot.lane.b32.xlu0 %v7595, 56
      %v7638 = vpop.permute.xlu0 %7637
      %7639 = vrot.lane.b32.xlu0 %v7596, 56
      %v7640 = vpop.permute.xlu0 %7639
      %7641 = vrot.lane.b32.xlu0 %v7597, 56
      %v7642 = vpop.permute.xlu0 %7641
      %7643 = vrot.lane.b32.xlu0 %v7598, 56
      %v7644 = vpop.permute.xlu0 %7643
      %7645 = vrot.lane.b32.xlu0 %v7599, 56
      %v7646 = vpop.permute.xlu0 %7645
      %7647 = vrot.lane.b32.xlu0 %v7600, 56
      %v7648 = vpop.permute.xlu0 %7647
      %7665 = vst.msk [vmem:[#allocation3] sm:$0xff] %vm2615, %v7618
      %7666 = vst.msk [vmem:[#allocation3 + $0x8] sm:$0xff] %vm2615, %v7620
      %7667 = vst.msk [vmem:[#allocation3 + $0x10] sm:$0xff] %vm2615, %v7622
      %7668 = vst.msk [vmem:[#allocation3 + $0x18] sm:$0xff] %vm2615, %v7624
      %7669 = vst.msk [vmem:[#allocation3 + $0x20] sm:$0xff] %vm2615, %v7626
      %7670 = vst.msk [vmem:[#allocation3 + $0x28] sm:$0xff] %vm2615, %v7628
      %7671 = vst.msk [vmem:[#allocation3 + $0x30] sm:$0xff] %vm2615, %v7630
      %7672 = vst.msk [vmem:[#allocation3 + $0x38] sm:$0xff] %vm2615, %v7632
      %7673 = vst.msk [vmem:[#allocation3 + $0x40] sm:$0xff] %vm2615, %v7634
      %7674 = vst.msk [vmem:[#allocation3 + $0x48] sm:$0xff] %vm2615, %v7636
      %7675 = vst.msk [vmem:[#allocation3 + $0x50] sm:$0xff] %vm2615, %v7638
      %7676 = vst.msk [vmem:[#allocation3 + $0x58] sm:$0xff] %vm2615, %v7640
      %7677 = vst.msk [vmem:[#allocation3 + $0x60] sm:$0xff] %vm2615, %v7642
      %7678 = vst.msk [vmem:[#allocation3 + $0x68] sm:$0xff] %vm2615, %v7644
      %7679 = vst.msk [vmem:[#allocation3 + $0x70] sm:$0xff] %vm2615, %v7646
      %7680 = vst.msk [vmem:[#allocation3 + $0x78] sm:$0xff] %vm2615, %v7648
      %v7681 = vld [vmem:[%s2373 + $0x2] sm:$0xff]
      %v7682 = vld [vmem:[%s2373 + $0xa] sm:$0xff]
      %v7683 = vld [vmem:[%s2373 + $0x1a] sm:$0xff]
      %v7684 = vld [vmem:[%s2373 + $0x22] sm:$0xff]
      %v7685 = vld [vmem:[%s2373 + $0x32] sm:$0xff]
      %v7686 = vld [vmem:[%s2373 + $0x3a] sm:$0xff]
      %v7687 = vld [vmem:[%s2373 + $0x4a] sm:$0xff]
      %v7688 = vld [vmem:[%s2373 + $0x52] sm:$0xff]
      %v7689 = vld [vmem:[%s2373 + $0x62] sm:$0xff]
      %v7690 = vld [vmem:[%s2373 + $0x6a] sm:$0xff]
      %v7691 = vld [vmem:[%s2373 + $0x7a] sm:$0xff]
      %v7692 = vld [vmem:[%s2373 + $0x82] sm:$0xff]
      %v7693 = vld [vmem:[%s2373 + $0x92] sm:$0xff]
      %v7694 = vld [vmem:[%s2373 + $0x9a] sm:$0xff]
      %v7695 = vld [vmem:[%s2373 + $0xaa] sm:$0xff]
      %v7696 = vld [vmem:[%s2373 + $0xb2] sm:$0xff]
      %v7697 = vld [vmem:[%s2373 + $0xc2] sm:$0xff]
      %v7698 = vld [vmem:[%s2373 + $0xca] sm:$0xff]
      %v7699 = vld [vmem:[%s2373 + $0xda] sm:$0xff]
      %v7700 = vld [vmem:[%s2373 + $0xe2] sm:$0xff]
      %v7701 = vld [vmem:[%s2373 + $0xf2] sm:$0xff]
      %v7702 = vld [vmem:[%s2373 + $0xfa] sm:$0xff]
      %v7703 = vld [vmem:[%s2373 + $0x10a] sm:$0xff]
      %v7704 = vld [vmem:[%s2373 + $0x112] sm:$0xff]
      %v7705 = vld [vmem:[%s2373 + $0x122] sm:$0xff]
      %v7706 = vld [vmem:[%s2373 + $0x12a] sm:$0xff]
      %v7707 = vld [vmem:[%s2373 + $0x13a] sm:$0xff]
      %v7708 = vld [vmem:[%s2373 + $0x142] sm:$0xff]
      %v7709 = vld [vmem:[%s2373 + $0x152] sm:$0xff]
      %v7710 = vld [vmem:[%s2373 + $0x15a] sm:$0xff]
      %v7711 = vld [vmem:[%s2373 + $0x16a] sm:$0xff]
      %v7712 = vld [vmem:[%s2373 + $0x172] sm:$0xff]
      %v7713 = vpack.c.bf16 %v7682, %v7681
      %v7714 = vpack.c.bf16 %v7684, %v7683
      %v7715 = vpack.c.bf16 %v7686, %v7685
      %v7716 = vpack.c.bf16 %v7688, %v7687
      %v7717 = vpack.c.bf16 %v7690, %v7689
      %v7718 = vpack.c.bf16 %v7692, %v7691
      %v7719 = vpack.c.bf16 %v7694, %v7693
      %v7720 = vpack.c.bf16 %v7696, %v7695
      %v7721 = vpack.c.bf16 %v7698, %v7697
      %v7722 = vpack.c.bf16 %v7700, %v7699
      %v7723 = vpack.c.bf16 %v7702, %v7701
      %v7724 = vpack.c.bf16 %v7704, %v7703
      %v7725 = vpack.c.bf16 %v7706, %v7705
      %v7726 = vpack.c.bf16 %v7708, %v7707
      %v7727 = vpack.c.bf16 %v7710, %v7709
      %v7728 = vpack.c.bf16 %v7712, %v7711
      %7745 = vrot.lane.b32.xlu0 %v7713, 64
      %v7746 = vpop.permute.xlu0 %7745
      %7747 = vrot.lane.b32.xlu0 %v7714, 64
      %v7748 = vpop.permute.xlu0 %7747
      %7749 = vrot.lane.b32.xlu0 %v7715, 64
      %v7750 = vpop.permute.xlu0 %7749
      %7751 = vrot.lane.b32.xlu0 %v7716, 64
      %v7752 = vpop.permute.xlu0 %7751
      %7753 = vrot.lane.b32.xlu0 %v7717, 64
      %v7754 = vpop.permute.xlu0 %7753
      %7755 = vrot.lane.b32.xlu0 %v7718, 64
      %v7756 = vpop.permute.xlu0 %7755
      %7757 = vrot.lane.b32.xlu0 %v7719, 64
      %v7758 = vpop.permute.xlu0 %7757
      %7759 = vrot.lane.b32.xlu0 %v7720, 64
      %v7760 = vpop.permute.xlu0 %7759
      %7761 = vrot.lane.b32.xlu0 %v7721, 64
      %v7762 = vpop.permute.xlu0 %7761
      %7763 = vrot.lane.b32.xlu0 %v7722, 64
      %v7764 = vpop.permute.xlu0 %7763
      %7765 = vrot.lane.b32.xlu0 %v7723, 64
      %v7766 = vpop.permute.xlu0 %7765
      %7767 = vrot.lane.b32.xlu0 %v7724, 64
      %v7768 = vpop.permute.xlu0 %7767
      %7769 = vrot.lane.b32.xlu0 %v7725, 64
      %v7770 = vpop.permute.xlu0 %7769
      %7771 = vrot.lane.b32.xlu0 %v7726, 64
      %v7772 = vpop.permute.xlu0 %7771
      %7773 = vrot.lane.b32.xlu0 %v7727, 64
      %v7774 = vpop.permute.xlu0 %7773
      %7775 = vrot.lane.b32.xlu0 %v7728, 64
      %v7776 = vpop.permute.xlu0 %7775
      %7793 = vst.msk [vmem:[#allocation3] sm:$0xff] %vm2744, %v7746
      %7794 = vst.msk [vmem:[#allocation3 + $0x8] sm:$0xff] %vm2744, %v7748
      %7795 = vst.msk [vmem:[#allocation3 + $0x10] sm:$0xff] %vm2744, %v7750
      %7796 = vst.msk [vmem:[#allocation3 + $0x18] sm:$0xff] %vm2744, %v7752
      %7797 = vst.msk [vmem:[#allocation3 + $0x20] sm:$0xff] %vm2744, %v7754
      %7798 = vst.msk [vmem:[#allocation3 + $0x28] sm:$0xff] %vm2744, %v7756
      %7799 = vst.msk [vmem:[#allocation3 + $0x30] sm:$0xff] %vm2744, %v7758
      %7800 = vst.msk [vmem:[#allocation3 + $0x38] sm:$0xff] %vm2744, %v7760
      %7801 = vst.msk [vmem:[#allocation3 + $0x40] sm:$0xff] %vm2744, %v7762
      %7802 = vst.msk [vmem:[#allocation3 + $0x48] sm:$0xff] %vm2744, %v7764
      %7803 = vst.msk [vmem:[#allocation3 + $0x50] sm:$0xff] %vm2744, %v7766
      %7804 = vst.msk [vmem:[#allocation3 + $0x58] sm:$0xff] %vm2744, %v7768
      %7805 = vst.msk [vmem:[#allocation3 + $0x60] sm:$0xff] %vm2744, %v7770
      %7806 = vst.msk [vmem:[#allocation3 + $0x68] sm:$0xff] %vm2744, %v7772
      %7807 = vst.msk [vmem:[#allocation3 + $0x70] sm:$0xff] %vm2744, %v7774
      %7808 = vst.msk [vmem:[#allocation3 + $0x78] sm:$0xff] %vm2744, %v7776
      %v7809 = vld [vmem:[#allocation3] sm:$0xff]
      %v7810 = vld [vmem:[#allocation3 + $0x8] sm:$0xff]
      %v7811 = vld [vmem:[#allocation3 + $0x10] sm:$0xff]
      %v7812 = vld [vmem:[#allocation3 + $0x18] sm:$0xff]
      %v7813 = vld [vmem:[#allocation3 + $0x20] sm:$0xff]
      %v7814 = vld [vmem:[#allocation3 + $0x28] sm:$0xff]
      %v7815 = vld [vmem:[#allocation3 + $0x30] sm:$0xff]
      %v7816 = vld [vmem:[#allocation3 + $0x38] sm:$0xff]
      %v7817 = vld [vmem:[#allocation3 + $0x40] sm:$0xff]
      %v7818 = vld [vmem:[#allocation3 + $0x48] sm:$0xff]
      %v7819 = vld [vmem:[#allocation3 + $0x50] sm:$0xff]
      %v7820 = vld [vmem:[#allocation3 + $0x58] sm:$0xff]
      %v7821 = vld [vmem:[#allocation3 + $0x60] sm:$0xff]
      %v7822 = vld [vmem:[#allocation3 + $0x68] sm:$0xff]
      %v7823 = vld [vmem:[#allocation3 + $0x70] sm:$0xff]
      %v7824 = vld [vmem:[#allocation3 + $0x78] sm:$0xff]
      %s7825 = scalar_lea.vmem %s3, 108
      %v7826 = vld [vmem:[%s7825] sm:$0xf]
      %v7827 = vld [vmem:[%s7825 + $0x4] sm:$0xf]
      %v7828 = vld [vmem:[%s7825 + $0x8] sm:$0xf]
      %v7829 = vld [vmem:[%s7825 + $0xc] sm:$0xf]
      %v7830 = vld [vmem:[%s7825 + $0x10] sm:$0xf]
      %v7831 = vld [vmem:[%s7825 + $0x14] sm:$0xf]
      %v7832 = vld [vmem:[%s7825 + $0x18] sm:$0xf]
      %v7833 = vld [vmem:[%s7825 + $0x1c] sm:$0xf]
      %v7834 = vld [vmem:[%s7825 + $0x20] sm:$0xf]
      %s7835 = scalar_lea.vmem %s4, 3
      %v7836 = vld [vmem:[%s7835] sm:$0x1]
      %v7838 = vlaneseq
      %v7839 = vshrl.u32 %v7838, 7
      %v7840 = vsub.s32 0, %v7839
      %v7841 = vrot.slane %v7836, %v7840
      %v7852 = vunpack.c.l.b16 %v7826
      %v7853 = vunpack.c.l.b16 %v7827
      %v7854 = vunpack.c.l.b16 %v7828
      %v7855 = vunpack.c.l.b16 %v7829
      %v7856 = vunpack.c.l.b16 %v7830
      %v7857 = vunpack.c.l.b16 %v7831
      %v7858 = vunpack.c.l.b16 %v7832
      %v7859 = vunpack.c.l.b16 %v7833
      %v7860 = vunpack.c.l.b16 %v7834
      %v7861 = vpack.c.b16 %v7853, %v7852
      %v7862 = vpack.c.b16 %v7855, %v7854
      %v7863 = vpack.c.b16 %v7857, %v7856
      %v7864 = vpack.c.b16 %v7859, %v7858
      %v7865 = vpack.c.b16 %v7860, %v7860
      %v7871 = vsel %vm2820, %v7809, 0
      %v7874 = vsel %vm2820, %v7810, 0
      %v7877 = vsel %vm2820, %v7811, 0
      %v7880 = vsel %vm2820, %v7812, 0
      %v7883 = vsel %vm2820, %v7813, 0
      %v7886 = vsel %vm2820, %v7814, 0
      %v7889 = vsel %vm2820, %v7815, 0
      %v7892 = vsel %vm2820, %v7816, 0
      %v7895 = vsel %vm2820, %v7817, 0
      %v7898 = vsel %vm2820, %v7818, 0
      %v7901 = vsel %vm2820, %v7819, 0
      %v7904 = vsel %vm2820, %v7820, 0
      %v7907 = vsel %vm2820, %v7821, 0
      %v7910 = vsel %vm2820, %v7822, 0
      %v7913 = vsel %vm2820, %v7823, 0
      %v7916 = vsel %vm2820, %v7824, 0
      %v7919 = vsel %vm1254, %v7865, 0
      %7921 = vmatprep.subr.bf16.mxu0 0
      %7922 = vmatpush1.bf16.msra.mxu0 %v7861
      %7923 = vmatprep.subr.bf16.mxu0 0
      %7924 = vmatpush1.bf16.msra.mxu0 %v7862
      %7925 = vmatprep.subr.bf16.mxu0 0
      %7926 = vmatpush1.bf16.msra.mxu0 %v7863
      %7927 = vmatprep.subr.bf16.mxu0 0
      %7928 = vmatpush1.bf16.msra.mxu0 %v7864
      %7929 = vmatprep.subr.bf16.mxu0 0
      %7930 = vmatpush1.bf16.msra.mxu0 %v7919
      %7931 = vmatprep.subr.bf16.mxu0 0
      %7932 = vmatpush1.bf16.msra.mxu0 0
      %7933 = vmatprep.subr.bf16.mxu0 0
      %7934 = vmatpush1.bf16.msra.mxu0 0
      %7935 = vmatprep.subr.bf16.mxu0 0
      %7936 = vmatpush1.bf16.msra.mxu0 0
      %7937 = vmatprep.subr.bf16.mxu0 0
      %7938 = vmatpush1.bf16.msra.mxu0 0
      %7939 = vmatprep.subr.bf16.mxu0 0
      %7940 = vmatpush1.bf16.msra.mxu0 0
      %7941 = vmatprep.subr.bf16.mxu0 0
      %7942 = vmatpush1.bf16.msra.mxu0 0
      %7943 = vmatprep.subr.bf16.mxu0 0
      %7944 = vmatpush1.bf16.msra.mxu0 0
      %7945 = vmatprep.subr.bf16.mxu0 0
      %7946 = vmatpush1.bf16.msra.mxu0 0
      %7947 = vmatprep.subr.bf16.mxu0 0
      %7948 = vmatpush1.bf16.msra.mxu0 0
      %7949 = vmatprep.subr.bf16.mxu0 0
      %7950 = vmatpush1.bf16.msra.mxu0 0
      %7951 = vmatprep.subr.bf16.mxu0 0
      %7952 = vmatpush1.bf16.msra.mxu0 0
      %7953 = vmatprep.mubr.bf16.mxu0 0
      %7954 = vmatmul.mubr.bf16.gmra.mrb[0].mxu0 %v7871
      %v7955 = vpop.f32.mrb[0].mxu0
      %v7956 = vadd.f32 %v7841, %v7955
      %v7957 = vpop.f32.mrb[0].mxu0
      %v7958 = vpop.f32.mrb[0].mxu0
      %v7959 = vadd.f32 %v7841, %v7958
      %v7960 = vpop.f32.mrb[0].mxu0
      %7961 = vmatprep.mubr.bf16.mxu0 0
      %7962 = vmatmul.mubr.bf16.gmra.mrb[0].mxu0 %v7874
      %v7963 = vpop.f32.mrb[0].mxu0
      %v7964 = vadd.f32 %v7841, %v7963
      %v7965 = vpop.f32.mrb[0].mxu0
      %v7966 = vpop.f32.mrb[0].mxu0
      %v7967 = vadd.f32 %v7841, %v7966
      %v7968 = vpop.f32.mrb[0].mxu0
      %7969 = vmatprep.mubr.bf16.mxu0 0
      %7970 = vmatmul.mubr.bf16.gmra.mrb[0].mxu0 %v7877
      %v7971 = vpop.f32.mrb[0].mxu0
      %v7972 = vadd.f32 %v7841, %v7971
      %v7973 = vpop.f32.mrb[0].mxu0
      %v7974 = vpop.f32.mrb[0].mxu0
      %v7975 = vadd.f32 %v7841, %v7974
      %v7976 = vpop.f32.mrb[0].mxu0
      %7977 = vmatprep.mubr.bf16.mxu0 0
      %7978 = vmatmul.mubr.bf16.gmra.mrb[0].mxu0 %v7880
      %v7979 = vpop.f32.mrb[0].mxu0
      %v7980 = vadd.f32 %v7841, %v7979
      %v7981 = vpop.f32.mrb[0].mxu0
      %v7982 = vpop.f32.mrb[0].mxu0
      %v7983 = vadd.f32 %v7841, %v7982
      %v7984 = vpop.f32.mrb[0].mxu0
      %7985 = vmatprep.mubr.bf16.mxu0 0
      %7986 = vmatmul.mubr.bf16.gmra.mrb[0].mxu0 %v7883
      %v7987 = vpop.f32.mrb[0].mxu0
      %v7988 = vadd.f32 %v7841, %v7987
      %v7989 = vpop.f32.mrb[0].mxu0
      %v7990 = vpop.f32.mrb[0].mxu0
      %v7991 = vadd.f32 %v7841, %v7990
      %v7992 = vpop.f32.mrb[0].mxu0
      %7993 = vmatprep.mubr.bf16.mxu0 0
      %7994 = vmatmul.mubr.bf16.gmra.mrb[0].mxu0 %v7886
      %v7995 = vpop.f32.mrb[0].mxu0
      %v7996 = vadd.f32 %v7841, %v7995
      %v7997 = vpop.f32.mrb[0].mxu0
      %v7998 = vpop.f32.mrb[0].mxu0
      %v7999 = vadd.f32 %v7841, %v7998
      %v8000 = vpop.f32.mrb[0].mxu0
      %8001 = vmatprep.mubr.bf16.mxu0 0
      %8002 = vmatmul.mubr.bf16.gmra.mrb[0].mxu0 %v7889
      %v8003 = vpop.f32.mrb[0].mxu0
      %v8004 = vadd.f32 %v7841, %v8003
      %v8005 = vpop.f32.mrb[0].mxu0
      %v8006 = vpop.f32.mrb[0].mxu0
      %v8007 = vadd.f32 %v7841, %v8006
      %v8008 = vpop.f32.mrb[0].mxu0
      %8009 = vmatprep.mubr.bf16.mxu0 0
      %8010 = vmatmul.mubr.bf16.gmra.mrb[0].mxu0 %v7892
      %v8011 = vpop.f32.mrb[0].mxu0
      %v8012 = vadd.f32 %v7841, %v8011
      %v8013 = vpop.f32.mrb[0].mxu0
      %v8014 = vpop.f32.mrb[0].mxu0
      %v8015 = vadd.f32 %v7841, %v8014
      %v8016 = vpop.f32.mrb[0].mxu0
      %8017 = vmatprep.mubr.bf16.mxu0 0
      %8018 = vmatmul.mubr.bf16.gmra.mrb[0].mxu0 %v7895
      %v8019 = vpop.f32.mrb[0].mxu0
      %v8020 = vadd.f32 %v7841, %v8019
      %v8021 = vpop.f32.mrb[0].mxu0
      %v8022 = vpop.f32.mrb[0].mxu0
      %v8023 = vadd.f32 %v7841, %v8022
      %v8024 = vpop.f32.mrb[0].mxu0
      %8025 = vmatprep.mubr.bf16.mxu0 0
      %8026 = vmatmul.mubr.bf16.gmra.mrb[0].mxu0 %v7898
      %v8027 = vpop.f32.mrb[0].mxu0
      %v8028 = vadd.f32 %v7841, %v8027
      %v8029 = vpop.f32.mrb[0].mxu0
      %v8030 = vpop.f32.mrb[0].mxu0
      %v8031 = vadd.f32 %v7841, %v8030
      %v8032 = vpop.f32.mrb[0].mxu0
      %8033 = vmatprep.mubr.bf16.mxu0 0
      %8034 = vmatmul.mubr.bf16.gmra.mrb[0].mxu0 %v7901
      %v8035 = vpop.f32.mrb[0].mxu0
      %v8036 = vadd.f32 %v7841, %v8035
      %v8037 = vpop.f32.mrb[0].mxu0
      %v8038 = vpop.f32.mrb[0].mxu0
      %v8039 = vadd.f32 %v7841, %v8038
      %v8040 = vpop.f32.mrb[0].mxu0
      %8041 = vmatprep.mubr.bf16.mxu0 0
      %8042 = vmatmul.mubr.bf16.gmra.mrb[0].mxu0 %v7904
      %v8043 = vpop.f32.mrb[0].mxu0
      %v8044 = vadd.f32 %v7841, %v8043
      %v8045 = vpop.f32.mrb[0].mxu0
      %v8046 = vpop.f32.mrb[0].mxu0
      %v8047 = vadd.f32 %v7841, %v8046
      %v8048 = vpop.f32.mrb[0].mxu0
      %8049 = vmatprep.mubr.bf16.mxu0 0
      %8050 = vmatmul.mubr.bf16.gmra.mrb[0].mxu0 %v7907
      %v8051 = vpop.f32.mrb[0].mxu0
      %v8052 = vadd.f32 %v7841, %v8051
      %v8053 = vpop.f32.mrb[0].mxu0
      %v8054 = vpop.f32.mrb[0].mxu0
      %v8055 = vadd.f32 %v7841, %v8054
      %v8056 = vpop.f32.mrb[0].mxu0
      %8057 = vmatprep.mubr.bf16.mxu0 0
      %8058 = vmatmul.mubr.bf16.gmra.mrb[0].mxu0 %v7910
      %v8059 = vpop.f32.mrb[0].mxu0
      %v8060 = vadd.f32 %v7841, %v8059
      %v8061 = vpop.f32.mrb[0].mxu0
      %v8062 = vpop.f32.mrb[0].mxu0
      %v8063 = vadd.f32 %v7841, %v8062
      %v8064 = vpop.f32.mrb[0].mxu0
      %8065 = vmatprep.mubr.bf16.mxu0 0
      %8066 = vmatmul.mubr.bf16.gmra.mrb[0].mxu0 %v7913
      %v8067 = vpop.f32.mrb[0].mxu0
      %v8068 = vadd.f32 %v7841, %v8067
      %v8069 = vpop.f32.mrb[0].mxu0
      %v8070 = vpop.f32.mrb[0].mxu0
      %v8071 = vadd.f32 %v7841, %v8070
      %v8072 = vpop.f32.mrb[0].mxu0
      %8073 = vmatprep.mubr.bf16.mxu0 0
      %8074 = vmatmul.mubr.bf16.gmra.mrb[0].mxu0 %v7916
      %v8075 = vpop.f32.mrb[0].mxu0
      %v8076 = vadd.f32 %v7841, %v8075
      %v8077 = vpop.f32.mrb[0].mxu0
      %v8078 = vpop.f32.mrb[0].mxu0
      %v8079 = vadd.f32 %v7841, %v8078
      %v8080 = vpop.f32.mrb[0].mxu0
      %8081 = vdwg.mxu0
      %v8082 = vsub.f32 0.0, %v7956
      %v8083 = vsub.f32 0.0, %v7959
      %v8084 = vsub.f32 0.0, %v7964
      %v8085 = vsub.f32 0.0, %v7967
      %v8086 = vsub.f32 0.0, %v7972
      %v8087 = vsub.f32 0.0, %v7975
      %v8088 = vsub.f32 0.0, %v7980
      %v8089 = vsub.f32 0.0, %v7983
      %v8090 = vsub.f32 0.0, %v7988
      %v8091 = vsub.f32 0.0, %v7991
      %v8092 = vsub.f32 0.0, %v7996
      %v8093 = vsub.f32 0.0, %v7999
      %v8094 = vsub.f32 0.0, %v8004
      %v8095 = vsub.f32 0.0, %v8007
      %v8096 = vsub.f32 0.0, %v8012
      %v8097 = vsub.f32 0.0, %v8015
      %v8098 = vsub.f32 0.0, %v8020
      %v8099 = vsub.f32 0.0, %v8023
      %v8100 = vsub.f32 0.0, %v8028
      %v8101 = vsub.f32 0.0, %v8031
      %v8102 = vsub.f32 0.0, %v8036
      %v8103 = vsub.f32 0.0, %v8039
      %v8104 = vsub.f32 0.0, %v8044
      %v8105 = vsub.f32 0.0, %v8047
      %v8106 = vsub.f32 0.0, %v8052
      %v8107 = vsub.f32 0.0, %v8055
      %v8108 = vsub.f32 0.0, %v8060
      %v8109 = vsub.f32 0.0, %v8063
      %v8110 = vsub.f32 0.0, %v8068
      %v8111 = vsub.f32 0.0, %v8071
      %v8112 = vsub.f32 0.0, %v8076
      %v8113 = vsub.f32 0.0, %v8079
      %v8114 = vmul.f32 %v8082, 1.442695
      %v8115 = vpow.pop %v8114
      %v8116 = vmul.f32 %v8083, 1.442695
      %v8117 = vpow.pop %v8116
      %v8118 = vmul.f32 %v8084, 1.442695
      %v8119 = vpow.pop %v8118
      %v8120 = vmul.f32 %v8085, 1.442695
      %v8121 = vpow.pop %v8120
      %v8122 = vmul.f32 %v8086, 1.442695
      %v8123 = vpow.pop %v8122
      %v8124 = vmul.f32 %v8087, 1.442695
      %v8125 = vpow.pop %v8124
      %v8126 = vmul.f32 %v8088, 1.442695
      %v8127 = vpow.pop %v8126
      %v8128 = vmul.f32 %v8089, 1.442695
      %v8129 = vpow.pop %v8128
      %v8130 = vmul.f32 %v8090, 1.442695
      %v8131 = vpow.pop %v8130
      %v8132 = vmul.f32 %v8091, 1.442695
      %v8133 = vpow.pop %v8132
      %v8134 = vmul.f32 %v8092, 1.442695
      %v8135 = vpow.pop %v8134
      %v8136 = vmul.f32 %v8093, 1.442695
      %v8137 = vpow.pop %v8136
      %v8138 = vmul.f32 %v8094, 1.442695
      %v8139 = vpow.pop %v8138
      %v8140 = vmul.f32 %v8095, 1.442695
      %v8141 = vpow.pop %v8140
      %v8142 = vmul.f32 %v8096, 1.442695
      %v8143 = vpow.pop %v8142
      %v8144 = vmul.f32 %v8097, 1.442695
      %v8145 = vpow.pop %v8144
      %v8146 = vmul.f32 %v8098, 1.442695
      %v8147 = vpow.pop %v8146
      %v8148 = vmul.f32 %v8099, 1.442695
      %v8149 = vpow.pop %v8148
      %v8150 = vmul.f32 %v8100, 1.442695
      %v8151 = vpow.pop %v8150
      %v8152 = vmul.f32 %v8101, 1.442695
      %v8153 = vpow.pop %v8152
      %v8154 = vmul.f32 %v8102, 1.442695
      %v8155 = vpow.pop %v8154
      %v8156 = vmul.f32 %v8103, 1.442695
      %v8157 = vpow.pop %v8156
      %v8158 = vmul.f32 %v8104, 1.442695
      %v8159 = vpow.pop %v8158
      %v8160 = vmul.f32 %v8105, 1.442695
      %v8161 = vpow.pop %v8160
      %v8162 = vmul.f32 %v8106, 1.442695
      %v8163 = vpow.pop %v8162
      %v8164 = vmul.f32 %v8107, 1.442695
      %v8165 = vpow.pop %v8164
      %v8166 = vmul.f32 %v8108, 1.442695
      %v8167 = vpow.pop %v8166
      %v8168 = vmul.f32 %v8109, 1.442695
      %v8169 = vpow.pop %v8168
      %v8170 = vmul.f32 %v8110, 1.442695
      %v8171 = vpow.pop %v8170
      %v8172 = vmul.f32 %v8111, 1.442695
      %v8173 = vpow.pop %v8172
      %v8174 = vmul.f32 %v8112, 1.442695
      %v8175 = vpow.pop %v8174
      %v8176 = vmul.f32 %v8113, 1.442695
      %v8177 = vpow.pop %v8176
      %v8178 = vadd.f32 %v8115, 1.0
      %v8179 = vadd.f32 %v8117, 1.0
      %v8180 = vadd.f32 %v8119, 1.0
      %v8181 = vadd.f32 %v8121, 1.0
      %v8182 = vadd.f32 %v8123, 1.0
      %v8183 = vadd.f32 %v8125, 1.0
      %v8184 = vadd.f32 %v8127, 1.0
      %v8185 = vadd.f32 %v8129, 1.0
      %v8186 = vadd.f32 %v8131, 1.0
      %v8187 = vadd.f32 %v8133, 1.0
      %v8188 = vadd.f32 %v8135, 1.0
      %v8189 = vadd.f32 %v8137, 1.0
      %v8190 = vadd.f32 %v8139, 1.0
      %v8191 = vadd.f32 %v8141, 1.0
      %v8192 = vadd.f32 %v8143, 1.0
      %v8193 = vadd.f32 %v8145, 1.0
      %v8194 = vadd.f32 %v8147, 1.0
      %v8195 = vadd.f32 %v8149, 1.0
      %v8196 = vadd.f32 %v8151, 1.0
      %v8197 = vadd.f32 %v8153, 1.0
      %v8198 = vadd.f32 %v8155, 1.0
      %v8199 = vadd.f32 %v8157, 1.0
      %v8200 = vadd.f32 %v8159, 1.0
      %v8201 = vadd.f32 %v8161, 1.0
      %v8202 = vadd.f32 %v8163, 1.0
      %v8203 = vadd.f32 %v8165, 1.0
      %v8204 = vadd.f32 %v8167, 1.0
      %v8205 = vadd.f32 %v8169, 1.0
      %v8206 = vadd.f32 %v8171, 1.0
      %v8207 = vadd.f32 %v8173, 1.0
      %v8208 = vadd.f32 %v8175, 1.0
      %v8209 = vadd.f32 %v8177, 1.0
      %v8210 = vrcp.pop %v8178
      %v8211 = vrcp.pop %v8179
      %v8212 = vrcp.pop %v8180
      %v8213 = vrcp.pop %v8181
      %v8214 = vrcp.pop %v8182
      %v8215 = vrcp.pop %v8183
      %v8216 = vrcp.pop %v8184
      %v8217 = vrcp.pop %v8185
      %v8218 = vrcp.pop %v8186
      %v8219 = vrcp.pop %v8187
      %v8220 = vrcp.pop %v8188
      %v8221 = vrcp.pop %v8189
      %v8222 = vrcp.pop %v8190
      %v8223 = vrcp.pop %v8191
      %v8224 = vrcp.pop %v8192
      %v8225 = vrcp.pop %v8193
      %v8226 = vrcp.pop %v8194
      %v8227 = vrcp.pop %v8195
      %v8228 = vrcp.pop %v8196
      %v8229 = vrcp.pop %v8197
      %v8230 = vrcp.pop %v8198
      %v8231 = vrcp.pop %v8199
      %v8232 = vrcp.pop %v8200
      %v8233 = vrcp.pop %v8201
      %v8234 = vrcp.pop %v8202
      %v8235 = vrcp.pop %v8203
      %v8236 = vrcp.pop %v8204
      %v8237 = vrcp.pop %v8205
      %v8238 = vrcp.pop %v8206
      %v8239 = vrcp.pop %v8207
      %v8240 = vrcp.pop %v8208
      %v8241 = vrcp.pop %v8209
      %v8242 = vmul.f32 %v7956, %v8210
      %v8243 = vmul.f32 %v7959, %v8211
      %v8244 = vmul.f32 %v7964, %v8212
      %v8245 = vmul.f32 %v7967, %v8213
      %v8246 = vmul.f32 %v7972, %v8214
      %v8247 = vmul.f32 %v7975, %v8215
      %v8248 = vmul.f32 %v7980, %v8216
      %v8249 = vmul.f32 %v7983, %v8217
      %v8250 = vmul.f32 %v7988, %v8218
      %v8251 = vmul.f32 %v7991, %v8219
      %v8252 = vmul.f32 %v7996, %v8220
      %v8253 = vmul.f32 %v7999, %v8221
      %v8254 = vmul.f32 %v8004, %v8222
      %v8255 = vmul.f32 %v8007, %v8223
      %v8256 = vmul.f32 %v8012, %v8224
      %v8257 = vmul.f32 %v8015, %v8225
      %v8258 = vmul.f32 %v8020, %v8226
      %v8259 = vmul.f32 %v8023, %v8227
      %v8260 = vmul.f32 %v8028, %v8228
      %v8261 = vmul.f32 %v8031, %v8229
      %v8262 = vmul.f32 %v8036, %v8230
      %v8263 = vmul.f32 %v8039, %v8231
      %v8264 = vmul.f32 %v8044, %v8232
      %v8265 = vmul.f32 %v8047, %v8233
      %v8266 = vmul.f32 %v8052, %v8234
      %v8267 = vmul.f32 %v8055, %v8235
      %v8268 = vmul.f32 %v8060, %v8236
      %v8269 = vmul.f32 %v8063, %v8237
      %v8270 = vmul.f32 %v8068, %v8238
      %v8271 = vmul.f32 %v8071, %v8239
      %v8272 = vmul.f32 %v8076, %v8240
      %v8273 = vmul.f32 %v8079, %v8241
      %v8274 = vadd.f32 %v4810, %v8242
      %v8275 = vadd.f32 %v4811, %v8243
      %v8276 = vadd.f32 %v4812, %v8244
      %v8277 = vadd.f32 %v4813, %v8245
      %v8278 = vadd.f32 %v4814, %v8246
      %v8279 = vadd.f32 %v4815, %v8247
      %v8280 = vadd.f32 %v4816, %v8248
      %v8281 = vadd.f32 %v4817, %v8249
      %v8282 = vadd.f32 %v4818, %v8250
      %v8283 = vadd.f32 %v4819, %v8251
      %v8284 = vadd.f32 %v4820, %v8252
      %v8285 = vadd.f32 %v4821, %v8253
      %v8286 = vadd.f32 %v4822, %v8254
      %v8287 = vadd.f32 %v4823, %v8255
      %v8288 = vadd.f32 %v4824, %v8256
      %v8289 = vadd.f32 %v4825, %v8257
      %v8290 = vadd.f32 %v4826, %v8258
      %v8291 = vadd.f32 %v4827, %v8259
      %v8292 = vadd.f32 %v4828, %v8260
      %v8293 = vadd.f32 %v4829, %v8261
      %v8294 = vadd.f32 %v4830, %v8262
      %v8295 = vadd.f32 %v4831, %v8263
      %v8296 = vadd.f32 %v4832, %v8264
      %v8297 = vadd.f32 %v4833, %v8265
      %v8298 = vadd.f32 %v4834, %v8266
      %v8299 = vadd.f32 %v4835, %v8267
      %v8300 = vadd.f32 %v4836, %v8268
      %v8301 = vadd.f32 %v4837, %v8269
      %v8302 = vadd.f32 %v4838, %v8270
      %v8303 = vadd.f32 %v4839, %v8271
      %v8304 = vadd.f32 %v4840, %v8272
      %v8305 = vadd.f32 %v4841, %v8273
      %v8306 = vpack.c.bf16 %v8275, %v8274
      %v8307 = vpack.c.bf16 %v8277, %v8276
      %v8308 = vpack.c.bf16 %v8279, %v8278
      %v8309 = vpack.c.bf16 %v8281, %v8280
      %v8310 = vpack.c.bf16 %v8283, %v8282
      %v8311 = vpack.c.bf16 %v8285, %v8284
      %v8312 = vpack.c.bf16 %v8287, %v8286
      %v8313 = vpack.c.bf16 %v8289, %v8288
      %v8314 = vpack.c.bf16 %v8291, %v8290
      %v8315 = vpack.c.bf16 %v8293, %v8292
      %v8316 = vpack.c.bf16 %v8295, %v8294
      %v8317 = vpack.c.bf16 %v8297, %v8296
      %v8318 = vpack.c.bf16 %v8299, %v8298
      %v8319 = vpack.c.bf16 %v8301, %v8300
      %v8320 = vpack.c.bf16 %v8303, %v8302
      %v8321 = vpack.c.bf16 %v8305, %v8304
      %s8322 = scalar_lea.vmem %s5, 12
      %v8323 = vld [vmem:[%s8322] sm:$0xf]
      %v8325 = vsel %vm280, %v8306, 0
      %v8328 = vsel %vm280, %v8307, 0
      %v8331 = vsel %vm280, %v8308, 0
      %v8334 = vsel %vm280, %v8309, 0
      %v8337 = vsel %vm280, %v8310, 0
      %v8340 = vsel %vm280, %v8311, 0
      %v8343 = vsel %vm280, %v8312, 0
      %v8346 = vsel %vm280, %v8313, 0
      %v8349 = vsel %vm280, %v8314, 0
      %v8352 = vsel %vm280, %v8315, 0
      %v8355 = vsel %vm280, %v8316, 0
      %v8358 = vsel %vm280, %v8317, 0
      %v8361 = vsel %vm280, %v8318, 0
      %v8364 = vsel %vm280, %v8319, 0
      %v8367 = vsel %vm280, %v8320, 0
      %v8370 = vsel %vm280, %v8321, 0
      %v8373 = vsel %vm1254, %v8323, 0
      %8375 = vmatprep.subr.bf16.mxu0 0
      %8376 = vmatpush1.bf16.msra.mxu0 %v8373
      %8377 = vmatprep.subr.bf16.mxu0 0
      %8378 = vmatpush1.bf16.msra.mxu0 0
      %8379 = vmatprep.subr.bf16.mxu0 0
      %8380 = vmatpush1.bf16.msra.mxu0 0
      %8381 = vmatprep.subr.bf16.mxu0 0
      %8382 = vmatpush1.bf16.msra.mxu0 0
      %8383 = vmatprep.subr.bf16.mxu0 0
      %8384 = vmatpush1.bf16.msra.mxu0 0
      %8385 = vmatprep.subr.bf16.mxu0 0
      %8386 = vmatpush1.bf16.msra.mxu0 0
      %8387 = vmatprep.subr.bf16.mxu0 0
      %8388 = vmatpush1.bf16.msra.mxu0 0
      %8389 = vmatprep.subr.bf16.mxu0 0
      %8390 = vmatpush1.bf16.msra.mxu0 0
      %8391 = vmatprep.subr.bf16.mxu0 0
      %8392 = vmatpush1.bf16.msra.mxu0 0
      %8393 = vmatprep.subr.bf16.mxu0 0
      %8394 = vmatpush1.bf16.msra.mxu0 0
      %8395 = vmatprep.subr.bf16.mxu0 0
      %8396 = vmatpush1.bf16.msra.mxu0 0
      %8397 = vmatprep.subr.bf16.mxu0 0
      %8398 = vmatpush1.bf16.msra.mxu0 0
      %8399 = vmatprep.subr.bf16.mxu0 0
      %8400 = vmatpush1.bf16.msra.mxu0 0
      %8401 = vmatprep.subr.bf16.mxu0 0
      %8402 = vmatpush1.bf16.msra.mxu0 0
      %8403 = vmatprep.subr.bf16.mxu0 0
      %8404 = vmatpush1.bf16.msra.mxu0 0
      %8405 = vmatprep.subr.bf16.mxu0 0
      %8406 = vmatpush1.bf16.msra.mxu0 0
      %8407 = vmatprep.mubr.bf16.mxu0 0
      %8408 = vmatmul.mubr.bf16.gmra.mrb[0].mxu0 %v8325
      %v8409 = vpop.f32.mrb[0].mxu0
      %v8410 = vadd.f32 0.0, %v8409
      %v8411 = vpop.f32.mrb[0].mxu0
      %v8412 = vpop.f32.mrb[0].mxu0
      %v8413 = vadd.f32 0.0, %v8412
      %v8414 = vpop.f32.mrb[0].mxu0
      %8415 = vmatprep.mubr.bf16.mxu0 0
      %8416 = vmatmul.mubr.bf16.gmra.mrb[0].mxu0 %v8328
      %v8417 = vpop.f32.mrb[0].mxu0
      %v8418 = vadd.f32 0.0, %v8417
      %v8419 = vpop.f32.mrb[0].mxu0
      %v8420 = vpop.f32.mrb[0].mxu0
      %v8421 = vadd.f32 0.0, %v8420
      %v8422 = vpop.f32.mrb[0].mxu0
      %8423 = vmatprep.mubr.bf16.mxu0 0
      %8424 = vmatmul.mubr.bf16.gmra.mrb[0].mxu0 %v8331
      %v8425 = vpop.f32.mrb[0].mxu0
      %v8426 = vadd.f32 0.0, %v8425
      %v8427 = vpop.f32.mrb[0].mxu0
      %v8428 = vpop.f32.mrb[0].mxu0
      %v8429 = vadd.f32 0.0, %v8428
      %v8430 = vpop.f32.mrb[0].mxu0
      %8431 = vmatprep.mubr.bf16.mxu0 0
      %8432 = vmatmul.mubr.bf16.gmra.mrb[0].mxu0 %v8334
      %v8433 = vpop.f32.mrb[0].mxu0
      %v8434 = vadd.f32 0.0, %v8433
      %v8435 = vpop.f32.mrb[0].mxu0
      %v8436 = vpop.f32.mrb[0].mxu0
      %v8437 = vadd.f32 0.0, %v8436
      %v8438 = vpop.f32.mrb[0].mxu0
      %8439 = vmatprep.mubr.bf16.mxu0 0
      %8440 = vmatmul.mubr.bf16.gmra.mrb[0].mxu0 %v8337
      %v8441 = vpop.f32.mrb[0].mxu0
      %v8442 = vadd.f32 0.0, %v8441
      %v8443 = vpop.f32.mrb[0].mxu0
      %v8444 = vpop.f32.mrb[0].mxu0
      %v8445 = vadd.f32 0.0, %v8444
      %v8446 = vpop.f32.mrb[0].mxu0
      %8447 = vmatprep.mubr.bf16.mxu0 0
      %8448 = vmatmul.mubr.bf16.gmra.mrb[0].mxu0 %v8340
      %v8449 = vpop.f32.mrb[0].mxu0
      %v8450 = vadd.f32 0.0, %v8449
      %v8451 = vpop.f32.mrb[0].mxu0
      %v8452 = vpop.f32.mrb[0].mxu0
      %v8453 = vadd.f32 0.0, %v8452
      %v8454 = vpop.f32.mrb[0].mxu0
      %8455 = vmatprep.mubr.bf16.mxu0 0
      %8456 = vmatmul.mubr.bf16.gmra.mrb[0].mxu0 %v8343
      %v8457 = vpop.f32.mrb[0].mxu0
      %v8458 = vadd.f32 0.0, %v8457
      %v8459 = vpop.f32.mrb[0].mxu0
      %v8460 = vpop.f32.mrb[0].mxu0
      %v8461 = vadd.f32 0.0, %v8460
      %v8462 = vpop.f32.mrb[0].mxu0
      %8463 = vmatprep.mubr.bf16.mxu0 0
      %8464 = vmatmul.mubr.bf16.gmra.mrb[0].mxu0 %v8346
      %v8465 = vpop.f32.mrb[0].mxu0
      %v8466 = vadd.f32 0.0, %v8465
      %v8467 = vpop.f32.mrb[0].mxu0
      %v8468 = vpop.f32.mrb[0].mxu0
      %v8469 = vadd.f32 0.0, %v8468
      %v8470 = vpop.f32.mrb[0].mxu0
      %8471 = vmatprep.mubr.bf16.mxu0 0
      %8472 = vmatmul.mubr.bf16.gmra.mrb[0].mxu0 %v8349
      %v8473 = vpop.f32.mrb[0].mxu0
      %v8474 = vadd.f32 0.0, %v8473
      %v8475 = vpop.f32.mrb[0].mxu0
      %v8476 = vpop.f32.mrb[0].mxu0
      %v8477 = vadd.f32 0.0, %v8476
      %v8478 = vpop.f32.mrb[0].mxu0
      %8479 = vmatprep.mubr.bf16.mxu0 0
      %8480 = vmatmul.mubr.bf16.gmra.mrb[0].mxu0 %v8352
      %v8481 = vpop.f32.mrb[0].mxu0
      %v8482 = vadd.f32 0.0, %v8481
      %v8483 = vpop.f32.mrb[0].mxu0
      %v8484 = vpop.f32.mrb[0].mxu0
      %v8485 = vadd.f32 0.0, %v8484
      %v8486 = vpop.f32.mrb[0].mxu0
      %8487 = vmatprep.mubr.bf16.mxu0 0
      %8488 = vmatmul.mubr.bf16.gmra.mrb[0].mxu0 %v8355
      %v8489 = vpop.f32.mrb[0].mxu0
      %v8490 = vadd.f32 0.0, %v8489
      %v8491 = vpop.f32.mrb[0].mxu0
      %v8492 = vpop.f32.mrb[0].mxu0
      %v8493 = vadd.f32 0.0, %v8492
      %v8494 = vpop.f32.mrb[0].mxu0
      %8495 = vmatprep.mubr.bf16.mxu0 0
      %8496 = vmatmul.mubr.bf16.gmra.mrb[0].mxu0 %v8358
      %v8497 = vpop.f32.mrb[0].mxu0
      %v8498 = vadd.f32 0.0, %v8497
      %v8499 = vpop.f32.mrb[0].mxu0
      %v8500 = vpop.f32.mrb[0].mxu0
      %v8501 = vadd.f32 0.0, %v8500
      %v8502 = vpop.f32.mrb[0].mxu0
      %8503 = vmatprep.mubr.bf16.mxu0 0
      %8504 = vmatmul.mubr.bf16.gmra.mrb[0].mxu0 %v8361
      %v8505 = vpop.f32.mrb[0].mxu0
      %v8506 = vadd.f32 0.0, %v8505
      %v8507 = vpop.f32.mrb[0].mxu0
      %v8508 = vpop.f32.mrb[0].mxu0
      %v8509 = vadd.f32 0.0, %v8508
      %v8510 = vpop.f32.mrb[0].mxu0
      %8511 = vmatprep.mubr.bf16.mxu0 0
      %8512 = vmatmul.mubr.bf16.gmra.mrb[0].mxu0 %v8364
      %v8513 = vpop.f32.mrb[0].mxu0
      %v8514 = vadd.f32 0.0, %v8513
      %v8515 = vpop.f32.mrb[0].mxu0
      %v8516 = vpop.f32.mrb[0].mxu0
      %v8517 = vadd.f32 0.0, %v8516
      %v8518 = vpop.f32.mrb[0].mxu0
      %8519 = vmatprep.mubr.bf16.mxu0 0
      %8520 = vmatmul.mubr.bf16.gmra.mrb[0].mxu0 %v8367
      %v8521 = vpop.f32.mrb[0].mxu0
      %v8522 = vadd.f32 0.0, %v8521
      %v8523 = vpop.f32.mrb[0].mxu0
      %v8524 = vpop.f32.mrb[0].mxu0
      %v8525 = vadd.f32 0.0, %v8524
      %v8526 = vpop.f32.mrb[0].mxu0
      %8527 = vmatprep.mubr.bf16.mxu0 0
      %8528 = vmatmul.mubr.bf16.gmra.mrb[0].mxu0 %v8370
      %v8529 = vpop.f32.mrb[0].mxu0
      %v8530 = vadd.f32 0.0, %v8529
      %v8531 = vpop.f32.mrb[0].mxu0
      %v8532 = vpop.f32.mrb[0].mxu0
      %v8533 = vadd.f32 0.0, %v8532
      %v8534 = vpop.f32.mrb[0].mxu0
      %8535 = vdwg.mxu0
      %v8536 = vadd.f32 %v5072, %v8410
      %v8537 = vadd.f32 %v5073, %v8413
      %v8538 = vadd.f32 %v5074, %v8418
      %v8539 = vadd.f32 %v5075, %v8421
      %v8540 = vadd.f32 %v5076, %v8426
      %v8541 = vadd.f32 %v5077, %v8429
      %v8542 = vadd.f32 %v5078, %v8434
      %v8543 = vadd.f32 %v5079, %v8437
      %v8544 = vadd.f32 %v5080, %v8442
      %v8545 = vadd.f32 %v5081, %v8445
      %v8546 = vadd.f32 %v5082, %v8450
      %v8547 = vadd.f32 %v5083, %v8453
      %v8548 = vadd.f32 %v5084, %v8458
      %v8549 = vadd.f32 %v5085, %v8461
      %v8550 = vadd.f32 %v5086, %v8466
      %v8551 = vadd.f32 %v5087, %v8469
      %v8552 = vadd.f32 %v5088, %v8474
      %v8553 = vadd.f32 %v5089, %v8477
      %v8554 = vadd.f32 %v5090, %v8482
      %v8555 = vadd.f32 %v5091, %v8485
      %v8556 = vadd.f32 %v5092, %v8490
      %v8557 = vadd.f32 %v5093, %v8493
      %v8558 = vadd.f32 %v5094, %v8498
      %v8559 = vadd.f32 %v5095, %v8501
      %v8560 = vadd.f32 %v5096, %v8506
      %v8561 = vadd.f32 %v5097, %v8509
      %v8562 = vadd.f32 %v5098, %v8514
      %v8563 = vadd.f32 %v5099, %v8517
      %v8564 = vadd.f32 %v5100, %v8522
      %v8565 = vadd.f32 %v5101, %v8525
      %v8566 = vadd.f32 %v5102, %v8530
      %v8567 = vadd.f32 %v5103, %v8533
      %v8568 = vld [vmem:[%s6] sm:$0x1]
      %v8570 = vlaneseq
      %v8571 = vshrl.u32 %v8570, 7
      %v8572 = vsub.s32 0, %v8571
      %v8573 = vrot.slane %v8568, %v8572
      %v8575 = vadd.f32 %v8536, %v8573
      %v8576 = vadd.f32 %v8537, %v8573
      %v8577 = vadd.f32 %v8538, %v8573
      %v8578 = vadd.f32 %v8539, %v8573
      %v8579 = vadd.f32 %v8540, %v8573
      %v8580 = vadd.f32 %v8541, %v8573
      %v8581 = vadd.f32 %v8542, %v8573
      %v8582 = vadd.f32 %v8543, %v8573
      %v8583 = vadd.f32 %v8544, %v8573
      %v8584 = vadd.f32 %v8545, %v8573
      %v8585 = vadd.f32 %v8546, %v8573
      %v8586 = vadd.f32 %v8547, %v8573
      %v8587 = vadd.f32 %v8548, %v8573
      %v8588 = vadd.f32 %v8549, %v8573
      %v8589 = vadd.f32 %v8550, %v8573
      %v8590 = vadd.f32 %v8551, %v8573
      %v8591 = vadd.f32 %v8552, %v8573
      %v8592 = vadd.f32 %v8553, %v8573
      %v8593 = vadd.f32 %v8554, %v8573
      %v8594 = vadd.f32 %v8555, %v8573
      %v8595 = vadd.f32 %v8556, %v8573
      %v8596 = vadd.f32 %v8557, %v8573
      %v8597 = vadd.f32 %v8558, %v8573
      %v8598 = vadd.f32 %v8559, %v8573
      %v8599 = vadd.f32 %v8560, %v8573
      %v8600 = vadd.f32 %v8561, %v8573
      %v8601 = vadd.f32 %v8562, %v8573
      %v8602 = vadd.f32 %v8563, %v8573
      %v8603 = vadd.f32 %v8564, %v8573
      %v8604 = vadd.f32 %v8565, %v8573
      %v8605 = vadd.f32 %v8566, %v8573
      %v8606 = vadd.f32 %v8567, %v8573
      %v8607 = vsub.f32 0.0, %v8575
      %v8608 = vsub.f32 0.0, %v8576
      %v8609 = vsub.f32 0.0, %v8577
      %v8610 = vsub.f32 0.0, %v8578
      %v8611 = vsub.f32 0.0, %v8579
      %v8612 = vsub.f32 0.0, %v8580
      %v8613 = vsub.f32 0.0, %v8581
      %v8614 = vsub.f32 0.0, %v8582
      %v8615 = vsub.f32 0.0, %v8583
      %v8616 = vsub.f32 0.0, %v8584
      %v8617 = vsub.f32 0.0, %v8585
      %v8618 = vsub.f32 0.0, %v8586
      %v8619 = vsub.f32 0.0, %v8587
      %v8620 = vsub.f32 0.0, %v8588
      %v8621 = vsub.f32 0.0, %v8589
      %v8622 = vsub.f32 0.0, %v8590
      %v8623 = vsub.f32 0.0, %v8591
      %v8624 = vsub.f32 0.0, %v8592
      %v8625 = vsub.f32 0.0, %v8593
      %v8626 = vsub.f32 0.0, %v8594
      %v8627 = vsub.f32 0.0, %v8595
      %v8628 = vsub.f32 0.0, %v8596
      %v8629 = vsub.f32 0.0, %v8597
      %v8630 = vsub.f32 0.0, %v8598
      %v8631 = vsub.f32 0.0, %v8599
      %v8632 = vsub.f32 0.0, %v8600
      %v8633 = vsub.f32 0.0, %v8601
      %v8634 = vsub.f32 0.0, %v8602
      %v8635 = vsub.f32 0.0, %v8603
      %v8636 = vsub.f32 0.0, %v8604
      %v8637 = vsub.f32 0.0, %v8605
      %v8638 = vsub.f32 0.0, %v8606
      %v8639 = vmul.f32 %v8607, 1.442695
      %v8640 = vpow.pop %v8639
      %v8641 = vmul.f32 %v8608, 1.442695
      %v8642 = vpow.pop %v8641
      %v8643 = vmul.f32 %v8609, 1.442695
      %v8644 = vpow.pop %v8643
      %v8645 = vmul.f32 %v8610, 1.442695
      %v8646 = vpow.pop %v8645
      %v8647 = vmul.f32 %v8611, 1.442695
      %v8648 = vpow.pop %v8647
      %v8649 = vmul.f32 %v8612, 1.442695
      %v8650 = vpow.pop %v8649
      %v8651 = vmul.f32 %v8613, 1.442695
      %v8652 = vpow.pop %v8651
      %v8653 = vmul.f32 %v8614, 1.442695
      %v8654 = vpow.pop %v8653
      %v8655 = vmul.f32 %v8615, 1.442695
      %v8656 = vpow.pop %v8655
      %v8657 = vmul.f32 %v8616, 1.442695
      %v8658 = vpow.pop %v8657
      %v8659 = vmul.f32 %v8617, 1.442695
      %v8660 = vpow.pop %v8659
      %v8661 = vmul.f32 %v8618, 1.442695
      %v8662 = vpow.pop %v8661
      %v8663 = vmul.f32 %v8619, 1.442695
      %v8664 = vpow.pop %v8663
      %v8665 = vmul.f32 %v8620, 1.442695
      %v8666 = vpow.pop %v8665
      %v8667 = vmul.f32 %v8621, 1.442695
      %v8668 = vpow.pop %v8667
      %v8669 = vmul.f32 %v8622, 1.442695
      %v8670 = vpow.pop %v8669
      %v8671 = vmul.f32 %v8623, 1.442695
      %v8672 = vpow.pop %v8671
      %v8673 = vmul.f32 %v8624, 1.442695
      %v8674 = vpow.pop %v8673
      %v8675 = vmul.f32 %v8625, 1.442695
      %v8676 = vpow.pop %v8675
      %v8677 = vmul.f32 %v8626, 1.442695
      %v8678 = vpow.pop %v8677
      %v8679 = vmul.f32 %v8627, 1.442695
      %v8680 = vpow.pop %v8679
      %v8681 = vmul.f32 %v8628, 1.442695
      %v8682 = vpow.pop %v8681
      %v8683 = vmul.f32 %v8629, 1.442695
      %v8684 = vpow.pop %v8683
      %v8685 = vmul.f32 %v8630, 1.442695
      %v8686 = vpow.pop %v8685
      %v8687 = vmul.f32 %v8631, 1.442695
      %v8688 = vpow.pop %v8687
      %v8689 = vmul.f32 %v8632, 1.442695
      %v8690 = vpow.pop %v8689
      %v8691 = vmul.f32 %v8633, 1.442695
      %v8692 = vpow.pop %v8691
      %v8693 = vmul.f32 %v8634, 1.442695
      %v8694 = vpow.pop %v8693
      %v8695 = vmul.f32 %v8635, 1.442695
      %v8696 = vpow.pop %v8695
      %v8697 = vmul.f32 %v8636, 1.442695
      %v8698 = vpow.pop %v8697
      %v8699 = vmul.f32 %v8637, 1.442695
      %v8700 = vpow.pop %v8699
      %v8701 = vmul.f32 %v8638, 1.442695
      %v8702 = vpow.pop %v8701
      %v8703 = vadd.f32 %v8640, 1.0
      %v8704 = vadd.f32 %v8642, 1.0
      %v8705 = vadd.f32 %v8644, 1.0
      %v8706 = vadd.f32 %v8646, 1.0
      %v8707 = vadd.f32 %v8648, 1.0
      %v8708 = vadd.f32 %v8650, 1.0
      %v8709 = vadd.f32 %v8652, 1.0
      %v8710 = vadd.f32 %v8654, 1.0
      %v8711 = vadd.f32 %v8656, 1.0
      %v8712 = vadd.f32 %v8658, 1.0
      %v8713 = vadd.f32 %v8660, 1.0
      %v8714 = vadd.f32 %v8662, 1.0
      %v8715 = vadd.f32 %v8664, 1.0
      %v8716 = vadd.f32 %v8666, 1.0
      %v8717 = vadd.f32 %v8668, 1.0
      %v8718 = vadd.f32 %v8670, 1.0
      %v8719 = vadd.f32 %v8672, 1.0
      %v8720 = vadd.f32 %v8674, 1.0
      %v8721 = vadd.f32 %v8676, 1.0
      %v8722 = vadd.f32 %v8678, 1.0
      %v8723 = vadd.f32 %v8680, 1.0
      %v8724 = vadd.f32 %v8682, 1.0
      %v8725 = vadd.f32 %v8684, 1.0
      %v8726 = vadd.f32 %v8686, 1.0
      %v8727 = vadd.f32 %v8688, 1.0
      %v8728 = vadd.f32 %v8690, 1.0
      %v8729 = vadd.f32 %v8692, 1.0
      %v8730 = vadd.f32 %v8694, 1.0
      %v8731 = vadd.f32 %v8696, 1.0
      %v8732 = vadd.f32 %v8698, 1.0
      %v8733 = vadd.f32 %v8700, 1.0
      %v8734 = vadd.f32 %v8702, 1.0
      %v8735 = vrcp.pop %v8703
      %v8736 = vrcp.pop %v8704
      %v8737 = vrcp.pop %v8705
      %v8738 = vrcp.pop %v8706
      %v8739 = vrcp.pop %v8707
      %v8740 = vrcp.pop %v8708
      %v8741 = vrcp.pop %v8709
      %v8742 = vrcp.pop %v8710
      %v8743 = vrcp.pop %v8711
      %v8744 = vrcp.pop %v8712
      %v8745 = vrcp.pop %v8713
      %v8746 = vrcp.pop %v8714
      %v8747 = vrcp.pop %v8715
      %v8748 = vrcp.pop %v8716
      %v8749 = vrcp.pop %v8717
      %v8750 = vrcp.pop %v8718
      %v8751 = vrcp.pop %v8719
      %v8752 = vrcp.pop %v8720
      %v8753 = vrcp.pop %v8721
      %v8754 = vrcp.pop %v8722
      %v8755 = vrcp.pop %v8723
      %v8756 = vrcp.pop %v8724
      %v8757 = vrcp.pop %v8725
      %v8758 = vrcp.pop %v8726
      %v8759 = vrcp.pop %v8727
      %v8760 = vrcp.pop %v8728
      %v8761 = vrcp.pop %v8729
      %v8762 = vrcp.pop %v8730
      %v8763 = vrcp.pop %v8731
      %v8764 = vrcp.pop %v8732
      %v8765 = vrcp.pop %v8733
      %v8766 = vrcp.pop %v8734
      %v8767 = vmul.f32 %v8575, %v8735
      %v8768 = vmul.f32 %v8576, %v8736
      %v8769 = vmul.f32 %v8577, %v8737
      %v8770 = vmul.f32 %v8578, %v8738
      %v8771 = vmul.f32 %v8579, %v8739
      %v8772 = vmul.f32 %v8580, %v8740
      %v8773 = vmul.f32 %v8581, %v8741
      %v8774 = vmul.f32 %v8582, %v8742
      %v8775 = vmul.f32 %v8583, %v8743
      %v8776 = vmul.f32 %v8584, %v8744
      %v8777 = vmul.f32 %v8585, %v8745
      %v8778 = vmul.f32 %v8586, %v8746
      %v8779 = vmul.f32 %v8587, %v8747
      %v8780 = vmul.f32 %v8588, %v8748
      %v8781 = vmul.f32 %v8589, %v8749
      %v8782 = vmul.f32 %v8590, %v8750
      %v8783 = vmul.f32 %v8591, %v8751
      %v8784 = vmul.f32 %v8592, %v8752
      %v8785 = vmul.f32 %v8593, %v8753
      %v8786 = vmul.f32 %v8594, %v8754
      %v8787 = vmul.f32 %v8595, %v8755
      %v8788 = vmul.f32 %v8596, %v8756
      %v8789 = vmul.f32 %v8597, %v8757
      %v8790 = vmul.f32 %v8598, %v8758
      %v8791 = vmul.f32 %v8599, %v8759
      %v8792 = vmul.f32 %v8600, %v8760
      %v8793 = vmul.f32 %v8601, %v8761
      %v8794 = vmul.f32 %v8602, %v8762
      %v8795 = vmul.f32 %v8603, %v8763
      %v8796 = vmul.f32 %v8604, %v8764
      %v8797 = vmul.f32 %v8605, %v8765
      %v8798 = vmul.f32 %v8606, %v8766
      %8799 = vst.msk [vmem:[%s278] sm:$0xff] %vm399, %v8767
      %8800 = vst.msk [vmem:[%s278 + $0x8] sm:$0xff] %vm399, %v8768
      %8801 = vst.msk [vmem:[%s278 + $0x10] sm:$0xff] %vm399, %v8769
      %8802 = vst.msk [vmem:[%s278 + $0x18] sm:$0xff] %vm399, %v8770
      %8803 = vst.msk [vmem:[%s278 + $0x20] sm:$0xff] %vm399, %v8771
      %8804 = vst.msk [vmem:[%s278 + $0x28] sm:$0xff] %vm399, %v8772
      %8805 = vst.msk [vmem:[%s278 + $0x30] sm:$0xff] %vm399, %v8773
      %8806 = vst.msk [vmem:[%s278 + $0x38] sm:$0xff] %vm399, %v8774
      %8807 = vst.msk [vmem:[%s278 + $0x40] sm:$0xff] %vm399, %v8775
      %8808 = vst.msk [vmem:[%s278 + $0x48] sm:$0xff] %vm399, %v8776
      %8809 = vst.msk [vmem:[%s278 + $0x50] sm:$0xff] %vm399, %v8777
      %8810 = vst.msk [vmem:[%s278 + $0x58] sm:$0xff] %vm399, %v8778
      %8811 = vst.msk [vmem:[%s278 + $0x60] sm:$0xff] %vm399, %v8779
      %8812 = vst.msk [vmem:[%s278 + $0x68] sm:$0xff] %vm399, %v8780
      %8813 = vst.msk [vmem:[%s278 + $0x70] sm:$0xff] %vm399, %v8781
      %8814 = vst.msk [vmem:[%s278 + $0x78] sm:$0xff] %vm399, %v8782
      %8815 = vst.msk [vmem:[%s278 + $0x80] sm:$0xff] %vm399, %v8783
      %8816 = vst.msk [vmem:[%s278 + $0x88] sm:$0xff] %vm399, %v8784
      %8817 = vst.msk [vmem:[%s278 + $0x90] sm:$0xff] %vm399, %v8785
      %8818 = vst.msk [vmem:[%s278 + $0x98] sm:$0xff] %vm399, %v8786
      %8819 = vst.msk [vmem:[%s278 + $0xa0] sm:$0xff] %vm399, %v8787
      %8820 = vst.msk [vmem:[%s278 + $0xa8] sm:$0xff] %vm399, %v8788
      %8821 = vst.msk [vmem:[%s278 + $0xb0] sm:$0xff] %vm399, %v8789
      %8822 = vst.msk [vmem:[%s278 + $0xb8] sm:$0xff] %vm399, %v8790
      %8823 = vst.msk [vmem:[%s278 + $0xc0] sm:$0xff] %vm399, %v8791
      %8824 = vst.msk [vmem:[%s278 + $0xc8] sm:$0xff] %vm399, %v8792
      %8825 = vst.msk [vmem:[%s278 + $0xd0] sm:$0xff] %vm399, %v8793
      %8826 = vst.msk [vmem:[%s278 + $0xd8] sm:$0xff] %vm399, %v8794
      %8827 = vst.msk [vmem:[%s278 + $0xe0] sm:$0xff] %vm399, %v8795
      %8828 = vst.msk [vmem:[%s278 + $0xe8] sm:$0xff] %vm399, %v8796
      %8829 = vst.msk [vmem:[%s278 + $0xf0] sm:$0xff] %vm399, %v8797
      %8830 = vst.msk [vmem:[%s278 + $0xf8] sm:$0xff] %vm399, %v8798
      %p8831 = scmp.lt.s32.totalorder %s18, 1
      %s8832 = scalar_select %p8831, %s18, 1
      %s8833 = smul.addr %s8832, 32
      %s8834 = smul.addr %s8833, 8
      %s8835 = scalar_lea.vmem %s7, %s8834
      // Predicated region
      $region49: #{csp_forward.1} parent=47 // pred_check
        %p8836 = pneg %p188
      $region50: #{csp_forward.1} parent=47 // pred_check_branch
        %8838 = sbr.rel (%p8836) target = $region52
      $region51: #{csp_forward.1} parent=47 // pred_region
        _
      $region52: #{csp_forward.1} parent=47 // pred_fallthru
        _
    $region48: #{csp_forward.1} parent=5 // pred_fallthru
      _
    %p8839 = scmp.le.s32.totalorder 2, %s13
    // Predicated region
    $region53: #{csp_forward.1} parent=5 // pred_check
      %p8840 = pneg %p8839
    $region54: #{csp_forward.1} parent=5 // pred_check_branch
      %8842 = sbr.rel (%p8840) target = $region56
    $region55: #{csp_forward.1} parent=5 // pred_region
      %s8843 = ssub.s32 %s13, 2
      // Predicated region
      $region57: #{csp_forward.1} parent=55 // pred_check
        %p8844 = pneg %p194
      $region58: #{csp_forward.1} parent=55 // pred_check_branch
        %8846 = sbr.rel (%p8844) target = $region60
      $region59: #{csp_forward.1} parent=55 // pred_region
        %p8847 = scmp.lt.s32.totalorder %s19, 1
        %s8848 = scalar_select %p8847, %s19, 1
        %s8849 = smul.addr %s8848, 32
        %s8850 = smul.addr %s8849, 8
        %s8851 = scalar_lea.vmem %s7, %s8850
      $region60: #{csp_forward.1} parent=55 // pred_fallthru
        _
    $region56: #{csp_forward.1} parent=5 // pred_fallthru
      _
  $region6: #{csp_forward.1} parent=0 // loop_footer
    %s17 = sadd.s32 1, %s13
  $region7: #{csp_forward.1} parent=0 // loop_footer_branch
    %12 = sbr.rel target = $region3
  $region8: #{csp_forward.1} parent=0 // loop_exit
    _

</llo_original>
